<compile_context>
chip_gen: v5e
topology: v5e:2x2
jax: 0.10.0
libtpu: 0.0.40
codegen_flags: <defaults>
</compile_context>

<pallas_src>
import functools

import numpy as np
import jax
import jax.numpy as jnp
from jax import lax
from jax.experimental import pallas as pl
from jax.experimental.pallas import tpu as pltpu

LANES = 128


def _pad128(m):
    return ((m + LANES - 1) // LANES) * LANES


# --------------------------------------------------------------------------------------
# Host-side constant builders (plain numpy): conv boundary masks and 0/1 selection
# matrices for pooling / global max. These are compile-time constants of the geometry.
# --------------------------------------------------------------------------------------
def _conv_tap_masks(n, h, w, k, m_pad):
    """(k*k, m_pad) f32 {0,1}: validity of each conv tap at every flattened (n,y,x)."""
    p = k // 2
    m = np.arange(n * h * w)
    y = (m // w) % h
    x = m % w
    rows = []
    for dy in range(k):
        for dx in range(k):
            oy, ox = dy - p, dx - p
            valid = (y + oy >= 0) & (y + oy < h) & (x + ox >= 0) & (x + ox < w)
            row = np.zeros((m_pad,), np.float32)
            row[: m.size] = valid.astype(np.float32)
            rows.append(row)
    return np.stack(rows, axis=0)


def _pool_selector(n, h, w, m_in_pad, m_out_pad):
    """0/1 matrix gathering the top-left corner of every 2x2 window into a compact layout."""
    ho, wo = h // 2, w // 2
    s = np.zeros((m_in_pad, m_out_pad), np.float32)
    for b in range(n):
        for yo in range(ho):
            for xo in range(wo):
                mo = (b * ho + yo) * wo + xo
                mi = (b * h + 2 * yo) * w + 2 * xo
                s[mi, mo] = 1.0
    return s


def _gmax_selectors(n, s_spatial, m_in_pad):
    """(s_spatial, m_in_pad, n): E_k picks spatial position k of every image (exact 0/1)."""
    e = np.zeros((s_spatial, m_in_pad, n), np.float32)
    for k in range(s_spatial):
        for b in range(n):
            e[k, b * s_spatial + k, b] = 1.0
    return e


# --------------------------------------------------------------------------------------
# In-kernel helpers. Activation layout: (channels, MP) with MP = pad128(N*H*W); the
# flattened (n, y, x) spatial index lives on the lane axis (lane-dense compute).
# --------------------------------------------------------------------------------------
def _dense(a, w_ref, b_ref, relu):
    """1x1 conv / linear: W @ a + b (+ ReLU)."""
    y = jnp.dot(w_ref[...], a, preferred_element_type=jnp.float32) + b_ref[...]
    return jnp.maximum(y, 0.0) if relu else y


def _conv_same(a, w_ref, b_ref, mask_ref, w_img, k, relu):
    """'same' kxk conv as a sum over taps: lane-roll + boundary mask + MXU GEMM per tap."""
    _, mp = a.shape
    p = k // 2
    acc = None
    t = 0
    for dy in range(k):
        for dx in range(k):
            s = (dy - p) * w_img + (dx - p)          # flat-index offset of this tap
            xs = a if s == 0 else pltpu.roll(a, shift=(-s) % mp, axis=1)
            xm = xs * mask_ref[pl.ds(t, 1), :]        # zero out-of-image contributions
            contrib = jnp.dot(w_ref[t], xm, preferred_element_type=jnp.float32)
            acc = contrib if acc is None else acc + contrib
            t += 1
    acc = acc + b_ref[...]
    return jnp.maximum(acc, 0.0) if relu else acc


def _pool2x2(a, sel_ref, w_img):
    """2x2/stride-2 max pool: window max via lane rolls, then exact 0/1 selection matmul."""
    _, mp = a.shape
    p = a
    for s in (1, w_img, w_img + 1):
        p = jnp.maximum(p, pltpu.roll(a, shift=(mp - s) % mp, axis=1))
    return jnp.dot(p, sel_ref[...], preferred_element_type=jnp.float32)


def _global_max(a, e_ref):
    """Global spatial max per image: max over exact column-selection matmuls."""
    s = e_ref.shape[0]
    out = jnp.dot(a, e_ref[0], preferred_element_type=jnp.float32)
    for k in range(1, s):
        out = jnp.maximum(out, jnp.dot(a, e_ref[k], preferred_element_type=jnp.float32))
    return out


# --------------------------------------------------------------------------------------
# Fused forward: builds a static "plan" + operand list at trace time, then runs one
# pallas_call that executes the entire network with every operand resident in VMEM.
# --------------------------------------------------------------------------------------
def fused_resnet_forward(x_nchw, params, *, in_channels, structure, proj_structure):
    n, c0, h, w = x_nchw.shape
    assert c0 == in_channels and h % 4 == 0 and w % 4 == 0

    operands = []
    steps = []

    def add_op(arr):
        operands.append(arr)
        return len(operands) - 1

    # operand 0: input activations in (C, MP) layout (NCHW -> C,N,H,W -> flatten spatial)
    m = n * h * w
    mp = _pad128(m)
    x_cm = jnp.transpose(x_nchw, (1, 0, 2, 3)).reshape(in_channels, m).astype(jnp.float32)
    if mp != m:
        x_cm = jnp.pad(x_cm, ((0, 0), (0, mp - m)))
    add_op(x_cm)

    def add_conv(cp, k, relu, h_cur, w_cur):
        widx = add_op(cp["w"])
        bidx = add_op(cp["b"])
        midx = add_op(jnp.asarray(
            _conv_tap_masks(n, h_cur, w_cur, k, _pad128(n * h_cur * w_cur))))
        steps.append(("conv", widx, bidx, midx, w_cur, k, relu))

    def add_dense(w_mat, b_vec, relu):
        widx = add_op(w_mat)
        bidx = add_op(b_vec)
        steps.append(("dense", widx, bidx, relu))

    def add_pool(h_cur, w_cur):
        sidx = add_op(jnp.asarray(_pool_selector(
            n, h_cur, w_cur,
            _pad128(n * h_cur * w_cur),
            _pad128(n * (h_cur // 2) * (w_cur // 2)))))
        steps.append(("pool", sidx, w_cur))

    # ---- backbone: input layer (7x7 conv + ReLU, 3x3 conv + ReLU), first 2x2 pooling
    add_conv(params["in_conv1"], 7, True, h, w)
    add_conv(params["in_conv2"], 3, True, h, w)
    add_pool(h, w)
    h, w = h // 2, w // 2

    # ---- backbone stages: residual blocks + 2x2 maxpool
    prev = structure[0][0]
    for (inp, inter, k, _n_rep), blocks in zip(structure, params["stages"]):
        cin = prev
        for blk in blocks:
            steps.append(("save",))
            add_dense(blk["w1"]["w"][0], blk["w1"]["b"], True)        # 1x1: cin -> inter
            add_conv(blk["w2"], k, True, h, w)                        # kxk: inter -> inter
            add_dense(blk["w3"]["w"][0], blk["w3"]["b"], False)       # 1x1: inter -> cin
            steps.append(("res_add", cin == inp))                     # +identity (+ReLU if no proj)
            if cin != inp:
                add_dense(blk["wp"]["w"][0], blk["wp"]["b"], True)    # 1x1 proj: cin -> inp, ReLU
            cin = inp
        prev = inp
        add_pool(h, w)
        h, w = h // 2, w // 2

    # ---- projection head: global spatial max then Linear(+ReLU)... Linear (norm_fn = Identity)
    eidx = add_op(jnp.asarray(_gmax_selectors(n, h * w, _pad128(n * h * w))))
    steps.append(("gmax", eidx))
    for i, lp in enumerate(params["proj"]):
        add_dense(lp["w"], lp["b"], i < len(params["proj"]) - 1)

    d_out = proj_structure[-1]

    def kernel(*refs):
        in_refs, o_ref = refs[:-1], refs[-1]
        a = in_refs[0][...]
        saved = []
        for st in steps:
            kind = st[0]
            if kind == "conv":
                _, widx, bidx, midx, w_img, kk, relu = st
                a = _conv_same(a, in_refs[widx], in_refs[bidx], in_refs[midx], w_img, kk, relu)
            elif kind == "dense":
                _, widx, bidx, relu = st
                a = _dense(a, in_refs[widx], in_refs[bidx], relu)
            elif kind == "pool":
                _, sidx, w_img = st
                a = _pool2x2(a, in_refs[sidx], w_img)
            elif kind == "save":
                saved.append(a)
            elif kind == "res_add":
                _, relu = st
                a = a + saved.pop()
                if relu:
                    a = jnp.maximum(a, 0.0)
            elif kind == "gmax":
                _, gidx = st
                a = _global_max(a, in_refs[gidx])
        o_ref[...] = a  # (d_out, N)

    out_t = pl.pallas_call(
        kernel,
        out_shape=jax.ShapeDtypeStruct((d_out, n), jnp.float32),
        in_specs=[pl.BlockSpec(memory_space=pltpu.MemorySpace.VMEM)] * len(operands),
        out_specs=pl.BlockSpec(memory_space=pltpu.MemorySpace.VMEM),
    )(*operands)
    return out_t.T  # tiny (d_out, N) -> (N, d_out) layout plumbing outside the kernel


# --------------------------------------------------------------------------------------
# Parameters (stored directly in kernel-ready layout: conv w = (k*k, cout, cin), b=(cout,1))
# --------------------------------------------------------------------------------------
def init_params(key, in_channels, structure, proj_structure):
    keys = iter(jax.random.split(key, 64))

    def conv_p(k, cin, cout):
        k1, k2 = jax.random.split(next(keys))
        scale = 1.0 / float(np.sqrt(k * k * cin))
        return {"w": jax.random.normal(k1, (k * k, cout, cin), jnp.float32) * scale,
                "b": jax.random.normal(k2, (cout, 1), jnp.float32) * scale}

    def linear_p(din, dout):
        k1, k2 = jax.random.split(next(keys))
        scale = 1.0 / float(np.sqrt(din))
        return {"w": jax.random.normal(k1, (dout, din), jnp.float32) * scale,
                "b": jax.random.normal(k2, (dout, 1), jnp.float32) * scale}

    f = structure[0][0]
    params = {"in_conv1": conv_p(7, in_channels, f),
              "in_conv2": conv_p(3, f, f),
              "stages": [], "proj": []}
    prev = f
    for (inp, inter, k, n_rep) in structure:
        blocks = []
        cin = prev
        for _ in range(n_rep):
            blk = {"w1": conv_p(1, cin, inter),
                   "w2": conv_p(k, inter, inter),
                   "w3": conv_p(1, inter, cin)}
            if cin != inp:
                blk["wp"] = conv_p(1, cin, inp)
            blocks.append(blk)
            cin = inp
        params["stages"].append(blocks)
        prev = inp
    d = prev
    for fd in proj_structure:
        params["proj"].append(linear_p(d, fd))
        d = fd
    return params


# --------------------------------------------------------------------------------------
# Plain-JAX reference of the same architecture (for an in-script correctness check).
# --------------------------------------------------------------------------------------
def reference_forward(x_nchw, params, *, structure):
    hp = lax.Precision.HIGHEST
    x = jnp.transpose(x_nchw, (0, 2, 3, 1))  # NHWC

    def conv_ref(x, cp, k, relu):
        _, cout, cin = cp["w"].shape
        w_hwio = jnp.transpose(cp["w"].reshape(k, k, cout, cin), (0, 1, 3, 2))
        y = lax.conv_general_dilated(x, w_hwio, window_strides=(1, 1), padding="SAME",
                                     dimension_numbers=("NHWC", "HWIO", "NHWC"),
                                     precision=hp)
        y = y + cp["b"][:, 0]
        return jnp.maximum(y, 0.0) if relu else y

    def dense_ref(x, cp, relu):  # 1x1 conv
        y = jnp.einsum("nhwc,oc->nhwo", x, cp["w"][0], precision=hp) + cp["b"][:, 0]
        return jnp.maximum(y, 0.0) if relu else y

    def pool_ref(x):
        return lax.reduce_window(x, -jnp.inf, lax.max, (1, 2, 2, 1), (1, 2, 2, 1), "VALID")

    x = conv_ref(x, params["in_conv1"], 7, True)
    x = conv_ref(x, params["in_conv2"], 3, True)
    x = pool_ref(x)
    for (inp, inter, k, _n_rep), blocks in zip(structure, params["stages"]):
        for blk in blocks:
            idn = x
            t = dense_ref(x, blk["w1"], True)
            t = conv_ref(t, blk["w2"], k, True)
            t = dense_ref(t, blk["w3"], False)
            z = t + idn
            x = dense_ref(z, blk["wp"], True) if "wp" in blk else jnp.maximum(z, 0.0)
        x = pool_ref(x)

    nb, hh, ww, cc = x.shape
    v = jnp.max(x.reshape(nb, hh * ww, cc), axis=1)
    for i, lp in enumerate(params["proj"]):
        v = jnp.dot(v, lp["w"].T, precision=hp) + lp["b"][:, 0]
        if i < len(params["proj"]) - 1:
            v = jnp.maximum(v, 0.0)
    return v


# --------------------------------------------------------------------------------------
if __name__ == "__main__":
    key = jax.random.PRNGKey(0)
    k_params, k_x = jax.random.split(key)

    in_channels = 4
    structure = [(8, 8, 3, 1), (16, 8, 3, 1)]   # (inp, inter, kernel, n_blocks)
    proj_structure = [32, 16]
    batch, hw = 2, 16

    params = init_params(k_params, in_channels, structure, proj_structure)
    x = jax.random.normal(k_x, (batch, in_channels, hw, hw), jnp.float32)  # PyTorch NCHW

    fwd = jax.jit(functools.partial(
        fused_resnet_forward, in_channels=in_channels,
        structure=structure, proj_structure=proj_structure))
    out = jax.block_until_ready(fwd(x, params))

    assert out.shape == (batch, proj_structure[-1]), out.shape
    assert out.dtype == jnp.float32
    assert bool(jnp.all(jnp.isfinite(out)))

    # correctness check of the Pallas kernel against a plain-JAX reference of the same math
    ref_fn = jax.jit(functools.partial(reference_forward, structure=structure))
    ref = jax.block_until_ready(ref_fn(x, params))
    max_err = float(jnp.max(jnp.abs(out - ref)))
    assert bool(jnp.allclose(out, ref, atol=2e-2, rtol=2e-2)), f"kernel/ref mismatch: {max_err}"

    print("KERNEL_OK")
</pallas_src>

<mosaic_0001>
module attributes {stable_mosaic.version = 11 : i64} {
  func.func @kernel(%arg0: memref<4x512xf32, #tpu.memory_space<vmem>>, %arg1: memref<49x8x4xf32, #tpu.memory_space<vmem>>, %arg2: memref<8x1xf32, #tpu.memory_space<vmem>>, %arg3: memref<49x512xf32, #tpu.memory_space<vmem>>, %arg4: memref<9x8x8xf32, #tpu.memory_space<vmem>>, %arg5: memref<8x1xf32, #tpu.memory_space<vmem>>, %arg6: memref<9x512xf32, #tpu.memory_space<vmem>>, %arg7: memref<512x128xf32, #tpu.memory_space<vmem>>, %arg8: memref<8x8xf32, #tpu.memory_space<vmem>>, %arg9: memref<8x1xf32, #tpu.memory_space<vmem>>, %arg10: memref<9x8x8xf32, #tpu.memory_space<vmem>>, %arg11: memref<8x1xf32, #tpu.memory_space<vmem>>, %arg12: memref<9x128xf32, #tpu.memory_space<vmem>>, %arg13: memref<8x8xf32, #tpu.memory_space<vmem>>, %arg14: memref<8x1xf32, #tpu.memory_space<vmem>>, %arg15: memref<128x128xf32, #tpu.memory_space<vmem>>, %arg16: memref<8x8xf32, #tpu.memory_space<vmem>>, %arg17: memref<8x1xf32, #tpu.memory_space<vmem>>, %arg18: memref<9x8x8xf32, #tpu.memory_space<vmem>>, %arg19: memref<8x1xf32, #tpu.memory_space<vmem>>, %arg20: memref<9x128xf32, #tpu.memory_space<vmem>>, %arg21: memref<8x8xf32, #tpu.memory_space<vmem>>, %arg22: memref<8x1xf32, #tpu.memory_space<vmem>>, %arg23: memref<16x8xf32, #tpu.memory_space<vmem>>, %arg24: memref<16x1xf32, #tpu.memory_space<vmem>>, %arg25: memref<128x128xf32, #tpu.memory_space<vmem>>, %arg26: memref<4x128x2xf32, #tpu.memory_space<vmem>>, %arg27: memref<32x16xf32, #tpu.memory_space<vmem>>, %arg28: memref<32x1xf32, #tpu.memory_space<vmem>>, %arg29: memref<16x32xf32, #tpu.memory_space<vmem>>, %arg30: memref<16x1xf32, #tpu.memory_space<vmem>>, %arg31: memref<16x2xf32, #tpu.memory_space<vmem>>) attributes {dimension_semantics = [], scalar_prefetch = 0 : i64, scratch_operands = 0 : i64, tpu.core_type = #tpu.core_type<tc>} {
    %c0 = arith.constant 0 : index
    %c0_0 = arith.constant 0 : index
    %0 = vector.load %arg0[%c0, %c0_0] : memref<4x512xf32, #tpu.memory_space<vmem>>, vector<4x512xf32>
    %c51_i32 = arith.constant 51 : i32
    %1 = tpu.dynamic_rotate %0 by %c51_i32 dim 1 : vector<4x512xf32>, i32 -> vector<4x512xf32>
    %c0_1 = arith.constant 0 : index
    %c0_2 = arith.constant 0 : index
    %2 = vector.load %arg3[%c0_1, %c0_2] : memref<49x512xf32, #tpu.memory_space<vmem>>, vector<1x512xf32>
    %3 = vector.broadcast %2 : vector<1x512xf32> to vector<4x512xf32>
    %4 = arith.mulf %1, %3 : vector<4x512xf32>
    %c0_3 = arith.constant 0 : index
    %c0_4 = arith.constant 0 : index
    %c0_5 = arith.constant 0 : index
    %5 = vector.load %arg1[%c0_3, %c0_4, %c0_5] : memref<49x8x4xf32, #tpu.memory_space<vmem>>, vector<1x8x4xf32>
    %6 = vector.shape_cast %5 : vector<1x8x4xf32> to vector<8x4xf32>
    %cst = arith.constant dense<0.000000e+00> : vector<8x512xf32>
    %7 = tpu.matmul %6, %4, %cst {dimension_numbers = #tpu.dot_dimension_numbers<[1], [0], [0], [1], [0, 0, 1, 1], [], []>} : vector<8x4xf32>, vector<4x512xf32>, vector<8x512xf32> -> vector<8x512xf32>
    %c50_i32 = arith.constant 50 : i32
    %8 = tpu.dynamic_rotate %0 by %c50_i32 dim 1 : vector<4x512xf32>, i32 -> vector<4x512xf32>
    %c1 = arith.constant 1 : index
    %c0_6 = arith.constant 0 : index
    %9 = vector.load %arg3[%c1, %c0_6] : memref<49x512xf32, #tpu.memory_space<vmem>>, vector<1x512xf32>
    %10 = vector.broadcast %9 : vector<1x512xf32> to vector<4x512xf32>
    %11 = arith.mulf %8, %10 : vector<4x512xf32>
    %c1_7 = arith.constant 1 : index
    %c0_8 = arith.constant 0 : index
    %c0_9 = arith.constant 0 : index
    %12 = vector.load %arg1[%c1_7, %c0_8, %c0_9] : memref<49x8x4xf32, #tpu.memory_space<vmem>>, vector<1x8x4xf32>
    %13 = vector.shape_cast %12 : vector<1x8x4xf32> to vector<8x4xf32>
    %cst_10 = arith.constant dense<0.000000e+00> : vector<8x512xf32>
    %14 = tpu.matmul %13, %11, %cst_10 {dimension_numbers = #tpu.dot_dimension_numbers<[1], [0], [0], [1], [0, 0, 1, 1], [], []>} : vector<8x4xf32>, vector<4x512xf32>, vector<8x512xf32> -> vector<8x512xf32>
    %15 = arith.addf %7, %14 : vector<8x512xf32>
    %c49_i32 = arith.constant 49 : i32
    %16 = tpu.dynamic_rotate %0 by %c49_i32 dim 1 : vector<4x512xf32>, i32 -> vector<4x512xf32>
    %c2 = arith.constant 2 : index
    %c0_11 = arith.constant 0 : index
    %17 = vector.load %arg3[%c2, %c0_11] : memref<49x512xf32, #tpu.memory_space<vmem>>, vector<1x512xf32>
    %18 = vector.broadcast %17 : vector<1x512xf32> to vector<4x512xf32>
    %19 = arith.mulf %16, %18 : vector<4x512xf32>
    %c2_12 = arith.constant 2 : index
    %c0_13 = arith.constant 0 : index
    %c0_14 = arith.constant 0 : index
    %20 = vector.load %arg1[%c2_12, %c0_13, %c0_14] : memref<49x8x4xf32, #tpu.memory_space<vmem>>, vector<1x8x4xf32>
    %21 = vector.shape_cast %20 : vector<1x8x4xf32> to vector<8x4xf32>
    %cst_15 = arith.constant dense<0.000000e+00> : vector<8x512xf32>
    %22 = tpu.matmul %21, %19, %cst_15 {dimension_numbers = #tpu.dot_dimension_numbers<[1], [0], [0], [1], [0, 0, 1, 1], [], []>} : vector<8x4xf32>, vector<4x512xf32>, vector<8x512xf32> -> vector<8x512xf32>
    %23 = arith.addf %15, %22 : vector<8x512xf32>
    %c48_i32 = arith.constant 48 : i32
    %24 = tpu.dynamic_rotate %0 by %c48_i32 dim 1 : vector<4x512xf32>, i32 -> vector<4x512xf32>
    %c3 = arith.constant 3 : index
    %c0_16 = arith.constant 0 : index
    %25 = vector.load %arg3[%c3, %c0_16] : memref<49x512xf32, #tpu.memory_space<vmem>>, vector<1x512xf32>
    %26 = vector.broadcast %25 : vector<1x512xf32> to vector<4x512xf32>
    %27 = arith.mulf %24, %26 : vector<4x512xf32>
    %c3_17 = arith.constant 3 : index
    %c0_18 = arith.constant 0 : index
    %c0_19 = arith.constant 0 : index
    %28 = vector.load %arg1[%c3_17, %c0_18, %c0_19] : memref<49x8x4xf32, #tpu.memory_space<vmem>>, vector<1x8x4xf32>
    %29 = vector.shape_cast %28 : vector<1x8x4xf32> to vector<8x4xf32>
    %cst_20 = arith.constant dense<0.000000e+00> : vector<8x512xf32>
    %30 = tpu.matmul %29, %27, %cst_20 {dimension_numbers = #tpu.dot_dimension_numbers<[1], [0], [0], [1], [0, 0, 1, 1], [], []>} : vector<8x4xf32>, vector<4x512xf32>, vector<8x512xf32> -> vector<8x512xf32>
    %31 = arith.addf %23, %30 : vector<8x512xf32>
    %c47_i32 = arith.constant 47 : i32
    %32 = tpu.dynamic_rotate %0 by %c47_i32 dim 1 : vector<4x512xf32>, i32 -> vector<4x512xf32>
    %c4 = arith.constant 4 : index
    %c0_21 = arith.constant 0 : index
    %33 = vector.load %arg3[%c4, %c0_21] : memref<49x512xf32, #tpu.memory_space<vmem>>, vector<1x512xf32>
    %34 = vector.broadcast %33 : vector<1x512xf32> to vector<4x512xf32>
    %35 = arith.mulf %32, %34 : vector<4x512xf32>
    %c4_22 = arith.constant 4 : index
    %c0_23 = arith.constant 0 : index
    %c0_24 = arith.constant 0 : index
    %36 = vector.load %arg1[%c4_22, %c0_23, %c0_24] : memref<49x8x4xf32, #tpu.memory_space<vmem>>, vector<1x8x4xf32>
    %37 = vector.shape_cast %36 : vector<1x8x4xf32> to vector<8x4xf32>
    %cst_25 = arith.constant dense<0.000000e+00> : vector<8x512xf32>
    %38 = tpu.matmul %37, %35, %cst_25 {dimension_numbers = #tpu.dot_dimension_numbers<[1], [0], [0], [1], [0, 0, 1, 1], [], []>} : vector<8x4xf32>, vector<4x512xf32>, vector<8x512xf32> -> vector<8x512xf32>
    %39 = arith.addf %31, %38 : vector<8x512xf32>
    %c46_i32 = arith.constant 46 : i32
    %40 = tpu.dynamic_rotate %0 by %c46_i32 dim 1 : vector<4x512xf32>, i32 -> vector<4x512xf32>
    %c5 = arith.constant 5 : index
    %c0_26 = arith.constant 0 : index
    %41 = vector.load %arg3[%c5, %c0_26] : memref<49x512xf32, #tpu.memory_space<vmem>>, vector<1x512xf32>
    %42 = vector.broadcast %41 : vector<1x512xf32> to vector<4x512xf32>
    %43 = arith.mulf %40, %42 : vector<4x512xf32>
    %c5_27 = arith.constant 5 : index
    %c0_28 = arith.constant 0 : index
    %c0_29 = arith.constant 0 : index
    %44 = vector.load %arg1[%c5_27, %c0_28, %c0_29] : memref<49x8x4xf32, #tpu.memory_space<vmem>>, vector<1x8x4xf32>
    %45 = vector.shape_cast %44 : vector<1x8x4xf32> to vector<8x4xf32>
    %cst_30 = arith.constant dense<0.000000e+00> : vector<8x512xf32>
    %46 = tpu.matmul %45, %43, %cst_30 {dimension_numbers = #tpu.dot_dimension_numbers<[1], [0], [0], [1], [0, 0, 1, 1], [], []>} : vector<8x4xf32>, vector<4x512xf32>, vector<8x512xf32> -> vector<8x512xf32>
    %47 = arith.addf %39, %46 : vector<8x512xf32>
    %c45_i32 = arith.constant 45 : i32
    %48 = tpu.dynamic_rotate %0 by %c45_i32 dim 1 : vector<4x512xf32>, i32 -> vector<4x512xf32>
    %c6 = arith.constant 6 : index
    %c0_31 = arith.constant 0 : index
    %49 = vector.load %arg3[%c6, %c0_31] : memref<49x512xf32, #tpu.memory_space<vmem>>, vector<1x512xf32>
    %50 = vector.broadcast %49 : vector<1x512xf32> to vector<4x512xf32>
    %51 = arith.mulf %48, %50 : vector<4x512xf32>
    %c6_32 = arith.constant 6 : index
    %c0_33 = arith.constant 0 : index
    %c0_34 = arith.constant 0 : index
    %52 = vector.load %arg1[%c6_32, %c0_33, %c0_34] : memref<49x8x4xf32, #tpu.memory_space<vmem>>, vector<1x8x4xf32>
    %53 = vector.shape_cast %52 : vector<1x8x4xf32> to vector<8x4xf32>
    %cst_35 = arith.constant dense<0.000000e+00> : vector<8x512xf32>
    %54 = tpu.matmul %53, %51, %cst_35 {dimension_numbers = #tpu.dot_dimension_numbers<[1], [0], [0], [1], [0, 0, 1, 1], [], []>} : vector<8x4xf32>, vector<4x512xf32>, vector<8x512xf32> -> vector<8x512xf32>
    %55 = arith.addf %47, %54 : vector<8x512xf32>
    %c35_i32 = arith.constant 35 : i32
    %56 = tpu.dynamic_rotate %0 by %c35_i32 dim 1 : vector<4x512xf32>, i32 -> vector<4x512xf32>
    %c7 = arith.constant 7 : index
    %c0_36 = arith.constant 0 : index
    %57 = vector.load %arg3[%c7, %c0_36] : memref<49x512xf32, #tpu.memory_space<vmem>>, vector<1x512xf32>
    %58 = vector.broadcast %57 : vector<1x512xf32> to vector<4x512xf32>
    %59 = arith.mulf %56, %58 : vector<4x512xf32>
    %c7_37 = arith.constant 7 : index
    %c0_38 = arith.constant 0 : index
    %c0_39 = arith.constant 0 : index
    %60 = vector.load %arg1[%c7_37, %c0_38, %c0_39] : memref<49x8x4xf32, #tpu.memory_space<vmem>>, vector<1x8x4xf32>
    %61 = vector.shape_cast %60 : vector<1x8x4xf32> to vector<8x4xf32>
    %cst_40 = arith.constant dense<0.000000e+00> : vector<8x512xf32>
    %62 = tpu.matmul %61, %59, %cst_40 {dimension_numbers = #tpu.dot_dimension_numbers<[1], [0], [0], [1], [0, 0, 1, 1], [], []>} : vector<8x4xf32>, vector<4x512xf32>, vector<8x512xf32> -> vector<8x512xf32>
    %63 = arith.addf %55, %62 : vector<8x512xf32>
    %c34_i32 = arith.constant 34 : i32
    %64 = tpu.dynamic_rotate %0 by %c34_i32 dim 1 : vector<4x512xf32>, i32 -> vector<4x512xf32>
    %c8 = arith.constant 8 : index
    %c0_41 = arith.constant 0 : index
    %65 = vector.load %arg3[%c8, %c0_41] : memref<49x512xf32, #tpu.memory_space<vmem>>, vector<1x512xf32>
    %66 = vector.broadcast %65 : vector<1x512xf32> to vector<4x512xf32>
    %67 = arith.mulf %64, %66 : vector<4x512xf32>
    %c8_42 = arith.constant 8 : index
    %c0_43 = arith.constant 0 : index
    %c0_44 = arith.constant 0 : index
    %68 = vector.load %arg1[%c8_42, %c0_43, %c0_44] : memref<49x8x4xf32, #tpu.memory_space<vmem>>, vector<1x8x4xf32>
    %69 = vector.shape_cast %68 : vector<1x8x4xf32> to vector<8x4xf32>
    %cst_45 = arith.constant dense<0.000000e+00> : vector<8x512xf32>
    %70 = tpu.matmul %69, %67, %cst_45 {dimension_numbers = #tpu.dot_dimension_numbers<[1], [0], [0], [1], [0, 0, 1, 1], [], []>} : vector<8x4xf32>, vector<4x512xf32>, vector<8x512xf32> -> vector<8x512xf32>
    %71 = arith.addf %63, %70 : vector<8x512xf32>
    %c33_i32 = arith.constant 33 : i32
    %72 = tpu.dynamic_rotate %0 by %c33_i32 dim 1 : vector<4x512xf32>, i32 -> vector<4x512xf32>
    %c9 = arith.constant 9 : index
    %c0_46 = arith.constant 0 : index
    %73 = vector.load %arg3[%c9, %c0_46] : memref<49x512xf32, #tpu.memory_space<vmem>>, vector<1x512xf32>
    %74 = vector.broadcast %73 : vector<1x512xf32> to vector<4x512xf32>
    %75 = arith.mulf %72, %74 : vector<4x512xf32>
    %c9_47 = arith.constant 9 : index
    %c0_48 = arith.constant 0 : index
    %c0_49 = arith.constant 0 : index
    %76 = vector.load %arg1[%c9_47, %c0_48, %c0_49] : memref<49x8x4xf32, #tpu.memory_space<vmem>>, vector<1x8x4xf32>
    %77 = vector.shape_cast %76 : vector<1x8x4xf32> to vector<8x4xf32>
    %cst_50 = arith.constant dense<0.000000e+00> : vector<8x512xf32>
    %78 = tpu.matmul %77, %75, %cst_50 {dimension_numbers = #tpu.dot_dimension_numbers<[1], [0], [0], [1], [0, 0, 1, 1], [], []>} : vector<8x4xf32>, vector<4x512xf32>, vector<8x512xf32> -> vector<8x512xf32>
    %79 = arith.addf %71, %78 : vector<8x512xf32>
    %c32_i32 = arith.constant 32 : i32
    %80 = tpu.dynamic_rotate %0 by %c32_i32 dim 1 : vector<4x512xf32>, i32 -> vector<4x512xf32>
    %c10 = arith.constant 10 : index
    %c0_51 = arith.constant 0 : index
    %81 = vector.load %arg3[%c10, %c0_51] : memref<49x512xf32, #tpu.memory_space<vmem>>, vector<1x512xf32>
    %82 = vector.broadcast %81 : vector<1x512xf32> to vector<4x512xf32>
    %83 = arith.mulf %80, %82 : vector<4x512xf32>
    %c10_52 = arith.constant 10 : index
    %c0_53 = arith.constant 0 : index
    %c0_54 = arith.constant 0 : index
    %84 = vector.load %arg1[%c10_52, %c0_53, %c0_54] : memref<49x8x4xf32, #tpu.memory_space<vmem>>, vector<1x8x4xf32>
    %85 = vector.shape_cast %84 : vector<1x8x4xf32> to vector<8x4xf32>
    %cst_55 = arith.constant dense<0.000000e+00> : vector<8x512xf32>
    %86 = tpu.matmul %85, %83, %cst_55 {dimension_numbers = #tpu.dot_dimension_numbers<[1], [0], [0], [1], [0, 0, 1, 1], [], []>} : vector<8x4xf32>, vector<4x512xf32>, vector<8x512xf32> -> vector<8x512xf32>
    %87 = arith.addf %79, %86 : vector<8x512xf32>
    %c31_i32 = arith.constant 31 : i32
    %88 = tpu.dynamic_rotate %0 by %c31_i32 dim 1 : vector<4x512xf32>, i32 -> vector<4x512xf32>
    %c11 = arith.constant 11 : index
    %c0_56 = arith.constant 0 : index
    %89 = vector.load %arg3[%c11, %c0_56] : memref<49x512xf32, #tpu.memory_space<vmem>>, vector<1x512xf32>
    %90 = vector.broadcast %89 : vector<1x512xf32> to vector<4x512xf32>
    %91 = arith.mulf %88, %90 : vector<4x512xf32>
    %c11_57 = arith.constant 11 : index
    %c0_58 = arith.constant 0 : index
    %c0_59 = arith.constant 0 : index
    %92 = vector.load %arg1[%c11_57, %c0_58, %c0_59] : memref<49x8x4xf32, #tpu.memory_space<vmem>>, vector<1x8x4xf32>
    %93 = vector.shape_cast %92 : vector<1x8x4xf32> to vector<8x4xf32>
    %cst_60 = arith.constant dense<0.000000e+00> : vector<8x512xf32>
    %94 = tpu.matmul %93, %91, %cst_60 {dimension_numbers = #tpu.dot_dimension_numbers<[1], [0], [0], [1], [0, 0, 1, 1], [], []>} : vector<8x4xf32>, vector<4x512xf32>, vector<8x512xf32> -> vector<8x512xf32>
    %95 = arith.addf %87, %94 : vector<8x512xf32>
    %c30_i32 = arith.constant 30 : i32
    %96 = tpu.dynamic_rotate %0 by %c30_i32 dim 1 : vector<4x512xf32>, i32 -> vector<4x512xf32>
    %c12 = arith.constant 12 : index
    %c0_61 = arith.constant 0 : index
    %97 = vector.load %arg3[%c12, %c0_61] : memref<49x512xf32, #tpu.memory_space<vmem>>, vector<1x512xf32>
    %98 = vector.broadcast %97 : vector<1x512xf32> to vector<4x512xf32>
    %99 = arith.mulf %96, %98 : vector<4x512xf32>
    %c12_62 = arith.constant 12 : index
    %c0_63 = arith.constant 0 : index
    %c0_64 = arith.constant 0 : index
    %100 = vector.load %arg1[%c12_62, %c0_63, %c0_64] : memref<49x8x4xf32, #tpu.memory_space<vmem>>, vector<1x8x4xf32>
    %101 = vector.shape_cast %100 : vector<1x8x4xf32> to vector<8x4xf32>
    %cst_65 = arith.constant dense<0.000000e+00> : vector<8x512xf32>
    %102 = tpu.matmul %101, %99, %cst_65 {dimension_numbers = #tpu.dot_dimension_numbers<[1], [0], [0], [1], [0, 0, 1, 1], [], []>} : vector<8x4xf32>, vector<4x512xf32>, vector<8x512xf32> -> vector<8x512xf32>
    %103 = arith.addf %95, %102 : vector<8x512xf32>
    %c29_i32 = arith.constant 29 : i32
    %104 = tpu.dynamic_rotate %0 by %c29_i32 dim 1 : vector<4x512xf32>, i32 -> vector<4x512xf32>
    %c13 = arith.constant 13 : index
    %c0_66 = arith.constant 0 : index
    %105 = vector.load %arg3[%c13, %c0_66] : memref<49x512xf32, #tpu.memory_space<vmem>>, vector<1x512xf32>
    %106 = vector.broadcast %105 : vector<1x512xf32> to vector<4x512xf32>
    %107 = arith.mulf %104, %106 : vector<4x512xf32>
    %c13_67 = arith.constant 13 : index
    %c0_68 = arith.constant 0 : index
    %c0_69 = arith.constant 0 : index
    %108 = vector.load %arg1[%c13_67, %c0_68, %c0_69] : memref<49x8x4xf32, #tpu.memory_space<vmem>>, vector<1x8x4xf32>
    %109 = vector.shape_cast %108 : vector<1x8x4xf32> to vector<8x4xf32>
    %cst_70 = arith.constant dense<0.000000e+00> : vector<8x512xf32>
    %110 = tpu.matmul %109, %107, %cst_70 {dimension_numbers = #tpu.dot_dimension_numbers<[1], [0], [0], [1], [0, 0, 1, 1], [], []>} : vector<8x4xf32>, vector<4x512xf32>, vector<8x512xf32> -> vector<8x512xf32>
    %111 = arith.addf %103, %110 : vector<8x512xf32>
    %c19_i32 = arith.constant 19 : i32
    %112 = tpu.dynamic_rotate %0 by %c19_i32 dim 1 : vector<4x512xf32>, i32 -> vector<4x512xf32>
    %c14 = arith.constant 14 : index
    %c0_71 = arith.constant 0 : index
    %113 = vector.load %arg3[%c14, %c0_71] : memref<49x512xf32, #tpu.memory_space<vmem>>, vector<1x512xf32>
    %114 = vector.broadcast %113 : vector<1x512xf32> to vector<4x512xf32>
    %115 = arith.mulf %112, %114 : vector<4x512xf32>
    %c14_72 = arith.constant 14 : index
    %c0_73 = arith.constant 0 : index
    %c0_74 = arith.constant 0 : index
    %116 = vector.load %arg1[%c14_72, %c0_73, %c0_74] : memref<49x8x4xf32, #tpu.memory_space<vmem>>, vector<1x8x4xf32>
    %117 = vector.shape_cast %116 : vector<1x8x4xf32> to vector<8x4xf32>
    %cst_75 = arith.constant dense<0.000000e+00> : vector<8x512xf32>
    %118 = tpu.matmul %117, %115, %cst_75 {dimension_numbers = #tpu.dot_dimension_numbers<[1], [0], [0], [1], [0, 0, 1, 1], [], []>} : vector<8x4xf32>, vector<4x512xf32>, vector<8x512xf32> -> vector<8x512xf32>
    %119 = arith.addf %111, %118 : vector<8x512xf32>
    %c18_i32 = arith.constant 18 : i32
    %120 = tpu.dynamic_rotate %0 by %c18_i32 dim 1 : vector<4x512xf32>, i32 -> vector<4x512xf32>
    %c15 = arith.constant 15 : index
    %c0_76 = arith.constant 0 : index
    %121 = vector.load %arg3[%c15, %c0_76] : memref<49x512xf32, #tpu.memory_space<vmem>>, vector<1x512xf32>
    %122 = vector.broadcast %121 : vector<1x512xf32> to vector<4x512xf32>
    %123 = arith.mulf %120, %122 : vector<4x512xf32>
    %c15_77 = arith.constant 15 : index
    %c0_78 = arith.constant 0 : index
    %c0_79 = arith.constant 0 : index
    %124 = vector.load %arg1[%c15_77, %c0_78, %c0_79] : memref<49x8x4xf32, #tpu.memory_space<vmem>>, vector<1x8x4xf32>
    %125 = vector.shape_cast %124 : vector<1x8x4xf32> to vector<8x4xf32>
    %cst_80 = arith.constant dense<0.000000e+00> : vector<8x512xf32>
    %126 = tpu.matmul %125, %123, %cst_80 {dimension_numbers = #tpu.dot_dimension_numbers<[1], [0], [0], [1], [0, 0, 1, 1], [], []>} : vector<8x4xf32>, vector<4x512xf32>, vector<8x512xf32> -> vector<8x512xf32>
    %127 = arith.addf %119, %126 : vector<8x512xf32>
    %c17_i32 = arith.constant 17 : i32
    %128 = tpu.dynamic_rotate %0 by %c17_i32 dim 1 : vector<4x512xf32>, i32 -> vector<4x512xf32>
    %c16 = arith.constant 16 : index
    %c0_81 = arith.constant 0 : index
    %129 = vector.load %arg3[%c16, %c0_81] : memref<49x512xf32, #tpu.memory_space<vmem>>, vector<1x512xf32>
    %130 = vector.broadcast %129 : vector<1x512xf32> to vector<4x512xf32>
    %131 = arith.mulf %128, %130 : vector<4x512xf32>
    %c16_82 = arith.constant 16 : index
    %c0_83 = arith.constant 0 : index
    %c0_84 = arith.constant 0 : index
    %132 = vector.load %arg1[%c16_82, %c0_83, %c0_84] : memref<49x8x4xf32, #tpu.memory_space<vmem>>, vector<1x8x4xf32>
    %133 = vector.shape_cast %132 : vector<1x8x4xf32> to vector<8x4xf32>
    %cst_85 = arith.constant dense<0.000000e+00> : vector<8x512xf32>
    %134 = tpu.matmul %133, %131, %cst_85 {dimension_numbers = #tpu.dot_dimension_numbers<[1], [0], [0], [1], [0, 0, 1, 1], [], []>} : vector<8x4xf32>, vector<4x512xf32>, vector<8x512xf32> -> vector<8x512xf32>
    %135 = arith.addf %127, %134 : vector<8x512xf32>
    %c16_i32 = arith.constant 16 : i32
    %136 = tpu.dynamic_rotate %0 by %c16_i32 dim 1 : vector<4x512xf32>, i32 -> vector<4x512xf32>
    %c17 = arith.constant 17 : index
    %c0_86 = arith.constant 0 : index
    %137 = vector.load %arg3[%c17, %c0_86] : memref<49x512xf32, #tpu.memory_space<vmem>>, vector<1x512xf32>
    %138 = vector.broadcast %137 : vector<1x512xf32> to vector<4x512xf32>
    %139 = arith.mulf %136, %138 : vector<4x512xf32>
    %c17_87 = arith.constant 17 : index
    %c0_88 = arith.constant 0 : index
    %c0_89 = arith.constant 0 : index
    %140 = vector.load %arg1[%c17_87, %c0_88, %c0_89] : memref<49x8x4xf32, #tpu.memory_space<vmem>>, vector<1x8x4xf32>
    %141 = vector.shape_cast %140 : vector<1x8x4xf32> to vector<8x4xf32>
    %cst_90 = arith.constant dense<0.000000e+00> : vector<8x512xf32>
    %142 = tpu.matmul %141, %139, %cst_90 {dimension_numbers = #tpu.dot_dimension_numbers<[1], [0], [0], [1], [0, 0, 1, 1], [], []>} : vector<8x4xf32>, vector<4x512xf32>, vector<8x512xf32> -> vector<8x512xf32>
    %143 = arith.addf %135, %142 : vector<8x512xf32>
    %c15_i32 = arith.constant 15 : i32
    %144 = tpu.dynamic_rotate %0 by %c15_i32 dim 1 : vector<4x512xf32>, i32 -> vector<4x512xf32>
    %c18 = arith.constant 18 : index
    %c0_91 = arith.constant 0 : index
    %145 = vector.load %arg3[%c18, %c0_91] : memref<49x512xf32, #tpu.memory_space<vmem>>, vector<1x512xf32>
    %146 = vector.broadcast %145 : vector<1x512xf32> to vector<4x512xf32>
    %147 = arith.mulf %144, %146 : vector<4x512xf32>
    %c18_92 = arith.constant 18 : index
    %c0_93 = arith.constant 0 : index
    %c0_94 = arith.constant 0 : index
    %148 = vector.load %arg1[%c18_92, %c0_93, %c0_94] : memref<49x8x4xf32, #tpu.memory_space<vmem>>, vector<1x8x4xf32>
    %149 = vector.shape_cast %148 : vector<1x8x4xf32> to vector<8x4xf32>
    %cst_95 = arith.constant dense<0.000000e+00> : vector<8x512xf32>
    %150 = tpu.matmul %149, %147, %cst_95 {dimension_numbers = #tpu.dot_dimension_numbers<[1], [0], [0], [1], [0, 0, 1, 1], [], []>} : vector<8x4xf32>, vector<4x512xf32>, vector<8x512xf32> -> vector<8x512xf32>
    %151 = arith.addf %143, %150 : vector<8x512xf32>
    %c14_i32 = arith.constant 14 : i32
    %152 = tpu.dynamic_rotate %0 by %c14_i32 dim 1 : vector<4x512xf32>, i32 -> vector<4x512xf32>
    %c19 = arith.constant 19 : index
    %c0_96 = arith.constant 0 : index
    %153 = vector.load %arg3[%c19, %c0_96] : memref<49x512xf32, #tpu.memory_space<vmem>>, vector<1x512xf32>
    %154 = vector.broadcast %153 : vector<1x512xf32> to vector<4x512xf32>
    %155 = arith.mulf %152, %154 : vector<4x512xf32>
    %c19_97 = arith.constant 19 : index
    %c0_98 = arith.constant 0 : index
    %c0_99 = arith.constant 0 : index
    %156 = vector.load %arg1[%c19_97, %c0_98, %c0_99] : memref<49x8x4xf32, #tpu.memory_space<vmem>>, vector<1x8x4xf32>
    %157 = vector.shape_cast %156 : vector<1x8x4xf32> to vector<8x4xf32>
    %cst_100 = arith.constant dense<0.000000e+00> : vector<8x512xf32>
    %158 = tpu.matmul %157, %155, %cst_100 {dimension_numbers = #tpu.dot_dimension_numbers<[1], [0], [0], [1], [0, 0, 1, 1], [], []>} : vector<8x4xf32>, vector<4x512xf32>, vector<8x512xf32> -> vector<8x512xf32>
    %159 = arith.addf %151, %158 : vector<8x512xf32>
    %c13_i32 = arith.constant 13 : i32
    %160 = tpu.dynamic_rotate %0 by %c13_i32 dim 1 : vector<4x512xf32>, i32 -> vector<4x512xf32>
    %c20 = arith.constant 20 : index
    %c0_101 = arith.constant 0 : index
    %161 = vector.load %arg3[%c20, %c0_101] : memref<49x512xf32, #tpu.memory_space<vmem>>, vector<1x512xf32>
    %162 = vector.broadcast %161 : vector<1x512xf32> to vector<4x512xf32>
    %163 = arith.mulf %160, %162 : vector<4x512xf32>
    %c20_102 = arith.constant 20 : index
    %c0_103 = arith.constant 0 : index
    %c0_104 = arith.constant 0 : index
    %164 = vector.load %arg1[%c20_102, %c0_103, %c0_104] : memref<49x8x4xf32, #tpu.memory_space<vmem>>, vector<1x8x4xf32>
    %165 = vector.shape_cast %164 : vector<1x8x4xf32> to vector<8x4xf32>
    %cst_105 = arith.constant dense<0.000000e+00> : vector<8x512xf32>
    %166 = tpu.matmul %165, %163, %cst_105 {dimension_numbers = #tpu.dot_dimension_numbers<[1], [0], [0], [1], [0, 0, 1, 1], [], []>} : vector<8x4xf32>, vector<4x512xf32>, vector<8x512xf32> -> vector<8x512xf32>
    %167 = arith.addf %159, %166 : vector<8x512xf32>
    %c3_i32 = arith.constant 3 : i32
    %168 = tpu.dynamic_rotate %0 by %c3_i32 dim 1 : vector<4x512xf32>, i32 -> vector<4x512xf32>
    %c21 = arith.constant 21 : index
    %c0_106 = arith.constant 0 : index
    %169 = vector.load %arg3[%c21, %c0_106] : memref<49x512xf32, #tpu.memory_space<vmem>>, vector<1x512xf32>
    %170 = vector.broadcast %169 : vector<1x512xf32> to vector<4x512xf32>
    %171 = arith.mulf %168, %170 : vector<4x512xf32>
    %c21_107 = arith.constant 21 : index
    %c0_108 = arith.constant 0 : index
    %c0_109 = arith.constant 0 : index
    %172 = vector.load %arg1[%c21_107, %c0_108, %c0_109] : memref<49x8x4xf32, #tpu.memory_space<vmem>>, vector<1x8x4xf32>
    %173 = vector.shape_cast %172 : vector<1x8x4xf32> to vector<8x4xf32>
    %cst_110 = arith.constant dense<0.000000e+00> : vector<8x512xf32>
    %174 = tpu.matmul %173, %171, %cst_110 {dimension_numbers = #tpu.dot_dimension_numbers<[1], [0], [0], [1], [0, 0, 1, 1], [], []>} : vector<8x4xf32>, vector<4x512xf32>, vector<8x512xf32> -> vector<8x512xf32>
    %175 = arith.addf %167, %174 : vector<8x512xf32>
    %c2_i32 = arith.constant 2 : i32
    %176 = tpu.dynamic_rotate %0 by %c2_i32 dim 1 : vector<4x512xf32>, i32 -> vector<4x512xf32>
    %c22 = arith.constant 22 : index
    %c0_111 = arith.constant 0 : index
    %177 = vector.load %arg3[%c22, %c0_111] : memref<49x512xf32, #tpu.memory_space<vmem>>, vector<1x512xf32>
    %178 = vector.broadcast %177 : vector<1x512xf32> to vector<4x512xf32>
    %179 = arith.mulf %176, %178 : vector<4x512xf32>
    %c22_112 = arith.constant 22 : index
    %c0_113 = arith.constant 0 : index
    %c0_114 = arith.constant 0 : index
    %180 = vector.load %arg1[%c22_112, %c0_113, %c0_114] : memref<49x8x4xf32, #tpu.memory_space<vmem>>, vector<1x8x4xf32>
    %181 = vector.shape_cast %180 : vector<1x8x4xf32> to vector<8x4xf32>
    %cst_115 = arith.constant dense<0.000000e+00> : vector<8x512xf32>
    %182 = tpu.matmul %181, %179, %cst_115 {dimension_numbers = #tpu.dot_dimension_numbers<[1], [0], [0], [1], [0, 0, 1, 1], [], []>} : vector<8x4xf32>, vector<4x512xf32>, vector<8x512xf32> -> vector<8x512xf32>
    %183 = arith.addf %175, %182 : vector<8x512xf32>
    %c1_i32 = arith.constant 1 : i32
    %184 = tpu.dynamic_rotate %0 by %c1_i32 dim 1 : vector<4x512xf32>, i32 -> vector<4x512xf32>
    %c23 = arith.constant 23 : index
    %c0_116 = arith.constant 0 : index
    %185 = vector.load %arg3[%c23, %c0_116] : memref<49x512xf32, #tpu.memory_space<vmem>>, vector<1x512xf32>
    %186 = vector.broadcast %185 : vector<1x512xf32> to vector<4x512xf32>
    %187 = arith.mulf %184, %186 : vector<4x512xf32>
    %c23_117 = arith.constant 23 : index
    %c0_118 = arith.constant 0 : index
    %c0_119 = arith.constant 0 : index
    %188 = vector.load %arg1[%c23_117, %c0_118, %c0_119] : memref<49x8x4xf32, #tpu.memory_space<vmem>>, vector<1x8x4xf32>
    %189 = vector.shape_cast %188 : vector<1x8x4xf32> to vector<8x4xf32>
    %cst_120 = arith.constant dense<0.000000e+00> : vector<8x512xf32>
    %190 = tpu.matmul %189, %187, %cst_120 {dimension_numbers = #tpu.dot_dimension_numbers<[1], [0], [0], [1], [0, 0, 1, 1], [], []>} : vector<8x4xf32>, vector<4x512xf32>, vector<8x512xf32> -> vector<8x512xf32>
    %191 = arith.addf %183, %190 : vector<8x512xf32>
    %c24 = arith.constant 24 : index
    %c0_121 = arith.constant 0 : index
    %192 = vector.load %arg3[%c24, %c0_121] : memref<49x512xf32, #tpu.memory_space<vmem>>, vector<1x512xf32>
    %193 = vector.broadcast %192 : vector<1x512xf32> to vector<4x512xf32>
    %194 = arith.mulf %0, %193 : vector<4x512xf32>
    %c24_122 = arith.constant 24 : index
    %c0_123 = arith.constant 0 : index
    %c0_124 = arith.constant 0 : index
    %195 = vector.load %arg1[%c24_122, %c0_123, %c0_124] : memref<49x8x4xf32, #tpu.memory_space<vmem>>, vector<1x8x4xf32>
    %196 = vector.shape_cast %195 : vector<1x8x4xf32> to vector<8x4xf32>
    %cst_125 = arith.constant dense<0.000000e+00> : vector<8x512xf32>
    %197 = tpu.matmul %196, %194, %cst_125 {dimension_numbers = #tpu.dot_dimension_numbers<[1], [0], [0], [1], [0, 0, 1, 1], [], []>} : vector<8x4xf32>, vector<4x512xf32>, vector<8x512xf32> -> vector<8x512xf32>
    %198 = arith.addf %191, %197 : vector<8x512xf32>
    %c511_i32 = arith.constant 511 : i32
    %199 = tpu.dynamic_rotate %0 by %c511_i32 dim 1 : vector<4x512xf32>, i32 -> vector<4x512xf32>
    %c25 = arith.constant 25 : index
    %c0_126 = arith.constant 0 : index
    %200 = vector.load %arg3[%c25, %c0_126] : memref<49x512xf32, #tpu.memory_space<vmem>>, vector<1x512xf32>
    %201 = vector.broadcast %200 : vector<1x512xf32> to vector<4x512xf32>
    %202 = arith.mulf %199, %201 : vector<4x512xf32>
    %c25_127 = arith.constant 25 : index
    %c0_128 = arith.constant 0 : index
    %c0_129 = arith.constant 0 : index
    %203 = vector.load %arg1[%c25_127, %c0_128, %c0_129] : memref<49x8x4xf32, #tpu.memory_space<vmem>>, vector<1x8x4xf32>
    %204 = vector.shape_cast %203 : vector<1x8x4xf32> to vector<8x4xf32>
    %cst_130 = arith.constant dense<0.000000e+00> : vector<8x512xf32>
    %205 = tpu.matmul %204, %202, %cst_130 {dimension_numbers = #tpu.dot_dimension_numbers<[1], [0], [0], [1], [0, 0, 1, 1], [], []>} : vector<8x4xf32>, vector<4x512xf32>, vector<8x512xf32> -> vector<8x512xf32>
    %206 = arith.addf %198, %205 : vector<8x512xf32>
    %c510_i32 = arith.constant 510 : i32
    %207 = tpu.dynamic_rotate %0 by %c510_i32 dim 1 : vector<4x512xf32>, i32 -> vector<4x512xf32>
    %c26 = arith.constant 26 : index
    %c0_131 = arith.constant 0 : index
    %208 = vector.load %arg3[%c26, %c0_131] : memref<49x512xf32, #tpu.memory_space<vmem>>, vector<1x512xf32>
    %209 = vector.broadcast %208 : vector<1x512xf32> to vector<4x512xf32>
    %210 = arith.mulf %207, %209 : vector<4x512xf32>
    %c26_132 = arith.constant 26 : index
    %c0_133 = arith.constant 0 : index
    %c0_134 = arith.constant 0 : index
    %211 = vector.load %arg1[%c26_132, %c0_133, %c0_134] : memref<49x8x4xf32, #tpu.memory_space<vmem>>, vector<1x8x4xf32>
    %212 = vector.shape_cast %211 : vector<1x8x4xf32> to vector<8x4xf32>
    %cst_135 = arith.constant dense<0.000000e+00> : vector<8x512xf32>
    %213 = tpu.matmul %212, %210, %cst_135 {dimension_numbers = #tpu.dot_dimension_numbers<[1], [0], [0], [1], [0, 0, 1, 1], [], []>} : vector<8x4xf32>, vector<4x512xf32>, vector<8x512xf32> -> vector<8x512xf32>
    %214 = arith.addf %206, %213 : vector<8x512xf32>
    %c509_i32 = arith.constant 509 : i32
    %215 = tpu.dynamic_rotate %0 by %c509_i32 dim 1 : vector<4x512xf32>, i32 -> vector<4x512xf32>
    %c27 = arith.constant 27 : index
    %c0_136 = arith.constant 0 : index
    %216 = vector.load %arg3[%c27, %c0_136] : memref<49x512xf32, #tpu.memory_space<vmem>>, vector<1x512xf32>
    %217 = vector.broadcast %216 : vector<1x512xf32> to vector<4x512xf32>
    %218 = arith.mulf %215, %217 : vector<4x512xf32>
    %c27_137 = arith.constant 27 : index
    %c0_138 = arith.constant 0 : index
    %c0_139 = arith.constant 0 : index
    %219 = vector.load %arg1[%c27_137, %c0_138, %c0_139] : memref<49x8x4xf32, #tpu.memory_space<vmem>>, vector<1x8x4xf32>
    %220 = vector.shape_cast %219 : vector<1x8x4xf32> to vector<8x4xf32>
    %cst_140 = arith.constant dense<0.000000e+00> : vector<8x512xf32>
    %221 = tpu.matmul %220, %218, %cst_140 {dimension_numbers = #tpu.dot_dimension_numbers<[1], [0], [0], [1], [0, 0, 1, 1], [], []>} : vector<8x4xf32>, vector<4x512xf32>, vector<8x512xf32> -> vector<8x512xf32>
    %222 = arith.addf %214, %221 : vector<8x512xf32>
    %c499_i32 = arith.constant 499 : i32
    %223 = tpu.dynamic_rotate %0 by %c499_i32 dim 1 : vector<4x512xf32>, i32 -> vector<4x512xf32>
    %c28 = arith.constant 28 : index
    %c0_141 = arith.constant 0 : index
    %224 = vector.load %arg3[%c28, %c0_141] : memref<49x512xf32, #tpu.memory_space<vmem>>, vector<1x512xf32>
    %225 = vector.broadcast %224 : vector<1x512xf32> to vector<4x512xf32>
    %226 = arith.mulf %223, %225 : vector<4x512xf32>
    %c28_142 = arith.constant 28 : index
    %c0_143 = arith.constant 0 : index
    %c0_144 = arith.constant 0 : index
    %227 = vector.load %arg1[%c28_142, %c0_143, %c0_144] : memref<49x8x4xf32, #tpu.memory_space<vmem>>, vector<1x8x4xf32>
    %228 = vector.shape_cast %227 : vector<1x8x4xf32> to vector<8x4xf32>
    %cst_145 = arith.constant dense<0.000000e+00> : vector<8x512xf32>
    %229 = tpu.matmul %228, %226, %cst_145 {dimension_numbers = #tpu.dot_dimension_numbers<[1], [0], [0], [1], [0, 0, 1, 1], [], []>} : vector<8x4xf32>, vector<4x512xf32>, vector<8x512xf32> -> vector<8x512xf32>
    %230 = arith.addf %222, %229 : vector<8x512xf32>
    %c498_i32 = arith.constant 498 : i32
    %231 = tpu.dynamic_rotate %0 by %c498_i32 dim 1 : vector<4x512xf32>, i32 -> vector<4x512xf32>
    %c29 = arith.constant 29 : index
    %c0_146 = arith.constant 0 : index
    %232 = vector.load %arg3[%c29, %c0_146] : memref<49x512xf32, #tpu.memory_space<vmem>>, vector<1x512xf32>
    %233 = vector.broadcast %232 : vector<1x512xf32> to vector<4x512xf32>
    %234 = arith.mulf %231, %233 : vector<4x512xf32>
    %c29_147 = arith.constant 29 : index
    %c0_148 = arith.constant 0 : index
    %c0_149 = arith.constant 0 : index
    %235 = vector.load %arg1[%c29_147, %c0_148, %c0_149] : memref<49x8x4xf32, #tpu.memory_space<vmem>>, vector<1x8x4xf32>
    %236 = vector.shape_cast %235 : vector<1x8x4xf32> to vector<8x4xf32>
    %cst_150 = arith.constant dense<0.000000e+00> : vector<8x512xf32>
    %237 = tpu.matmul %236, %234, %cst_150 {dimension_numbers = #tpu.dot_dimension_numbers<[1], [0], [0], [1], [0, 0, 1, 1], [], []>} : vector<8x4xf32>, vector<4x512xf32>, vector<8x512xf32> -> vector<8x512xf32>
    %238 = arith.addf %230, %237 : vector<8x512xf32>
    %c497_i32 = arith.constant 497 : i32
    %239 = tpu.dynamic_rotate %0 by %c497_i32 dim 1 : vector<4x512xf32>, i32 -> vector<4x512xf32>
    %c30 = arith.constant 30 : index
    %c0_151 = arith.constant 0 : index
    %240 = vector.load %arg3[%c30, %c0_151] : memref<49x512xf32, #tpu.memory_space<vmem>>, vector<1x512xf32>
    %241 = vector.broadcast %240 : vector<1x512xf32> to vector<4x512xf32>
    %242 = arith.mulf %239, %241 : vector<4x512xf32>
    %c30_152 = arith.constant 30 : index
    %c0_153 = arith.constant 0 : index
    %c0_154 = arith.constant 0 : index
    %243 = vector.load %arg1[%c30_152, %c0_153, %c0_154] : memref<49x8x4xf32, #tpu.memory_space<vmem>>, vector<1x8x4xf32>
    %244 = vector.shape_cast %243 : vector<1x8x4xf32> to vector<8x4xf32>
    %cst_155 = arith.constant dense<0.000000e+00> : vector<8x512xf32>
    %245 = tpu.matmul %244, %242, %cst_155 {dimension_numbers = #tpu.dot_dimension_numbers<[1], [0], [0], [1], [0, 0, 1, 1], [], []>} : vector<8x4xf32>, vector<4x512xf32>, vector<8x512xf32> -> vector<8x512xf32>
    %246 = arith.addf %238, %245 : vector<8x512xf32>
    %c496_i32 = arith.constant 496 : i32
    %247 = tpu.dynamic_rotate %0 by %c496_i32 dim 1 : vector<4x512xf32>, i32 -> vector<4x512xf32>
    %c31 = arith.constant 31 : index
    %c0_156 = arith.constant 0 : index
    %248 = vector.load %arg3[%c31, %c0_156] : memref<49x512xf32, #tpu.memory_space<vmem>>, vector<1x512xf32>
    %249 = vector.broadcast %248 : vector<1x512xf32> to vector<4x512xf32>
    %250 = arith.mulf %247, %249 : vector<4x512xf32>
    %c31_157 = arith.constant 31 : index
    %c0_158 = arith.constant 0 : index
    %c0_159 = arith.constant 0 : index
    %251 = vector.load %arg1[%c31_157, %c0_158, %c0_159] : memref<49x8x4xf32, #tpu.memory_space<vmem>>, vector<1x8x4xf32>
    %252 = vector.shape_cast %251 : vector<1x8x4xf32> to vector<8x4xf32>
    %cst_160 = arith.constant dense<0.000000e+00> : vector<8x512xf32>
    %253 = tpu.matmul %252, %250, %cst_160 {dimension_numbers = #tpu.dot_dimension_numbers<[1], [0], [0], [1], [0, 0, 1, 1], [], []>} : vector<8x4xf32>, vector<4x512xf32>, vector<8x512xf32> -> vector<8x512xf32>
    %254 = arith.addf %246, %253 : vector<8x512xf32>
    %c495_i32 = arith.constant 495 : i32
    %255 = tpu.dynamic_rotate %0 by %c495_i32 dim 1 : vector<4x512xf32>, i32 -> vector<4x512xf32>
    %c32 = arith.constant 32 : index
    %c0_161 = arith.constant 0 : index
    %256 = vector.load %arg3[%c32, %c0_161] : memref<49x512xf32, #tpu.memory_space<vmem>>, vector<1x512xf32>
    %257 = vector.broadcast %256 : vector<1x512xf32> to vector<4x512xf32>
    %258 = arith.mulf %255, %257 : vector<4x512xf32>
    %c32_162 = arith.constant 32 : index
    %c0_163 = arith.constant 0 : index
    %c0_164 = arith.constant 0 : index
    %259 = vector.load %arg1[%c32_162, %c0_163, %c0_164] : memref<49x8x4xf32, #tpu.memory_space<vmem>>, vector<1x8x4xf32>
    %260 = vector.shape_cast %259 : vector<1x8x4xf32> to vector<8x4xf32>
    %cst_165 = arith.constant dense<0.000000e+00> : vector<8x512xf32>
    %261 = tpu.matmul %260, %258, %cst_165 {dimension_numbers = #tpu.dot_dimension_numbers<[1], [0], [0], [1], [0, 0, 1, 1], [], []>} : vector<8x4xf32>, vector<4x512xf32>, vector<8x512xf32> -> vector<8x512xf32>
    %262 = arith.addf %254, %261 : vector<8x512xf32>
    %c494_i32 = arith.constant 494 : i32
    %263 = tpu.dynamic_rotate %0 by %c494_i32 dim 1 : vector<4x512xf32>, i32 -> vector<4x512xf32>
    %c33 = arith.constant 33 : index
    %c0_166 = arith.constant 0 : index
    %264 = vector.load %arg3[%c33, %c0_166] : memref<49x512xf32, #tpu.memory_space<vmem>>, vector<1x512xf32>
    %265 = vector.broadcast %264 : vector<1x512xf32> to vector<4x512xf32>
    %266 = arith.mulf %263, %265 : vector<4x512xf32>
    %c33_167 = arith.constant 33 : index
    %c0_168 = arith.constant 0 : index
    %c0_169 = arith.constant 0 : index
    %267 = vector.load %arg1[%c33_167, %c0_168, %c0_169] : memref<49x8x4xf32, #tpu.memory_space<vmem>>, vector<1x8x4xf32>
    %268 = vector.shape_cast %267 : vector<1x8x4xf32> to vector<8x4xf32>
    %cst_170 = arith.constant dense<0.000000e+00> : vector<8x512xf32>
    %269 = tpu.matmul %268, %266, %cst_170 {dimension_numbers = #tpu.dot_dimension_numbers<[1], [0], [0], [1], [0, 0, 1, 1], [], []>} : vector<8x4xf32>, vector<4x512xf32>, vector<8x512xf32> -> vector<8x512xf32>
    %270 = arith.addf %262, %269 : vector<8x512xf32>
    %c493_i32 = arith.constant 493 : i32
    %271 = tpu.dynamic_rotate %0 by %c493_i32 dim 1 : vector<4x512xf32>, i32 -> vector<4x512xf32>
    %c34 = arith.constant 34 : index
    %c0_171 = arith.constant 0 : index
    %272 = vector.load %arg3[%c34, %c0_171] : memref<49x512xf32, #tpu.memory_space<vmem>>, vector<1x512xf32>
    %273 = vector.broadcast %272 : vector<1x512xf32> to vector<4x512xf32>
    %274 = arith.mulf %271, %273 : vector<4x512xf32>
    %c34_172 = arith.constant 34 : index
    %c0_173 = arith.constant 0 : index
    %c0_174 = arith.constant 0 : index
    %275 = vector.load %arg1[%c34_172, %c0_173, %c0_174] : memref<49x8x4xf32, #tpu.memory_space<vmem>>, vector<1x8x4xf32>
    %276 = vector.shape_cast %275 : vector<1x8x4xf32> to vector<8x4xf32>
    %cst_175 = arith.constant dense<0.000000e+00> : vector<8x512xf32>
    %277 = tpu.matmul %276, %274, %cst_175 {dimension_numbers = #tpu.dot_dimension_numbers<[1], [0], [0], [1], [0, 0, 1, 1], [], []>} : vector<8x4xf32>, vector<4x512xf32>, vector<8x512xf32> -> vector<8x512xf32>
    %278 = arith.addf %270, %277 : vector<8x512xf32>
    %c483_i32 = arith.constant 483 : i32
    %279 = tpu.dynamic_rotate %0 by %c483_i32 dim 1 : vector<4x512xf32>, i32 -> vector<4x512xf32>
    %c35 = arith.constant 35 : index
    %c0_176 = arith.constant 0 : index
    %280 = vector.load %arg3[%c35, %c0_176] : memref<49x512xf32, #tpu.memory_space<vmem>>, vector<1x512xf32>
    %281 = vector.broadcast %280 : vector<1x512xf32> to vector<4x512xf32>
    %282 = arith.mulf %279, %281 : vector<4x512xf32>
    %c35_177 = arith.constant 35 : index
    %c0_178 = arith.constant 0 : index
    %c0_179 = arith.constant 0 : index
    %283 = vector.load %arg1[%c35_177, %c0_178, %c0_179] : memref<49x8x4xf32, #tpu.memory_space<vmem>>, vector<1x8x4xf32>
    %284 = vector.shape_cast %283 : vector<1x8x4xf32> to vector<8x4xf32>
    %cst_180 = arith.constant dense<0.000000e+00> : vector<8x512xf32>
    %285 = tpu.matmul %284, %282, %cst_180 {dimension_numbers = #tpu.dot_dimension_numbers<[1], [0], [0], [1], [0, 0, 1, 1], [], []>} : vector<8x4xf32>, vector<4x512xf32>, vector<8x512xf32> -> vector<8x512xf32>
    %286 = arith.addf %278, %285 : vector<8x512xf32>
    %c482_i32 = arith.constant 482 : i32
    %287 = tpu.dynamic_rotate %0 by %c482_i32 dim 1 : vector<4x512xf32>, i32 -> vector<4x512xf32>
    %c36 = arith.constant 36 : index
    %c0_181 = arith.constant 0 : index
    %288 = vector.load %arg3[%c36, %c0_181] : memref<49x512xf32, #tpu.memory_space<vmem>>, vector<1x512xf32>
    %289 = vector.broadcast %288 : vector<1x512xf32> to vector<4x512xf32>
    %290 = arith.mulf %287, %289 : vector<4x512xf32>
    %c36_182 = arith.constant 36 : index
    %c0_183 = arith.constant 0 : index
    %c0_184 = arith.constant 0 : index
    %291 = vector.load %arg1[%c36_182, %c0_183, %c0_184] : memref<49x8x4xf32, #tpu.memory_space<vmem>>, vector<1x8x4xf32>
    %292 = vector.shape_cast %291 : vector<1x8x4xf32> to vector<8x4xf32>
    %cst_185 = arith.constant dense<0.000000e+00> : vector<8x512xf32>
    %293 = tpu.matmul %292, %290, %cst_185 {dimension_numbers = #tpu.dot_dimension_numbers<[1], [0], [0], [1], [0, 0, 1, 1], [], []>} : vector<8x4xf32>, vector<4x512xf32>, vector<8x512xf32> -> vector<8x512xf32>
    %294 = arith.addf %286, %293 : vector<8x512xf32>
    %c481_i32 = arith.constant 481 : i32
    %295 = tpu.dynamic_rotate %0 by %c481_i32 dim 1 : vector<4x512xf32>, i32 -> vector<4x512xf32>
    %c37 = arith.constant 37 : index
    %c0_186 = arith.constant 0 : index
    %296 = vector.load %arg3[%c37, %c0_186] : memref<49x512xf32, #tpu.memory_space<vmem>>, vector<1x512xf32>
    %297 = vector.broadcast %296 : vector<1x512xf32> to vector<4x512xf32>
    %298 = arith.mulf %295, %297 : vector<4x512xf32>
    %c37_187 = arith.constant 37 : index
    %c0_188 = arith.constant 0 : index
    %c0_189 = arith.constant 0 : index
    %299 = vector.load %arg1[%c37_187, %c0_188, %c0_189] : memref<49x8x4xf32, #tpu.memory_space<vmem>>, vector<1x8x4xf32>
    %300 = vector.shape_cast %299 : vector<1x8x4xf32> to vector<8x4xf32>
    %cst_190 = arith.constant dense<0.000000e+00> : vector<8x512xf32>
    %301 = tpu.matmul %300, %298, %cst_190 {dimension_numbers = #tpu.dot_dimension_numbers<[1], [0], [0], [1], [0, 0, 1, 1], [], []>} : vector<8x4xf32>, vector<4x512xf32>, vector<8x512xf32> -> vector<8x512xf32>
    %302 = arith.addf %294, %301 : vector<8x512xf32>
    %c480_i32 = arith.constant 480 : i32
    %303 = tpu.dynamic_rotate %0 by %c480_i32 dim 1 : vector<4x512xf32>, i32 -> vector<4x512xf32>
    %c38 = arith.constant 38 : index
    %c0_191 = arith.constant 0 : index
    %304 = vector.load %arg3[%c38, %c0_191] : memref<49x512xf32, #tpu.memory_space<vmem>>, vector<1x512xf32>
    %305 = vector.broadcast %304 : vector<1x512xf32> to vector<4x512xf32>
    %306 = arith.mulf %303, %305 : vector<4x512xf32>
    %c38_192 = arith.constant 38 : index
    %c0_193 = arith.constant 0 : index
    %c0_194 = arith.constant 0 : index
    %307 = vector.load %arg1[%c38_192, %c0_193, %c0_194] : memref<49x8x4xf32, #tpu.memory_space<vmem>>, vector<1x8x4xf32>
    %308 = vector.shape_cast %307 : vector<1x8x4xf32> to vector<8x4xf32>
    %cst_195 = arith.constant dense<0.000000e+00> : vector<8x512xf32>
    %309 = tpu.matmul %308, %306, %cst_195 {dimension_numbers = #tpu.dot_dimension_numbers<[1], [0], [0], [1], [0, 0, 1, 1], [], []>} : vector<8x4xf32>, vector<4x512xf32>, vector<8x512xf32> -> vector<8x512xf32>
    %310 = arith.addf %302, %309 : vector<8x512xf32>
    %c479_i32 = arith.constant 479 : i32
    %311 = tpu.dynamic_rotate %0 by %c479_i32 dim 1 : vector<4x512xf32>, i32 -> vector<4x512xf32>
    %c39 = arith.constant 39 : index
    %c0_196 = arith.constant 0 : index
    %312 = vector.load %arg3[%c39, %c0_196] : memref<49x512xf32, #tpu.memory_space<vmem>>, vector<1x512xf32>
    %313 = vector.broadcast %312 : vector<1x512xf32> to vector<4x512xf32>
    %314 = arith.mulf %311, %313 : vector<4x512xf32>
    %c39_197 = arith.constant 39 : index
    %c0_198 = arith.constant 0 : index
    %c0_199 = arith.constant 0 : index
    %315 = vector.load %arg1[%c39_197, %c0_198, %c0_199] : memref<49x8x4xf32, #tpu.memory_space<vmem>>, vector<1x8x4xf32>
    %316 = vector.shape_cast %315 : vector<1x8x4xf32> to vector<8x4xf32>
    %cst_200 = arith.constant dense<0.000000e+00> : vector<8x512xf32>
    %317 = tpu.matmul %316, %314, %cst_200 {dimension_numbers = #tpu.dot_dimension_numbers<[1], [0], [0], [1], [0, 0, 1, 1], [], []>} : vector<8x4xf32>, vector<4x512xf32>, vector<8x512xf32> -> vector<8x512xf32>
    %318 = arith.addf %310, %317 : vector<8x512xf32>
    %c478_i32 = arith.constant 478 : i32
    %319 = tpu.dynamic_rotate %0 by %c478_i32 dim 1 : vector<4x512xf32>, i32 -> vector<4x512xf32>
    %c40 = arith.constant 40 : index
    %c0_201 = arith.constant 0 : index
    %320 = vector.load %arg3[%c40, %c0_201] : memref<49x512xf32, #tpu.memory_space<vmem>>, vector<1x512xf32>
    %321 = vector.broadcast %320 : vector<1x512xf32> to vector<4x512xf32>
    %322 = arith.mulf %319, %321 : vector<4x512xf32>
    %c40_202 = arith.constant 40 : index
    %c0_203 = arith.constant 0 : index
    %c0_204 = arith.constant 0 : index
    %323 = vector.load %arg1[%c40_202, %c0_203, %c0_204] : memref<49x8x4xf32, #tpu.memory_space<vmem>>, vector<1x8x4xf32>
    %324 = vector.shape_cast %323 : vector<1x8x4xf32> to vector<8x4xf32>
    %cst_205 = arith.constant dense<0.000000e+00> : vector<8x512xf32>
    %325 = tpu.matmul %324, %322, %cst_205 {dimension_numbers = #tpu.dot_dimension_numbers<[1], [0], [0], [1], [0, 0, 1, 1], [], []>} : vector<8x4xf32>, vector<4x512xf32>, vector<8x512xf32> -> vector<8x512xf32>
    %326 = arith.addf %318, %325 : vector<8x512xf32>
    %c477_i32 = arith.constant 477 : i32
    %327 = tpu.dynamic_rotate %0 by %c477_i32 dim 1 : vector<4x512xf32>, i32 -> vector<4x512xf32>
    %c41 = arith.constant 41 : index
    %c0_206 = arith.constant 0 : index
    %328 = vector.load %arg3[%c41, %c0_206] : memref<49x512xf32, #tpu.memory_space<vmem>>, vector<1x512xf32>
    %329 = vector.broadcast %328 : vector<1x512xf32> to vector<4x512xf32>
    %330 = arith.mulf %327, %329 : vector<4x512xf32>
    %c41_207 = arith.constant 41 : index
    %c0_208 = arith.constant 0 : index
    %c0_209 = arith.constant 0 : index
    %331 = vector.load %arg1[%c41_207, %c0_208, %c0_209] : memref<49x8x4xf32, #tpu.memory_space<vmem>>, vector<1x8x4xf32>
    %332 = vector.shape_cast %331 : vector<1x8x4xf32> to vector<8x4xf32>
    %cst_210 = arith.constant dense<0.000000e+00> : vector<8x512xf32>
    %333 = tpu.matmul %332, %330, %cst_210 {dimension_numbers = #tpu.dot_dimension_numbers<[1], [0], [0], [1], [0, 0, 1, 1], [], []>} : vector<8x4xf32>, vector<4x512xf32>, vector<8x512xf32> -> vector<8x512xf32>
    %334 = arith.addf %326, %333 : vector<8x512xf32>
    %c467_i32 = arith.constant 467 : i32
    %335 = tpu.dynamic_rotate %0 by %c467_i32 dim 1 : vector<4x512xf32>, i32 -> vector<4x512xf32>
    %c42 = arith.constant 42 : index
    %c0_211 = arith.constant 0 : index
    %336 = vector.load %arg3[%c42, %c0_211] : memref<49x512xf32, #tpu.memory_space<vmem>>, vector<1x512xf32>
    %337 = vector.broadcast %336 : vector<1x512xf32> to vector<4x512xf32>
    %338 = arith.mulf %335, %337 : vector<4x512xf32>
    %c42_212 = arith.constant 42 : index
    %c0_213 = arith.constant 0 : index
    %c0_214 = arith.constant 0 : index
    %339 = vector.load %arg1[%c42_212, %c0_213, %c0_214] : memref<49x8x4xf32, #tpu.memory_space<vmem>>, vector<1x8x4xf32>
    %340 = vector.shape_cast %339 : vector<1x8x4xf32> to vector<8x4xf32>
    %cst_215 = arith.constant dense<0.000000e+00> : vector<8x512xf32>
    %341 = tpu.matmul %340, %338, %cst_215 {dimension_numbers = #tpu.dot_dimension_numbers<[1], [0], [0], [1], [0, 0, 1, 1], [], []>} : vector<8x4xf32>, vector<4x512xf32>, vector<8x512xf32> -> vector<8x512xf32>
    %342 = arith.addf %334, %341 : vector<8x512xf32>
    %c466_i32 = arith.constant 466 : i32
    %343 = tpu.dynamic_rotate %0 by %c466_i32 dim 1 : vector<4x512xf32>, i32 -> vector<4x512xf32>
    %c43 = arith.constant 43 : index
    %c0_216 = arith.constant 0 : index
    %344 = vector.load %arg3[%c43, %c0_216] : memref<49x512xf32, #tpu.memory_space<vmem>>, vector<1x512xf32>
    %345 = vector.broadcast %344 : vector<1x512xf32> to vector<4x512xf32>
    %346 = arith.mulf %343, %345 : vector<4x512xf32>
    %c43_217 = arith.constant 43 : index
    %c0_218 = arith.constant 0 : index
    %c0_219 = arith.constant 0 : index
    %347 = vector.load %arg1[%c43_217, %c0_218, %c0_219] : memref<49x8x4xf32, #tpu.memory_space<vmem>>, vector<1x8x4xf32>
    %348 = vector.shape_cast %347 : vector<1x8x4xf32> to vector<8x4xf32>
    %cst_220 = arith.constant dense<0.000000e+00> : vector<8x512xf32>
    %349 = tpu.matmul %348, %346, %cst_220 {dimension_numbers = #tpu.dot_dimension_numbers<[1], [0], [0], [1], [0, 0, 1, 1], [], []>} : vector<8x4xf32>, vector<4x512xf32>, vector<8x512xf32> -> vector<8x512xf32>
    %350 = arith.addf %342, %349 : vector<8x512xf32>
    %c465_i32 = arith.constant 465 : i32
    %351 = tpu.dynamic_rotate %0 by %c465_i32 dim 1 : vector<4x512xf32>, i32 -> vector<4x512xf32>
    %c44 = arith.constant 44 : index
    %c0_221 = arith.constant 0 : index
    %352 = vector.load %arg3[%c44, %c0_221] : memref<49x512xf32, #tpu.memory_space<vmem>>, vector<1x512xf32>
    %353 = vector.broadcast %352 : vector<1x512xf32> to vector<4x512xf32>
    %354 = arith.mulf %351, %353 : vector<4x512xf32>
    %c44_222 = arith.constant 44 : index
    %c0_223 = arith.constant 0 : index
    %c0_224 = arith.constant 0 : index
    %355 = vector.load %arg1[%c44_222, %c0_223, %c0_224] : memref<49x8x4xf32, #tpu.memory_space<vmem>>, vector<1x8x4xf32>
    %356 = vector.shape_cast %355 : vector<1x8x4xf32> to vector<8x4xf32>
    %cst_225 = arith.constant dense<0.000000e+00> : vector<8x512xf32>
    %357 = tpu.matmul %356, %354, %cst_225 {dimension_numbers = #tpu.dot_dimension_numbers<[1], [0], [0], [1], [0, 0, 1, 1], [], []>} : vector<8x4xf32>, vector<4x512xf32>, vector<8x512xf32> -> vector<8x512xf32>
    %358 = arith.addf %350, %357 : vector<8x512xf32>
    %c464_i32 = arith.constant 464 : i32
    %359 = tpu.dynamic_rotate %0 by %c464_i32 dim 1 : vector<4x512xf32>, i32 -> vector<4x512xf32>
    %c45 = arith.constant 45 : index
    %c0_226 = arith.constant 0 : index
    %360 = vector.load %arg3[%c45, %c0_226] : memref<49x512xf32, #tpu.memory_space<vmem>>, vector<1x512xf32>
    %361 = vector.broadcast %360 : vector<1x512xf32> to vector<4x512xf32>
    %362 = arith.mulf %359, %361 : vector<4x512xf32>
    %c45_227 = arith.constant 45 : index
    %c0_228 = arith.constant 0 : index
    %c0_229 = arith.constant 0 : index
    %363 = vector.load %arg1[%c45_227, %c0_228, %c0_229] : memref<49x8x4xf32, #tpu.memory_space<vmem>>, vector<1x8x4xf32>
    %364 = vector.shape_cast %363 : vector<1x8x4xf32> to vector<8x4xf32>
    %cst_230 = arith.constant dense<0.000000e+00> : vector<8x512xf32>
    %365 = tpu.matmul %364, %362, %cst_230 {dimension_numbers = #tpu.dot_dimension_numbers<[1], [0], [0], [1], [0, 0, 1, 1], [], []>} : vector<8x4xf32>, vector<4x512xf32>, vector<8x512xf32> -> vector<8x512xf32>
    %366 = arith.addf %358, %365 : vector<8x512xf32>
    %c463_i32 = arith.constant 463 : i32
    %367 = tpu.dynamic_rotate %0 by %c463_i32 dim 1 : vector<4x512xf32>, i32 -> vector<4x512xf32>
    %c46 = arith.constant 46 : index
    %c0_231 = arith.constant 0 : index
    %368 = vector.load %arg3[%c46, %c0_231] : memref<49x512xf32, #tpu.memory_space<vmem>>, vector<1x512xf32>
    %369 = vector.broadcast %368 : vector<1x512xf32> to vector<4x512xf32>
    %370 = arith.mulf %367, %369 : vector<4x512xf32>
    %c46_232 = arith.constant 46 : index
    %c0_233 = arith.constant 0 : index
    %c0_234 = arith.constant 0 : index
    %371 = vector.load %arg1[%c46_232, %c0_233, %c0_234] : memref<49x8x4xf32, #tpu.memory_space<vmem>>, vector<1x8x4xf32>
    %372 = vector.shape_cast %371 : vector<1x8x4xf32> to vector<8x4xf32>
    %cst_235 = arith.constant dense<0.000000e+00> : vector<8x512xf32>
    %373 = tpu.matmul %372, %370, %cst_235 {dimension_numbers = #tpu.dot_dimension_numbers<[1], [0], [0], [1], [0, 0, 1, 1], [], []>} : vector<8x4xf32>, vector<4x512xf32>, vector<8x512xf32> -> vector<8x512xf32>
    %374 = arith.addf %366, %373 : vector<8x512xf32>
    %c462_i32 = arith.constant 462 : i32
    %375 = tpu.dynamic_rotate %0 by %c462_i32 dim 1 : vector<4x512xf32>, i32 -> vector<4x512xf32>
    %c47 = arith.constant 47 : index
    %c0_236 = arith.constant 0 : index
    %376 = vector.load %arg3[%c47, %c0_236] : memref<49x512xf32, #tpu.memory_space<vmem>>, vector<1x512xf32>
    %377 = vector.broadcast %376 : vector<1x512xf32> to vector<4x512xf32>
    %378 = arith.mulf %375, %377 : vector<4x512xf32>
    %c47_237 = arith.constant 47 : index
    %c0_238 = arith.constant 0 : index
    %c0_239 = arith.constant 0 : index
    %379 = vector.load %arg1[%c47_237, %c0_238, %c0_239] : memref<49x8x4xf32, #tpu.memory_space<vmem>>, vector<1x8x4xf32>
    %380 = vector.shape_cast %379 : vector<1x8x4xf32> to vector<8x4xf32>
    %cst_240 = arith.constant dense<0.000000e+00> : vector<8x512xf32>
    %381 = tpu.matmul %380, %378, %cst_240 {dimension_numbers = #tpu.dot_dimension_numbers<[1], [0], [0], [1], [0, 0, 1, 1], [], []>} : vector<8x4xf32>, vector<4x512xf32>, vector<8x512xf32> -> vector<8x512xf32>
    %382 = arith.addf %374, %381 : vector<8x512xf32>
    %c461_i32 = arith.constant 461 : i32
    %383 = tpu.dynamic_rotate %0 by %c461_i32 dim 1 : vector<4x512xf32>, i32 -> vector<4x512xf32>
    %c48 = arith.constant 48 : index
    %c0_241 = arith.constant 0 : index
    %384 = vector.load %arg3[%c48, %c0_241] : memref<49x512xf32, #tpu.memory_space<vmem>>, vector<1x512xf32>
    %385 = vector.broadcast %384 : vector<1x512xf32> to vector<4x512xf32>
    %386 = arith.mulf %383, %385 : vector<4x512xf32>
    %c48_242 = arith.constant 48 : index
    %c0_243 = arith.constant 0 : index
    %c0_244 = arith.constant 0 : index
    %387 = vector.load %arg1[%c48_242, %c0_243, %c0_244] : memref<49x8x4xf32, #tpu.memory_space<vmem>>, vector<1x8x4xf32>
    %388 = vector.shape_cast %387 : vector<1x8x4xf32> to vector<8x4xf32>
    %cst_245 = arith.constant dense<0.000000e+00> : vector<8x512xf32>
    %389 = tpu.matmul %388, %386, %cst_245 {dimension_numbers = #tpu.dot_dimension_numbers<[1], [0], [0], [1], [0, 0, 1, 1], [], []>} : vector<8x4xf32>, vector<4x512xf32>, vector<8x512xf32> -> vector<8x512xf32>
    %390 = arith.addf %382, %389 : vector<8x512xf32>
    %c0_246 = arith.constant 0 : index
    %c0_247 = arith.constant 0 : index
    %391 = vector.load %arg2[%c0_246, %c0_247] : memref<8x1xf32, #tpu.memory_space<vmem>>, vector<8x1xf32>
    %392 = vector.broadcast %391 : vector<8x1xf32> to vector<8x512xf32>
    %393 = arith.addf %390, %392 : vector<8x512xf32>
    %cst_248 = arith.constant 0.000000e+00 : f32
    %394 = vector.broadcast %cst_248 : f32 to vector<8x512xf32>
    %395 = arith.maximumf %393, %394 : vector<8x512xf32>
    %c17_i32_249 = arith.constant 17 : i32
    %396 = tpu.dynamic_rotate %395 by %c17_i32_249 dim 1 : vector<8x512xf32>, i32 -> vector<8x512xf32>
    %c0_250 = arith.constant 0 : index
    %c0_251 = arith.constant 0 : index
    %397 = vector.load %arg6[%c0_250, %c0_251] : memref<9x512xf32, #tpu.memory_space<vmem>>, vector<1x512xf32>
    %398 = vector.broadcast %397 : vector<1x512xf32> to vector<8x512xf32>
    %399 = arith.mulf %396, %398 : vector<8x512xf32>
    %c0_252 = arith.constant 0 : index
    %c0_253 = arith.constant 0 : index
    %c0_254 = arith.constant 0 : index
    %400 = vector.load %arg4[%c0_252, %c0_253, %c0_254] : memref<9x8x8xf32, #tpu.memory_space<vmem>>, vector<1x8x8xf32>
    %401 = vector.shape_cast %400 : vector<1x8x8xf32> to vector<8x8xf32>
    %cst_255 = arith.constant dense<0.000000e+00> : vector<8x512xf32>
    %402 = tpu.matmul %401, %399, %cst_255 {dimension_numbers = #tpu.dot_dimension_numbers<[1], [0], [0], [1], [0, 0, 1, 1], [], []>} : vector<8x8xf32>, vector<8x512xf32>, vector<8x512xf32> -> vector<8x512xf32>
    %c16_i32_256 = arith.constant 16 : i32
    %403 = tpu.dynamic_rotate %395 by %c16_i32_256 dim 1 : vector<8x512xf32>, i32 -> vector<8x512xf32>
    %c1_257 = arith.constant 1 : index
    %c0_258 = arith.constant 0 : index
    %404 = vector.load %arg6[%c1_257, %c0_258] : memref<9x512xf32, #tpu.memory_space<vmem>>, vector<1x512xf32>
    %405 = vector.broadcast %404 : vector<1x512xf32> to vector<8x512xf32>
    %406 = arith.mulf %403, %405 : vector<8x512xf32>
    %c1_259 = arith.constant 1 : index
    %c0_260 = arith.constant 0 : index
    %c0_261 = arith.constant 0 : index
    %407 = vector.load %arg4[%c1_259, %c0_260, %c0_261] : memref<9x8x8xf32, #tpu.memory_space<vmem>>, vector<1x8x8xf32>
    %408 = vector.shape_cast %407 : vector<1x8x8xf32> to vector<8x8xf32>
    %cst_262 = arith.constant dense<0.000000e+00> : vector<8x512xf32>
    %409 = tpu.matmul %408, %406, %cst_262 {dimension_numbers = #tpu.dot_dimension_numbers<[1], [0], [0], [1], [0, 0, 1, 1], [], []>} : vector<8x8xf32>, vector<8x512xf32>, vector<8x512xf32> -> vector<8x512xf32>
    %410 = arith.addf %402, %409 : vector<8x512xf32>
    %c15_i32_263 = arith.constant 15 : i32
    %411 = tpu.dynamic_rotate %395 by %c15_i32_263 dim 1 : vector<8x512xf32>, i32 -> vector<8x512xf32>
    %c2_264 = arith.constant 2 : index
    %c0_265 = arith.constant 0 : index
    %412 = vector.load %arg6[%c2_264, %c0_265] : memref<9x512xf32, #tpu.memory_space<vmem>>, vector<1x512xf32>
    %413 = vector.broadcast %412 : vector<1x512xf32> to vector<8x512xf32>
    %414 = arith.mulf %411, %413 : vector<8x512xf32>
    %c2_266 = arith.constant 2 : index
    %c0_267 = arith.constant 0 : index
    %c0_268 = arith.constant 0 : index
    %415 = vector.load %arg4[%c2_266, %c0_267, %c0_268] : memref<9x8x8xf32, #tpu.memory_space<vmem>>, vector<1x8x8xf32>
    %416 = vector.shape_cast %415 : vector<1x8x8xf32> to vector<8x8xf32>
    %cst_269 = arith.constant dense<0.000000e+00> : vector<8x512xf32>
    %417 = tpu.matmul %416, %414, %cst_269 {dimension_numbers = #tpu.dot_dimension_numbers<[1], [0], [0], [1], [0, 0, 1, 1], [], []>} : vector<8x8xf32>, vector<8x512xf32>, vector<8x512xf32> -> vector<8x512xf32>
    %418 = arith.addf %410, %417 : vector<8x512xf32>
    %c1_i32_270 = arith.constant 1 : i32
    %419 = tpu.dynamic_rotate %395 by %c1_i32_270 dim 1 : vector<8x512xf32>, i32 -> vector<8x512xf32>
    %c3_271 = arith.constant 3 : index
    %c0_272 = arith.constant 0 : index
    %420 = vector.load %arg6[%c3_271, %c0_272] : memref<9x512xf32, #tpu.memory_space<vmem>>, vector<1x512xf32>
    %421 = vector.broadcast %420 : vector<1x512xf32> to vector<8x512xf32>
    %422 = arith.mulf %419, %421 : vector<8x512xf32>
    %c3_273 = arith.constant 3 : index
    %c0_274 = arith.constant 0 : index
    %c0_275 = arith.constant 0 : index
    %423 = vector.load %arg4[%c3_273, %c0_274, %c0_275] : memref<9x8x8xf32, #tpu.memory_space<vmem>>, vector<1x8x8xf32>
    %424 = vector.shape_cast %423 : vector<1x8x8xf32> to vector<8x8xf32>
    %cst_276 = arith.constant dense<0.000000e+00> : vector<8x512xf32>
    %425 = tpu.matmul %424, %422, %cst_276 {dimension_numbers = #tpu.dot_dimension_numbers<[1], [0], [0], [1], [0, 0, 1, 1], [], []>} : vector<8x8xf32>, vector<8x512xf32>, vector<8x512xf32> -> vector<8x512xf32>
    %426 = arith.addf %418, %425 : vector<8x512xf32>
    %c4_277 = arith.constant 4 : index
    %c0_278 = arith.constant 0 : index
    %427 = vector.load %arg6[%c4_277, %c0_278] : memref<9x512xf32, #tpu.memory_space<vmem>>, vector<1x512xf32>
    %428 = vector.broadcast %427 : vector<1x512xf32> to vector<8x512xf32>
    %429 = arith.mulf %395, %428 : vector<8x512xf32>
    %c4_279 = arith.constant 4 : index
    %c0_280 = arith.constant 0 : index
    %c0_281 = arith.constant 0 : index
    %430 = vector.load %arg4[%c4_279, %c0_280, %c0_281] : memref<9x8x8xf32, #tpu.memory_space<vmem>>, vector<1x8x8xf32>
    %431 = vector.shape_cast %430 : vector<1x8x8xf32> to vector<8x8xf32>
    %cst_282 = arith.constant dense<0.000000e+00> : vector<8x512xf32>
    %432 = tpu.matmul %431, %429, %cst_282 {dimension_numbers = #tpu.dot_dimension_numbers<[1], [0], [0], [1], [0, 0, 1, 1], [], []>} : vector<8x8xf32>, vector<8x512xf32>, vector<8x512xf32> -> vector<8x512xf32>
    %433 = arith.addf %426, %432 : vector<8x512xf32>
    %c511_i32_283 = arith.constant 511 : i32
    %434 = tpu.dynamic_rotate %395 by %c511_i32_283 dim 1 : vector<8x512xf32>, i32 -> vector<8x512xf32>
    %c5_284 = arith.constant 5 : index
    %c0_285 = arith.constant 0 : index
    %435 = vector.load %arg6[%c5_284, %c0_285] : memref<9x512xf32, #tpu.memory_space<vmem>>, vector<1x512xf32>
    %436 = vector.broadcast %435 : vector<1x512xf32> to vector<8x512xf32>
    %437 = arith.mulf %434, %436 : vector<8x512xf32>
    %c5_286 = arith.constant 5 : index
    %c0_287 = arith.constant 0 : index
    %c0_288 = arith.constant 0 : index
    %438 = vector.load %arg4[%c5_286, %c0_287, %c0_288] : memref<9x8x8xf32, #tpu.memory_space<vmem>>, vector<1x8x8xf32>
    %439 = vector.shape_cast %438 : vector<1x8x8xf32> to vector<8x8xf32>
    %cst_289 = arith.constant dense<0.000000e+00> : vector<8x512xf32>
    %440 = tpu.matmul %439, %437, %cst_289 {dimension_numbers = #tpu.dot_dimension_numbers<[1], [0], [0], [1], [0, 0, 1, 1], [], []>} : vector<8x8xf32>, vector<8x512xf32>, vector<8x512xf32> -> vector<8x512xf32>
    %441 = arith.addf %433, %440 : vector<8x512xf32>
    %c497_i32_290 = arith.constant 497 : i32
    %442 = tpu.dynamic_rotate %395 by %c497_i32_290 dim 1 : vector<8x512xf32>, i32 -> vector<8x512xf32>
    %c6_291 = arith.constant 6 : index
    %c0_292 = arith.constant 0 : index
    %443 = vector.load %arg6[%c6_291, %c0_292] : memref<9x512xf32, #tpu.memory_space<vmem>>, vector<1x512xf32>
    %444 = vector.broadcast %443 : vector<1x512xf32> to vector<8x512xf32>
    %445 = arith.mulf %442, %444 : vector<8x512xf32>
    %c6_293 = arith.constant 6 : index
    %c0_294 = arith.constant 0 : index
    %c0_295 = arith.constant 0 : index
    %446 = vector.load %arg4[%c6_293, %c0_294, %c0_295] : memref<9x8x8xf32, #tpu.memory_space<vmem>>, vector<1x8x8xf32>
    %447 = vector.shape_cast %446 : vector<1x8x8xf32> to vector<8x8xf32>
    %cst_296 = arith.constant dense<0.000000e+00> : vector<8x512xf32>
    %448 = tpu.matmul %447, %445, %cst_296 {dimension_numbers = #tpu.dot_dimension_numbers<[1], [0], [0], [1], [0, 0, 1, 1], [], []>} : vector<8x8xf32>, vector<8x512xf32>, vector<8x512xf32> -> vector<8x512xf32>
    %449 = arith.addf %441, %448 : vector<8x512xf32>
    %c496_i32_297 = arith.constant 496 : i32
    %450 = tpu.dynamic_rotate %395 by %c496_i32_297 dim 1 : vector<8x512xf32>, i32 -> vector<8x512xf32>
    %c7_298 = arith.constant 7 : index
    %c0_299 = arith.constant 0 : index
    %451 = vector.load %arg6[%c7_298, %c0_299] : memref<9x512xf32, #tpu.memory_space<vmem>>, vector<1x512xf32>
    %452 = vector.broadcast %451 : vector<1x512xf32> to vector<8x512xf32>
    %453 = arith.mulf %450, %452 : vector<8x512xf32>
    %c7_300 = arith.constant 7 : index
    %c0_301 = arith.constant 0 : index
    %c0_302 = arith.constant 0 : index
    %454 = vector.load %arg4[%c7_300, %c0_301, %c0_302] : memref<9x8x8xf32, #tpu.memory_space<vmem>>, vector<1x8x8xf32>
    %455 = vector.shape_cast %454 : vector<1x8x8xf32> to vector<8x8xf32>
    %cst_303 = arith.constant dense<0.000000e+00> : vector<8x512xf32>
    %456 = tpu.matmul %455, %453, %cst_303 {dimension_numbers = #tpu.dot_dimension_numbers<[1], [0], [0], [1], [0, 0, 1, 1], [], []>} : vector<8x8xf32>, vector<8x512xf32>, vector<8x512xf32> -> vector<8x512xf32>
    %457 = arith.addf %449, %456 : vector<8x512xf32>
    %c495_i32_304 = arith.constant 495 : i32
    %458 = tpu.dynamic_rotate %395 by %c495_i32_304 dim 1 : vector<8x512xf32>, i32 -> vector<8x512xf32>
    %c8_305 = arith.constant 8 : index
    %c0_306 = arith.constant 0 : index
    %459 = vector.load %arg6[%c8_305, %c0_306] : memref<9x512xf32, #tpu.memory_space<vmem>>, vector<1x512xf32>
    %460 = vector.broadcast %459 : vector<1x512xf32> to vector<8x512xf32>
    %461 = arith.mulf %458, %460 : vector<8x512xf32>
    %c8_307 = arith.constant 8 : index
    %c0_308 = arith.constant 0 : index
    %c0_309 = arith.constant 0 : index
    %462 = vector.load %arg4[%c8_307, %c0_308, %c0_309] : memref<9x8x8xf32, #tpu.memory_space<vmem>>, vector<1x8x8xf32>
    %463 = vector.shape_cast %462 : vector<1x8x8xf32> to vector<8x8xf32>
    %cst_310 = arith.constant dense<0.000000e+00> : vector<8x512xf32>
    %464 = tpu.matmul %463, %461, %cst_310 {dimension_numbers = #tpu.dot_dimension_numbers<[1], [0], [0], [1], [0, 0, 1, 1], [], []>} : vector<8x8xf32>, vector<8x512xf32>, vector<8x512xf32> -> vector<8x512xf32>
    %465 = arith.addf %457, %464 : vector<8x512xf32>
    %c0_311 = arith.constant 0 : index
    %c0_312 = arith.constant 0 : index
    %466 = vector.load %arg5[%c0_311, %c0_312] : memref<8x1xf32, #tpu.memory_space<vmem>>, vector<8x1xf32>
    %467 = vector.broadcast %466 : vector<8x1xf32> to vector<8x512xf32>
    %468 = arith.addf %465, %467 : vector<8x512xf32>
    %cst_313 = arith.constant 0.000000e+00 : f32
    %469 = vector.broadcast %cst_313 : f32 to vector<8x512xf32>
    %470 = arith.maximumf %468, %469 : vector<8x512xf32>
    %c511_i32_314 = arith.constant 511 : i32
    %471 = tpu.dynamic_rotate %470 by %c511_i32_314 dim 1 : vector<8x512xf32>, i32 -> vector<8x512xf32>
    %472 = arith.maximumf %470, %471 : vector<8x512xf32>
    %c496_i32_315 = arith.constant 496 : i32
    %473 = tpu.dynamic_rotate %470 by %c496_i32_315 dim 1 : vector<8x512xf32>, i32 -> vector<8x512xf32>
    %474 = arith.maximumf %472, %473 : vector<8x512xf32>
    %c495_i32_316 = arith.constant 495 : i32
    %475 = tpu.dynamic_rotate %470 by %c495_i32_316 dim 1 : vector<8x512xf32>, i32 -> vector<8x512xf32>
    %476 = arith.maximumf %474, %475 : vector<8x512xf32>
    %c0_317 = arith.constant 0 : index
    %c0_318 = arith.constant 0 : index
    %477 = vector.load %arg7[%c0_317, %c0_318] : memref<512x128xf32, #tpu.memory_space<vmem>>, vector<512x128xf32>
    %cst_319 = arith.constant dense<0.000000e+00> : vector<8x128xf32>
    %478 = tpu.matmul %476, %477, %cst_319 {dimension_numbers = #tpu.dot_dimension_numbers<[1], [0], [0], [1], [0, 0, 1, 1], [], []>} : vector<8x512xf32>, vector<512x128xf32>, vector<8x128xf32> -> vector<8x128xf32>
    %c0_320 = arith.constant 0 : index
    %c0_321 = arith.constant 0 : index
    %479 = vector.load %arg8[%c0_320, %c0_321] : memref<8x8xf32, #tpu.memory_space<vmem>>, vector<8x8xf32>
    %cst_322 = arith.constant dense<0.000000e+00> : vector<8x128xf32>
    %480 = tpu.matmul %479, %478, %cst_322 {dimension_numbers = #tpu.dot_dimension_numbers<[1], [0], [0], [1], [0, 0, 1, 1], [], []>} : vector<8x8xf32>, vector<8x128xf32>, vector<8x128xf32> -> vector<8x128xf32>
    %c0_323 = arith.constant 0 : index
    %c0_324 = arith.constant 0 : index
    %481 = vector.load %arg9[%c0_323, %c0_324] : memref<8x1xf32, #tpu.memory_space<vmem>>, vector<8x1xf32>
    %482 = vector.broadcast %481 : vector<8x1xf32> to vector<8x128xf32>
    %483 = arith.addf %480, %482 : vector<8x128xf32>
    %cst_325 = arith.constant 0.000000e+00 : f32
    %484 = vector.broadcast %cst_325 : f32 to vector<8x128xf32>
    %485 = arith.maximumf %483, %484 : vector<8x128xf32>
    %c9_i32 = arith.constant 9 : i32
    %486 = tpu.dynamic_rotate %485 by %c9_i32 dim 1 : vector<8x128xf32>, i32 -> vector<8x128xf32>
    %c0_326 = arith.constant 0 : index
    %c0_327 = arith.constant 0 : index
    %487 = vector.load %arg12[%c0_326, %c0_327] : memref<9x128xf32, #tpu.memory_space<vmem>>, vector<1x128xf32>
    %488 = vector.broadcast %487 : vector<1x128xf32> to vector<8x128xf32>
    %489 = arith.mulf %486, %488 : vector<8x128xf32>
    %c0_328 = arith.constant 0 : index
    %c0_329 = arith.constant 0 : index
    %c0_330 = arith.constant 0 : index
    %490 = vector.load %arg10[%c0_328, %c0_329, %c0_330] : memref<9x8x8xf32, #tpu.memory_space<vmem>>, vector<1x8x8xf32>
    %491 = vector.shape_cast %490 : vector<1x8x8xf32> to vector<8x8xf32>
    %cst_331 = arith.constant dense<0.000000e+00> : vector<8x128xf32>
    %492 = tpu.matmul %491, %489, %cst_331 {dimension_numbers = #tpu.dot_dimension_numbers<[1], [0], [0], [1], [0, 0, 1, 1], [], []>} : vector<8x8xf32>, vector<8x128xf32>, vector<8x128xf32> -> vector<8x128xf32>
    %c8_i32 = arith.constant 8 : i32
    %493 = tpu.dynamic_rotate %485 by %c8_i32 dim 1 : vector<8x128xf32>, i32 -> vector<8x128xf32>
    %c1_332 = arith.constant 1 : index
    %c0_333 = arith.constant 0 : index
    %494 = vector.load %arg12[%c1_332, %c0_333] : memref<9x128xf32, #tpu.memory_space<vmem>>, vector<1x128xf32>
    %495 = vector.broadcast %494 : vector<1x128xf32> to vector<8x128xf32>
    %496 = arith.mulf %493, %495 : vector<8x128xf32>
    %c1_334 = arith.constant 1 : index
    %c0_335 = arith.constant 0 : index
    %c0_336 = arith.constant 0 : index
    %497 = vector.load %arg10[%c1_334, %c0_335, %c0_336] : memref<9x8x8xf32, #tpu.memory_space<vmem>>, vector<1x8x8xf32>
    %498 = vector.shape_cast %497 : vector<1x8x8xf32> to vector<8x8xf32>
    %cst_337 = arith.constant dense<0.000000e+00> : vector<8x128xf32>
    %499 = tpu.matmul %498, %496, %cst_337 {dimension_numbers = #tpu.dot_dimension_numbers<[1], [0], [0], [1], [0, 0, 1, 1], [], []>} : vector<8x8xf32>, vector<8x128xf32>, vector<8x128xf32> -> vector<8x128xf32>
    %500 = arith.addf %492, %499 : vector<8x128xf32>
    %c7_i32 = arith.constant 7 : i32
    %501 = tpu.dynamic_rotate %485 by %c7_i32 dim 1 : vector<8x128xf32>, i32 -> vector<8x128xf32>
    %c2_338 = arith.constant 2 : index
    %c0_339 = arith.constant 0 : index
    %502 = vector.load %arg12[%c2_338, %c0_339] : memref<9x128xf32, #tpu.memory_space<vmem>>, vector<1x128xf32>
    %503 = vector.broadcast %502 : vector<1x128xf32> to vector<8x128xf32>
    %504 = arith.mulf %501, %503 : vector<8x128xf32>
    %c2_340 = arith.constant 2 : index
    %c0_341 = arith.constant 0 : index
    %c0_342 = arith.constant 0 : index
    %505 = vector.load %arg10[%c2_340, %c0_341, %c0_342] : memref<9x8x8xf32, #tpu.memory_space<vmem>>, vector<1x8x8xf32>
    %506 = vector.shape_cast %505 : vector<1x8x8xf32> to vector<8x8xf32>
    %cst_343 = arith.constant dense<0.000000e+00> : vector<8x128xf32>
    %507 = tpu.matmul %506, %504, %cst_343 {dimension_numbers = #tpu.dot_dimension_numbers<[1], [0], [0], [1], [0, 0, 1, 1], [], []>} : vector<8x8xf32>, vector<8x128xf32>, vector<8x128xf32> -> vector<8x128xf32>
    %508 = arith.addf %500, %507 : vector<8x128xf32>
    %c1_i32_344 = arith.constant 1 : i32
    %509 = tpu.dynamic_rotate %485 by %c1_i32_344 dim 1 : vector<8x128xf32>, i32 -> vector<8x128xf32>
    %c3_345 = arith.constant 3 : index
    %c0_346 = arith.constant 0 : index
    %510 = vector.load %arg12[%c3_345, %c0_346] : memref<9x128xf32, #tpu.memory_space<vmem>>, vector<1x128xf32>
    %511 = vector.broadcast %510 : vector<1x128xf32> to vector<8x128xf32>
    %512 = arith.mulf %509, %511 : vector<8x128xf32>
    %c3_347 = arith.constant 3 : index
    %c0_348 = arith.constant 0 : index
    %c0_349 = arith.constant 0 : index
    %513 = vector.load %arg10[%c3_347, %c0_348, %c0_349] : memref<9x8x8xf32, #tpu.memory_space<vmem>>, vector<1x8x8xf32>
    %514 = vector.shape_cast %513 : vector<1x8x8xf32> to vector<8x8xf32>
    %cst_350 = arith.constant dense<0.000000e+00> : vector<8x128xf32>
    %515 = tpu.matmul %514, %512, %cst_350 {dimension_numbers = #tpu.dot_dimension_numbers<[1], [0], [0], [1], [0, 0, 1, 1], [], []>} : vector<8x8xf32>, vector<8x128xf32>, vector<8x128xf32> -> vector<8x128xf32>
    %516 = arith.addf %508, %515 : vector<8x128xf32>
    %c4_351 = arith.constant 4 : index
    %c0_352 = arith.constant 0 : index
    %517 = vector.load %arg12[%c4_351, %c0_352] : memref<9x128xf32, #tpu.memory_space<vmem>>, vector<1x128xf32>
    %518 = vector.broadcast %517 : vector<1x128xf32> to vector<8x128xf32>
    %519 = arith.mulf %485, %518 : vector<8x128xf32>
    %c4_353 = arith.constant 4 : index
    %c0_354 = arith.constant 0 : index
    %c0_355 = arith.constant 0 : index
    %520 = vector.load %arg10[%c4_353, %c0_354, %c0_355] : memref<9x8x8xf32, #tpu.memory_space<vmem>>, vector<1x8x8xf32>
    %521 = vector.shape_cast %520 : vector<1x8x8xf32> to vector<8x8xf32>
    %cst_356 = arith.constant dense<0.000000e+00> : vector<8x128xf32>
    %522 = tpu.matmul %521, %519, %cst_356 {dimension_numbers = #tpu.dot_dimension_numbers<[1], [0], [0], [1], [0, 0, 1, 1], [], []>} : vector<8x8xf32>, vector<8x128xf32>, vector<8x128xf32> -> vector<8x128xf32>
    %523 = arith.addf %516, %522 : vector<8x128xf32>
    %c127_i32 = arith.constant 127 : i32
    %524 = tpu.dynamic_rotate %485 by %c127_i32 dim 1 : vector<8x128xf32>, i32 -> vector<8x128xf32>
    %c5_357 = arith.constant 5 : index
    %c0_358 = arith.constant 0 : index
    %525 = vector.load %arg12[%c5_357, %c0_358] : memref<9x128xf32, #tpu.memory_space<vmem>>, vector<1x128xf32>
    %526 = vector.broadcast %525 : vector<1x128xf32> to vector<8x128xf32>
    %527 = arith.mulf %524, %526 : vector<8x128xf32>
    %c5_359 = arith.constant 5 : index
    %c0_360 = arith.constant 0 : index
    %c0_361 = arith.constant 0 : index
    %528 = vector.load %arg10[%c5_359, %c0_360, %c0_361] : memref<9x8x8xf32, #tpu.memory_space<vmem>>, vector<1x8x8xf32>
    %529 = vector.shape_cast %528 : vector<1x8x8xf32> to vector<8x8xf32>
    %cst_362 = arith.constant dense<0.000000e+00> : vector<8x128xf32>
    %530 = tpu.matmul %529, %527, %cst_362 {dimension_numbers = #tpu.dot_dimension_numbers<[1], [0], [0], [1], [0, 0, 1, 1], [], []>} : vector<8x8xf32>, vector<8x128xf32>, vector<8x128xf32> -> vector<8x128xf32>
    %531 = arith.addf %523, %530 : vector<8x128xf32>
    %c121_i32 = arith.constant 121 : i32
    %532 = tpu.dynamic_rotate %485 by %c121_i32 dim 1 : vector<8x128xf32>, i32 -> vector<8x128xf32>
    %c6_363 = arith.constant 6 : index
    %c0_364 = arith.constant 0 : index
    %533 = vector.load %arg12[%c6_363, %c0_364] : memref<9x128xf32, #tpu.memory_space<vmem>>, vector<1x128xf32>
    %534 = vector.broadcast %533 : vector<1x128xf32> to vector<8x128xf32>
    %535 = arith.mulf %532, %534 : vector<8x128xf32>
    %c6_365 = arith.constant 6 : index
    %c0_366 = arith.constant 0 : index
    %c0_367 = arith.constant 0 : index
    %536 = vector.load %arg10[%c6_365, %c0_366, %c0_367] : memref<9x8x8xf32, #tpu.memory_space<vmem>>, vector<1x8x8xf32>
    %537 = vector.shape_cast %536 : vector<1x8x8xf32> to vector<8x8xf32>
    %cst_368 = arith.constant dense<0.000000e+00> : vector<8x128xf32>
    %538 = tpu.matmul %537, %535, %cst_368 {dimension_numbers = #tpu.dot_dimension_numbers<[1], [0], [0], [1], [0, 0, 1, 1], [], []>} : vector<8x8xf32>, vector<8x128xf32>, vector<8x128xf32> -> vector<8x128xf32>
    %539 = arith.addf %531, %538 : vector<8x128xf32>
    %c120_i32 = arith.constant 120 : i32
    %540 = tpu.dynamic_rotate %485 by %c120_i32 dim 1 : vector<8x128xf32>, i32 -> vector<8x128xf32>
    %c7_369 = arith.constant 7 : index
    %c0_370 = arith.constant 0 : index
    %541 = vector.load %arg12[%c7_369, %c0_370] : memref<9x128xf32, #tpu.memory_space<vmem>>, vector<1x128xf32>
    %542 = vector.broadcast %541 : vector<1x128xf32> to vector<8x128xf32>
    %543 = arith.mulf %540, %542 : vector<8x128xf32>
    %c7_371 = arith.constant 7 : index
    %c0_372 = arith.constant 0 : index
    %c0_373 = arith.constant 0 : index
    %544 = vector.load %arg10[%c7_371, %c0_372, %c0_373] : memref<9x8x8xf32, #tpu.memory_space<vmem>>, vector<1x8x8xf32>
    %545 = vector.shape_cast %544 : vector<1x8x8xf32> to vector<8x8xf32>
    %cst_374 = arith.constant dense<0.000000e+00> : vector<8x128xf32>
    %546 = tpu.matmul %545, %543, %cst_374 {dimension_numbers = #tpu.dot_dimension_numbers<[1], [0], [0], [1], [0, 0, 1, 1], [], []>} : vector<8x8xf32>, vector<8x128xf32>, vector<8x128xf32> -> vector<8x128xf32>
    %547 = arith.addf %539, %546 : vector<8x128xf32>
    %c119_i32 = arith.constant 119 : i32
    %548 = tpu.dynamic_rotate %485 by %c119_i32 dim 1 : vector<8x128xf32>, i32 -> vector<8x128xf32>
    %c8_375 = arith.constant 8 : index
    %c0_376 = arith.constant 0 : index
    %549 = vector.load %arg12[%c8_375, %c0_376] : memref<9x128xf32, #tpu.memory_space<vmem>>, vector<1x128xf32>
    %550 = vector.broadcast %549 : vector<1x128xf32> to vector<8x128xf32>
    %551 = arith.mulf %548, %550 : vector<8x128xf32>
    %c8_377 = arith.constant 8 : index
    %c0_378 = arith.constant 0 : index
    %c0_379 = arith.constant 0 : index
    %552 = vector.load %arg10[%c8_377, %c0_378, %c0_379] : memref<9x8x8xf32, #tpu.memory_space<vmem>>, vector<1x8x8xf32>
    %553 = vector.shape_cast %552 : vector<1x8x8xf32> to vector<8x8xf32>
    %cst_380 = arith.constant dense<0.000000e+00> : vector<8x128xf32>
    %554 = tpu.matmul %553, %551, %cst_380 {dimension_numbers = #tpu.dot_dimension_numbers<[1], [0], [0], [1], [0, 0, 1, 1], [], []>} : vector<8x8xf32>, vector<8x128xf32>, vector<8x128xf32> -> vector<8x128xf32>
    %555 = arith.addf %547, %554 : vector<8x128xf32>
    %c0_381 = arith.constant 0 : index
    %c0_382 = arith.constant 0 : index
    %556 = vector.load %arg11[%c0_381, %c0_382] : memref<8x1xf32, #tpu.memory_space<vmem>>, vector<8x1xf32>
    %557 = vector.broadcast %556 : vector<8x1xf32> to vector<8x128xf32>
    %558 = arith.addf %555, %557 : vector<8x128xf32>
    %cst_383 = arith.constant 0.000000e+00 : f32
    %559 = vector.broadcast %cst_383 : f32 to vector<8x128xf32>
    %560 = arith.maximumf %558, %559 : vector<8x128xf32>
    %c0_384 = arith.constant 0 : index
    %c0_385 = arith.constant 0 : index
    %561 = vector.load %arg13[%c0_384, %c0_385] : memref<8x8xf32, #tpu.memory_space<vmem>>, vector<8x8xf32>
    %cst_386 = arith.constant dense<0.000000e+00> : vector<8x128xf32>
    %562 = tpu.matmul %561, %560, %cst_386 {dimension_numbers = #tpu.dot_dimension_numbers<[1], [0], [0], [1], [0, 0, 1, 1], [], []>} : vector<8x8xf32>, vector<8x128xf32>, vector<8x128xf32> -> vector<8x128xf32>
    %c0_387 = arith.constant 0 : index
    %c0_388 = arith.constant 0 : index
    %563 = vector.load %arg14[%c0_387, %c0_388] : memref<8x1xf32, #tpu.memory_space<vmem>>, vector<8x1xf32>
    %564 = vector.broadcast %563 : vector<8x1xf32> to vector<8x128xf32>
    %565 = arith.addf %562, %564 : vector<8x128xf32>
    %566 = arith.addf %565, %478 : vector<8x128xf32>
    %cst_389 = arith.constant 0.000000e+00 : f32
    %567 = vector.broadcast %cst_389 : f32 to vector<8x128xf32>
    %568 = arith.maximumf %566, %567 : vector<8x128xf32>
    %c127_i32_390 = arith.constant 127 : i32
    %569 = tpu.dynamic_rotate %568 by %c127_i32_390 dim 1 : vector<8x128xf32>, i32 -> vector<8x128xf32>
    %570 = arith.maximumf %568, %569 : vector<8x128xf32>
    %c120_i32_391 = arith.constant 120 : i32
    %571 = tpu.dynamic_rotate %568 by %c120_i32_391 dim 1 : vector<8x128xf32>, i32 -> vector<8x128xf32>
    %572 = arith.maximumf %570, %571 : vector<8x128xf32>
    %c119_i32_392 = arith.constant 119 : i32
    %573 = tpu.dynamic_rotate %568 by %c119_i32_392 dim 1 : vector<8x128xf32>, i32 -> vector<8x128xf32>
    %574 = arith.maximumf %572, %573 : vector<8x128xf32>
    %c0_393 = arith.constant 0 : index
    %c0_394 = arith.constant 0 : index
    %575 = vector.load %arg15[%c0_393, %c0_394] : memref<128x128xf32, #tpu.memory_space<vmem>>, vector<128x128xf32>
    %cst_395 = arith.constant dense<0.000000e+00> : vector<8x128xf32>
    %576 = tpu.matmul %574, %575, %cst_395 {dimension_numbers = #tpu.dot_dimension_numbers<[1], [0], [0], [1], [0, 0, 1, 1], [], []>} : vector<8x128xf32>, vector<128x128xf32>, vector<8x128xf32> -> vector<8x128xf32>
    %c0_396 = arith.constant 0 : index
    %c0_397 = arith.constant 0 : index
    %577 = vector.load %arg16[%c0_396, %c0_397] : memref<8x8xf32, #tpu.memory_space<vmem>>, vector<8x8xf32>
    %cst_398 = arith.constant dense<0.000000e+00> : vector<8x128xf32>
    %578 = tpu.matmul %577, %576, %cst_398 {dimension_numbers = #tpu.dot_dimension_numbers<[1], [0], [0], [1], [0, 0, 1, 1], [], []>} : vector<8x8xf32>, vector<8x128xf32>, vector<8x128xf32> -> vector<8x128xf32>
    %c0_399 = arith.constant 0 : index
    %c0_400 = arith.constant 0 : index
    %579 = vector.load %arg17[%c0_399, %c0_400] : memref<8x1xf32, #tpu.memory_space<vmem>>, vector<8x1xf32>
    %580 = vector.broadcast %579 : vector<8x1xf32> to vector<8x128xf32>
    %581 = arith.addf %578, %580 : vector<8x128xf32>
    %cst_401 = arith.constant 0.000000e+00 : f32
    %582 = vector.broadcast %cst_401 : f32 to vector<8x128xf32>
    %583 = arith.maximumf %581, %582 : vector<8x128xf32>
    %c5_i32 = arith.constant 5 : i32
    %584 = tpu.dynamic_rotate %583 by %c5_i32 dim 1 : vector<8x128xf32>, i32 -> vector<8x128xf32>
    %c0_402 = arith.constant 0 : index
    %c0_403 = arith.constant 0 : index
    %585 = vector.load %arg20[%c0_402, %c0_403] : memref<9x128xf32, #tpu.memory_space<vmem>>, vector<1x128xf32>
    %586 = vector.broadcast %585 : vector<1x128xf32> to vector<8x128xf32>
    %587 = arith.mulf %584, %586 : vector<8x128xf32>
    %c0_404 = arith.constant 0 : index
    %c0_405 = arith.constant 0 : index
    %c0_406 = arith.constant 0 : index
    %588 = vector.load %arg18[%c0_404, %c0_405, %c0_406] : memref<9x8x8xf32, #tpu.memory_space<vmem>>, vector<1x8x8xf32>
    %589 = vector.shape_cast %588 : vector<1x8x8xf32> to vector<8x8xf32>
    %cst_407 = arith.constant dense<0.000000e+00> : vector<8x128xf32>
    %590 = tpu.matmul %589, %587, %cst_407 {dimension_numbers = #tpu.dot_dimension_numbers<[1], [0], [0], [1], [0, 0, 1, 1], [], []>} : vector<8x8xf32>, vector<8x128xf32>, vector<8x128xf32> -> vector<8x128xf32>
    %c4_i32 = arith.constant 4 : i32
    %591 = tpu.dynamic_rotate %583 by %c4_i32 dim 1 : vector<8x128xf32>, i32 -> vector<8x128xf32>
    %c1_408 = arith.constant 1 : index
    %c0_409 = arith.constant 0 : index
    %592 = vector.load %arg20[%c1_408, %c0_409] : memref<9x128xf32, #tpu.memory_space<vmem>>, vector<1x128xf32>
    %593 = vector.broadcast %592 : vector<1x128xf32> to vector<8x128xf32>
    %594 = arith.mulf %591, %593 : vector<8x128xf32>
    %c1_410 = arith.constant 1 : index
    %c0_411 = arith.constant 0 : index
    %c0_412 = arith.constant 0 : index
    %595 = vector.load %arg18[%c1_410, %c0_411, %c0_412] : memref<9x8x8xf32, #tpu.memory_space<vmem>>, vector<1x8x8xf32>
    %596 = vector.shape_cast %595 : vector<1x8x8xf32> to vector<8x8xf32>
    %cst_413 = arith.constant dense<0.000000e+00> : vector<8x128xf32>
    %597 = tpu.matmul %596, %594, %cst_413 {dimension_numbers = #tpu.dot_dimension_numbers<[1], [0], [0], [1], [0, 0, 1, 1], [], []>} : vector<8x8xf32>, vector<8x128xf32>, vector<8x128xf32> -> vector<8x128xf32>
    %598 = arith.addf %590, %597 : vector<8x128xf32>
    %c3_i32_414 = arith.constant 3 : i32
    %599 = tpu.dynamic_rotate %583 by %c3_i32_414 dim 1 : vector<8x128xf32>, i32 -> vector<8x128xf32>
    %c2_415 = arith.constant 2 : index
    %c0_416 = arith.constant 0 : index
    %600 = vector.load %arg20[%c2_415, %c0_416] : memref<9x128xf32, #tpu.memory_space<vmem>>, vector<1x128xf32>
    %601 = vector.broadcast %600 : vector<1x128xf32> to vector<8x128xf32>
    %602 = arith.mulf %599, %601 : vector<8x128xf32>
    %c2_417 = arith.constant 2 : index
    %c0_418 = arith.constant 0 : index
    %c0_419 = arith.constant 0 : index
    %603 = vector.load %arg18[%c2_417, %c0_418, %c0_419] : memref<9x8x8xf32, #tpu.memory_space<vmem>>, vector<1x8x8xf32>
    %604 = vector.shape_cast %603 : vector<1x8x8xf32> to vector<8x8xf32>
    %cst_420 = arith.constant dense<0.000000e+00> : vector<8x128xf32>
    %605 = tpu.matmul %604, %602, %cst_420 {dimension_numbers = #tpu.dot_dimension_numbers<[1], [0], [0], [1], [0, 0, 1, 1], [], []>} : vector<8x8xf32>, vector<8x128xf32>, vector<8x128xf32> -> vector<8x128xf32>
    %606 = arith.addf %598, %605 : vector<8x128xf32>
    %c1_i32_421 = arith.constant 1 : i32
    %607 = tpu.dynamic_rotate %583 by %c1_i32_421 dim 1 : vector<8x128xf32>, i32 -> vector<8x128xf32>
    %c3_422 = arith.constant 3 : index
    %c0_423 = arith.constant 0 : index
    %608 = vector.load %arg20[%c3_422, %c0_423] : memref<9x128xf32, #tpu.memory_space<vmem>>, vector<1x128xf32>
    %609 = vector.broadcast %608 : vector<1x128xf32> to vector<8x128xf32>
    %610 = arith.mulf %607, %609 : vector<8x128xf32>
    %c3_424 = arith.constant 3 : index
    %c0_425 = arith.constant 0 : index
    %c0_426 = arith.constant 0 : index
    %611 = vector.load %arg18[%c3_424, %c0_425, %c0_426] : memref<9x8x8xf32, #tpu.memory_space<vmem>>, vector<1x8x8xf32>
    %612 = vector.shape_cast %611 : vector<1x8x8xf32> to vector<8x8xf32>
    %cst_427 = arith.constant dense<0.000000e+00> : vector<8x128xf32>
    %613 = tpu.matmul %612, %610, %cst_427 {dimension_numbers = #tpu.dot_dimension_numbers<[1], [0], [0], [1], [0, 0, 1, 1], [], []>} : vector<8x8xf32>, vector<8x128xf32>, vector<8x128xf32> -> vector<8x128xf32>
    %614 = arith.addf %606, %613 : vector<8x128xf32>
    %c4_428 = arith.constant 4 : index
    %c0_429 = arith.constant 0 : index
    %615 = vector.load %arg20[%c4_428, %c0_429] : memref<9x128xf32, #tpu.memory_space<vmem>>, vector<1x128xf32>
    %616 = vector.broadcast %615 : vector<1x128xf32> to vector<8x128xf32>
    %617 = arith.mulf %583, %616 : vector<8x128xf32>
    %c4_430 = arith.constant 4 : index
    %c0_431 = arith.constant 0 : index
    %c0_432 = arith.constant 0 : index
    %618 = vector.load %arg18[%c4_430, %c0_431, %c0_432] : memref<9x8x8xf32, #tpu.memory_space<vmem>>, vector<1x8x8xf32>
    %619 = vector.shape_cast %618 : vector<1x8x8xf32> to vector<8x8xf32>
    %cst_433 = arith.constant dense<0.000000e+00> : vector<8x128xf32>
    %620 = tpu.matmul %619, %617, %cst_433 {dimension_numbers = #tpu.dot_dimension_numbers<[1], [0], [0], [1], [0, 0, 1, 1], [], []>} : vector<8x8xf32>, vector<8x128xf32>, vector<8x128xf32> -> vector<8x128xf32>
    %621 = arith.addf %614, %620 : vector<8x128xf32>
    %c127_i32_434 = arith.constant 127 : i32
    %622 = tpu.dynamic_rotate %583 by %c127_i32_434 dim 1 : vector<8x128xf32>, i32 -> vector<8x128xf32>
    %c5_435 = arith.constant 5 : index
    %c0_436 = arith.constant 0 : index
    %623 = vector.load %arg20[%c5_435, %c0_436] : memref<9x128xf32, #tpu.memory_space<vmem>>, vector<1x128xf32>
    %624 = vector.broadcast %623 : vector<1x128xf32> to vector<8x128xf32>
    %625 = arith.mulf %622, %624 : vector<8x128xf32>
    %c5_437 = arith.constant 5 : index
    %c0_438 = arith.constant 0 : index
    %c0_439 = arith.constant 0 : index
    %626 = vector.load %arg18[%c5_437, %c0_438, %c0_439] : memref<9x8x8xf32, #tpu.memory_space<vmem>>, vector<1x8x8xf32>
    %627 = vector.shape_cast %626 : vector<1x8x8xf32> to vector<8x8xf32>
    %cst_440 = arith.constant dense<0.000000e+00> : vector<8x128xf32>
    %628 = tpu.matmul %627, %625, %cst_440 {dimension_numbers = #tpu.dot_dimension_numbers<[1], [0], [0], [1], [0, 0, 1, 1], [], []>} : vector<8x8xf32>, vector<8x128xf32>, vector<8x128xf32> -> vector<8x128xf32>
    %629 = arith.addf %621, %628 : vector<8x128xf32>
    %c125_i32 = arith.constant 125 : i32
    %630 = tpu.dynamic_rotate %583 by %c125_i32 dim 1 : vector<8x128xf32>, i32 -> vector<8x128xf32>
    %c6_441 = arith.constant 6 : index
    %c0_442 = arith.constant 0 : index
    %631 = vector.load %arg20[%c6_441, %c0_442] : memref<9x128xf32, #tpu.memory_space<vmem>>, vector<1x128xf32>
    %632 = vector.broadcast %631 : vector<1x128xf32> to vector<8x128xf32>
    %633 = arith.mulf %630, %632 : vector<8x128xf32>
    %c6_443 = arith.constant 6 : index
    %c0_444 = arith.constant 0 : index
    %c0_445 = arith.constant 0 : index
    %634 = vector.load %arg18[%c6_443, %c0_444, %c0_445] : memref<9x8x8xf32, #tpu.memory_space<vmem>>, vector<1x8x8xf32>
    %635 = vector.shape_cast %634 : vector<1x8x8xf32> to vector<8x8xf32>
    %cst_446 = arith.constant dense<0.000000e+00> : vector<8x128xf32>
    %636 = tpu.matmul %635, %633, %cst_446 {dimension_numbers = #tpu.dot_dimension_numbers<[1], [0], [0], [1], [0, 0, 1, 1], [], []>} : vector<8x8xf32>, vector<8x128xf32>, vector<8x128xf32> -> vector<8x128xf32>
    %637 = arith.addf %629, %636 : vector<8x128xf32>
    %c124_i32 = arith.constant 124 : i32
    %638 = tpu.dynamic_rotate %583 by %c124_i32 dim 1 : vector<8x128xf32>, i32 -> vector<8x128xf32>
    %c7_447 = arith.constant 7 : index
    %c0_448 = arith.constant 0 : index
    %639 = vector.load %arg20[%c7_447, %c0_448] : memref<9x128xf32, #tpu.memory_space<vmem>>, vector<1x128xf32>
    %640 = vector.broadcast %639 : vector<1x128xf32> to vector<8x128xf32>
    %641 = arith.mulf %638, %640 : vector<8x128xf32>
    %c7_449 = arith.constant 7 : index
    %c0_450 = arith.constant 0 : index
    %c0_451 = arith.constant 0 : index
    %642 = vector.load %arg18[%c7_449, %c0_450, %c0_451] : memref<9x8x8xf32, #tpu.memory_space<vmem>>, vector<1x8x8xf32>
    %643 = vector.shape_cast %642 : vector<1x8x8xf32> to vector<8x8xf32>
    %cst_452 = arith.constant dense<0.000000e+00> : vector<8x128xf32>
    %644 = tpu.matmul %643, %641, %cst_452 {dimension_numbers = #tpu.dot_dimension_numbers<[1], [0], [0], [1], [0, 0, 1, 1], [], []>} : vector<8x8xf32>, vector<8x128xf32>, vector<8x128xf32> -> vector<8x128xf32>
    %645 = arith.addf %637, %644 : vector<8x128xf32>
    %c123_i32 = arith.constant 123 : i32
    %646 = tpu.dynamic_rotate %583 by %c123_i32 dim 1 : vector<8x128xf32>, i32 -> vector<8x128xf32>
    %c8_453 = arith.constant 8 : index
    %c0_454 = arith.constant 0 : index
    %647 = vector.load %arg20[%c8_453, %c0_454] : memref<9x128xf32, #tpu.memory_space<vmem>>, vector<1x128xf32>
    %648 = vector.broadcast %647 : vector<1x128xf32> to vector<8x128xf32>
    %649 = arith.mulf %646, %648 : vector<8x128xf32>
    %c8_455 = arith.constant 8 : index
    %c0_456 = arith.constant 0 : index
    %c0_457 = arith.constant 0 : index
    %650 = vector.load %arg18[%c8_455, %c0_456, %c0_457] : memref<9x8x8xf32, #tpu.memory_space<vmem>>, vector<1x8x8xf32>
    %651 = vector.shape_cast %650 : vector<1x8x8xf32> to vector<8x8xf32>
    %cst_458 = arith.constant dense<0.000000e+00> : vector<8x128xf32>
    %652 = tpu.matmul %651, %649, %cst_458 {dimension_numbers = #tpu.dot_dimension_numbers<[1], [0], [0], [1], [0, 0, 1, 1], [], []>} : vector<8x8xf32>, vector<8x128xf32>, vector<8x128xf32> -> vector<8x128xf32>
    %653 = arith.addf %645, %652 : vector<8x128xf32>
    %c0_459 = arith.constant 0 : index
    %c0_460 = arith.constant 0 : index
    %654 = vector.load %arg19[%c0_459, %c0_460] : memref<8x1xf32, #tpu.memory_space<vmem>>, vector<8x1xf32>
    %655 = vector.broadcast %654 : vector<8x1xf32> to vector<8x128xf32>
    %656 = arith.addf %653, %655 : vector<8x128xf32>
    %cst_461 = arith.constant 0.000000e+00 : f32
    %657 = vector.broadcast %cst_461 : f32 to vector<8x128xf32>
    %658 = arith.maximumf %656, %657 : vector<8x128xf32>
    %c0_462 = arith.constant 0 : index
    %c0_463 = arith.constant 0 : index
    %659 = vector.load %arg21[%c0_462, %c0_463] : memref<8x8xf32, #tpu.memory_space<vmem>>, vector<8x8xf32>
    %cst_464 = arith.constant dense<0.000000e+00> : vector<8x128xf32>
    %660 = tpu.matmul %659, %658, %cst_464 {dimension_numbers = #tpu.dot_dimension_numbers<[1], [0], [0], [1], [0, 0, 1, 1], [], []>} : vector<8x8xf32>, vector<8x128xf32>, vector<8x128xf32> -> vector<8x128xf32>
    %c0_465 = arith.constant 0 : index
    %c0_466 = arith.constant 0 : index
    %661 = vector.load %arg22[%c0_465, %c0_466] : memref<8x1xf32, #tpu.memory_space<vmem>>, vector<8x1xf32>
    %662 = vector.broadcast %661 : vector<8x1xf32> to vector<8x128xf32>
    %663 = arith.addf %660, %662 : vector<8x128xf32>
    %664 = arith.addf %663, %576 : vector<8x128xf32>
    %c0_467 = arith.constant 0 : index
    %c0_468 = arith.constant 0 : index
    %665 = vector.load %arg23[%c0_467, %c0_468] : memref<16x8xf32, #tpu.memory_space<vmem>>, vector<16x8xf32>
    %cst_469 = arith.constant dense<0.000000e+00> : vector<16x128xf32>
    %666 = tpu.matmul %665, %664, %cst_469 {dimension_numbers = #tpu.dot_dimension_numbers<[1], [0], [0], [1], [0, 0, 1, 1], [], []>} : vector<16x8xf32>, vector<8x128xf32>, vector<16x128xf32> -> vector<16x128xf32>
    %c0_470 = arith.constant 0 : index
    %c0_471 = arith.constant 0 : index
    %667 = vector.load %arg24[%c0_470, %c0_471] : memref<16x1xf32, #tpu.memory_space<vmem>>, vector<16x1xf32>
    %668 = vector.broadcast %667 : vector<16x1xf32> to vector<16x128xf32>
    %669 = arith.addf %666, %668 : vector<16x128xf32>
    %cst_472 = arith.constant 0.000000e+00 : f32
    %670 = vector.broadcast %cst_472 : f32 to vector<16x128xf32>
    %671 = arith.maximumf %669, %670 : vector<16x128xf32>
    %c127_i32_473 = arith.constant 127 : i32
    %672 = tpu.dynamic_rotate %671 by %c127_i32_473 dim 1 : vector<16x128xf32>, i32 -> vector<16x128xf32>
    %673 = arith.maximumf %671, %672 : vector<16x128xf32>
    %c124_i32_474 = arith.constant 124 : i32
    %674 = tpu.dynamic_rotate %671 by %c124_i32_474 dim 1 : vector<16x128xf32>, i32 -> vector<16x128xf32>
    %675 = arith.maximumf %673, %674 : vector<16x128xf32>
    %c123_i32_475 = arith.constant 123 : i32
    %676 = tpu.dynamic_rotate %671 by %c123_i32_475 dim 1 : vector<16x128xf32>, i32 -> vector<16x128xf32>
    %677 = arith.maximumf %675, %676 : vector<16x128xf32>
    %c0_476 = arith.constant 0 : index
    %c0_477 = arith.constant 0 : index
    %678 = vector.load %arg25[%c0_476, %c0_477] : memref<128x128xf32, #tpu.memory_space<vmem>>, vector<128x128xf32>
    %cst_478 = arith.constant dense<0.000000e+00> : vector<16x128xf32>
    %679 = tpu.matmul %677, %678, %cst_478 {dimension_numbers = #tpu.dot_dimension_numbers<[1], [0], [0], [1], [0, 0, 1, 1], [], []>} : vector<16x128xf32>, vector<128x128xf32>, vector<16x128xf32> -> vector<16x128xf32>
    %c0_479 = arith.constant 0 : index
    %c0_480 = arith.constant 0 : index
    %c0_481 = arith.constant 0 : index
    %680 = vector.load %arg26[%c0_479, %c0_480, %c0_481] : memref<4x128x2xf32, #tpu.memory_space<vmem>>, vector<1x128x2xf32>
    %681 = vector.shape_cast %680 : vector<1x128x2xf32> to vector<128x2xf32>
    %cst_482 = arith.constant dense<0.000000e+00> : vector<16x2xf32>
    %682 = tpu.matmul %679, %681, %cst_482 {dimension_numbers = #tpu.dot_dimension_numbers<[1], [0], [0], [1], [0, 0, 1, 1], [], []>} : vector<16x128xf32>, vector<128x2xf32>, vector<16x2xf32> -> vector<16x2xf32>
    %c1_483 = arith.constant 1 : index
    %c0_484 = arith.constant 0 : index
    %c0_485 = arith.constant 0 : index
    %683 = vector.load %arg26[%c1_483, %c0_484, %c0_485] : memref<4x128x2xf32, #tpu.memory_space<vmem>>, vector<1x128x2xf32>
    %684 = vector.shape_cast %683 : vector<1x128x2xf32> to vector<128x2xf32>
    %cst_486 = arith.constant dense<0.000000e+00> : vector<16x2xf32>
    %685 = tpu.matmul %679, %684, %cst_486 {dimension_numbers = #tpu.dot_dimension_numbers<[1], [0], [0], [1], [0, 0, 1, 1], [], []>} : vector<16x128xf32>, vector<128x2xf32>, vector<16x2xf32> -> vector<16x2xf32>
    %686 = arith.maximumf %682, %685 : vector<16x2xf32>
    %c2_487 = arith.constant 2 : index
    %c0_488 = arith.constant 0 : index
    %c0_489 = arith.constant 0 : index
    %687 = vector.load %arg26[%c2_487, %c0_488, %c0_489] : memref<4x128x2xf32, #tpu.memory_space<vmem>>, vector<1x128x2xf32>
    %688 = vector.shape_cast %687 : vector<1x128x2xf32> to vector<128x2xf32>
    %cst_490 = arith.constant dense<0.000000e+00> : vector<16x2xf32>
    %689 = tpu.matmul %679, %688, %cst_490 {dimension_numbers = #tpu.dot_dimension_numbers<[1], [0], [0], [1], [0, 0, 1, 1], [], []>} : vector<16x128xf32>, vector<128x2xf32>, vector<16x2xf32> -> vector<16x2xf32>
    %690 = arith.maximumf %686, %689 : vector<16x2xf32>
    %c3_491 = arith.constant 3 : index
    %c0_492 = arith.constant 0 : index
    %c0_493 = arith.constant 0 : index
    %691 = vector.load %arg26[%c3_491, %c0_492, %c0_493] : memref<4x128x2xf32, #tpu.memory_space<vmem>>, vector<1x128x2xf32>
    %692 = vector.shape_cast %691 : vector<1x128x2xf32> to vector<128x2xf32>
    %cst_494 = arith.constant dense<0.000000e+00> : vector<16x2xf32>
    %693 = tpu.matmul %679, %692, %cst_494 {dimension_numbers = #tpu.dot_dimension_numbers<[1], [0], [0], [1], [0, 0, 1, 1], [], []>} : vector<16x128xf32>, vector<128x2xf32>, vector<16x2xf32> -> vector<16x2xf32>
    %694 = arith.maximumf %690, %693 : vector<16x2xf32>
    %c0_495 = arith.constant 0 : index
    %c0_496 = arith.constant 0 : index
    %695 = vector.load %arg27[%c0_495, %c0_496] : memref<32x16xf32, #tpu.memory_space<vmem>>, vector<32x16xf32>
    %cst_497 = arith.constant dense<0.000000e+00> : vector<32x2xf32>
    %696 = tpu.matmul %695, %694, %cst_497 {dimension_numbers = #tpu.dot_dimension_numbers<[1], [0], [0], [1], [0, 0, 1, 1], [], []>} : vector<32x16xf32>, vector<16x2xf32>, vector<32x2xf32> -> vector<32x2xf32>
    %c0_498 = arith.constant 0 : index
    %c0_499 = arith.constant 0 : index
    %697 = vector.load %arg28[%c0_498, %c0_499] : memref<32x1xf32, #tpu.memory_space<vmem>>, vector<32x1xf32>
    %698 = vector.broadcast %697 : vector<32x1xf32> to vector<32x2xf32>
    %699 = arith.addf %696, %698 : vector<32x2xf32>
    %cst_500 = arith.constant 0.000000e+00 : f32
    %700 = vector.broadcast %cst_500 : f32 to vector<32x2xf32>
    %701 = arith.maximumf %699, %700 : vector<32x2xf32>
    %c0_501 = arith.constant 0 : index
    %c0_502 = arith.constant 0 : index
    %702 = vector.load %arg29[%c0_501, %c0_502] : memref<16x32xf32, #tpu.memory_space<vmem>>, vector<16x32xf32>
    %cst_503 = arith.constant dense<0.000000e+00> : vector<16x2xf32>
    %703 = tpu.matmul %702, %701, %cst_503 {dimension_numbers = #tpu.dot_dimension_numbers<[1], [0], [0], [1], [0, 0, 1, 1], [], []>} : vector<16x32xf32>, vector<32x2xf32>, vector<16x2xf32> -> vector<16x2xf32>
    %c0_504 = arith.constant 0 : index
    %c0_505 = arith.constant 0 : index
    %704 = vector.load %arg30[%c0_504, %c0_505] : memref<16x1xf32, #tpu.memory_space<vmem>>, vector<16x1xf32>
    %705 = vector.broadcast %704 : vector<16x1xf32> to vector<16x2xf32>
    %706 = arith.addf %703, %705 : vector<16x2xf32>
    %c0_506 = arith.constant 0 : index
    %c0_507 = arith.constant 0 : index
    %707 = vector.load %arg31[%c0_506, %c0_507] : memref<16x2xf32, #tpu.memory_space<vmem>>, vector<16x2xf32>
    tpu.vector_store %arg31[%c0_506, %c0_507], %706 {strides = array<i32>} : memref<16x2xf32, #tpu.memory_space<vmem>>, vector<16x2xf32>,
    return
  }
}

</mosaic_0001>

<llo_original>
// kernel: fused_resnet_forward.1
$region0: #{fused_resnet_forward.1}
  #allocation0 [shape = 'u32[]', space=smem, size = 0x4, offset = 0x4, fixed_abs, tag = 'smem constant byte address 0x4 - core index']
  #allocation1 [shape = 'u32[72,128]{1,0:T(1,128)}', space=vmem, size = 0x9000, scoped, tag = 'internal scratch']
  %s0 = inlined_call_operand.smem [shape: u32[32], index: -1, kind: input, shape index: {}]
  %s1 = sld [smem:[%s0]]
  %s2 = scalar_lea.smem %s0, 1
  %s3 = sld [smem:[%s2]]
  %s4 = scalar_lea.smem %s0, 2
  %s5 = sld [smem:[%s4]]
  %s6 = scalar_lea.smem %s0, 3
  %s7 = sld [smem:[%s6]]
  %s8 = scalar_lea.smem %s0, 4
  %s9 = sld [smem:[%s8]]
  %s10 = scalar_lea.smem %s0, 5
  %s11 = sld [smem:[%s10]]
  %s12 = scalar_lea.smem %s0, 6
  %s13 = sld [smem:[%s12]]
  %s14 = scalar_lea.smem %s0, 7
  %s15 = sld [smem:[%s14]]
  %s16 = scalar_lea.smem %s0, 8
  %s17 = sld [smem:[%s16]]
  %s18 = scalar_lea.smem %s0, 9
  %s19 = sld [smem:[%s18]]
  %s20 = scalar_lea.smem %s0, 10
  %s21 = sld [smem:[%s20]]
  %s22 = scalar_lea.smem %s0, 11
  %s23 = sld [smem:[%s22]]
  %s24 = scalar_lea.smem %s0, 12
  %s25 = sld [smem:[%s24]]
  %s26 = scalar_lea.smem %s0, 13
  %s27 = sld [smem:[%s26]]
  %s28 = scalar_lea.smem %s0, 14
  %s29 = sld [smem:[%s28]]
  %s30 = scalar_lea.smem %s0, 15
  %s31 = sld [smem:[%s30]]
  %s32 = scalar_lea.smem %s0, 16
  %s33 = sld [smem:[%s32]]
  %s34 = scalar_lea.smem %s0, 17
  %s35 = sld [smem:[%s34]]
  %s36 = scalar_lea.smem %s0, 18
  %s37 = sld [smem:[%s36]]
  %s38 = scalar_lea.smem %s0, 19
  %s39 = sld [smem:[%s38]]
  %s40 = scalar_lea.smem %s0, 20
  %s41 = sld [smem:[%s40]]
  %s42 = scalar_lea.smem %s0, 21
  %s43 = sld [smem:[%s42]]
  %s44 = scalar_lea.smem %s0, 22
  %s45 = sld [smem:[%s44]]
  %s46 = scalar_lea.smem %s0, 23
  %s47 = sld [smem:[%s46]]
  %s48 = scalar_lea.smem %s0, 24
  %s49 = sld [smem:[%s48]]
  %s50 = scalar_lea.smem %s0, 25
  %s51 = sld [smem:[%s50]]
  %s52 = scalar_lea.smem %s0, 26
  %s53 = sld [smem:[%s52]]
  %s54 = scalar_lea.smem %s0, 27
  %s55 = sld [smem:[%s54]]
  %s56 = scalar_lea.smem %s0, 28
  %s57 = sld [smem:[%s56]]
  %s58 = scalar_lea.smem %s0, 29
  %s59 = sld [smem:[%s58]]
  %s60 = scalar_lea.smem %s0, 30
  %s61 = sld [smem:[%s60]]
  %s62 = scalar_lea.smem %s0, 31
  %s63 = sld [smem:[%s62]]
  %s64 = sld [smem:[#allocation0]]
  $region142: #{fused_resnet_forward.1} parent=0
    _
  %s66 = ssub.s32 1, %s64
  %s67 = scalar_select 0, %s66, %s64
  $region1: #{fused_resnet_forward.1} parent=0
    #allocation2 [shape = 'u8[262144]{0}', space=vmem, size = 0x40000, scoped, tag = 'input window, operand 7, single buffered']
    #allocation3 [shape = 's32[1]{0}', space=sflag, size = 0x4, scoped, tag = 'scoped memory for fused_resnet_forward.1']
    #allocation4 [shape = 'u8[65536]{0}', space=vmem, size = 0x10000, scoped, tag = 'input window, operand 15, single buffered']
    #allocation5 [shape = 's32[1]{0}', space=sflag, size = 0x4, scoped, tag = 'scoped memory for fused_resnet_forward.1']
    %68 = vsyncpa [#allocation3], 0
    %69 = vsyncpa [#allocation5], 0
    // Predicated region
    $region2: #{fused_resnet_forward.1} parent=1 // pred_check
      _
    $region3: #{fused_resnet_forward.1} parent=1 // pred_check_branch
      %71 = sbr.rel (0) target = $region5
    $region4: #{fused_resnet_forward.1} parent=1 // pred_region
      _
    $region5: #{fused_resnet_forward.1} parent=1 // pred_fallthru
      _
    // Predicated region
    $region6: #{fused_resnet_forward.1} parent=1 // pred_check
      _
    $region7: #{fused_resnet_forward.1} parent=1 // pred_check_branch
      %73 = sbr.rel (0) target = $region9
    $region8: #{fused_resnet_forward.1} parent=1 // pred_region
      _
    $region9: #{fused_resnet_forward.1} parent=1 // pred_fallthru
      _
    // Predicated region
    $region10: #{fused_resnet_forward.1} parent=1 // pred_check
      _
    $region11: #{fused_resnet_forward.1} parent=1 // pred_check_branch
      %75 = sbr.rel (0) target = $region13
    $region12: #{fused_resnet_forward.1} parent=1 // pred_region
      _
    $region13: #{fused_resnet_forward.1} parent=1 // pred_fallthru
      _
    // Predicated region
    $region14: #{fused_resnet_forward.1} parent=1 // pred_check
      _
    $region15: #{fused_resnet_forward.1} parent=1 // pred_check_branch
      %77 = sbr.rel (0) target = $region17
    $region16: #{fused_resnet_forward.1} parent=1 // pred_region
      _
    $region17: #{fused_resnet_forward.1} parent=1 // pred_fallthru
      _
    // Predicated region
    $region18: #{fused_resnet_forward.1} parent=1 // pred_check
      _
    $region19: #{fused_resnet_forward.1} parent=1 // pred_check_branch
      %79 = sbr.rel (0) target = $region21
    $region20: #{fused_resnet_forward.1} parent=1 // pred_region
      _
    $region21: #{fused_resnet_forward.1} parent=1 // pred_fallthru
      _
    // Predicated region
    $region22: #{fused_resnet_forward.1} parent=1 // pred_check
      _
    $region23: #{fused_resnet_forward.1} parent=1 // pred_check_branch
      %81 = sbr.rel (0) target = $region25
    $region24: #{fused_resnet_forward.1} parent=1 // pred_region
      _
    $region25: #{fused_resnet_forward.1} parent=1 // pred_fallthru
      _
    // Predicated region
    $region26: #{fused_resnet_forward.1} parent=1 // pred_check
      _
    $region27: #{fused_resnet_forward.1} parent=1 // pred_check_branch
      %83 = sbr.rel (0) target = $region29
    $region28: #{fused_resnet_forward.1} parent=1 // pred_region
      _
    $region29: #{fused_resnet_forward.1} parent=1 // pred_fallthru
      _
    // Predicated region
    $region30: #{fused_resnet_forward.1} parent=1 // pred_check
      _
    $region31: #{fused_resnet_forward.1} parent=1 // pred_check_branch
      %85 = sbr.rel (0) target = $region33
    $region32: #{fused_resnet_forward.1} parent=1 // pred_region
      %87 = vsyncadd [#allocation3], 0
      %s88 = sshll.u32 %s15, 4
      %s89 = int_to_ptr.hbm [resolvable:$true] %s88
      %s90 = sshll.u32 [#allocation2], 4
      %s91 = int_to_ptr.vmem [resolvable:$true] %s90
      %96 = dma.hbm_to_vmem [thread:$0]  %s89, 8192, %s91, [#allocation3], 128, 128, 8
    $region33: #{fused_resnet_forward.1} parent=1 // pred_fallthru
      _
    // Predicated region
    $region34: #{fused_resnet_forward.1} parent=1 // pred_check
      _
    $region35: #{fused_resnet_forward.1} parent=1 // pred_check_branch
      %98 = sbr.rel (0) target = $region37
    $region36: #{fused_resnet_forward.1} parent=1 // pred_region
      _
    $region37: #{fused_resnet_forward.1} parent=1 // pred_fallthru
      _
    // Predicated region
    $region38: #{fused_resnet_forward.1} parent=1 // pred_check
      _
    $region39: #{fused_resnet_forward.1} parent=1 // pred_check_branch
      %100 = sbr.rel (0) target = $region41
    $region40: #{fused_resnet_forward.1} parent=1 // pred_region
      _
    $region41: #{fused_resnet_forward.1} parent=1 // pred_fallthru
      _
    // Predicated region
    $region42: #{fused_resnet_forward.1} parent=1 // pred_check
      _
    $region43: #{fused_resnet_forward.1} parent=1 // pred_check_branch
      %102 = sbr.rel (0) target = $region45
    $region44: #{fused_resnet_forward.1} parent=1 // pred_region
      _
    $region45: #{fused_resnet_forward.1} parent=1 // pred_fallthru
      _
    // Predicated region
    $region46: #{fused_resnet_forward.1} parent=1 // pred_check
      _
    $region47: #{fused_resnet_forward.1} parent=1 // pred_check_branch
      %104 = sbr.rel (0) target = $region49
    $region48: #{fused_resnet_forward.1} parent=1 // pred_region
      _
    $region49: #{fused_resnet_forward.1} parent=1 // pred_fallthru
      _
    // Predicated region
    $region50: #{fused_resnet_forward.1} parent=1 // pred_check
      _
    $region51: #{fused_resnet_forward.1} parent=1 // pred_check_branch
      %106 = sbr.rel (0) target = $region53
    $region52: #{fused_resnet_forward.1} parent=1 // pred_region
      _
    $region53: #{fused_resnet_forward.1} parent=1 // pred_fallthru
      _
    // Predicated region
    $region54: #{fused_resnet_forward.1} parent=1 // pred_check
      _
    $region55: #{fused_resnet_forward.1} parent=1 // pred_check_branch
      %108 = sbr.rel (0) target = $region57
    $region56: #{fused_resnet_forward.1} parent=1 // pred_region
      _
    $region57: #{fused_resnet_forward.1} parent=1 // pred_fallthru
      _
    // Predicated region
    $region58: #{fused_resnet_forward.1} parent=1 // pred_check
      _
    $region59: #{fused_resnet_forward.1} parent=1 // pred_check_branch
      %110 = sbr.rel (0) target = $region61
    $region60: #{fused_resnet_forward.1} parent=1 // pred_region
      _
    $region61: #{fused_resnet_forward.1} parent=1 // pred_fallthru
      _
    // Predicated region
    $region62: #{fused_resnet_forward.1} parent=1 // pred_check
      _
    $region63: #{fused_resnet_forward.1} parent=1 // pred_check_branch
      %112 = sbr.rel (0) target = $region65
    $region64: #{fused_resnet_forward.1} parent=1 // pred_region
      %114 = vsyncadd [#allocation5], 0
      %s115 = sshll.u32 %s31, 4
      %s116 = int_to_ptr.hbm [resolvable:$true] %s115
      %s117 = sshll.u32 [#allocation4], 4
      %s118 = int_to_ptr.vmem [resolvable:$true] %s117
      %123 = dma.hbm_to_vmem [thread:$0]  %s116, 2048, %s118, [#allocation5], 128, 128, 8
    $region65: #{fused_resnet_forward.1} parent=1 // pred_fallthru
      _
    // Predicated region
    $region66: #{fused_resnet_forward.1} parent=1 // pred_check
      _
    $region67: #{fused_resnet_forward.1} parent=1 // pred_check_branch
      %125 = sbr.rel (0) target = $region69
    $region68: #{fused_resnet_forward.1} parent=1 // pred_region
      _
    $region69: #{fused_resnet_forward.1} parent=1 // pred_fallthru
      _
    // Predicated region
    $region70: #{fused_resnet_forward.1} parent=1 // pred_check
      _
    $region71: #{fused_resnet_forward.1} parent=1 // pred_check_branch
      %127 = sbr.rel (0) target = $region73
    $region72: #{fused_resnet_forward.1} parent=1 // pred_region
      _
    $region73: #{fused_resnet_forward.1} parent=1 // pred_fallthru
      _
    // Predicated region
    $region74: #{fused_resnet_forward.1} parent=1 // pred_check
      _
    $region75: #{fused_resnet_forward.1} parent=1 // pred_check_branch
      %129 = sbr.rel (0) target = $region77
    $region76: #{fused_resnet_forward.1} parent=1 // pred_region
      _
    $region77: #{fused_resnet_forward.1} parent=1 // pred_fallthru
      _
    // Predicated region
    $region78: #{fused_resnet_forward.1} parent=1 // pred_check
      _
    $region79: #{fused_resnet_forward.1} parent=1 // pred_check_branch
      %131 = sbr.rel (0) target = $region81
    $region80: #{fused_resnet_forward.1} parent=1 // pred_region
      _
    $region81: #{fused_resnet_forward.1} parent=1 // pred_fallthru
      _
    // Predicated region
    $region82: #{fused_resnet_forward.1} parent=1 // pred_check
      _
    $region83: #{fused_resnet_forward.1} parent=1 // pred_check_branch
      %133 = sbr.rel (0) target = $region85
    $region84: #{fused_resnet_forward.1} parent=1 // pred_region
      _
    $region85: #{fused_resnet_forward.1} parent=1 // pred_fallthru
      _
    // Predicated region
    $region86: #{fused_resnet_forward.1} parent=1 // pred_check
      _
    $region87: #{fused_resnet_forward.1} parent=1 // pred_check_branch
      %135 = sbr.rel (0) target = $region89
    $region88: #{fused_resnet_forward.1} parent=1 // pred_region
      _
    $region89: #{fused_resnet_forward.1} parent=1 // pred_fallthru
      _
    // Predicated region
    $region90: #{fused_resnet_forward.1} parent=1 // pred_check
      _
    $region91: #{fused_resnet_forward.1} parent=1 // pred_check_branch
      %137 = sbr.rel (0) target = $region93
    $region92: #{fused_resnet_forward.1} parent=1 // pred_region
      _
    $region93: #{fused_resnet_forward.1} parent=1 // pred_fallthru
      _
    // Predicated region
    $region94: #{fused_resnet_forward.1} parent=1 // pred_check
      _
    $region95: #{fused_resnet_forward.1} parent=1 // pred_check_branch
      %139 = sbr.rel (0) target = $region97
    $region96: #{fused_resnet_forward.1} parent=1 // pred_region
      _
    $region97: #{fused_resnet_forward.1} parent=1 // pred_fallthru
      _
    // Predicated region
    $region98: #{fused_resnet_forward.1} parent=1 // pred_check
      _
    $region99: #{fused_resnet_forward.1} parent=1 // pred_check_branch
      %141 = sbr.rel (0) target = $region101
    $region100: #{fused_resnet_forward.1} parent=1 // pred_region
      _
    $region101: #{fused_resnet_forward.1} parent=1 // pred_fallthru
      _
    // Predicated region
    $region102: #{fused_resnet_forward.1} parent=1 // pred_check
      _
    $region103: #{fused_resnet_forward.1} parent=1 // pred_check_branch
      %143 = sbr.rel (0) target = $region105
    $region104: #{fused_resnet_forward.1} parent=1 // pred_region
      _
    $region105: #{fused_resnet_forward.1} parent=1 // pred_fallthru
      _
    // Predicated region
    $region106: #{fused_resnet_forward.1} parent=1 // pred_check
      _
    $region107: #{fused_resnet_forward.1} parent=1 // pred_check_branch
      %145 = sbr.rel (0) target = $region109
    $region108: #{fused_resnet_forward.1} parent=1 // pred_region
      _
    $region109: #{fused_resnet_forward.1} parent=1 // pred_fallthru
      _
    // Predicated region
    $region110: #{fused_resnet_forward.1} parent=1 // pred_check
      _
    $region111: #{fused_resnet_forward.1} parent=1 // pred_check_branch
      %147 = sbr.rel (0) target = $region113
    $region112: #{fused_resnet_forward.1} parent=1 // pred_region
      _
    $region113: #{fused_resnet_forward.1} parent=1 // pred_fallthru
      _
    // Predicated region
    $region114: #{fused_resnet_forward.1} parent=1 // pred_check
      _
    $region115: #{fused_resnet_forward.1} parent=1 // pred_check_branch
      %149 = sbr.rel (0) target = $region117
    $region116: #{fused_resnet_forward.1} parent=1 // pred_region
      _
    $region117: #{fused_resnet_forward.1} parent=1 // pred_fallthru
      _
    // Predicated region
    $region118: #{fused_resnet_forward.1} parent=1 // pred_check
      _
    $region119: #{fused_resnet_forward.1} parent=1 // pred_check_branch
      %151 = sbr.rel (0) target = $region121
    $region120: #{fused_resnet_forward.1} parent=1 // pred_region
      _
    $region121: #{fused_resnet_forward.1} parent=1 // pred_fallthru
      _
    // Predicated region
    $region122: #{fused_resnet_forward.1} parent=1 // pred_check
      _
    $region123: #{fused_resnet_forward.1} parent=1 // pred_check_branch
      %153 = sbr.rel (0) target = $region125
    $region124: #{fused_resnet_forward.1} parent=1 // pred_region
      _
    $region125: #{fused_resnet_forward.1} parent=1 // pred_fallthru
      _
    // Predicated region
    $region126: #{fused_resnet_forward.1} parent=1 // pred_check
      _
    $region127: #{fused_resnet_forward.1} parent=1 // pred_check_branch
      %155 = sbr.rel (0) target = $region129
    $region128: #{fused_resnet_forward.1} parent=1 // pred_region
      %157 = dma.done [#allocation3], 8192
    $region129: #{fused_resnet_forward.1} parent=1 // pred_fallthru
      _
    // Predicated region
    $region130: #{fused_resnet_forward.1} parent=1 // pred_check
      _
    $region131: #{fused_resnet_forward.1} parent=1 // pred_check_branch
      %159 = sbr.rel (0) target = $region133
    $region132: #{fused_resnet_forward.1} parent=1 // pred_region
      %161 = dma.done [#allocation5], 2048
    $region133: #{fused_resnet_forward.1} parent=1 // pred_fallthru
      _
    %v162 = vld [vmem:[%s1] sm:$0xff]
    %v163 = vld [vmem:[%s1 + $0x8] sm:$0xff]
    %166 = vst [vmem:[#allocation1] ss:$2 sm:$0xff] %v162
    %s167 = scalar_lea.vmem [#allocation1], 16
    %168 = vst [vmem:[%s167] ss:$2 sm:$0xff] %v163
    %v169 = vld.sshfl [vmem:[#allocation1] sm:$0xff pattern:$0x75316420]
    %v170 = vld.sshfl [vmem:[#allocation1 + $0x8] sm:$0xff pattern:$0x75316420]
    %v171 = vld.sshfl [vmem:[#allocation1 + $0x10] sm:$0xff pattern:$0x75316420]
    %v172 = vld.sshfl [vmem:[#allocation1 + $0x18] sm:$0xff pattern:$0x75316420]
    %177 = vrot.lane.b32.xlu0 %v169, 51
    %v178 = vpop.permute.xlu0 %177
    %179 = vrot.lane.b32.xlu0 %v170, 51
    %v180 = vpop.permute.xlu0 %179
    %181 = vrot.lane.b32.xlu0 %v171, 51
    %v182 = vpop.permute.xlu0 %181
    %183 = vrot.lane.b32.xlu0 %v172, 51
    %v184 = vpop.permute.xlu0 %183
    %v185 = vlaneseq
    %v186 = vand.u32 %v185, 127
    %vm187 = vcmp.lt.s32.totalorder %v186, 51
    %v188 = vsel %vm187, %v182, %v184
    %v189 = vsel %vm187, %v180, %v182
    %v190 = vsel %vm187, %v178, %v180
    %v191 = vsel %vm187, %v184, %v178
    %v192 = vld [vmem:[%s7] ss:$8 sm:$0xf]
    %v194 = vperm.slane %v192, 0
    %v195 = vperm.slane %v192, 1
    %v196 = vperm.slane %v192, 2
    %v197 = vperm.slane %v192, 3
    %v202 = vmul.f32 %v191, %v194
    %v203 = vmul.f32 %v190, %v195
    %v204 = vmul.f32 %v189, %v196
    %v205 = vmul.f32 %v188, %v197
    %v206 = vld [vmem:[%s3] sm:$0xff]
    %207 = vst [vmem:[#allocation1] ss:$2 sm:$0xff] %v162
    %s208 = scalar_lea.vmem [#allocation1], 16
    %209 = vst [vmem:[%s208] ss:$2 sm:$0xff] %v163
    %v210 = vld.sshfl [vmem:[#allocation1] sm:$0xff pattern:$0x75316420]
    %v211 = vld.sshfl [vmem:[#allocation1 + $0x8] sm:$0xff pattern:$0x75316420]
    %v212 = vld.sshfl [vmem:[#allocation1 + $0x10] sm:$0xff pattern:$0x75316420]
    %v213 = vld.sshfl [vmem:[#allocation1 + $0x18] sm:$0xff pattern:$0x75316420]
    %218 = vrot.lane.b32.xlu0 %v210, 50
    %v219 = vpop.permute.xlu0 %218
    %220 = vrot.lane.b32.xlu0 %v211, 50
    %v221 = vpop.permute.xlu0 %220
    %222 = vrot.lane.b32.xlu0 %v212, 50
    %v223 = vpop.permute.xlu0 %222
    %224 = vrot.lane.b32.xlu0 %v213, 50
    %v225 = vpop.permute.xlu0 %224
    %vm226 = vcmp.lt.s32.totalorder %v186, 50
    %v227 = vsel %vm226, %v223, %v225
    %v228 = vsel %vm226, %v221, %v223
    %v229 = vsel %vm226, %v219, %v221
    %v230 = vsel %vm226, %v225, %v219
    %s231 = scalar_lea.vmem %s7, 1
    %v232 = vld [vmem:[%s231] ss:$8 sm:$0xf]
    %v234 = vperm.slane %v232, 0
    %v235 = vperm.slane %v232, 1
    %v236 = vperm.slane %v232, 2
    %v237 = vperm.slane %v232, 3
    %v242 = vmul.f32 %v230, %v234
    %v243 = vmul.f32 %v229, %v235
    %v244 = vmul.f32 %v228, %v236
    %v245 = vmul.f32 %v227, %v237
    %s246 = scalar_lea.vmem %s3, 8
    %v247 = vld [vmem:[%s246] sm:$0xff]
    %vm248 = vcmask 31744
    %v250 = vsel %vm248, %v247, 0
    %vm252 = vcmask 1043456
    %v254 = vsel %vm252, %v242, 0
    %v257 = vsel %vm252, %v243, 0
    %v260 = vsel %vm252, %v244, 0
    %v263 = vsel %vm252, %v245, 0
    %265 = vmatpush.msra.mxu0 0.0
    %266 = vmatpush.msra.mxu0 0.0
    %267 = vmatpush.msra.mxu0 0.0
    %268 = vmatpush.msra.mxu0 0.0
    %269 = vmatpush.msra.mxu0 0.0
    %270 = vmatpush.msra.mxu0 0.0
    %271 = vmatpush.msra.mxu0 0.0
    %272 = vmatpush.msra.mxu0 0.0
    %273 = vmatpush.msra.mxu0 0.0
    %274 = vmatpush.msra.mxu0 0.0
    %275 = vmatpush.msra.mxu0 0.0
    %276 = vmatpush.msra.mxu0 0.0
    %277 = vmatpush.msra.mxu0 0.0
    %278 = vmatpush.msra.mxu0 0.0
    %279 = vmatpush.msra.mxu0 0.0
    %280 = vmatpush.msra.mxu0 %v254
    %281 = vmatmul.f32.gmra.mxu0 %v250
    %v282 = vpop.f32.mrf.mxu0
    %v283 = vadd.f32 0.0, %v282
    %284 = vdwg.mxu0
    %285 = vmatpush.msra.mxu0 0.0
    %286 = vmatpush.msra.mxu0 0.0
    %287 = vmatpush.msra.mxu0 0.0
    %288 = vmatpush.msra.mxu0 0.0
    %289 = vmatpush.msra.mxu0 0.0
    %290 = vmatpush.msra.mxu0 0.0
    %291 = vmatpush.msra.mxu0 0.0
    %292 = vmatpush.msra.mxu0 0.0
    %293 = vmatpush.msra.mxu0 0.0
    %294 = vmatpush.msra.mxu0 0.0
    %295 = vmatpush.msra.mxu0 0.0
    %296 = vmatpush.msra.mxu0 0.0
    %297 = vmatpush.msra.mxu0 0.0
    %298 = vmatpush.msra.mxu0 0.0
    %299 = vmatpush.msra.mxu0 0.0
    %300 = vmatpush.msra.mxu0 %v257
    %301 = vmatmul.f32.gmra.mxu0 %v250
    %v302 = vpop.f32.mrf.mxu0
    %v303 = vadd.f32 0.0, %v302
    %304 = vdwg.mxu0
    %305 = vmatpush.msra.mxu0 0.0
    %306 = vmatpush.msra.mxu0 0.0
    %307 = vmatpush.msra.mxu0 0.0
    %308 = vmatpush.msra.mxu0 0.0
    %309 = vmatpush.msra.mxu0 0.0
    %310 = vmatpush.msra.mxu0 0.0
    %311 = vmatpush.msra.mxu0 0.0
    %312 = vmatpush.msra.mxu0 0.0
    %313 = vmatpush.msra.mxu0 0.0
    %314 = vmatpush.msra.mxu0 0.0
    %315 = vmatpush.msra.mxu0 0.0
    %316 = vmatpush.msra.mxu0 0.0
    %317 = vmatpush.msra.mxu0 0.0
    %318 = vmatpush.msra.mxu0 0.0
    %319 = vmatpush.msra.mxu0 0.0
    %320 = vmatpush.msra.mxu0 %v260
    %321 = vmatmul.f32.gmra.mxu0 %v250
    %v322 = vpop.f32.mrf.mxu0
    %v323 = vadd.f32 0.0, %v322
    %324 = vdwg.mxu0
    %325 = vmatpush.msra.mxu0 0.0
    %326 = vmatpush.msra.mxu0 0.0
    %327 = vmatpush.msra.mxu0 0.0
    %328 = vmatpush.msra.mxu0 0.0
    %329 = vmatpush.msra.mxu0 0.0
    %330 = vmatpush.msra.mxu0 0.0
    %331 = vmatpush.msra.mxu0 0.0
    %332 = vmatpush.msra.mxu0 0.0
    %333 = vmatpush.msra.mxu0 0.0
    %334 = vmatpush.msra.mxu0 0.0
    %335 = vmatpush.msra.mxu0 0.0
    %336 = vmatpush.msra.mxu0 0.0
    %337 = vmatpush.msra.mxu0 0.0
    %338 = vmatpush.msra.mxu0 0.0
    %339 = vmatpush.msra.mxu0 0.0
    %340 = vmatpush.msra.mxu0 %v263
    %341 = vmatmul.f32.gmra.mxu0 %v250
    %v342 = vpop.f32.mrf.mxu0
    %v343 = vadd.f32 0.0, %v342
    %344 = vdwg.mxu0
    %v346 = vsel %vm248, %v206, 0
    %v349 = vsel %vm252, %v202, 0
    %v352 = vsel %vm252, %v203, 0
    %v355 = vsel %vm252, %v204, 0
    %v358 = vsel %vm252, %v205, 0
    %360 = vmatpush.msra.mxu0 0.0
    %361 = vmatpush.msra.mxu0 0.0
    %362 = vmatpush.msra.mxu0 0.0
    %363 = vmatpush.msra.mxu0 0.0
    %364 = vmatpush.msra.mxu0 0.0
    %365 = vmatpush.msra.mxu0 0.0
    %366 = vmatpush.msra.mxu0 0.0
    %367 = vmatpush.msra.mxu0 0.0
    %368 = vmatpush.msra.mxu0 0.0
    %369 = vmatpush.msra.mxu0 0.0
    %370 = vmatpush.msra.mxu0 0.0
    %371 = vmatpush.msra.mxu0 0.0
    %372 = vmatpush.msra.mxu0 0.0
    %373 = vmatpush.msra.mxu0 0.0
    %374 = vmatpush.msra.mxu0 0.0
    %375 = vmatpush.msra.mxu0 %v349
    %376 = vmatmul.f32.gmra.mxu0 %v346
    %v377 = vpop.f32.mrf.mxu0
    %v378 = vadd.f32 %v283, %v377
    %379 = vdwg.mxu0
    %380 = vmatpush.msra.mxu0 0.0
    %381 = vmatpush.msra.mxu0 0.0
    %382 = vmatpush.msra.mxu0 0.0
    %383 = vmatpush.msra.mxu0 0.0
    %384 = vmatpush.msra.mxu0 0.0
    %385 = vmatpush.msra.mxu0 0.0
    %386 = vmatpush.msra.mxu0 0.0
    %387 = vmatpush.msra.mxu0 0.0
    %388 = vmatpush.msra.mxu0 0.0
    %389 = vmatpush.msra.mxu0 0.0
    %390 = vmatpush.msra.mxu0 0.0
    %391 = vmatpush.msra.mxu0 0.0
    %392 = vmatpush.msra.mxu0 0.0
    %393 = vmatpush.msra.mxu0 0.0
    %394 = vmatpush.msra.mxu0 0.0
    %395 = vmatpush.msra.mxu0 %v352
    %396 = vmatmul.f32.gmra.mxu0 %v346
    %v397 = vpop.f32.mrf.mxu0
    %v398 = vadd.f32 %v303, %v397
    %399 = vdwg.mxu0
    %400 = vmatpush.msra.mxu0 0.0
    %401 = vmatpush.msra.mxu0 0.0
    %402 = vmatpush.msra.mxu0 0.0
    %403 = vmatpush.msra.mxu0 0.0
    %404 = vmatpush.msra.mxu0 0.0
    %405 = vmatpush.msra.mxu0 0.0
    %406 = vmatpush.msra.mxu0 0.0
    %407 = vmatpush.msra.mxu0 0.0
    %408 = vmatpush.msra.mxu0 0.0
    %409 = vmatpush.msra.mxu0 0.0
    %410 = vmatpush.msra.mxu0 0.0
    %411 = vmatpush.msra.mxu0 0.0
    %412 = vmatpush.msra.mxu0 0.0
    %413 = vmatpush.msra.mxu0 0.0
    %414 = vmatpush.msra.mxu0 0.0
    %415 = vmatpush.msra.mxu0 %v355
    %416 = vmatmul.f32.gmra.mxu0 %v346
    %v417 = vpop.f32.mrf.mxu0
    %v418 = vadd.f32 %v323, %v417
    %419 = vdwg.mxu0
    %420 = vmatpush.msra.mxu0 0.0
    %421 = vmatpush.msra.mxu0 0.0
    %422 = vmatpush.msra.mxu0 0.0
    %423 = vmatpush.msra.mxu0 0.0
    %424 = vmatpush.msra.mxu0 0.0
    %425 = vmatpush.msra.mxu0 0.0
    %426 = vmatpush.msra.mxu0 0.0
    %427 = vmatpush.msra.mxu0 0.0
    %428 = vmatpush.msra.mxu0 0.0
    %429 = vmatpush.msra.mxu0 0.0
    %430 = vmatpush.msra.mxu0 0.0
    %431 = vmatpush.msra.mxu0 0.0
    %432 = vmatpush.msra.mxu0 0.0
    %433 = vmatpush.msra.mxu0 0.0
    %434 = vmatpush.msra.mxu0 0.0
    %435 = vmatpush.msra.mxu0 %v358
    %436 = vmatmul.f32.gmra.mxu0 %v346
    %v437 = vpop.f32.mrf.mxu0
    %v438 = vadd.f32 %v343, %v437
    %439 = vdwg.mxu0
    %440 = vst [vmem:[#allocation1] ss:$2 sm:$0xff] %v162
    %s441 = scalar_lea.vmem [#allocation1], 16
    %442 = vst [vmem:[%s441] ss:$2 sm:$0xff] %v163
    %v443 = vld.sshfl [vmem:[#allocation1] sm:$0xff pattern:$0x75316420]
    %v444 = vld.sshfl [vmem:[#allocation1 + $0x8] sm:$0xff pattern:$0x75316420]
    %v445 = vld.sshfl [vmem:[#allocation1 + $0x10] sm:$0xff pattern:$0x75316420]
    %v446 = vld.sshfl [vmem:[#allocation1 + $0x18] sm:$0xff pattern:$0x75316420]
    %451 = vrot.lane.b32.xlu0 %v443, 49
    %v452 = vpop.permute.xlu0 %451
    %453 = vrot.lane.b32.xlu0 %v444, 49
    %v454 = vpop.permute.xlu0 %453
    %455 = vrot.lane.b32.xlu0 %v445, 49
    %v456 = vpop.permute.xlu0 %455
    %457 = vrot.lane.b32.xlu0 %v446, 49
    %v458 = vpop.permute.xlu0 %457
    %vm459 = vcmp.lt.s32.totalorder %v186, 49
    %v460 = vsel %vm459, %v456, %v458
    %v461 = vsel %vm459, %v454, %v456
    %v462 = vsel %vm459, %v452, %v454
    %v463 = vsel %vm459, %v458, %v452
    %s464 = scalar_lea.vmem %s7, 2
    %v465 = vld [vmem:[%s464] ss:$8 sm:$0xf]
    %v467 = vperm.slane %v465, 0
    %v468 = vperm.slane %v465, 1
    %v469 = vperm.slane %v465, 2
    %v470 = vperm.slane %v465, 3
    %v475 = vmul.f32 %v463, %v467
    %v476 = vmul.f32 %v462, %v468
    %v477 = vmul.f32 %v461, %v469
    %v478 = vmul.f32 %v460, %v470
    %s479 = scalar_lea.vmem %s3, 16
    %v480 = vld [vmem:[%s479] sm:$0xff]
    %v482 = vsel %vm248, %v480, 0
    %v485 = vsel %vm252, %v475, 0
    %v488 = vsel %vm252, %v476, 0
    %v491 = vsel %vm252, %v477, 0
    %v494 = vsel %vm252, %v478, 0
    %496 = vmatpush.msra.mxu0 0.0
    %497 = vmatpush.msra.mxu0 0.0
    %498 = vmatpush.msra.mxu0 0.0
    %499 = vmatpush.msra.mxu0 0.0
    %500 = vmatpush.msra.mxu0 0.0
    %501 = vmatpush.msra.mxu0 0.0
    %502 = vmatpush.msra.mxu0 0.0
    %503 = vmatpush.msra.mxu0 0.0
    %504 = vmatpush.msra.mxu0 0.0
    %505 = vmatpush.msra.mxu0 0.0
    %506 = vmatpush.msra.mxu0 0.0
    %507 = vmatpush.msra.mxu0 0.0
    %508 = vmatpush.msra.mxu0 0.0
    %509 = vmatpush.msra.mxu0 0.0
    %510 = vmatpush.msra.mxu0 0.0
    %511 = vmatpush.msra.mxu0 %v485
    %512 = vmatmul.f32.gmra.mxu0 %v482
    %v513 = vpop.f32.mrf.mxu0
    %v514 = vadd.f32 0.0, %v513
    %515 = vdwg.mxu0
    %516 = vmatpush.msra.mxu0 0.0
    %517 = vmatpush.msra.mxu0 0.0
    %518 = vmatpush.msra.mxu0 0.0
    %519 = vmatpush.msra.mxu0 0.0
    %520 = vmatpush.msra.mxu0 0.0
    %521 = vmatpush.msra.mxu0 0.0
    %522 = vmatpush.msra.mxu0 0.0
    %523 = vmatpush.msra.mxu0 0.0
    %524 = vmatpush.msra.mxu0 0.0
    %525 = vmatpush.msra.mxu0 0.0
    %526 = vmatpush.msra.mxu0 0.0
    %527 = vmatpush.msra.mxu0 0.0
    %528 = vmatpush.msra.mxu0 0.0
    %529 = vmatpush.msra.mxu0 0.0
    %530 = vmatpush.msra.mxu0 0.0
    %531 = vmatpush.msra.mxu0 %v488
    %532 = vmatmul.f32.gmra.mxu0 %v482
    %v533 = vpop.f32.mrf.mxu0
    %v534 = vadd.f32 0.0, %v533
    %535 = vdwg.mxu0
    %536 = vmatpush.msra.mxu0 0.0
    %537 = vmatpush.msra.mxu0 0.0
    %538 = vmatpush.msra.mxu0 0.0
    %539 = vmatpush.msra.mxu0 0.0
    %540 = vmatpush.msra.mxu0 0.0
    %541 = vmatpush.msra.mxu0 0.0
    %542 = vmatpush.msra.mxu0 0.0
    %543 = vmatpush.msra.mxu0 0.0
    %544 = vmatpush.msra.mxu0 0.0
    %545 = vmatpush.msra.mxu0 0.0
    %546 = vmatpush.msra.mxu0 0.0
    %547 = vmatpush.msra.mxu0 0.0
    %548 = vmatpush.msra.mxu0 0.0
    %549 = vmatpush.msra.mxu0 0.0
    %550 = vmatpush.msra.mxu0 0.0
    %551 = vmatpush.msra.mxu0 %v491
    %552 = vmatmul.f32.gmra.mxu0 %v482
    %v553 = vpop.f32.mrf.mxu0
    %v554 = vadd.f32 0.0, %v553
    %555 = vdwg.mxu0
    %556 = vmatpush.msra.mxu0 0.0
    %557 = vmatpush.msra.mxu0 0.0
    %558 = vmatpush.msra.mxu0 0.0
    %559 = vmatpush.msra.mxu0 0.0
    %560 = vmatpush.msra.mxu0 0.0
    %561 = vmatpush.msra.mxu0 0.0
    %562 = vmatpush.msra.mxu0 0.0
    %563 = vmatpush.msra.mxu0 0.0
    %564 = vmatpush.msra.mxu0 0.0
    %565 = vmatpush.msra.mxu0 0.0
    %566 = vmatpush.msra.mxu0 0.0
    %567 = vmatpush.msra.mxu0 0.0
    %568 = vmatpush.msra.mxu0 0.0
    %569 = vmatpush.msra.mxu0 0.0
    %570 = vmatpush.msra.mxu0 0.0
    %571 = vmatpush.msra.mxu0 %v494
    %572 = vmatmul.f32.gmra.mxu0 %v482
    %v573 = vpop.f32.mrf.mxu0
    %v574 = vadd.f32 0.0, %v573
    %575 = vdwg.mxu0
    %v576 = vadd.f32 %v378, %v514
    %v577 = vadd.f32 %v398, %v534
    %v578 = vadd.f32 %v418, %v554
    %v579 = vadd.f32 %v438, %v574
    %580 = vst [vmem:[#allocation1] ss:$2 sm:$0xff] %v162
    %s581 = scalar_lea.vmem [#allocation1], 16
    %582 = vst [vmem:[%s581] ss:$2 sm:$0xff] %v163
    %v583 = vld.sshfl [vmem:[#allocation1] sm:$0xff pattern:$0x75316420]
    %v584 = vld.sshfl [vmem:[#allocation1 + $0x8] sm:$0xff pattern:$0x75316420]
    %v585 = vld.sshfl [vmem:[#allocation1 + $0x10] sm:$0xff pattern:$0x75316420]
    %v586 = vld.sshfl [vmem:[#allocation1 + $0x18] sm:$0xff pattern:$0x75316420]
    %591 = vrot.lane.b32.xlu0 %v583, 48
    %v592 = vpop.permute.xlu0 %591
    %593 = vrot.lane.b32.xlu0 %v584, 48
    %v594 = vpop.permute.xlu0 %593
    %595 = vrot.lane.b32.xlu0 %v585, 48
    %v596 = vpop.permute.xlu0 %595
    %597 = vrot.lane.b32.xlu0 %v586, 48
    %v598 = vpop.permute.xlu0 %597
    %vm599 = vcmp.lt.s32.totalorder %v186, 48
    %v600 = vsel %vm599, %v596, %v598
    %v601 = vsel %vm599, %v594, %v596
    %v602 = vsel %vm599, %v592, %v594
    %v603 = vsel %vm599, %v598, %v592
    %s604 = scalar_lea.vmem %s7, 3
    %v605 = vld [vmem:[%s604] ss:$8 sm:$0xf]
    %v607 = vperm.slane %v605, 0
    %v608 = vperm.slane %v605, 1
    %v609 = vperm.slane %v605, 2
    %v610 = vperm.slane %v605, 3
    %v615 = vmul.f32 %v603, %v607
    %v616 = vmul.f32 %v602, %v608
    %v617 = vmul.f32 %v601, %v609
    %v618 = vmul.f32 %v600, %v610
    %s619 = scalar_lea.vmem %s3, 24
    %v620 = vld [vmem:[%s619] sm:$0xff]
    %v622 = vsel %vm248, %v620, 0
    %v625 = vsel %vm252, %v615, 0
    %v628 = vsel %vm252, %v616, 0
    %v631 = vsel %vm252, %v617, 0
    %v634 = vsel %vm252, %v618, 0
    %636 = vmatpush.msra.mxu0 0.0
    %637 = vmatpush.msra.mxu0 0.0
    %638 = vmatpush.msra.mxu0 0.0
    %639 = vmatpush.msra.mxu0 0.0
    %640 = vmatpush.msra.mxu0 0.0
    %641 = vmatpush.msra.mxu0 0.0
    %642 = vmatpush.msra.mxu0 0.0
    %643 = vmatpush.msra.mxu0 0.0
    %644 = vmatpush.msra.mxu0 0.0
    %645 = vmatpush.msra.mxu0 0.0
    %646 = vmatpush.msra.mxu0 0.0
    %647 = vmatpush.msra.mxu0 0.0
    %648 = vmatpush.msra.mxu0 0.0
    %649 = vmatpush.msra.mxu0 0.0
    %650 = vmatpush.msra.mxu0 0.0
    %651 = vmatpush.msra.mxu0 %v625
    %652 = vmatmul.f32.gmra.mxu0 %v622
    %v653 = vpop.f32.mrf.mxu0
    %v654 = vadd.f32 0.0, %v653
    %655 = vdwg.mxu0
    %656 = vmatpush.msra.mxu0 0.0
    %657 = vmatpush.msra.mxu0 0.0
    %658 = vmatpush.msra.mxu0 0.0
    %659 = vmatpush.msra.mxu0 0.0
    %660 = vmatpush.msra.mxu0 0.0
    %661 = vmatpush.msra.mxu0 0.0
    %662 = vmatpush.msra.mxu0 0.0
    %663 = vmatpush.msra.mxu0 0.0
    %664 = vmatpush.msra.mxu0 0.0
    %665 = vmatpush.msra.mxu0 0.0
    %666 = vmatpush.msra.mxu0 0.0
    %667 = vmatpush.msra.mxu0 0.0
    %668 = vmatpush.msra.mxu0 0.0
    %669 = vmatpush.msra.mxu0 0.0
    %670 = vmatpush.msra.mxu0 0.0
    %671 = vmatpush.msra.mxu0 %v628
    %672 = vmatmul.f32.gmra.mxu0 %v622
    %v673 = vpop.f32.mrf.mxu0
    %v674 = vadd.f32 0.0, %v673
    %675 = vdwg.mxu0
    %676 = vmatpush.msra.mxu0 0.0
    %677 = vmatpush.msra.mxu0 0.0
    %678 = vmatpush.msra.mxu0 0.0
    %679 = vmatpush.msra.mxu0 0.0
    %680 = vmatpush.msra.mxu0 0.0
    %681 = vmatpush.msra.mxu0 0.0
    %682 = vmatpush.msra.mxu0 0.0
    %683 = vmatpush.msra.mxu0 0.0
    %684 = vmatpush.msra.mxu0 0.0
    %685 = vmatpush.msra.mxu0 0.0
    %686 = vmatpush.msra.mxu0 0.0
    %687 = vmatpush.msra.mxu0 0.0
    %688 = vmatpush.msra.mxu0 0.0
    %689 = vmatpush.msra.mxu0 0.0
    %690 = vmatpush.msra.mxu0 0.0
    %691 = vmatpush.msra.mxu0 %v631
    %692 = vmatmul.f32.gmra.mxu0 %v622
    %v693 = vpop.f32.mrf.mxu0
    %v694 = vadd.f32 0.0, %v693
    %695 = vdwg.mxu0
    %696 = vmatpush.msra.mxu0 0.0
    %697 = vmatpush.msra.mxu0 0.0
    %698 = vmatpush.msra.mxu0 0.0
    %699 = vmatpush.msra.mxu0 0.0
    %700 = vmatpush.msra.mxu0 0.0
    %701 = vmatpush.msra.mxu0 0.0
    %702 = vmatpush.msra.mxu0 0.0
    %703 = vmatpush.msra.mxu0 0.0
    %704 = vmatpush.msra.mxu0 0.0
    %705 = vmatpush.msra.mxu0 0.0
    %706 = vmatpush.msra.mxu0 0.0
    %707 = vmatpush.msra.mxu0 0.0
    %708 = vmatpush.msra.mxu0 0.0
    %709 = vmatpush.msra.mxu0 0.0
    %710 = vmatpush.msra.mxu0 0.0
    %711 = vmatpush.msra.mxu0 %v634
    %712 = vmatmul.f32.gmra.mxu0 %v622
    %v713 = vpop.f32.mrf.mxu0
    %v714 = vadd.f32 0.0, %v713
    %715 = vdwg.mxu0
    %v716 = vadd.f32 %v576, %v654
    %v717 = vadd.f32 %v577, %v674
    %v718 = vadd.f32 %v578, %v694
    %v719 = vadd.f32 %v579, %v714
    %720 = vst [vmem:[#allocation1] ss:$2 sm:$0xff] %v162
    %s721 = scalar_lea.vmem [#allocation1], 16
    %722 = vst [vmem:[%s721] ss:$2 sm:$0xff] %v163
    %v723 = vld.sshfl [vmem:[#allocation1] sm:$0xff pattern:$0x75316420]
    %v724 = vld.sshfl [vmem:[#allocation1 + $0x8] sm:$0xff pattern:$0x75316420]
    %v725 = vld.sshfl [vmem:[#allocation1 + $0x10] sm:$0xff pattern:$0x75316420]
    %v726 = vld.sshfl [vmem:[#allocation1 + $0x18] sm:$0xff pattern:$0x75316420]
    %731 = vrot.lane.b32.xlu0 %v723, 47
    %v732 = vpop.permute.xlu0 %731
    %733 = vrot.lane.b32.xlu0 %v724, 47
    %v734 = vpop.permute.xlu0 %733
    %735 = vrot.lane.b32.xlu0 %v725, 47
    %v736 = vpop.permute.xlu0 %735
    %737 = vrot.lane.b32.xlu0 %v726, 47
    %v738 = vpop.permute.xlu0 %737
    %vm739 = vcmp.lt.s32.totalorder %v186, 47
    %v740 = vsel %vm739, %v736, %v738
    %v741 = vsel %vm739, %v734, %v736
    %v742 = vsel %vm739, %v732, %v734
    %v743 = vsel %vm739, %v738, %v732
    %s744 = scalar_lea.vmem %s7, 4
    %v745 = vld [vmem:[%s744] ss:$8 sm:$0xf]
    %v747 = vperm.slane %v745, 0
    %v748 = vperm.slane %v745, 1
    %v749 = vperm.slane %v745, 2
    %v750 = vperm.slane %v745, 3
    %v755 = vmul.f32 %v743, %v747
    %v756 = vmul.f32 %v742, %v748
    %v757 = vmul.f32 %v741, %v749
    %v758 = vmul.f32 %v740, %v750
    %s759 = scalar_lea.vmem %s3, 32
    %v760 = vld [vmem:[%s759] sm:$0xff]
    %v762 = vsel %vm248, %v760, 0
    %v765 = vsel %vm252, %v755, 0
    %v768 = vsel %vm252, %v756, 0
    %v771 = vsel %vm252, %v757, 0
    %v774 = vsel %vm252, %v758, 0
    %776 = vmatpush.msra.mxu0 0.0
    %777 = vmatpush.msra.mxu0 0.0
    %778 = vmatpush.msra.mxu0 0.0
    %779 = vmatpush.msra.mxu0 0.0
    %780 = vmatpush.msra.mxu0 0.0
    %781 = vmatpush.msra.mxu0 0.0
    %782 = vmatpush.msra.mxu0 0.0
    %783 = vmatpush.msra.mxu0 0.0
    %784 = vmatpush.msra.mxu0 0.0
    %785 = vmatpush.msra.mxu0 0.0
    %786 = vmatpush.msra.mxu0 0.0
    %787 = vmatpush.msra.mxu0 0.0
    %788 = vmatpush.msra.mxu0 0.0
    %789 = vmatpush.msra.mxu0 0.0
    %790 = vmatpush.msra.mxu0 0.0
    %791 = vmatpush.msra.mxu0 %v765
    %792 = vmatmul.f32.gmra.mxu0 %v762
    %v793 = vpop.f32.mrf.mxu0
    %v794 = vadd.f32 0.0, %v793
    %795 = vdwg.mxu0
    %796 = vmatpush.msra.mxu0 0.0
    %797 = vmatpush.msra.mxu0 0.0
    %798 = vmatpush.msra.mxu0 0.0
    %799 = vmatpush.msra.mxu0 0.0
    %800 = vmatpush.msra.mxu0 0.0
    %801 = vmatpush.msra.mxu0 0.0
    %802 = vmatpush.msra.mxu0 0.0
    %803 = vmatpush.msra.mxu0 0.0
    %804 = vmatpush.msra.mxu0 0.0
    %805 = vmatpush.msra.mxu0 0.0
    %806 = vmatpush.msra.mxu0 0.0
    %807 = vmatpush.msra.mxu0 0.0
    %808 = vmatpush.msra.mxu0 0.0
    %809 = vmatpush.msra.mxu0 0.0
    %810 = vmatpush.msra.mxu0 0.0
    %811 = vmatpush.msra.mxu0 %v768
    %812 = vmatmul.f32.gmra.mxu0 %v762
    %v813 = vpop.f32.mrf.mxu0
    %v814 = vadd.f32 0.0, %v813
    %815 = vdwg.mxu0
    %816 = vmatpush.msra.mxu0 0.0
    %817 = vmatpush.msra.mxu0 0.0
    %818 = vmatpush.msra.mxu0 0.0
    %819 = vmatpush.msra.mxu0 0.0
    %820 = vmatpush.msra.mxu0 0.0
    %821 = vmatpush.msra.mxu0 0.0
    %822 = vmatpush.msra.mxu0 0.0
    %823 = vmatpush.msra.mxu0 0.0
    %824 = vmatpush.msra.mxu0 0.0
    %825 = vmatpush.msra.mxu0 0.0
    %826 = vmatpush.msra.mxu0 0.0
    %827 = vmatpush.msra.mxu0 0.0
    %828 = vmatpush.msra.mxu0 0.0
    %829 = vmatpush.msra.mxu0 0.0
    %830 = vmatpush.msra.mxu0 0.0
    %831 = vmatpush.msra.mxu0 %v771
    %832 = vmatmul.f32.gmra.mxu0 %v762
    %v833 = vpop.f32.mrf.mxu0
    %v834 = vadd.f32 0.0, %v833
    %835 = vdwg.mxu0
    %836 = vmatpush.msra.mxu0 0.0
    %837 = vmatpush.msra.mxu0 0.0
    %838 = vmatpush.msra.mxu0 0.0
    %839 = vmatpush.msra.mxu0 0.0
    %840 = vmatpush.msra.mxu0 0.0
    %841 = vmatpush.msra.mxu0 0.0
    %842 = vmatpush.msra.mxu0 0.0
    %843 = vmatpush.msra.mxu0 0.0
    %844 = vmatpush.msra.mxu0 0.0
    %845 = vmatpush.msra.mxu0 0.0
    %846 = vmatpush.msra.mxu0 0.0
    %847 = vmatpush.msra.mxu0 0.0
    %848 = vmatpush.msra.mxu0 0.0
    %849 = vmatpush.msra.mxu0 0.0
    %850 = vmatpush.msra.mxu0 0.0
    %851 = vmatpush.msra.mxu0 %v774
    %852 = vmatmul.f32.gmra.mxu0 %v762
    %v853 = vpop.f32.mrf.mxu0
    %v854 = vadd.f32 0.0, %v853
    %855 = vdwg.mxu0
    %v856 = vadd.f32 %v716, %v794
    %v857 = vadd.f32 %v717, %v814
    %v858 = vadd.f32 %v718, %v834
    %v859 = vadd.f32 %v719, %v854
    %860 = vst [vmem:[#allocation1] ss:$2 sm:$0xff] %v162
    %s861 = scalar_lea.vmem [#allocation1], 16
    %862 = vst [vmem:[%s861] ss:$2 sm:$0xff] %v163
    %v863 = vld.sshfl [vmem:[#allocation1] sm:$0xff pattern:$0x75316420]
    %v864 = vld.sshfl [vmem:[#allocation1 + $0x8] sm:$0xff pattern:$0x75316420]
    %v865 = vld.sshfl [vmem:[#allocation1 + $0x10] sm:$0xff pattern:$0x75316420]
    %v866 = vld.sshfl [vmem:[#allocation1 + $0x18] sm:$0xff pattern:$0x75316420]
    %871 = vrot.lane.b32.xlu0 %v863, 46
    %v872 = vpop.permute.xlu0 %871
    %873 = vrot.lane.b32.xlu0 %v864, 46
    %v874 = vpop.permute.xlu0 %873
    %875 = vrot.lane.b32.xlu0 %v865, 46
    %v876 = vpop.permute.xlu0 %875
    %877 = vrot.lane.b32.xlu0 %v866, 46
    %v878 = vpop.permute.xlu0 %877
    %vm879 = vcmp.lt.s32.totalorder %v186, 46
    %v880 = vsel %vm879, %v876, %v878
    %v881 = vsel %vm879, %v874, %v876
    %v882 = vsel %vm879, %v872, %v874
    %v883 = vsel %vm879, %v878, %v872
    %s884 = scalar_lea.vmem %s7, 5
    %v885 = vld [vmem:[%s884] ss:$8 sm:$0xf]
    %v887 = vperm.slane %v885, 0
    %v888 = vperm.slane %v885, 1
    %v889 = vperm.slane %v885, 2
    %v890 = vperm.slane %v885, 3
    %v895 = vmul.f32 %v883, %v887
    %v896 = vmul.f32 %v882, %v888
    %v897 = vmul.f32 %v881, %v889
    %v898 = vmul.f32 %v880, %v890
    %s899 = scalar_lea.vmem %s3, 40
    %v900 = vld [vmem:[%s899] sm:$0xff]
    %v902 = vsel %vm248, %v900, 0
    %v905 = vsel %vm252, %v895, 0
    %v908 = vsel %vm252, %v896, 0
    %v911 = vsel %vm252, %v897, 0
    %v914 = vsel %vm252, %v898, 0
    %916 = vmatpush.msra.mxu0 0.0
    %917 = vmatpush.msra.mxu0 0.0
    %918 = vmatpush.msra.mxu0 0.0
    %919 = vmatpush.msra.mxu0 0.0
    %920 = vmatpush.msra.mxu0 0.0
    %921 = vmatpush.msra.mxu0 0.0
    %922 = vmatpush.msra.mxu0 0.0
    %923 = vmatpush.msra.mxu0 0.0
    %924 = vmatpush.msra.mxu0 0.0
    %925 = vmatpush.msra.mxu0 0.0
    %926 = vmatpush.msra.mxu0 0.0
    %927 = vmatpush.msra.mxu0 0.0
    %928 = vmatpush.msra.mxu0 0.0
    %929 = vmatpush.msra.mxu0 0.0
    %930 = vmatpush.msra.mxu0 0.0
    %931 = vmatpush.msra.mxu0 %v905
    %932 = vmatmul.f32.gmra.mxu0 %v902
    %v933 = vpop.f32.mrf.mxu0
    %v934 = vadd.f32 0.0, %v933
    %935 = vdwg.mxu0
    %936 = vmatpush.msra.mxu0 0.0
    %937 = vmatpush.msra.mxu0 0.0
    %938 = vmatpush.msra.mxu0 0.0
    %939 = vmatpush.msra.mxu0 0.0
    %940 = vmatpush.msra.mxu0 0.0
    %941 = vmatpush.msra.mxu0 0.0
    %942 = vmatpush.msra.mxu0 0.0
    %943 = vmatpush.msra.mxu0 0.0
    %944 = vmatpush.msra.mxu0 0.0
    %945 = vmatpush.msra.mxu0 0.0
    %946 = vmatpush.msra.mxu0 0.0
    %947 = vmatpush.msra.mxu0 0.0
    %948 = vmatpush.msra.mxu0 0.0
    %949 = vmatpush.msra.mxu0 0.0
    %950 = vmatpush.msra.mxu0 0.0
    %951 = vmatpush.msra.mxu0 %v908
    %952 = vmatmul.f32.gmra.mxu0 %v902
    %v953 = vpop.f32.mrf.mxu0
    %v954 = vadd.f32 0.0, %v953
    %955 = vdwg.mxu0
    %956 = vmatpush.msra.mxu0 0.0
    %957 = vmatpush.msra.mxu0 0.0
    %958 = vmatpush.msra.mxu0 0.0
    %959 = vmatpush.msra.mxu0 0.0
    %960 = vmatpush.msra.mxu0 0.0
    %961 = vmatpush.msra.mxu0 0.0
    %962 = vmatpush.msra.mxu0 0.0
    %963 = vmatpush.msra.mxu0 0.0
    %964 = vmatpush.msra.mxu0 0.0
    %965 = vmatpush.msra.mxu0 0.0
    %966 = vmatpush.msra.mxu0 0.0
    %967 = vmatpush.msra.mxu0 0.0
    %968 = vmatpush.msra.mxu0 0.0
    %969 = vmatpush.msra.mxu0 0.0
    %970 = vmatpush.msra.mxu0 0.0
    %971 = vmatpush.msra.mxu0 %v911
    %972 = vmatmul.f32.gmra.mxu0 %v902
    %v973 = vpop.f32.mrf.mxu0
    %v974 = vadd.f32 0.0, %v973
    %975 = vdwg.mxu0
    %976 = vmatpush.msra.mxu0 0.0
    %977 = vmatpush.msra.mxu0 0.0
    %978 = vmatpush.msra.mxu0 0.0
    %979 = vmatpush.msra.mxu0 0.0
    %980 = vmatpush.msra.mxu0 0.0
    %981 = vmatpush.msra.mxu0 0.0
    %982 = vmatpush.msra.mxu0 0.0
    %983 = vmatpush.msra.mxu0 0.0
    %984 = vmatpush.msra.mxu0 0.0
    %985 = vmatpush.msra.mxu0 0.0
    %986 = vmatpush.msra.mxu0 0.0
    %987 = vmatpush.msra.mxu0 0.0
    %988 = vmatpush.msra.mxu0 0.0
    %989 = vmatpush.msra.mxu0 0.0
    %990 = vmatpush.msra.mxu0 0.0
    %991 = vmatpush.msra.mxu0 %v914
    %992 = vmatmul.f32.gmra.mxu0 %v902
    %v993 = vpop.f32.mrf.mxu0
    %v994 = vadd.f32 0.0, %v993
    %995 = vdwg.mxu0
    %v996 = vadd.f32 %v856, %v934
    %v997 = vadd.f32 %v857, %v954
    %v998 = vadd.f32 %v858, %v974
    %v999 = vadd.f32 %v859, %v994
    %1000 = vst [vmem:[#allocation1] ss:$2 sm:$0xff] %v162
    %s1001 = scalar_lea.vmem [#allocation1], 16
    %1002 = vst [vmem:[%s1001] ss:$2 sm:$0xff] %v163
    %v1003 = vld.sshfl [vmem:[#allocation1] sm:$0xff pattern:$0x75316420]
    %v1004 = vld.sshfl [vmem:[#allocation1 + $0x8] sm:$0xff pattern:$0x75316420]
    %v1005 = vld.sshfl [vmem:[#allocation1 + $0x10] sm:$0xff pattern:$0x75316420]
    %v1006 = vld.sshfl [vmem:[#allocation1 + $0x18] sm:$0xff pattern:$0x75316420]
    %1011 = vrot.lane.b32.xlu0 %v1003, 45
    %v1012 = vpop.permute.xlu0 %1011
    %1013 = vrot.lane.b32.xlu0 %v1004, 45
    %v1014 = vpop.permute.xlu0 %1013
    %1015 = vrot.lane.b32.xlu0 %v1005, 45
    %v1016 = vpop.permute.xlu0 %1015
    %1017 = vrot.lane.b32.xlu0 %v1006, 45
    %v1018 = vpop.permute.xlu0 %1017
    %vm1019 = vcmp.lt.s32.totalorder %v186, 45
    %v1020 = vsel %vm1019, %v1016, %v1018
    %v1021 = vsel %vm1019, %v1014, %v1016
    %v1022 = vsel %vm1019, %v1012, %v1014
    %v1023 = vsel %vm1019, %v1018, %v1012
    %s1024 = scalar_lea.vmem %s7, 6
    %v1025 = vld [vmem:[%s1024] ss:$8 sm:$0xf]
    %v1027 = vperm.slane %v1025, 0
    %v1028 = vperm.slane %v1025, 1
    %v1029 = vperm.slane %v1025, 2
    %v1030 = vperm.slane %v1025, 3
    %v1035 = vmul.f32 %v1023, %v1027
    %v1036 = vmul.f32 %v1022, %v1028
    %v1037 = vmul.f32 %v1021, %v1029
    %v1038 = vmul.f32 %v1020, %v1030
    %s1039 = scalar_lea.vmem %s3, 48
    %v1040 = vld [vmem:[%s1039] sm:$0xff]
    %v1042 = vsel %vm248, %v1040, 0
    %v1045 = vsel %vm252, %v1035, 0
    %v1048 = vsel %vm252, %v1036, 0
    %v1051 = vsel %vm252, %v1037, 0
    %v1054 = vsel %vm252, %v1038, 0
    %1056 = vmatpush.msra.mxu0 0.0
    %1057 = vmatpush.msra.mxu0 0.0
    %1058 = vmatpush.msra.mxu0 0.0
    %1059 = vmatpush.msra.mxu0 0.0
    %1060 = vmatpush.msra.mxu0 0.0
    %1061 = vmatpush.msra.mxu0 0.0
    %1062 = vmatpush.msra.mxu0 0.0
    %1063 = vmatpush.msra.mxu0 0.0
    %1064 = vmatpush.msra.mxu0 0.0
    %1065 = vmatpush.msra.mxu0 0.0
    %1066 = vmatpush.msra.mxu0 0.0
    %1067 = vmatpush.msra.mxu0 0.0
    %1068 = vmatpush.msra.mxu0 0.0
    %1069 = vmatpush.msra.mxu0 0.0
    %1070 = vmatpush.msra.mxu0 0.0
    %1071 = vmatpush.msra.mxu0 %v1045
    %1072 = vmatmul.f32.gmra.mxu0 %v1042
    %v1073 = vpop.f32.mrf.mxu0
    %v1074 = vadd.f32 0.0, %v1073
    %1075 = vdwg.mxu0
    %1076 = vmatpush.msra.mxu0 0.0
    %1077 = vmatpush.msra.mxu0 0.0
    %1078 = vmatpush.msra.mxu0 0.0
    %1079 = vmatpush.msra.mxu0 0.0
    %1080 = vmatpush.msra.mxu0 0.0
    %1081 = vmatpush.msra.mxu0 0.0
    %1082 = vmatpush.msra.mxu0 0.0
    %1083 = vmatpush.msra.mxu0 0.0
    %1084 = vmatpush.msra.mxu0 0.0
    %1085 = vmatpush.msra.mxu0 0.0
    %1086 = vmatpush.msra.mxu0 0.0
    %1087 = vmatpush.msra.mxu0 0.0
    %1088 = vmatpush.msra.mxu0 0.0
    %1089 = vmatpush.msra.mxu0 0.0
    %1090 = vmatpush.msra.mxu0 0.0
    %1091 = vmatpush.msra.mxu0 %v1048
    %1092 = vmatmul.f32.gmra.mxu0 %v1042
    %v1093 = vpop.f32.mrf.mxu0
    %v1094 = vadd.f32 0.0, %v1093
    %1095 = vdwg.mxu0
    %1096 = vmatpush.msra.mxu0 0.0
    %1097 = vmatpush.msra.mxu0 0.0
    %1098 = vmatpush.msra.mxu0 0.0
    %1099 = vmatpush.msra.mxu0 0.0
    %1100 = vmatpush.msra.mxu0 0.0
    %1101 = vmatpush.msra.mxu0 0.0
    %1102 = vmatpush.msra.mxu0 0.0
    %1103 = vmatpush.msra.mxu0 0.0
    %1104 = vmatpush.msra.mxu0 0.0
    %1105 = vmatpush.msra.mxu0 0.0
    %1106 = vmatpush.msra.mxu0 0.0
    %1107 = vmatpush.msra.mxu0 0.0
    %1108 = vmatpush.msra.mxu0 0.0
    %1109 = vmatpush.msra.mxu0 0.0
    %1110 = vmatpush.msra.mxu0 0.0
    %1111 = vmatpush.msra.mxu0 %v1051
    %1112 = vmatmul.f32.gmra.mxu0 %v1042
    %v1113 = vpop.f32.mrf.mxu0
    %v1114 = vadd.f32 0.0, %v1113
    %1115 = vdwg.mxu0
    %1116 = vmatpush.msra.mxu0 0.0
    %1117 = vmatpush.msra.mxu0 0.0
    %1118 = vmatpush.msra.mxu0 0.0
    %1119 = vmatpush.msra.mxu0 0.0
    %1120 = vmatpush.msra.mxu0 0.0
    %1121 = vmatpush.msra.mxu0 0.0
    %1122 = vmatpush.msra.mxu0 0.0
    %1123 = vmatpush.msra.mxu0 0.0
    %1124 = vmatpush.msra.mxu0 0.0
    %1125 = vmatpush.msra.mxu0 0.0
    %1126 = vmatpush.msra.mxu0 0.0
    %1127 = vmatpush.msra.mxu0 0.0
    %1128 = vmatpush.msra.mxu0 0.0
    %1129 = vmatpush.msra.mxu0 0.0
    %1130 = vmatpush.msra.mxu0 0.0
    %1131 = vmatpush.msra.mxu0 %v1054
    %1132 = vmatmul.f32.gmra.mxu0 %v1042
    %v1133 = vpop.f32.mrf.mxu0
    %v1134 = vadd.f32 0.0, %v1133
    %1135 = vdwg.mxu0
    %v1136 = vadd.f32 %v996, %v1074
    %v1137 = vadd.f32 %v997, %v1094
    %v1138 = vadd.f32 %v998, %v1114
    %v1139 = vadd.f32 %v999, %v1134
    %1140 = vst [vmem:[#allocation1] ss:$2 sm:$0xff] %v162
    %s1141 = scalar_lea.vmem [#allocation1], 16
    %1142 = vst [vmem:[%s1141] ss:$2 sm:$0xff] %v163
    %v1143 = vld.sshfl [vmem:[#allocation1] sm:$0xff pattern:$0x75316420]
    %v1144 = vld.sshfl [vmem:[#allocation1 + $0x8] sm:$0xff pattern:$0x75316420]
    %v1145 = vld.sshfl [vmem:[#allocation1 + $0x10] sm:$0xff pattern:$0x75316420]
    %v1146 = vld.sshfl [vmem:[#allocation1 + $0x18] sm:$0xff pattern:$0x75316420]
    %1151 = vrot.lane.b32.xlu0 %v1143, 35
    %v1152 = vpop.permute.xlu0 %1151
    %1153 = vrot.lane.b32.xlu0 %v1144, 35
    %v1154 = vpop.permute.xlu0 %1153
    %1155 = vrot.lane.b32.xlu0 %v1145, 35
    %v1156 = vpop.permute.xlu0 %1155
    %1157 = vrot.lane.b32.xlu0 %v1146, 35
    %v1158 = vpop.permute.xlu0 %1157
    %vm1159 = vcmp.lt.s32.totalorder %v186, 35
    %v1160 = vsel %vm1159, %v1156, %v1158
    %v1161 = vsel %vm1159, %v1154, %v1156
    %v1162 = vsel %vm1159, %v1152, %v1154
    %v1163 = vsel %vm1159, %v1158, %v1152
    %s1164 = scalar_lea.vmem %s7, 7
    %v1165 = vld [vmem:[%s1164] ss:$8 sm:$0xf]
    %v1167 = vperm.slane %v1165, 0
    %v1168 = vperm.slane %v1165, 1
    %v1169 = vperm.slane %v1165, 2
    %v1170 = vperm.slane %v1165, 3
    %v1175 = vmul.f32 %v1163, %v1167
    %v1176 = vmul.f32 %v1162, %v1168
    %v1177 = vmul.f32 %v1161, %v1169
    %v1178 = vmul.f32 %v1160, %v1170
    %s1179 = scalar_lea.vmem %s3, 56
    %v1180 = vld [vmem:[%s1179] sm:$0xff]
    %v1182 = vsel %vm248, %v1180, 0
    %v1185 = vsel %vm252, %v1175, 0
    %v1188 = vsel %vm252, %v1176, 0
    %v1191 = vsel %vm252, %v1177, 0
    %v1194 = vsel %vm252, %v1178, 0
    %1196 = vmatpush.msra.mxu0 0.0
    %1197 = vmatpush.msra.mxu0 0.0
    %1198 = vmatpush.msra.mxu0 0.0
    %1199 = vmatpush.msra.mxu0 0.0
    %1200 = vmatpush.msra.mxu0 0.0
    %1201 = vmatpush.msra.mxu0 0.0
    %1202 = vmatpush.msra.mxu0 0.0
    %1203 = vmatpush.msra.mxu0 0.0
    %1204 = vmatpush.msra.mxu0 0.0
    %1205 = vmatpush.msra.mxu0 0.0
    %1206 = vmatpush.msra.mxu0 0.0
    %1207 = vmatpush.msra.mxu0 0.0
    %1208 = vmatpush.msra.mxu0 0.0
    %1209 = vmatpush.msra.mxu0 0.0
    %1210 = vmatpush.msra.mxu0 0.0
    %1211 = vmatpush.msra.mxu0 %v1185
    %1212 = vmatmul.f32.gmra.mxu0 %v1182
    %v1213 = vpop.f32.mrf.mxu0
    %v1214 = vadd.f32 0.0, %v1213
    %1215 = vdwg.mxu0
    %1216 = vmatpush.msra.mxu0 0.0
    %1217 = vmatpush.msra.mxu0 0.0
    %1218 = vmatpush.msra.mxu0 0.0
    %1219 = vmatpush.msra.mxu0 0.0
    %1220 = vmatpush.msra.mxu0 0.0
    %1221 = vmatpush.msra.mxu0 0.0
    %1222 = vmatpush.msra.mxu0 0.0
    %1223 = vmatpush.msra.mxu0 0.0
    %1224 = vmatpush.msra.mxu0 0.0
    %1225 = vmatpush.msra.mxu0 0.0
    %1226 = vmatpush.msra.mxu0 0.0
    %1227 = vmatpush.msra.mxu0 0.0
    %1228 = vmatpush.msra.mxu0 0.0
    %1229 = vmatpush.msra.mxu0 0.0
    %1230 = vmatpush.msra.mxu0 0.0
    %1231 = vmatpush.msra.mxu0 %v1188
    %1232 = vmatmul.f32.gmra.mxu0 %v1182
    %v1233 = vpop.f32.mrf.mxu0
    %v1234 = vadd.f32 0.0, %v1233
    %1235 = vdwg.mxu0
    %1236 = vmatpush.msra.mxu0 0.0
    %1237 = vmatpush.msra.mxu0 0.0
    %1238 = vmatpush.msra.mxu0 0.0
    %1239 = vmatpush.msra.mxu0 0.0
    %1240 = vmatpush.msra.mxu0 0.0
    %1241 = vmatpush.msra.mxu0 0.0
    %1242 = vmatpush.msra.mxu0 0.0
    %1243 = vmatpush.msra.mxu0 0.0
    %1244 = vmatpush.msra.mxu0 0.0
    %1245 = vmatpush.msra.mxu0 0.0
    %1246 = vmatpush.msra.mxu0 0.0
    %1247 = vmatpush.msra.mxu0 0.0
    %1248 = vmatpush.msra.mxu0 0.0
    %1249 = vmatpush.msra.mxu0 0.0
    %1250 = vmatpush.msra.mxu0 0.0
    %1251 = vmatpush.msra.mxu0 %v1191
    %1252 = vmatmul.f32.gmra.mxu0 %v1182
    %v1253 = vpop.f32.mrf.mxu0
    %v1254 = vadd.f32 0.0, %v1253
    %1255 = vdwg.mxu0
    %1256 = vmatpush.msra.mxu0 0.0
    %1257 = vmatpush.msra.mxu0 0.0
    %1258 = vmatpush.msra.mxu0 0.0
    %1259 = vmatpush.msra.mxu0 0.0
    %1260 = vmatpush.msra.mxu0 0.0
    %1261 = vmatpush.msra.mxu0 0.0
    %1262 = vmatpush.msra.mxu0 0.0
    %1263 = vmatpush.msra.mxu0 0.0
    %1264 = vmatpush.msra.mxu0 0.0
    %1265 = vmatpush.msra.mxu0 0.0
    %1266 = vmatpush.msra.mxu0 0.0
    %1267 = vmatpush.msra.mxu0 0.0
    %1268 = vmatpush.msra.mxu0 0.0
    %1269 = vmatpush.msra.mxu0 0.0
    %1270 = vmatpush.msra.mxu0 0.0
    %1271 = vmatpush.msra.mxu0 %v1194
    %1272 = vmatmul.f32.gmra.mxu0 %v1182
    %v1273 = vpop.f32.mrf.mxu0
    %v1274 = vadd.f32 0.0, %v1273
    %1275 = vdwg.mxu0
    %v1276 = vadd.f32 %v1136, %v1214
    %v1277 = vadd.f32 %v1137, %v1234
    %v1278 = vadd.f32 %v1138, %v1254
    %v1279 = vadd.f32 %v1139, %v1274
    %1280 = vst [vmem:[#allocation1] ss:$2 sm:$0xff] %v162
    %s1281 = scalar_lea.vmem [#allocation1], 16
    %1282 = vst [vmem:[%s1281] ss:$2 sm:$0xff] %v163
    %v1283 = vld.sshfl [vmem:[#allocation1] sm:$0xff pattern:$0x75316420]
    %v1284 = vld.sshfl [vmem:[#allocation1 + $0x8] sm:$0xff pattern:$0x75316420]
    %v1285 = vld.sshfl [vmem:[#allocation1 + $0x10] sm:$0xff pattern:$0x75316420]
    %v1286 = vld.sshfl [vmem:[#allocation1 + $0x18] sm:$0xff pattern:$0x75316420]
    %1291 = vrot.lane.b32.xlu0 %v1283, 34
    %v1292 = vpop.permute.xlu0 %1291
    %1293 = vrot.lane.b32.xlu0 %v1284, 34
    %v1294 = vpop.permute.xlu0 %1293
    %1295 = vrot.lane.b32.xlu0 %v1285, 34
    %v1296 = vpop.permute.xlu0 %1295
    %1297 = vrot.lane.b32.xlu0 %v1286, 34
    %v1298 = vpop.permute.xlu0 %1297
    %vm1299 = vcmp.lt.s32.totalorder %v186, 34
    %v1300 = vsel %vm1299, %v1296, %v1298
    %v1301 = vsel %vm1299, %v1294, %v1296
    %v1302 = vsel %vm1299, %v1292, %v1294
    %v1303 = vsel %vm1299, %v1298, %v1292
    %s1304 = scalar_lea.vmem %s7, 32
    %v1305 = vld [vmem:[%s1304] ss:$8 sm:$0xf]
    %v1307 = vperm.slane %v1305, 0
    %v1308 = vperm.slane %v1305, 1
    %v1309 = vperm.slane %v1305, 2
    %v1310 = vperm.slane %v1305, 3
    %v1315 = vmul.f32 %v1303, %v1307
    %v1316 = vmul.f32 %v1302, %v1308
    %v1317 = vmul.f32 %v1301, %v1309
    %v1318 = vmul.f32 %v1300, %v1310
    %s1319 = scalar_lea.vmem %s3, 64
    %v1320 = vld [vmem:[%s1319] sm:$0xff]
    %v1322 = vsel %vm248, %v1320, 0
    %v1325 = vsel %vm252, %v1315, 0
    %v1328 = vsel %vm252, %v1316, 0
    %v1331 = vsel %vm252, %v1317, 0
    %v1334 = vsel %vm252, %v1318, 0
    %1336 = vmatpush.msra.mxu0 0.0
    %1337 = vmatpush.msra.mxu0 0.0
    %1338 = vmatpush.msra.mxu0 0.0
    %1339 = vmatpush.msra.mxu0 0.0
    %1340 = vmatpush.msra.mxu0 0.0
    %1341 = vmatpush.msra.mxu0 0.0
    %1342 = vmatpush.msra.mxu0 0.0
    %1343 = vmatpush.msra.mxu0 0.0
    %1344 = vmatpush.msra.mxu0 0.0
    %1345 = vmatpush.msra.mxu0 0.0
    %1346 = vmatpush.msra.mxu0 0.0
    %1347 = vmatpush.msra.mxu0 0.0
    %1348 = vmatpush.msra.mxu0 0.0
    %1349 = vmatpush.msra.mxu0 0.0
    %1350 = vmatpush.msra.mxu0 0.0
    %1351 = vmatpush.msra.mxu0 %v1325
    %1352 = vmatmul.f32.gmra.mxu0 %v1322
    %v1353 = vpop.f32.mrf.mxu0
    %v1354 = vadd.f32 0.0, %v1353
    %1355 = vdwg.mxu0
    %1356 = vmatpush.msra.mxu0 0.0
    %1357 = vmatpush.msra.mxu0 0.0
    %1358 = vmatpush.msra.mxu0 0.0
    %1359 = vmatpush.msra.mxu0 0.0
    %1360 = vmatpush.msra.mxu0 0.0
    %1361 = vmatpush.msra.mxu0 0.0
    %1362 = vmatpush.msra.mxu0 0.0
    %1363 = vmatpush.msra.mxu0 0.0
    %1364 = vmatpush.msra.mxu0 0.0
    %1365 = vmatpush.msra.mxu0 0.0
    %1366 = vmatpush.msra.mxu0 0.0
    %1367 = vmatpush.msra.mxu0 0.0
    %1368 = vmatpush.msra.mxu0 0.0
    %1369 = vmatpush.msra.mxu0 0.0
    %1370 = vmatpush.msra.mxu0 0.0
    %1371 = vmatpush.msra.mxu0 %v1328
    %1372 = vmatmul.f32.gmra.mxu0 %v1322
    %v1373 = vpop.f32.mrf.mxu0
    %v1374 = vadd.f32 0.0, %v1373
    %1375 = vdwg.mxu0
    %1376 = vmatpush.msra.mxu0 0.0
    %1377 = vmatpush.msra.mxu0 0.0
    %1378 = vmatpush.msra.mxu0 0.0
    %1379 = vmatpush.msra.mxu0 0.0
    %1380 = vmatpush.msra.mxu0 0.0
    %1381 = vmatpush.msra.mxu0 0.0
    %1382 = vmatpush.msra.mxu0 0.0
    %1383 = vmatpush.msra.mxu0 0.0
    %1384 = vmatpush.msra.mxu0 0.0
    %1385 = vmatpush.msra.mxu0 0.0
    %1386 = vmatpush.msra.mxu0 0.0
    %1387 = vmatpush.msra.mxu0 0.0
    %1388 = vmatpush.msra.mxu0 0.0
    %1389 = vmatpush.msra.mxu0 0.0
    %1390 = vmatpush.msra.mxu0 0.0
    %1391 = vmatpush.msra.mxu0 %v1331
    %1392 = vmatmul.f32.gmra.mxu0 %v1322
    %v1393 = vpop.f32.mrf.mxu0
    %v1394 = vadd.f32 0.0, %v1393
    %1395 = vdwg.mxu0
    %1396 = vmatpush.msra.mxu0 0.0
    %1397 = vmatpush.msra.mxu0 0.0
    %1398 = vmatpush.msra.mxu0 0.0
    %1399 = vmatpush.msra.mxu0 0.0
    %1400 = vmatpush.msra.mxu0 0.0
    %1401 = vmatpush.msra.mxu0 0.0
    %1402 = vmatpush.msra.mxu0 0.0
    %1403 = vmatpush.msra.mxu0 0.0
    %1404 = vmatpush.msra.mxu0 0.0
    %1405 = vmatpush.msra.mxu0 0.0
    %1406 = vmatpush.msra.mxu0 0.0
    %1407 = vmatpush.msra.mxu0 0.0
    %1408 = vmatpush.msra.mxu0 0.0
    %1409 = vmatpush.msra.mxu0 0.0
    %1410 = vmatpush.msra.mxu0 0.0
    %1411 = vmatpush.msra.mxu0 %v1334
    %1412 = vmatmul.f32.gmra.mxu0 %v1322
    %v1413 = vpop.f32.mrf.mxu0
    %v1414 = vadd.f32 0.0, %v1413
    %1415 = vdwg.mxu0
    %v1416 = vadd.f32 %v1276, %v1354
    %v1417 = vadd.f32 %v1277, %v1374
    %v1418 = vadd.f32 %v1278, %v1394
    %v1419 = vadd.f32 %v1279, %v1414
    %1420 = vst [vmem:[#allocation1] ss:$2 sm:$0xff] %v162
    %s1421 = scalar_lea.vmem [#allocation1], 16
    %1422 = vst [vmem:[%s1421] ss:$2 sm:$0xff] %v163
    %v1423 = vld.sshfl [vmem:[#allocation1] sm:$0xff pattern:$0x75316420]
    %v1424 = vld.sshfl [vmem:[#allocation1 + $0x8] sm:$0xff pattern:$0x75316420]
    %v1425 = vld.sshfl [vmem:[#allocation1 + $0x10] sm:$0xff pattern:$0x75316420]
    %v1426 = vld.sshfl [vmem:[#allocation1 + $0x18] sm:$0xff pattern:$0x75316420]
    %1431 = vrot.lane.b32.xlu0 %v1423, 33
    %v1432 = vpop.permute.xlu0 %1431
    %1433 = vrot.lane.b32.xlu0 %v1424, 33
    %v1434 = vpop.permute.xlu0 %1433
    %1435 = vrot.lane.b32.xlu0 %v1425, 33
    %v1436 = vpop.permute.xlu0 %1435
    %1437 = vrot.lane.b32.xlu0 %v1426, 33
    %v1438 = vpop.permute.xlu0 %1437
    %vm1439 = vcmp.lt.s32.totalorder %v186, 33
    %v1440 = vsel %vm1439, %v1436, %v1438
    %v1441 = vsel %vm1439, %v1434, %v1436
    %v1442 = vsel %vm1439, %v1432, %v1434
    %v1443 = vsel %vm1439, %v1438, %v1432
    %s1444 = scalar_lea.vmem %s7, 33
    %v1445 = vld [vmem:[%s1444] ss:$8 sm:$0xf]
    %v1447 = vperm.slane %v1445, 0
    %v1448 = vperm.slane %v1445, 1
    %v1449 = vperm.slane %v1445, 2
    %v1450 = vperm.slane %v1445, 3
    %v1455 = vmul.f32 %v1443, %v1447
    %v1456 = vmul.f32 %v1442, %v1448
    %v1457 = vmul.f32 %v1441, %v1449
    %v1458 = vmul.f32 %v1440, %v1450
    %s1459 = scalar_lea.vmem %s3, 72
    %v1460 = vld [vmem:[%s1459] sm:$0xff]
    %v1462 = vsel %vm248, %v1460, 0
    %v1465 = vsel %vm252, %v1455, 0
    %v1468 = vsel %vm252, %v1456, 0
    %v1471 = vsel %vm252, %v1457, 0
    %v1474 = vsel %vm252, %v1458, 0
    %1476 = vmatpush.msra.mxu0 0.0
    %1477 = vmatpush.msra.mxu0 0.0
    %1478 = vmatpush.msra.mxu0 0.0
    %1479 = vmatpush.msra.mxu0 0.0
    %1480 = vmatpush.msra.mxu0 0.0
    %1481 = vmatpush.msra.mxu0 0.0
    %1482 = vmatpush.msra.mxu0 0.0
    %1483 = vmatpush.msra.mxu0 0.0
    %1484 = vmatpush.msra.mxu0 0.0
    %1485 = vmatpush.msra.mxu0 0.0
    %1486 = vmatpush.msra.mxu0 0.0
    %1487 = vmatpush.msra.mxu0 0.0
    %1488 = vmatpush.msra.mxu0 0.0
    %1489 = vmatpush.msra.mxu0 0.0
    %1490 = vmatpush.msra.mxu0 0.0
    %1491 = vmatpush.msra.mxu0 %v1465
    %1492 = vmatmul.f32.gmra.mxu0 %v1462
    %v1493 = vpop.f32.mrf.mxu0
    %v1494 = vadd.f32 0.0, %v1493
    %1495 = vdwg.mxu0
    %1496 = vmatpush.msra.mxu0 0.0
    %1497 = vmatpush.msra.mxu0 0.0
    %1498 = vmatpush.msra.mxu0 0.0
    %1499 = vmatpush.msra.mxu0 0.0
    %1500 = vmatpush.msra.mxu0 0.0
    %1501 = vmatpush.msra.mxu0 0.0
    %1502 = vmatpush.msra.mxu0 0.0
    %1503 = vmatpush.msra.mxu0 0.0
    %1504 = vmatpush.msra.mxu0 0.0
    %1505 = vmatpush.msra.mxu0 0.0
    %1506 = vmatpush.msra.mxu0 0.0
    %1507 = vmatpush.msra.mxu0 0.0
    %1508 = vmatpush.msra.mxu0 0.0
    %1509 = vmatpush.msra.mxu0 0.0
    %1510 = vmatpush.msra.mxu0 0.0
    %1511 = vmatpush.msra.mxu0 %v1468
    %1512 = vmatmul.f32.gmra.mxu0 %v1462
    %v1513 = vpop.f32.mrf.mxu0
    %v1514 = vadd.f32 0.0, %v1513
    %1515 = vdwg.mxu0
    %1516 = vmatpush.msra.mxu0 0.0
    %1517 = vmatpush.msra.mxu0 0.0
    %1518 = vmatpush.msra.mxu0 0.0
    %1519 = vmatpush.msra.mxu0 0.0
    %1520 = vmatpush.msra.mxu0 0.0
    %1521 = vmatpush.msra.mxu0 0.0
    %1522 = vmatpush.msra.mxu0 0.0
    %1523 = vmatpush.msra.mxu0 0.0
    %1524 = vmatpush.msra.mxu0 0.0
    %1525 = vmatpush.msra.mxu0 0.0
    %1526 = vmatpush.msra.mxu0 0.0
    %1527 = vmatpush.msra.mxu0 0.0
    %1528 = vmatpush.msra.mxu0 0.0
    %1529 = vmatpush.msra.mxu0 0.0
    %1530 = vmatpush.msra.mxu0 0.0
    %1531 = vmatpush.msra.mxu0 %v1471
    %1532 = vmatmul.f32.gmra.mxu0 %v1462
    %v1533 = vpop.f32.mrf.mxu0
    %v1534 = vadd.f32 0.0, %v1533
    %1535 = vdwg.mxu0
    %1536 = vmatpush.msra.mxu0 0.0
    %1537 = vmatpush.msra.mxu0 0.0
    %1538 = vmatpush.msra.mxu0 0.0
    %1539 = vmatpush.msra.mxu0 0.0
    %1540 = vmatpush.msra.mxu0 0.0
    %1541 = vmatpush.msra.mxu0 0.0
    %1542 = vmatpush.msra.mxu0 0.0
    %1543 = vmatpush.msra.mxu0 0.0
    %1544 = vmatpush.msra.mxu0 0.0
    %1545 = vmatpush.msra.mxu0 0.0
    %1546 = vmatpush.msra.mxu0 0.0
    %1547 = vmatpush.msra.mxu0 0.0
    %1548 = vmatpush.msra.mxu0 0.0
    %1549 = vmatpush.msra.mxu0 0.0
    %1550 = vmatpush.msra.mxu0 0.0
    %1551 = vmatpush.msra.mxu0 %v1474
    %1552 = vmatmul.f32.gmra.mxu0 %v1462
    %v1553 = vpop.f32.mrf.mxu0
    %v1554 = vadd.f32 0.0, %v1553
    %1555 = vdwg.mxu0
    %v1556 = vadd.f32 %v1416, %v1494
    %v1557 = vadd.f32 %v1417, %v1514
    %v1558 = vadd.f32 %v1418, %v1534
    %v1559 = vadd.f32 %v1419, %v1554
    %1560 = vst [vmem:[#allocation1] ss:$2 sm:$0xff] %v162
    %s1561 = scalar_lea.vmem [#allocation1], 16
    %1562 = vst [vmem:[%s1561] ss:$2 sm:$0xff] %v163
    %v1563 = vld.sshfl [vmem:[#allocation1] sm:$0xff pattern:$0x75316420]
    %v1564 = vld.sshfl [vmem:[#allocation1 + $0x8] sm:$0xff pattern:$0x75316420]
    %v1565 = vld.sshfl [vmem:[#allocation1 + $0x10] sm:$0xff pattern:$0x75316420]
    %v1566 = vld.sshfl [vmem:[#allocation1 + $0x18] sm:$0xff pattern:$0x75316420]
    %1571 = vrot.lane.b32.xlu0 %v1563, 32
    %v1572 = vpop.permute.xlu0 %1571
    %1573 = vrot.lane.b32.xlu0 %v1564, 32
    %v1574 = vpop.permute.xlu0 %1573
    %1575 = vrot.lane.b32.xlu0 %v1565, 32
    %v1576 = vpop.permute.xlu0 %1575
    %1577 = vrot.lane.b32.xlu0 %v1566, 32
    %v1578 = vpop.permute.xlu0 %1577
    %vm1579 = vcmp.lt.s32.totalorder %v186, 32
    %v1580 = vsel %vm1579, %v1576, %v1578
    %v1581 = vsel %vm1579, %v1574, %v1576
    %v1582 = vsel %vm1579, %v1572, %v1574
    %v1583 = vsel %vm1579, %v1578, %v1572
    %s1584 = scalar_lea.vmem %s7, 34
    %v1585 = vld [vmem:[%s1584] ss:$8 sm:$0xf]
    %v1587 = vperm.slane %v1585, 0
    %v1588 = vperm.slane %v1585, 1
    %v1589 = vperm.slane %v1585, 2
    %v1590 = vperm.slane %v1585, 3
    %v1595 = vmul.f32 %v1583, %v1587
    %v1596 = vmul.f32 %v1582, %v1588
    %v1597 = vmul.f32 %v1581, %v1589
    %v1598 = vmul.f32 %v1580, %v1590
    %s1599 = scalar_lea.vmem %s3, 80
    %v1600 = vld [vmem:[%s1599] sm:$0xff]
    %v1602 = vsel %vm248, %v1600, 0
    %v1605 = vsel %vm252, %v1595, 0
    %v1608 = vsel %vm252, %v1596, 0
    %v1611 = vsel %vm252, %v1597, 0
    %v1614 = vsel %vm252, %v1598, 0
    %1616 = vmatpush.msra.mxu0 0.0
    %1617 = vmatpush.msra.mxu0 0.0
    %1618 = vmatpush.msra.mxu0 0.0
    %1619 = vmatpush.msra.mxu0 0.0
    %1620 = vmatpush.msra.mxu0 0.0
    %1621 = vmatpush.msra.mxu0 0.0
    %1622 = vmatpush.msra.mxu0 0.0
    %1623 = vmatpush.msra.mxu0 0.0
    %1624 = vmatpush.msra.mxu0 0.0
    %1625 = vmatpush.msra.mxu0 0.0
    %1626 = vmatpush.msra.mxu0 0.0
    %1627 = vmatpush.msra.mxu0 0.0
    %1628 = vmatpush.msra.mxu0 0.0
    %1629 = vmatpush.msra.mxu0 0.0
    %1630 = vmatpush.msra.mxu0 0.0
    %1631 = vmatpush.msra.mxu0 %v1605
    %1632 = vmatmul.f32.gmra.mxu0 %v1602
    %v1633 = vpop.f32.mrf.mxu0
    %v1634 = vadd.f32 0.0, %v1633
    %1635 = vdwg.mxu0
    %1636 = vmatpush.msra.mxu0 0.0
    %1637 = vmatpush.msra.mxu0 0.0
    %1638 = vmatpush.msra.mxu0 0.0
    %1639 = vmatpush.msra.mxu0 0.0
    %1640 = vmatpush.msra.mxu0 0.0
    %1641 = vmatpush.msra.mxu0 0.0
    %1642 = vmatpush.msra.mxu0 0.0
    %1643 = vmatpush.msra.mxu0 0.0
    %1644 = vmatpush.msra.mxu0 0.0
    %1645 = vmatpush.msra.mxu0 0.0
    %1646 = vmatpush.msra.mxu0 0.0
    %1647 = vmatpush.msra.mxu0 0.0
    %1648 = vmatpush.msra.mxu0 0.0
    %1649 = vmatpush.msra.mxu0 0.0
    %1650 = vmatpush.msra.mxu0 0.0
    %1651 = vmatpush.msra.mxu0 %v1608
    %1652 = vmatmul.f32.gmra.mxu0 %v1602
    %v1653 = vpop.f32.mrf.mxu0
    %v1654 = vadd.f32 0.0, %v1653
    %1655 = vdwg.mxu0
    %1656 = vmatpush.msra.mxu0 0.0
    %1657 = vmatpush.msra.mxu0 0.0
    %1658 = vmatpush.msra.mxu0 0.0
    %1659 = vmatpush.msra.mxu0 0.0
    %1660 = vmatpush.msra.mxu0 0.0
    %1661 = vmatpush.msra.mxu0 0.0
    %1662 = vmatpush.msra.mxu0 0.0
    %1663 = vmatpush.msra.mxu0 0.0
    %1664 = vmatpush.msra.mxu0 0.0
    %1665 = vmatpush.msra.mxu0 0.0
    %1666 = vmatpush.msra.mxu0 0.0
    %1667 = vmatpush.msra.mxu0 0.0
    %1668 = vmatpush.msra.mxu0 0.0
    %1669 = vmatpush.msra.mxu0 0.0
    %1670 = vmatpush.msra.mxu0 0.0
    %1671 = vmatpush.msra.mxu0 %v1611
    %1672 = vmatmul.f32.gmra.mxu0 %v1602
    %v1673 = vpop.f32.mrf.mxu0
    %v1674 = vadd.f32 0.0, %v1673
    %1675 = vdwg.mxu0
    %1676 = vmatpush.msra.mxu0 0.0
    %1677 = vmatpush.msra.mxu0 0.0
    %1678 = vmatpush.msra.mxu0 0.0
    %1679 = vmatpush.msra.mxu0 0.0
    %1680 = vmatpush.msra.mxu0 0.0
    %1681 = vmatpush.msra.mxu0 0.0
    %1682 = vmatpush.msra.mxu0 0.0
    %1683 = vmatpush.msra.mxu0 0.0
    %1684 = vmatpush.msra.mxu0 0.0
    %1685 = vmatpush.msra.mxu0 0.0
    %1686 = vmatpush.msra.mxu0 0.0
    %1687 = vmatpush.msra.mxu0 0.0
    %1688 = vmatpush.msra.mxu0 0.0
    %1689 = vmatpush.msra.mxu0 0.0
    %1690 = vmatpush.msra.mxu0 0.0
    %1691 = vmatpush.msra.mxu0 %v1614
    %1692 = vmatmul.f32.gmra.mxu0 %v1602
    %v1693 = vpop.f32.mrf.mxu0
    %v1694 = vadd.f32 0.0, %v1693
    %1695 = vdwg.mxu0
    %v1696 = vadd.f32 %v1556, %v1634
    %v1697 = vadd.f32 %v1557, %v1654
    %v1698 = vadd.f32 %v1558, %v1674
    %v1699 = vadd.f32 %v1559, %v1694
    %1700 = vst [vmem:[#allocation1] ss:$2 sm:$0xff] %v162
    %s1701 = scalar_lea.vmem [#allocation1], 16
    %1702 = vst [vmem:[%s1701] ss:$2 sm:$0xff] %v163
    %v1703 = vld.sshfl [vmem:[#allocation1] sm:$0xff pattern:$0x75316420]
    %v1704 = vld.sshfl [vmem:[#allocation1 + $0x8] sm:$0xff pattern:$0x75316420]
    %v1705 = vld.sshfl [vmem:[#allocation1 + $0x10] sm:$0xff pattern:$0x75316420]
    %v1706 = vld.sshfl [vmem:[#allocation1 + $0x18] sm:$0xff pattern:$0x75316420]
    %1711 = vrot.lane.b32.xlu0 %v1703, 31
    %v1712 = vpop.permute.xlu0 %1711
    %1713 = vrot.lane.b32.xlu0 %v1704, 31
    %v1714 = vpop.permute.xlu0 %1713
    %1715 = vrot.lane.b32.xlu0 %v1705, 31
    %v1716 = vpop.permute.xlu0 %1715
    %1717 = vrot.lane.b32.xlu0 %v1706, 31
    %v1718 = vpop.permute.xlu0 %1717
    %vm1719 = vcmp.lt.s32.totalorder %v186, 31
    %v1720 = vsel %vm1719, %v1716, %v1718
    %v1721 = vsel %vm1719, %v1714, %v1716
    %v1722 = vsel %vm1719, %v1712, %v1714
    %v1723 = vsel %vm1719, %v1718, %v1712
    %s1724 = scalar_lea.vmem %s7, 35
    %v1725 = vld [vmem:[%s1724] ss:$8 sm:$0xf]
    %v1727 = vperm.slane %v1725, 0
    %v1728 = vperm.slane %v1725, 1
    %v1729 = vperm.slane %v1725, 2
    %v1730 = vperm.slane %v1725, 3
    %v1735 = vmul.f32 %v1723, %v1727
    %v1736 = vmul.f32 %v1722, %v1728
    %v1737 = vmul.f32 %v1721, %v1729
    %v1738 = vmul.f32 %v1720, %v1730
    %s1739 = scalar_lea.vmem %s3, 88
    %v1740 = vld [vmem:[%s1739] sm:$0xff]
    %v1742 = vsel %vm248, %v1740, 0
    %v1745 = vsel %vm252, %v1735, 0
    %v1748 = vsel %vm252, %v1736, 0
    %v1751 = vsel %vm252, %v1737, 0
    %v1754 = vsel %vm252, %v1738, 0
    %1756 = vmatpush.msra.mxu0 0.0
    %1757 = vmatpush.msra.mxu0 0.0
    %1758 = vmatpush.msra.mxu0 0.0
    %1759 = vmatpush.msra.mxu0 0.0
    %1760 = vmatpush.msra.mxu0 0.0
    %1761 = vmatpush.msra.mxu0 0.0
    %1762 = vmatpush.msra.mxu0 0.0
    %1763 = vmatpush.msra.mxu0 0.0
    %1764 = vmatpush.msra.mxu0 0.0
    %1765 = vmatpush.msra.mxu0 0.0
    %1766 = vmatpush.msra.mxu0 0.0
    %1767 = vmatpush.msra.mxu0 0.0
    %1768 = vmatpush.msra.mxu0 0.0
    %1769 = vmatpush.msra.mxu0 0.0
    %1770 = vmatpush.msra.mxu0 0.0
    %1771 = vmatpush.msra.mxu0 %v1745
    %1772 = vmatmul.f32.gmra.mxu0 %v1742
    %v1773 = vpop.f32.mrf.mxu0
    %v1774 = vadd.f32 0.0, %v1773
    %1775 = vdwg.mxu0
    %1776 = vmatpush.msra.mxu0 0.0
    %1777 = vmatpush.msra.mxu0 0.0
    %1778 = vmatpush.msra.mxu0 0.0
    %1779 = vmatpush.msra.mxu0 0.0
    %1780 = vmatpush.msra.mxu0 0.0
    %1781 = vmatpush.msra.mxu0 0.0
    %1782 = vmatpush.msra.mxu0 0.0
    %1783 = vmatpush.msra.mxu0 0.0
    %1784 = vmatpush.msra.mxu0 0.0
    %1785 = vmatpush.msra.mxu0 0.0
    %1786 = vmatpush.msra.mxu0 0.0
    %1787 = vmatpush.msra.mxu0 0.0
    %1788 = vmatpush.msra.mxu0 0.0
    %1789 = vmatpush.msra.mxu0 0.0
    %1790 = vmatpush.msra.mxu0 0.0
    %1791 = vmatpush.msra.mxu0 %v1748
    %1792 = vmatmul.f32.gmra.mxu0 %v1742
    %v1793 = vpop.f32.mrf.mxu0
    %v1794 = vadd.f32 0.0, %v1793
    %1795 = vdwg.mxu0
    %1796 = vmatpush.msra.mxu0 0.0
    %1797 = vmatpush.msra.mxu0 0.0
    %1798 = vmatpush.msra.mxu0 0.0
    %1799 = vmatpush.msra.mxu0 0.0
    %1800 = vmatpush.msra.mxu0 0.0
    %1801 = vmatpush.msra.mxu0 0.0
    %1802 = vmatpush.msra.mxu0 0.0
    %1803 = vmatpush.msra.mxu0 0.0
    %1804 = vmatpush.msra.mxu0 0.0
    %1805 = vmatpush.msra.mxu0 0.0
    %1806 = vmatpush.msra.mxu0 0.0
    %1807 = vmatpush.msra.mxu0 0.0
    %1808 = vmatpush.msra.mxu0 0.0
    %1809 = vmatpush.msra.mxu0 0.0
    %1810 = vmatpush.msra.mxu0 0.0
    %1811 = vmatpush.msra.mxu0 %v1751
    %1812 = vmatmul.f32.gmra.mxu0 %v1742
    %v1813 = vpop.f32.mrf.mxu0
    %v1814 = vadd.f32 0.0, %v1813
    %1815 = vdwg.mxu0
    %1816 = vmatpush.msra.mxu0 0.0
    %1817 = vmatpush.msra.mxu0 0.0
    %1818 = vmatpush.msra.mxu0 0.0
    %1819 = vmatpush.msra.mxu0 0.0
    %1820 = vmatpush.msra.mxu0 0.0
    %1821 = vmatpush.msra.mxu0 0.0
    %1822 = vmatpush.msra.mxu0 0.0
    %1823 = vmatpush.msra.mxu0 0.0
    %1824 = vmatpush.msra.mxu0 0.0
    %1825 = vmatpush.msra.mxu0 0.0
    %1826 = vmatpush.msra.mxu0 0.0
    %1827 = vmatpush.msra.mxu0 0.0
    %1828 = vmatpush.msra.mxu0 0.0
    %1829 = vmatpush.msra.mxu0 0.0
    %1830 = vmatpush.msra.mxu0 0.0
    %1831 = vmatpush.msra.mxu0 %v1754
    %1832 = vmatmul.f32.gmra.mxu0 %v1742
    %v1833 = vpop.f32.mrf.mxu0
    %v1834 = vadd.f32 0.0, %v1833
    %1835 = vdwg.mxu0
    %v1836 = vadd.f32 %v1696, %v1774
    %v1837 = vadd.f32 %v1697, %v1794
    %v1838 = vadd.f32 %v1698, %v1814
    %v1839 = vadd.f32 %v1699, %v1834
    %1840 = vst [vmem:[#allocation1] ss:$2 sm:$0xff] %v162
    %s1841 = scalar_lea.vmem [#allocation1], 16
    %1842 = vst [vmem:[%s1841] ss:$2 sm:$0xff] %v163
    %v1843 = vld.sshfl [vmem:[#allocation1] sm:$0xff pattern:$0x75316420]
    %v1844 = vld.sshfl [vmem:[#allocation1 + $0x8] sm:$0xff pattern:$0x75316420]
    %v1845 = vld.sshfl [vmem:[#allocation1 + $0x10] sm:$0xff pattern:$0x75316420]
    %v1846 = vld.sshfl [vmem:[#allocation1 + $0x18] sm:$0xff pattern:$0x75316420]
    %1851 = vrot.lane.b32.xlu0 %v1843, 30
    %v1852 = vpop.permute.xlu0 %1851
    %1853 = vrot.lane.b32.xlu0 %v1844, 30
    %v1854 = vpop.permute.xlu0 %1853
    %1855 = vrot.lane.b32.xlu0 %v1845, 30
    %v1856 = vpop.permute.xlu0 %1855
    %1857 = vrot.lane.b32.xlu0 %v1846, 30
    %v1858 = vpop.permute.xlu0 %1857
    %vm1859 = vcmp.lt.s32.totalorder %v186, 30
    %v1860 = vsel %vm1859, %v1856, %v1858
    %v1861 = vsel %vm1859, %v1854, %v1856
    %v1862 = vsel %vm1859, %v1852, %v1854
    %v1863 = vsel %vm1859, %v1858, %v1852
    %s1864 = scalar_lea.vmem %s7, 36
    %v1865 = vld [vmem:[%s1864] ss:$8 sm:$0xf]
    %v1867 = vperm.slane %v1865, 0
    %v1868 = vperm.slane %v1865, 1
    %v1869 = vperm.slane %v1865, 2
    %v1870 = vperm.slane %v1865, 3
    %v1875 = vmul.f32 %v1863, %v1867
    %v1876 = vmul.f32 %v1862, %v1868
    %v1877 = vmul.f32 %v1861, %v1869
    %v1878 = vmul.f32 %v1860, %v1870
    %s1879 = scalar_lea.vmem %s3, 96
    %v1880 = vld [vmem:[%s1879] sm:$0xff]
    %v1882 = vsel %vm248, %v1880, 0
    %v1885 = vsel %vm252, %v1875, 0
    %v1888 = vsel %vm252, %v1876, 0
    %v1891 = vsel %vm252, %v1877, 0
    %v1894 = vsel %vm252, %v1878, 0
    %1896 = vmatpush.msra.mxu0 0.0
    %1897 = vmatpush.msra.mxu0 0.0
    %1898 = vmatpush.msra.mxu0 0.0
    %1899 = vmatpush.msra.mxu0 0.0
    %1900 = vmatpush.msra.mxu0 0.0
    %1901 = vmatpush.msra.mxu0 0.0
    %1902 = vmatpush.msra.mxu0 0.0
    %1903 = vmatpush.msra.mxu0 0.0
    %1904 = vmatpush.msra.mxu0 0.0
    %1905 = vmatpush.msra.mxu0 0.0
    %1906 = vmatpush.msra.mxu0 0.0
    %1907 = vmatpush.msra.mxu0 0.0
    %1908 = vmatpush.msra.mxu0 0.0
    %1909 = vmatpush.msra.mxu0 0.0
    %1910 = vmatpush.msra.mxu0 0.0
    %1911 = vmatpush.msra.mxu0 %v1885
    %1912 = vmatmul.f32.gmra.mxu0 %v1882
    %v1913 = vpop.f32.mrf.mxu0
    %v1914 = vadd.f32 0.0, %v1913
    %1915 = vdwg.mxu0
    %1916 = vmatpush.msra.mxu0 0.0
    %1917 = vmatpush.msra.mxu0 0.0
    %1918 = vmatpush.msra.mxu0 0.0
    %1919 = vmatpush.msra.mxu0 0.0
    %1920 = vmatpush.msra.mxu0 0.0
    %1921 = vmatpush.msra.mxu0 0.0
    %1922 = vmatpush.msra.mxu0 0.0
    %1923 = vmatpush.msra.mxu0 0.0
    %1924 = vmatpush.msra.mxu0 0.0
    %1925 = vmatpush.msra.mxu0 0.0
    %1926 = vmatpush.msra.mxu0 0.0
    %1927 = vmatpush.msra.mxu0 0.0
    %1928 = vmatpush.msra.mxu0 0.0
    %1929 = vmatpush.msra.mxu0 0.0
    %1930 = vmatpush.msra.mxu0 0.0
    %1931 = vmatpush.msra.mxu0 %v1888
    %1932 = vmatmul.f32.gmra.mxu0 %v1882
    %v1933 = vpop.f32.mrf.mxu0
    %v1934 = vadd.f32 0.0, %v1933
    %1935 = vdwg.mxu0
    %1936 = vmatpush.msra.mxu0 0.0
    %1937 = vmatpush.msra.mxu0 0.0
    %1938 = vmatpush.msra.mxu0 0.0
    %1939 = vmatpush.msra.mxu0 0.0
    %1940 = vmatpush.msra.mxu0 0.0
    %1941 = vmatpush.msra.mxu0 0.0
    %1942 = vmatpush.msra.mxu0 0.0
    %1943 = vmatpush.msra.mxu0 0.0
    %1944 = vmatpush.msra.mxu0 0.0
    %1945 = vmatpush.msra.mxu0 0.0
    %1946 = vmatpush.msra.mxu0 0.0
    %1947 = vmatpush.msra.mxu0 0.0
    %1948 = vmatpush.msra.mxu0 0.0
    %1949 = vmatpush.msra.mxu0 0.0
    %1950 = vmatpush.msra.mxu0 0.0
    %1951 = vmatpush.msra.mxu0 %v1891
    %1952 = vmatmul.f32.gmra.mxu0 %v1882
    %v1953 = vpop.f32.mrf.mxu0
    %v1954 = vadd.f32 0.0, %v1953
    %1955 = vdwg.mxu0
    %1956 = vmatpush.msra.mxu0 0.0
    %1957 = vmatpush.msra.mxu0 0.0
    %1958 = vmatpush.msra.mxu0 0.0
    %1959 = vmatpush.msra.mxu0 0.0
    %1960 = vmatpush.msra.mxu0 0.0
    %1961 = vmatpush.msra.mxu0 0.0
    %1962 = vmatpush.msra.mxu0 0.0
    %1963 = vmatpush.msra.mxu0 0.0
    %1964 = vmatpush.msra.mxu0 0.0
    %1965 = vmatpush.msra.mxu0 0.0
    %1966 = vmatpush.msra.mxu0 0.0
    %1967 = vmatpush.msra.mxu0 0.0
    %1968 = vmatpush.msra.mxu0 0.0
    %1969 = vmatpush.msra.mxu0 0.0
    %1970 = vmatpush.msra.mxu0 0.0
    %1971 = vmatpush.msra.mxu0 %v1894
    %1972 = vmatmul.f32.gmra.mxu0 %v1882
    %v1973 = vpop.f32.mrf.mxu0
    %v1974 = vadd.f32 0.0, %v1973
    %1975 = vdwg.mxu0
    %v1976 = vadd.f32 %v1836, %v1914
    %v1977 = vadd.f32 %v1837, %v1934
    %v1978 = vadd.f32 %v1838, %v1954
    %v1979 = vadd.f32 %v1839, %v1974
    %1980 = vst [vmem:[#allocation1] ss:$2 sm:$0xff] %v162
    %s1981 = scalar_lea.vmem [#allocation1], 16
    %1982 = vst [vmem:[%s1981] ss:$2 sm:$0xff] %v163
    %v1983 = vld.sshfl [vmem:[#allocation1] sm:$0xff pattern:$0x75316420]
    %v1984 = vld.sshfl [vmem:[#allocation1 + $0x8] sm:$0xff pattern:$0x75316420]
    %v1985 = vld.sshfl [vmem:[#allocation1 + $0x10] sm:$0xff pattern:$0x75316420]
    %v1986 = vld.sshfl [vmem:[#allocation1 + $0x18] sm:$0xff pattern:$0x75316420]
    %1991 = vrot.lane.b32.xlu0 %v1983, 29
    %v1992 = vpop.permute.xlu0 %1991
    %1993 = vrot.lane.b32.xlu0 %v1984, 29
    %v1994 = vpop.permute.xlu0 %1993
    %1995 = vrot.lane.b32.xlu0 %v1985, 29
    %v1996 = vpop.permute.xlu0 %1995
    %1997 = vrot.lane.b32.xlu0 %v1986, 29
    %v1998 = vpop.permute.xlu0 %1997
    %vm1999 = vcmp.lt.s32.totalorder %v186, 29
    %v2000 = vsel %vm1999, %v1996, %v1998
    %v2001 = vsel %vm1999, %v1994, %v1996
    %v2002 = vsel %vm1999, %v1992, %v1994
    %v2003 = vsel %vm1999, %v1998, %v1992
    %s2004 = scalar_lea.vmem %s7, 37
    %v2005 = vld [vmem:[%s2004] ss:$8 sm:$0xf]
    %v2007 = vperm.slane %v2005, 0
    %v2008 = vperm.slane %v2005, 1
    %v2009 = vperm.slane %v2005, 2
    %v2010 = vperm.slane %v2005, 3
    %v2015 = vmul.f32 %v2003, %v2007
    %v2016 = vmul.f32 %v2002, %v2008
    %v2017 = vmul.f32 %v2001, %v2009
    %v2018 = vmul.f32 %v2000, %v2010
    %s2019 = scalar_lea.vmem %s3, 104
    %v2020 = vld [vmem:[%s2019] sm:$0xff]
    %v2022 = vsel %vm248, %v2020, 0
    %v2025 = vsel %vm252, %v2015, 0
    %v2028 = vsel %vm252, %v2016, 0
    %v2031 = vsel %vm252, %v2017, 0
    %v2034 = vsel %vm252, %v2018, 0
    %2036 = vmatpush.msra.mxu0 0.0
    %2037 = vmatpush.msra.mxu0 0.0
    %2038 = vmatpush.msra.mxu0 0.0
    %2039 = vmatpush.msra.mxu0 0.0
    %2040 = vmatpush.msra.mxu0 0.0
    %2041 = vmatpush.msra.mxu0 0.0
    %2042 = vmatpush.msra.mxu0 0.0
    %2043 = vmatpush.msra.mxu0 0.0
    %2044 = vmatpush.msra.mxu0 0.0
    %2045 = vmatpush.msra.mxu0 0.0
    %2046 = vmatpush.msra.mxu0 0.0
    %2047 = vmatpush.msra.mxu0 0.0
    %2048 = vmatpush.msra.mxu0 0.0
    %2049 = vmatpush.msra.mxu0 0.0
    %2050 = vmatpush.msra.mxu0 0.0
    %2051 = vmatpush.msra.mxu0 %v2025
    %2052 = vmatmul.f32.gmra.mxu0 %v2022
    %v2053 = vpop.f32.mrf.mxu0
    %v2054 = vadd.f32 0.0, %v2053
    %2055 = vdwg.mxu0
    %2056 = vmatpush.msra.mxu0 0.0
    %2057 = vmatpush.msra.mxu0 0.0
    %2058 = vmatpush.msra.mxu0 0.0
    %2059 = vmatpush.msra.mxu0 0.0
    %2060 = vmatpush.msra.mxu0 0.0
    %2061 = vmatpush.msra.mxu0 0.0
    %2062 = vmatpush.msra.mxu0 0.0
    %2063 = vmatpush.msra.mxu0 0.0
    %2064 = vmatpush.msra.mxu0 0.0
    %2065 = vmatpush.msra.mxu0 0.0
    %2066 = vmatpush.msra.mxu0 0.0
    %2067 = vmatpush.msra.mxu0 0.0
    %2068 = vmatpush.msra.mxu0 0.0
    %2069 = vmatpush.msra.mxu0 0.0
    %2070 = vmatpush.msra.mxu0 0.0
    %2071 = vmatpush.msra.mxu0 %v2028
    %2072 = vmatmul.f32.gmra.mxu0 %v2022
    %v2073 = vpop.f32.mrf.mxu0
    %v2074 = vadd.f32 0.0, %v2073
    %2075 = vdwg.mxu0
    %2076 = vmatpush.msra.mxu0 0.0
    %2077 = vmatpush.msra.mxu0 0.0
    %2078 = vmatpush.msra.mxu0 0.0
    %2079 = vmatpush.msra.mxu0 0.0
    %2080 = vmatpush.msra.mxu0 0.0
    %2081 = vmatpush.msra.mxu0 0.0
    %2082 = vmatpush.msra.mxu0 0.0
    %2083 = vmatpush.msra.mxu0 0.0
    %2084 = vmatpush.msra.mxu0 0.0
    %2085 = vmatpush.msra.mxu0 0.0
    %2086 = vmatpush.msra.mxu0 0.0
    %2087 = vmatpush.msra.mxu0 0.0
    %2088 = vmatpush.msra.mxu0 0.0
    %2089 = vmatpush.msra.mxu0 0.0
    %2090 = vmatpush.msra.mxu0 0.0
    %2091 = vmatpush.msra.mxu0 %v2031
    %2092 = vmatmul.f32.gmra.mxu0 %v2022
    %v2093 = vpop.f32.mrf.mxu0
    %v2094 = vadd.f32 0.0, %v2093
    %2095 = vdwg.mxu0
    %2096 = vmatpush.msra.mxu0 0.0
    %2097 = vmatpush.msra.mxu0 0.0
    %2098 = vmatpush.msra.mxu0 0.0
    %2099 = vmatpush.msra.mxu0 0.0
    %2100 = vmatpush.msra.mxu0 0.0
    %2101 = vmatpush.msra.mxu0 0.0
    %2102 = vmatpush.msra.mxu0 0.0
    %2103 = vmatpush.msra.mxu0 0.0
    %2104 = vmatpush.msra.mxu0 0.0
    %2105 = vmatpush.msra.mxu0 0.0
    %2106 = vmatpush.msra.mxu0 0.0
    %2107 = vmatpush.msra.mxu0 0.0
    %2108 = vmatpush.msra.mxu0 0.0
    %2109 = vmatpush.msra.mxu0 0.0
    %2110 = vmatpush.msra.mxu0 0.0
    %2111 = vmatpush.msra.mxu0 %v2034
    %2112 = vmatmul.f32.gmra.mxu0 %v2022
    %v2113 = vpop.f32.mrf.mxu0
    %v2114 = vadd.f32 0.0, %v2113
    %2115 = vdwg.mxu0
    %v2116 = vadd.f32 %v1976, %v2054
    %v2117 = vadd.f32 %v1977, %v2074
    %v2118 = vadd.f32 %v1978, %v2094
    %v2119 = vadd.f32 %v1979, %v2114
    %2120 = vst [vmem:[#allocation1] ss:$2 sm:$0xff] %v162
    %s2121 = scalar_lea.vmem [#allocation1], 16
    %2122 = vst [vmem:[%s2121] ss:$2 sm:$0xff] %v163
    %v2123 = vld.sshfl [vmem:[#allocation1] sm:$0xff pattern:$0x75316420]
    %v2124 = vld.sshfl [vmem:[#allocation1 + $0x8] sm:$0xff pattern:$0x75316420]
    %v2125 = vld.sshfl [vmem:[#allocation1 + $0x10] sm:$0xff pattern:$0x75316420]
    %v2126 = vld.sshfl [vmem:[#allocation1 + $0x18] sm:$0xff pattern:$0x75316420]
    %2131 = vrot.lane.b32.xlu0 %v2123, 19
    %v2132 = vpop.permute.xlu0 %2131
    %2133 = vrot.lane.b32.xlu0 %v2124, 19
    %v2134 = vpop.permute.xlu0 %2133
    %2135 = vrot.lane.b32.xlu0 %v2125, 19
    %v2136 = vpop.permute.xlu0 %2135
    %2137 = vrot.lane.b32.xlu0 %v2126, 19
    %v2138 = vpop.permute.xlu0 %2137
    %vm2139 = vcmp.lt.s32.totalorder %v186, 19
    %v2140 = vsel %vm2139, %v2136, %v2138
    %v2141 = vsel %vm2139, %v2134, %v2136
    %v2142 = vsel %vm2139, %v2132, %v2134
    %v2143 = vsel %vm2139, %v2138, %v2132
    %s2144 = scalar_lea.vmem %s7, 38
    %v2145 = vld [vmem:[%s2144] ss:$8 sm:$0xf]
    %v2147 = vperm.slane %v2145, 0
    %v2148 = vperm.slane %v2145, 1
    %v2149 = vperm.slane %v2145, 2
    %v2150 = vperm.slane %v2145, 3
    %v2155 = vmul.f32 %v2143, %v2147
    %v2156 = vmul.f32 %v2142, %v2148
    %v2157 = vmul.f32 %v2141, %v2149
    %v2158 = vmul.f32 %v2140, %v2150
    %s2159 = scalar_lea.vmem %s3, 112
    %v2160 = vld [vmem:[%s2159] sm:$0xff]
    %v2162 = vsel %vm248, %v2160, 0
    %v2165 = vsel %vm252, %v2155, 0
    %v2168 = vsel %vm252, %v2156, 0
    %v2171 = vsel %vm252, %v2157, 0
    %v2174 = vsel %vm252, %v2158, 0
    %2176 = vmatpush.msra.mxu0 0.0
    %2177 = vmatpush.msra.mxu0 0.0
    %2178 = vmatpush.msra.mxu0 0.0
    %2179 = vmatpush.msra.mxu0 0.0
    %2180 = vmatpush.msra.mxu0 0.0
    %2181 = vmatpush.msra.mxu0 0.0
    %2182 = vmatpush.msra.mxu0 0.0
    %2183 = vmatpush.msra.mxu0 0.0
    %2184 = vmatpush.msra.mxu0 0.0
    %2185 = vmatpush.msra.mxu0 0.0
    %2186 = vmatpush.msra.mxu0 0.0
    %2187 = vmatpush.msra.mxu0 0.0
    %2188 = vmatpush.msra.mxu0 0.0
    %2189 = vmatpush.msra.mxu0 0.0
    %2190 = vmatpush.msra.mxu0 0.0
    %2191 = vmatpush.msra.mxu0 %v2165
    %2192 = vmatmul.f32.gmra.mxu0 %v2162
    %v2193 = vpop.f32.mrf.mxu0
    %v2194 = vadd.f32 0.0, %v2193
    %2195 = vdwg.mxu0
    %2196 = vmatpush.msra.mxu0 0.0
    %2197 = vmatpush.msra.mxu0 0.0
    %2198 = vmatpush.msra.mxu0 0.0
    %2199 = vmatpush.msra.mxu0 0.0
    %2200 = vmatpush.msra.mxu0 0.0
    %2201 = vmatpush.msra.mxu0 0.0
    %2202 = vmatpush.msra.mxu0 0.0
    %2203 = vmatpush.msra.mxu0 0.0
    %2204 = vmatpush.msra.mxu0 0.0
    %2205 = vmatpush.msra.mxu0 0.0
    %2206 = vmatpush.msra.mxu0 0.0
    %2207 = vmatpush.msra.mxu0 0.0
    %2208 = vmatpush.msra.mxu0 0.0
    %2209 = vmatpush.msra.mxu0 0.0
    %2210 = vmatpush.msra.mxu0 0.0
    %2211 = vmatpush.msra.mxu0 %v2168
    %2212 = vmatmul.f32.gmra.mxu0 %v2162
    %v2213 = vpop.f32.mrf.mxu0
    %v2214 = vadd.f32 0.0, %v2213
    %2215 = vdwg.mxu0
    %2216 = vmatpush.msra.mxu0 0.0
    %2217 = vmatpush.msra.mxu0 0.0
    %2218 = vmatpush.msra.mxu0 0.0
    %2219 = vmatpush.msra.mxu0 0.0
    %2220 = vmatpush.msra.mxu0 0.0
    %2221 = vmatpush.msra.mxu0 0.0
    %2222 = vmatpush.msra.mxu0 0.0
    %2223 = vmatpush.msra.mxu0 0.0
    %2224 = vmatpush.msra.mxu0 0.0
    %2225 = vmatpush.msra.mxu0 0.0
    %2226 = vmatpush.msra.mxu0 0.0
    %2227 = vmatpush.msra.mxu0 0.0
    %2228 = vmatpush.msra.mxu0 0.0
    %2229 = vmatpush.msra.mxu0 0.0
    %2230 = vmatpush.msra.mxu0 0.0
    %2231 = vmatpush.msra.mxu0 %v2171
    %2232 = vmatmul.f32.gmra.mxu0 %v2162
    %v2233 = vpop.f32.mrf.mxu0
    %v2234 = vadd.f32 0.0, %v2233
    %2235 = vdwg.mxu0
    %2236 = vmatpush.msra.mxu0 0.0
    %2237 = vmatpush.msra.mxu0 0.0
    %2238 = vmatpush.msra.mxu0 0.0
    %2239 = vmatpush.msra.mxu0 0.0
    %2240 = vmatpush.msra.mxu0 0.0
    %2241 = vmatpush.msra.mxu0 0.0
    %2242 = vmatpush.msra.mxu0 0.0
    %2243 = vmatpush.msra.mxu0 0.0
    %2244 = vmatpush.msra.mxu0 0.0
    %2245 = vmatpush.msra.mxu0 0.0
    %2246 = vmatpush.msra.mxu0 0.0
    %2247 = vmatpush.msra.mxu0 0.0
    %2248 = vmatpush.msra.mxu0 0.0
    %2249 = vmatpush.msra.mxu0 0.0
    %2250 = vmatpush.msra.mxu0 0.0
    %2251 = vmatpush.msra.mxu0 %v2174
    %2252 = vmatmul.f32.gmra.mxu0 %v2162
    %v2253 = vpop.f32.mrf.mxu0
    %v2254 = vadd.f32 0.0, %v2253
    %2255 = vdwg.mxu0
    %v2256 = vadd.f32 %v2116, %v2194
    %v2257 = vadd.f32 %v2117, %v2214
    %v2258 = vadd.f32 %v2118, %v2234
    %v2259 = vadd.f32 %v2119, %v2254
    %2260 = vst [vmem:[#allocation1] ss:$2 sm:$0xff] %v162
    %s2261 = scalar_lea.vmem [#allocation1], 16
    %2262 = vst [vmem:[%s2261] ss:$2 sm:$0xff] %v163
    %v2263 = vld.sshfl [vmem:[#allocation1] sm:$0xff pattern:$0x75316420]
    %v2264 = vld.sshfl [vmem:[#allocation1 + $0x8] sm:$0xff pattern:$0x75316420]
    %v2265 = vld.sshfl [vmem:[#allocation1 + $0x10] sm:$0xff pattern:$0x75316420]
    %v2266 = vld.sshfl [vmem:[#allocation1 + $0x18] sm:$0xff pattern:$0x75316420]
    %2271 = vrot.lane.b32.xlu0 %v2263, 18
    %v2272 = vpop.permute.xlu0 %2271
    %2273 = vrot.lane.b32.xlu0 %v2264, 18
    %v2274 = vpop.permute.xlu0 %2273
    %2275 = vrot.lane.b32.xlu0 %v2265, 18
    %v2276 = vpop.permute.xlu0 %2275
    %2277 = vrot.lane.b32.xlu0 %v2266, 18
    %v2278 = vpop.permute.xlu0 %2277
    %vm2279 = vcmp.lt.s32.totalorder %v186, 18
    %v2280 = vsel %vm2279, %v2276, %v2278
    %v2281 = vsel %vm2279, %v2274, %v2276
    %v2282 = vsel %vm2279, %v2272, %v2274
    %v2283 = vsel %vm2279, %v2278, %v2272
    %s2284 = scalar_lea.vmem %s7, 39
    %v2285 = vld [vmem:[%s2284] ss:$8 sm:$0xf]
    %v2287 = vperm.slane %v2285, 0
    %v2288 = vperm.slane %v2285, 1
    %v2289 = vperm.slane %v2285, 2
    %v2290 = vperm.slane %v2285, 3
    %v2295 = vmul.f32 %v2283, %v2287
    %v2296 = vmul.f32 %v2282, %v2288
    %v2297 = vmul.f32 %v2281, %v2289
    %v2298 = vmul.f32 %v2280, %v2290
    %s2299 = scalar_lea.vmem %s3, 120
    %v2300 = vld [vmem:[%s2299] sm:$0xff]
    %v2302 = vsel %vm248, %v2300, 0
    %v2305 = vsel %vm252, %v2295, 0
    %v2308 = vsel %vm252, %v2296, 0
    %v2311 = vsel %vm252, %v2297, 0
    %v2314 = vsel %vm252, %v2298, 0
    %2316 = vmatpush.msra.mxu0 0.0
    %2317 = vmatpush.msra.mxu0 0.0
    %2318 = vmatpush.msra.mxu0 0.0
    %2319 = vmatpush.msra.mxu0 0.0
    %2320 = vmatpush.msra.mxu0 0.0
    %2321 = vmatpush.msra.mxu0 0.0
    %2322 = vmatpush.msra.mxu0 0.0
    %2323 = vmatpush.msra.mxu0 0.0
    %2324 = vmatpush.msra.mxu0 0.0
    %2325 = vmatpush.msra.mxu0 0.0
    %2326 = vmatpush.msra.mxu0 0.0
    %2327 = vmatpush.msra.mxu0 0.0
    %2328 = vmatpush.msra.mxu0 0.0
    %2329 = vmatpush.msra.mxu0 0.0
    %2330 = vmatpush.msra.mxu0 0.0
    %2331 = vmatpush.msra.mxu0 %v2305
    %2332 = vmatmul.f32.gmra.mxu0 %v2302
    %v2333 = vpop.f32.mrf.mxu0
    %v2334 = vadd.f32 0.0, %v2333
    %2335 = vdwg.mxu0
    %2336 = vmatpush.msra.mxu0 0.0
    %2337 = vmatpush.msra.mxu0 0.0
    %2338 = vmatpush.msra.mxu0 0.0
    %2339 = vmatpush.msra.mxu0 0.0
    %2340 = vmatpush.msra.mxu0 0.0
    %2341 = vmatpush.msra.mxu0 0.0
    %2342 = vmatpush.msra.mxu0 0.0
    %2343 = vmatpush.msra.mxu0 0.0
    %2344 = vmatpush.msra.mxu0 0.0
    %2345 = vmatpush.msra.mxu0 0.0
    %2346 = vmatpush.msra.mxu0 0.0
    %2347 = vmatpush.msra.mxu0 0.0
    %2348 = vmatpush.msra.mxu0 0.0
    %2349 = vmatpush.msra.mxu0 0.0
    %2350 = vmatpush.msra.mxu0 0.0
    %2351 = vmatpush.msra.mxu0 %v2308
    %2352 = vmatmul.f32.gmra.mxu0 %v2302
    %v2353 = vpop.f32.mrf.mxu0
    %v2354 = vadd.f32 0.0, %v2353
    %2355 = vdwg.mxu0
    %2356 = vmatpush.msra.mxu0 0.0
    %2357 = vmatpush.msra.mxu0 0.0
    %2358 = vmatpush.msra.mxu0 0.0
    %2359 = vmatpush.msra.mxu0 0.0
    %2360 = vmatpush.msra.mxu0 0.0
    %2361 = vmatpush.msra.mxu0 0.0
    %2362 = vmatpush.msra.mxu0 0.0
    %2363 = vmatpush.msra.mxu0 0.0
    %2364 = vmatpush.msra.mxu0 0.0
    %2365 = vmatpush.msra.mxu0 0.0
    %2366 = vmatpush.msra.mxu0 0.0
    %2367 = vmatpush.msra.mxu0 0.0
    %2368 = vmatpush.msra.mxu0 0.0
    %2369 = vmatpush.msra.mxu0 0.0
    %2370 = vmatpush.msra.mxu0 0.0
    %2371 = vmatpush.msra.mxu0 %v2311
    %2372 = vmatmul.f32.gmra.mxu0 %v2302
    %v2373 = vpop.f32.mrf.mxu0
    %v2374 = vadd.f32 0.0, %v2373
    %2375 = vdwg.mxu0
    %2376 = vmatpush.msra.mxu0 0.0
    %2377 = vmatpush.msra.mxu0 0.0
    %2378 = vmatpush.msra.mxu0 0.0
    %2379 = vmatpush.msra.mxu0 0.0
    %2380 = vmatpush.msra.mxu0 0.0
    %2381 = vmatpush.msra.mxu0 0.0
    %2382 = vmatpush.msra.mxu0 0.0
    %2383 = vmatpush.msra.mxu0 0.0
    %2384 = vmatpush.msra.mxu0 0.0
    %2385 = vmatpush.msra.mxu0 0.0
    %2386 = vmatpush.msra.mxu0 0.0
    %2387 = vmatpush.msra.mxu0 0.0
    %2388 = vmatpush.msra.mxu0 0.0
    %2389 = vmatpush.msra.mxu0 0.0
    %2390 = vmatpush.msra.mxu0 0.0
    %2391 = vmatpush.msra.mxu0 %v2314
    %2392 = vmatmul.f32.gmra.mxu0 %v2302
    %v2393 = vpop.f32.mrf.mxu0
    %v2394 = vadd.f32 0.0, %v2393
    %2395 = vdwg.mxu0
    %v2396 = vadd.f32 %v2256, %v2334
    %v2397 = vadd.f32 %v2257, %v2354
    %v2398 = vadd.f32 %v2258, %v2374
    %v2399 = vadd.f32 %v2259, %v2394
    %2400 = vst [vmem:[#allocation1] ss:$2 sm:$0xff] %v162
    %s2401 = scalar_lea.vmem [#allocation1], 16
    %2402 = vst [vmem:[%s2401] ss:$2 sm:$0xff] %v163
    %v2403 = vld.sshfl [vmem:[#allocation1] sm:$0xff pattern:$0x75316420]
    %v2404 = vld.sshfl [vmem:[#allocation1 + $0x8] sm:$0xff pattern:$0x75316420]
    %v2405 = vld.sshfl [vmem:[#allocation1 + $0x10] sm:$0xff pattern:$0x75316420]
    %v2406 = vld.sshfl [vmem:[#allocation1 + $0x18] sm:$0xff pattern:$0x75316420]
    %2411 = vrot.lane.b32.xlu0 %v2403, 17
    %v2412 = vpop.permute.xlu0 %2411
    %2413 = vrot.lane.b32.xlu0 %v2404, 17
    %v2414 = vpop.permute.xlu0 %2413
    %2415 = vrot.lane.b32.xlu0 %v2405, 17
    %v2416 = vpop.permute.xlu0 %2415
    %2417 = vrot.lane.b32.xlu0 %v2406, 17
    %v2418 = vpop.permute.xlu0 %2417
    %vm2419 = vcmp.lt.s32.totalorder %v186, 17
    %v2420 = vsel %vm2419, %v2416, %v2418
    %v2421 = vsel %vm2419, %v2414, %v2416
    %v2422 = vsel %vm2419, %v2412, %v2414
    %v2423 = vsel %vm2419, %v2418, %v2412
    %s2424 = scalar_lea.vmem %s7, 64
    %v2425 = vld [vmem:[%s2424] ss:$8 sm:$0xf]
    %v2427 = vperm.slane %v2425, 0
    %v2428 = vperm.slane %v2425, 1
    %v2429 = vperm.slane %v2425, 2
    %v2430 = vperm.slane %v2425, 3
    %v2435 = vmul.f32 %v2423, %v2427
    %v2436 = vmul.f32 %v2422, %v2428
    %v2437 = vmul.f32 %v2421, %v2429
    %v2438 = vmul.f32 %v2420, %v2430
    %s2439 = scalar_lea.vmem %s3, 128
    %v2440 = vld [vmem:[%s2439] sm:$0xff]
    %v2442 = vsel %vm248, %v2440, 0
    %v2445 = vsel %vm252, %v2435, 0
    %v2448 = vsel %vm252, %v2436, 0
    %v2451 = vsel %vm252, %v2437, 0
    %v2454 = vsel %vm252, %v2438, 0
    %2456 = vmatpush.msra.mxu0 0.0
    %2457 = vmatpush.msra.mxu0 0.0
    %2458 = vmatpush.msra.mxu0 0.0
    %2459 = vmatpush.msra.mxu0 0.0
    %2460 = vmatpush.msra.mxu0 0.0
    %2461 = vmatpush.msra.mxu0 0.0
    %2462 = vmatpush.msra.mxu0 0.0
    %2463 = vmatpush.msra.mxu0 0.0
    %2464 = vmatpush.msra.mxu0 0.0
    %2465 = vmatpush.msra.mxu0 0.0
    %2466 = vmatpush.msra.mxu0 0.0
    %2467 = vmatpush.msra.mxu0 0.0
    %2468 = vmatpush.msra.mxu0 0.0
    %2469 = vmatpush.msra.mxu0 0.0
    %2470 = vmatpush.msra.mxu0 0.0
    %2471 = vmatpush.msra.mxu0 %v2445
    %2472 = vmatmul.f32.gmra.mxu0 %v2442
    %v2473 = vpop.f32.mrf.mxu0
    %v2474 = vadd.f32 0.0, %v2473
    %2475 = vdwg.mxu0
    %2476 = vmatpush.msra.mxu0 0.0
    %2477 = vmatpush.msra.mxu0 0.0
    %2478 = vmatpush.msra.mxu0 0.0
    %2479 = vmatpush.msra.mxu0 0.0
    %2480 = vmatpush.msra.mxu0 0.0
    %2481 = vmatpush.msra.mxu0 0.0
    %2482 = vmatpush.msra.mxu0 0.0
    %2483 = vmatpush.msra.mxu0 0.0
    %2484 = vmatpush.msra.mxu0 0.0
    %2485 = vmatpush.msra.mxu0 0.0
    %2486 = vmatpush.msra.mxu0 0.0
    %2487 = vmatpush.msra.mxu0 0.0
    %2488 = vmatpush.msra.mxu0 0.0
    %2489 = vmatpush.msra.mxu0 0.0
    %2490 = vmatpush.msra.mxu0 0.0
    %2491 = vmatpush.msra.mxu0 %v2448
    %2492 = vmatmul.f32.gmra.mxu0 %v2442
    %v2493 = vpop.f32.mrf.mxu0
    %v2494 = vadd.f32 0.0, %v2493
    %2495 = vdwg.mxu0
    %2496 = vmatpush.msra.mxu0 0.0
    %2497 = vmatpush.msra.mxu0 0.0
    %2498 = vmatpush.msra.mxu0 0.0
    %2499 = vmatpush.msra.mxu0 0.0
    %2500 = vmatpush.msra.mxu0 0.0
    %2501 = vmatpush.msra.mxu0 0.0
    %2502 = vmatpush.msra.mxu0 0.0
    %2503 = vmatpush.msra.mxu0 0.0
    %2504 = vmatpush.msra.mxu0 0.0
    %2505 = vmatpush.msra.mxu0 0.0
    %2506 = vmatpush.msra.mxu0 0.0
    %2507 = vmatpush.msra.mxu0 0.0
    %2508 = vmatpush.msra.mxu0 0.0
    %2509 = vmatpush.msra.mxu0 0.0
    %2510 = vmatpush.msra.mxu0 0.0
    %2511 = vmatpush.msra.mxu0 %v2451
    %2512 = vmatmul.f32.gmra.mxu0 %v2442
    %v2513 = vpop.f32.mrf.mxu0
    %v2514 = vadd.f32 0.0, %v2513
    %2515 = vdwg.mxu0
    %2516 = vmatpush.msra.mxu0 0.0
    %2517 = vmatpush.msra.mxu0 0.0
    %2518 = vmatpush.msra.mxu0 0.0
    %2519 = vmatpush.msra.mxu0 0.0
    %2520 = vmatpush.msra.mxu0 0.0
    %2521 = vmatpush.msra.mxu0 0.0
    %2522 = vmatpush.msra.mxu0 0.0
    %2523 = vmatpush.msra.mxu0 0.0
    %2524 = vmatpush.msra.mxu0 0.0
    %2525 = vmatpush.msra.mxu0 0.0
    %2526 = vmatpush.msra.mxu0 0.0
    %2527 = vmatpush.msra.mxu0 0.0
    %2528 = vmatpush.msra.mxu0 0.0
    %2529 = vmatpush.msra.mxu0 0.0
    %2530 = vmatpush.msra.mxu0 0.0
    %2531 = vmatpush.msra.mxu0 %v2454
    %2532 = vmatmul.f32.gmra.mxu0 %v2442
    %v2533 = vpop.f32.mrf.mxu0
    %v2534 = vadd.f32 0.0, %v2533
    %2535 = vdwg.mxu0
    %v2536 = vadd.f32 %v2396, %v2474
    %v2537 = vadd.f32 %v2397, %v2494
    %v2538 = vadd.f32 %v2398, %v2514
    %v2539 = vadd.f32 %v2399, %v2534
    %2540 = vst [vmem:[#allocation1] ss:$2 sm:$0xff] %v162
    %s2541 = scalar_lea.vmem [#allocation1], 16
    %2542 = vst [vmem:[%s2541] ss:$2 sm:$0xff] %v163
    %v2543 = vld.sshfl [vmem:[#allocation1] sm:$0xff pattern:$0x75316420]
    %v2544 = vld.sshfl [vmem:[#allocation1 + $0x8] sm:$0xff pattern:$0x75316420]
    %v2545 = vld.sshfl [vmem:[#allocation1 + $0x10] sm:$0xff pattern:$0x75316420]
    %v2546 = vld.sshfl [vmem:[#allocation1 + $0x18] sm:$0xff pattern:$0x75316420]
    %2551 = vrot.lane.b32.xlu0 %v2543, 16
    %v2552 = vpop.permute.xlu0 %2551
    %2553 = vrot.lane.b32.xlu0 %v2544, 16
    %v2554 = vpop.permute.xlu0 %2553
    %2555 = vrot.lane.b32.xlu0 %v2545, 16
    %v2556 = vpop.permute.xlu0 %2555
    %2557 = vrot.lane.b32.xlu0 %v2546, 16
    %v2558 = vpop.permute.xlu0 %2557
    %vm2559 = vcmp.lt.s32.totalorder %v186, 16
    %v2560 = vsel %vm2559, %v2556, %v2558
    %v2561 = vsel %vm2559, %v2554, %v2556
    %v2562 = vsel %vm2559, %v2552, %v2554
    %v2563 = vsel %vm2559, %v2558, %v2552
    %s2564 = scalar_lea.vmem %s7, 65
    %v2565 = vld [vmem:[%s2564] ss:$8 sm:$0xf]
    %v2567 = vperm.slane %v2565, 0
    %v2568 = vperm.slane %v2565, 1
    %v2569 = vperm.slane %v2565, 2
    %v2570 = vperm.slane %v2565, 3
    %v2575 = vmul.f32 %v2563, %v2567
    %v2576 = vmul.f32 %v2562, %v2568
    %v2577 = vmul.f32 %v2561, %v2569
    %v2578 = vmul.f32 %v2560, %v2570
    %s2579 = scalar_lea.vmem %s3, 136
    %v2580 = vld [vmem:[%s2579] sm:$0xff]
    %v2582 = vsel %vm248, %v2580, 0
    %v2585 = vsel %vm252, %v2575, 0
    %v2588 = vsel %vm252, %v2576, 0
    %v2591 = vsel %vm252, %v2577, 0
    %v2594 = vsel %vm252, %v2578, 0
    %2596 = vmatpush.msra.mxu0 0.0
    %2597 = vmatpush.msra.mxu0 0.0
    %2598 = vmatpush.msra.mxu0 0.0
    %2599 = vmatpush.msra.mxu0 0.0
    %2600 = vmatpush.msra.mxu0 0.0
    %2601 = vmatpush.msra.mxu0 0.0
    %2602 = vmatpush.msra.mxu0 0.0
    %2603 = vmatpush.msra.mxu0 0.0
    %2604 = vmatpush.msra.mxu0 0.0
    %2605 = vmatpush.msra.mxu0 0.0
    %2606 = vmatpush.msra.mxu0 0.0
    %2607 = vmatpush.msra.mxu0 0.0
    %2608 = vmatpush.msra.mxu0 0.0
    %2609 = vmatpush.msra.mxu0 0.0
    %2610 = vmatpush.msra.mxu0 0.0
    %2611 = vmatpush.msra.mxu0 %v2585
    %2612 = vmatmul.f32.gmra.mxu0 %v2582
    %v2613 = vpop.f32.mrf.mxu0
    %v2614 = vadd.f32 0.0, %v2613
    %2615 = vdwg.mxu0
    %2616 = vmatpush.msra.mxu0 0.0
    %2617 = vmatpush.msra.mxu0 0.0
    %2618 = vmatpush.msra.mxu0 0.0
    %2619 = vmatpush.msra.mxu0 0.0
    %2620 = vmatpush.msra.mxu0 0.0
    %2621 = vmatpush.msra.mxu0 0.0
    %2622 = vmatpush.msra.mxu0 0.0
    %2623 = vmatpush.msra.mxu0 0.0
    %2624 = vmatpush.msra.mxu0 0.0
    %2625 = vmatpush.msra.mxu0 0.0
    %2626 = vmatpush.msra.mxu0 0.0
    %2627 = vmatpush.msra.mxu0 0.0
    %2628 = vmatpush.msra.mxu0 0.0
    %2629 = vmatpush.msra.mxu0 0.0
    %2630 = vmatpush.msra.mxu0 0.0
    %2631 = vmatpush.msra.mxu0 %v2588
    %2632 = vmatmul.f32.gmra.mxu0 %v2582
    %v2633 = vpop.f32.mrf.mxu0
    %v2634 = vadd.f32 0.0, %v2633
    %2635 = vdwg.mxu0
    %2636 = vmatpush.msra.mxu0 0.0
    %2637 = vmatpush.msra.mxu0 0.0
    %2638 = vmatpush.msra.mxu0 0.0
    %2639 = vmatpush.msra.mxu0 0.0
    %2640 = vmatpush.msra.mxu0 0.0
    %2641 = vmatpush.msra.mxu0 0.0
    %2642 = vmatpush.msra.mxu0 0.0
    %2643 = vmatpush.msra.mxu0 0.0
    %2644 = vmatpush.msra.mxu0 0.0
    %2645 = vmatpush.msra.mxu0 0.0
    %2646 = vmatpush.msra.mxu0 0.0
    %2647 = vmatpush.msra.mxu0 0.0
    %2648 = vmatpush.msra.mxu0 0.0
    %2649 = vmatpush.msra.mxu0 0.0
    %2650 = vmatpush.msra.mxu0 0.0
    %2651 = vmatpush.msra.mxu0 %v2591
    %2652 = vmatmul.f32.gmra.mxu0 %v2582
    %v2653 = vpop.f32.mrf.mxu0
    %v2654 = vadd.f32 0.0, %v2653
    %2655 = vdwg.mxu0
    %2656 = vmatpush.msra.mxu0 0.0
    %2657 = vmatpush.msra.mxu0 0.0
    %2658 = vmatpush.msra.mxu0 0.0
    %2659 = vmatpush.msra.mxu0 0.0
    %2660 = vmatpush.msra.mxu0 0.0
    %2661 = vmatpush.msra.mxu0 0.0
    %2662 = vmatpush.msra.mxu0 0.0
    %2663 = vmatpush.msra.mxu0 0.0
    %2664 = vmatpush.msra.mxu0 0.0
    %2665 = vmatpush.msra.mxu0 0.0
    %2666 = vmatpush.msra.mxu0 0.0
    %2667 = vmatpush.msra.mxu0 0.0
    %2668 = vmatpush.msra.mxu0 0.0
    %2669 = vmatpush.msra.mxu0 0.0
    %2670 = vmatpush.msra.mxu0 0.0
    %2671 = vmatpush.msra.mxu0 %v2594
    %2672 = vmatmul.f32.gmra.mxu0 %v2582
    %v2673 = vpop.f32.mrf.mxu0
    %v2674 = vadd.f32 0.0, %v2673
    %2675 = vdwg.mxu0
    %v2676 = vadd.f32 %v2536, %v2614
    %v2677 = vadd.f32 %v2537, %v2634
    %v2678 = vadd.f32 %v2538, %v2654
    %v2679 = vadd.f32 %v2539, %v2674
    %2680 = vst [vmem:[#allocation1] ss:$2 sm:$0xff] %v162
    %s2681 = scalar_lea.vmem [#allocation1], 16
    %2682 = vst [vmem:[%s2681] ss:$2 sm:$0xff] %v163
    %v2683 = vld.sshfl [vmem:[#allocation1] sm:$0xff pattern:$0x75316420]
    %v2684 = vld.sshfl [vmem:[#allocation1 + $0x8] sm:$0xff pattern:$0x75316420]
    %v2685 = vld.sshfl [vmem:[#allocation1 + $0x10] sm:$0xff pattern:$0x75316420]
    %v2686 = vld.sshfl [vmem:[#allocation1 + $0x18] sm:$0xff pattern:$0x75316420]
    %2691 = vrot.lane.b32.xlu0 %v2683, 15
    %v2692 = vpop.permute.xlu0 %2691
    %2693 = vrot.lane.b32.xlu0 %v2684, 15
    %v2694 = vpop.permute.xlu0 %2693
    %2695 = vrot.lane.b32.xlu0 %v2685, 15
    %v2696 = vpop.permute.xlu0 %2695
    %2697 = vrot.lane.b32.xlu0 %v2686, 15
    %v2698 = vpop.permute.xlu0 %2697
    %vm2699 = vcmp.lt.s32.totalorder %v186, 15
    %v2700 = vsel %vm2699, %v2696, %v2698
    %v2701 = vsel %vm2699, %v2694, %v2696
    %v2702 = vsel %vm2699, %v2692, %v2694
    %v2703 = vsel %vm2699, %v2698, %v2692
    %s2704 = scalar_lea.vmem %s7, 66
    %v2705 = vld [vmem:[%s2704] ss:$8 sm:$0xf]
    %v2707 = vperm.slane %v2705, 0
    %v2708 = vperm.slane %v2705, 1
    %v2709 = vperm.slane %v2705, 2
    %v2710 = vperm.slane %v2705, 3
    %v2715 = vmul.f32 %v2703, %v2707
    %v2716 = vmul.f32 %v2702, %v2708
    %v2717 = vmul.f32 %v2701, %v2709
    %v2718 = vmul.f32 %v2700, %v2710
    %s2719 = scalar_lea.vmem %s3, 144
    %v2720 = vld [vmem:[%s2719] sm:$0xff]
    %v2722 = vsel %vm248, %v2720, 0
    %v2725 = vsel %vm252, %v2715, 0
    %v2728 = vsel %vm252, %v2716, 0
    %v2731 = vsel %vm252, %v2717, 0
    %v2734 = vsel %vm252, %v2718, 0
    %2736 = vmatpush.msra.mxu0 0.0
    %2737 = vmatpush.msra.mxu0 0.0
    %2738 = vmatpush.msra.mxu0 0.0
    %2739 = vmatpush.msra.mxu0 0.0
    %2740 = vmatpush.msra.mxu0 0.0
    %2741 = vmatpush.msra.mxu0 0.0
    %2742 = vmatpush.msra.mxu0 0.0
    %2743 = vmatpush.msra.mxu0 0.0
    %2744 = vmatpush.msra.mxu0 0.0
    %2745 = vmatpush.msra.mxu0 0.0
    %2746 = vmatpush.msra.mxu0 0.0
    %2747 = vmatpush.msra.mxu0 0.0
    %2748 = vmatpush.msra.mxu0 0.0
    %2749 = vmatpush.msra.mxu0 0.0
    %2750 = vmatpush.msra.mxu0 0.0
    %2751 = vmatpush.msra.mxu0 %v2725
    %2752 = vmatmul.f32.gmra.mxu0 %v2722
    %v2753 = vpop.f32.mrf.mxu0
    %v2754 = vadd.f32 0.0, %v2753
    %2755 = vdwg.mxu0
    %2756 = vmatpush.msra.mxu0 0.0
    %2757 = vmatpush.msra.mxu0 0.0
    %2758 = vmatpush.msra.mxu0 0.0
    %2759 = vmatpush.msra.mxu0 0.0
    %2760 = vmatpush.msra.mxu0 0.0
    %2761 = vmatpush.msra.mxu0 0.0
    %2762 = vmatpush.msra.mxu0 0.0
    %2763 = vmatpush.msra.mxu0 0.0
    %2764 = vmatpush.msra.mxu0 0.0
    %2765 = vmatpush.msra.mxu0 0.0
    %2766 = vmatpush.msra.mxu0 0.0
    %2767 = vmatpush.msra.mxu0 0.0
    %2768 = vmatpush.msra.mxu0 0.0
    %2769 = vmatpush.msra.mxu0 0.0
    %2770 = vmatpush.msra.mxu0 0.0
    %2771 = vmatpush.msra.mxu0 %v2728
    %2772 = vmatmul.f32.gmra.mxu0 %v2722
    %v2773 = vpop.f32.mrf.mxu0
    %v2774 = vadd.f32 0.0, %v2773
    %2775 = vdwg.mxu0
    %2776 = vmatpush.msra.mxu0 0.0
    %2777 = vmatpush.msra.mxu0 0.0
    %2778 = vmatpush.msra.mxu0 0.0
    %2779 = vmatpush.msra.mxu0 0.0
    %2780 = vmatpush.msra.mxu0 0.0
    %2781 = vmatpush.msra.mxu0 0.0
    %2782 = vmatpush.msra.mxu0 0.0
    %2783 = vmatpush.msra.mxu0 0.0
    %2784 = vmatpush.msra.mxu0 0.0
    %2785 = vmatpush.msra.mxu0 0.0
    %2786 = vmatpush.msra.mxu0 0.0
    %2787 = vmatpush.msra.mxu0 0.0
    %2788 = vmatpush.msra.mxu0 0.0
    %2789 = vmatpush.msra.mxu0 0.0
    %2790 = vmatpush.msra.mxu0 0.0
    %2791 = vmatpush.msra.mxu0 %v2731
    %2792 = vmatmul.f32.gmra.mxu0 %v2722
    %v2793 = vpop.f32.mrf.mxu0
    %v2794 = vadd.f32 0.0, %v2793
    %2795 = vdwg.mxu0
    %2796 = vmatpush.msra.mxu0 0.0
    %2797 = vmatpush.msra.mxu0 0.0
    %2798 = vmatpush.msra.mxu0 0.0
    %2799 = vmatpush.msra.mxu0 0.0
    %2800 = vmatpush.msra.mxu0 0.0
    %2801 = vmatpush.msra.mxu0 0.0
    %2802 = vmatpush.msra.mxu0 0.0
    %2803 = vmatpush.msra.mxu0 0.0
    %2804 = vmatpush.msra.mxu0 0.0
    %2805 = vmatpush.msra.mxu0 0.0
    %2806 = vmatpush.msra.mxu0 0.0
    %2807 = vmatpush.msra.mxu0 0.0
    %2808 = vmatpush.msra.mxu0 0.0
    %2809 = vmatpush.msra.mxu0 0.0
    %2810 = vmatpush.msra.mxu0 0.0
    %2811 = vmatpush.msra.mxu0 %v2734
    %2812 = vmatmul.f32.gmra.mxu0 %v2722
    %v2813 = vpop.f32.mrf.mxu0
    %v2814 = vadd.f32 0.0, %v2813
    %2815 = vdwg.mxu0
    %v2816 = vadd.f32 %v2676, %v2754
    %v2817 = vadd.f32 %v2677, %v2774
    %v2818 = vadd.f32 %v2678, %v2794
    %v2819 = vadd.f32 %v2679, %v2814
    %2820 = vst [vmem:[#allocation1] ss:$2 sm:$0xff] %v162
    %s2821 = scalar_lea.vmem [#allocation1], 16
    %2822 = vst [vmem:[%s2821] ss:$2 sm:$0xff] %v163
    %v2823 = vld.sshfl [vmem:[#allocation1] sm:$0xff pattern:$0x75316420]
    %v2824 = vld.sshfl [vmem:[#allocation1 + $0x8] sm:$0xff pattern:$0x75316420]
    %v2825 = vld.sshfl [vmem:[#allocation1 + $0x10] sm:$0xff pattern:$0x75316420]
    %v2826 = vld.sshfl [vmem:[#allocation1 + $0x18] sm:$0xff pattern:$0x75316420]
    %2831 = vrot.lane.b32.xlu0 %v2823, 14
    %v2832 = vpop.permute.xlu0 %2831
    %2833 = vrot.lane.b32.xlu0 %v2824, 14
    %v2834 = vpop.permute.xlu0 %2833
    %2835 = vrot.lane.b32.xlu0 %v2825, 14
    %v2836 = vpop.permute.xlu0 %2835
    %2837 = vrot.lane.b32.xlu0 %v2826, 14
    %v2838 = vpop.permute.xlu0 %2837
    %vm2839 = vcmp.lt.s32.totalorder %v186, 14
    %v2840 = vsel %vm2839, %v2836, %v2838
    %v2841 = vsel %vm2839, %v2834, %v2836
    %v2842 = vsel %vm2839, %v2832, %v2834
    %v2843 = vsel %vm2839, %v2838, %v2832
    %s2844 = scalar_lea.vmem %s7, 67
    %v2845 = vld [vmem:[%s2844] ss:$8 sm:$0xf]
    %v2847 = vperm.slane %v2845, 0
    %v2848 = vperm.slane %v2845, 1
    %v2849 = vperm.slane %v2845, 2
    %v2850 = vperm.slane %v2845, 3
    %v2855 = vmul.f32 %v2843, %v2847
    %v2856 = vmul.f32 %v2842, %v2848
    %v2857 = vmul.f32 %v2841, %v2849
    %v2858 = vmul.f32 %v2840, %v2850
    %s2859 = scalar_lea.vmem %s3, 152
    %v2860 = vld [vmem:[%s2859] sm:$0xff]
    %v2862 = vsel %vm248, %v2860, 0
    %v2865 = vsel %vm252, %v2855, 0
    %v2868 = vsel %vm252, %v2856, 0
    %v2871 = vsel %vm252, %v2857, 0
    %v2874 = vsel %vm252, %v2858, 0
    %2876 = vmatpush.msra.mxu0 0.0
    %2877 = vmatpush.msra.mxu0 0.0
    %2878 = vmatpush.msra.mxu0 0.0
    %2879 = vmatpush.msra.mxu0 0.0
    %2880 = vmatpush.msra.mxu0 0.0
    %2881 = vmatpush.msra.mxu0 0.0
    %2882 = vmatpush.msra.mxu0 0.0
    %2883 = vmatpush.msra.mxu0 0.0
    %2884 = vmatpush.msra.mxu0 0.0
    %2885 = vmatpush.msra.mxu0 0.0
    %2886 = vmatpush.msra.mxu0 0.0
    %2887 = vmatpush.msra.mxu0 0.0
    %2888 = vmatpush.msra.mxu0 0.0
    %2889 = vmatpush.msra.mxu0 0.0
    %2890 = vmatpush.msra.mxu0 0.0
    %2891 = vmatpush.msra.mxu0 %v2865
    %2892 = vmatmul.f32.gmra.mxu0 %v2862
    %v2893 = vpop.f32.mrf.mxu0
    %v2894 = vadd.f32 0.0, %v2893
    %2895 = vdwg.mxu0
    %2896 = vmatpush.msra.mxu0 0.0
    %2897 = vmatpush.msra.mxu0 0.0
    %2898 = vmatpush.msra.mxu0 0.0
    %2899 = vmatpush.msra.mxu0 0.0
    %2900 = vmatpush.msra.mxu0 0.0
    %2901 = vmatpush.msra.mxu0 0.0
    %2902 = vmatpush.msra.mxu0 0.0
    %2903 = vmatpush.msra.mxu0 0.0
    %2904 = vmatpush.msra.mxu0 0.0
    %2905 = vmatpush.msra.mxu0 0.0
    %2906 = vmatpush.msra.mxu0 0.0
    %2907 = vmatpush.msra.mxu0 0.0
    %2908 = vmatpush.msra.mxu0 0.0
    %2909 = vmatpush.msra.mxu0 0.0
    %2910 = vmatpush.msra.mxu0 0.0
    %2911 = vmatpush.msra.mxu0 %v2868
    %2912 = vmatmul.f32.gmra.mxu0 %v2862
    %v2913 = vpop.f32.mrf.mxu0
    %v2914 = vadd.f32 0.0, %v2913
    %2915 = vdwg.mxu0
    %2916 = vmatpush.msra.mxu0 0.0
    %2917 = vmatpush.msra.mxu0 0.0
    %2918 = vmatpush.msra.mxu0 0.0
    %2919 = vmatpush.msra.mxu0 0.0
    %2920 = vmatpush.msra.mxu0 0.0
    %2921 = vmatpush.msra.mxu0 0.0
    %2922 = vmatpush.msra.mxu0 0.0
    %2923 = vmatpush.msra.mxu0 0.0
    %2924 = vmatpush.msra.mxu0 0.0
    %2925 = vmatpush.msra.mxu0 0.0
    %2926 = vmatpush.msra.mxu0 0.0
    %2927 = vmatpush.msra.mxu0 0.0
    %2928 = vmatpush.msra.mxu0 0.0
    %2929 = vmatpush.msra.mxu0 0.0
    %2930 = vmatpush.msra.mxu0 0.0
    %2931 = vmatpush.msra.mxu0 %v2871
    %2932 = vmatmul.f32.gmra.mxu0 %v2862
    %v2933 = vpop.f32.mrf.mxu0
    %v2934 = vadd.f32 0.0, %v2933
    %2935 = vdwg.mxu0
    %2936 = vmatpush.msra.mxu0 0.0
    %2937 = vmatpush.msra.mxu0 0.0
    %2938 = vmatpush.msra.mxu0 0.0
    %2939 = vmatpush.msra.mxu0 0.0
    %2940 = vmatpush.msra.mxu0 0.0
    %2941 = vmatpush.msra.mxu0 0.0
    %2942 = vmatpush.msra.mxu0 0.0
    %2943 = vmatpush.msra.mxu0 0.0
    %2944 = vmatpush.msra.mxu0 0.0
    %2945 = vmatpush.msra.mxu0 0.0
    %2946 = vmatpush.msra.mxu0 0.0
    %2947 = vmatpush.msra.mxu0 0.0
    %2948 = vmatpush.msra.mxu0 0.0
    %2949 = vmatpush.msra.mxu0 0.0
    %2950 = vmatpush.msra.mxu0 0.0
    %2951 = vmatpush.msra.mxu0 %v2874
    %2952 = vmatmul.f32.gmra.mxu0 %v2862
    %v2953 = vpop.f32.mrf.mxu0
    %v2954 = vadd.f32 0.0, %v2953
    %2955 = vdwg.mxu0
    %v2956 = vadd.f32 %v2816, %v2894
    %v2957 = vadd.f32 %v2817, %v2914
    %v2958 = vadd.f32 %v2818, %v2934
    %v2959 = vadd.f32 %v2819, %v2954
    %2960 = vst [vmem:[#allocation1] ss:$2 sm:$0xff] %v162
    %s2961 = scalar_lea.vmem [#allocation1], 16
    %2962 = vst [vmem:[%s2961] ss:$2 sm:$0xff] %v163
    %v2963 = vld.sshfl [vmem:[#allocation1] sm:$0xff pattern:$0x75316420]
    %v2964 = vld.sshfl [vmem:[#allocation1 + $0x8] sm:$0xff pattern:$0x75316420]
    %v2965 = vld.sshfl [vmem:[#allocation1 + $0x10] sm:$0xff pattern:$0x75316420]
    %v2966 = vld.sshfl [vmem:[#allocation1 + $0x18] sm:$0xff pattern:$0x75316420]
    %2971 = vrot.lane.b32.xlu0 %v2963, 13
    %v2972 = vpop.permute.xlu0 %2971
    %2973 = vrot.lane.b32.xlu0 %v2964, 13
    %v2974 = vpop.permute.xlu0 %2973
    %2975 = vrot.lane.b32.xlu0 %v2965, 13
    %v2976 = vpop.permute.xlu0 %2975
    %2977 = vrot.lane.b32.xlu0 %v2966, 13
    %v2978 = vpop.permute.xlu0 %2977
    %vm2979 = vcmp.lt.s32.totalorder %v186, 13
    %v2980 = vsel %vm2979, %v2976, %v2978
    %v2981 = vsel %vm2979, %v2974, %v2976
    %v2982 = vsel %vm2979, %v2972, %v2974
    %v2983 = vsel %vm2979, %v2978, %v2972
    %s2984 = scalar_lea.vmem %s7, 68
    %v2985 = vld [vmem:[%s2984] ss:$8 sm:$0xf]
    %v2987 = vperm.slane %v2985, 0
    %v2988 = vperm.slane %v2985, 1
    %v2989 = vperm.slane %v2985, 2
    %v2990 = vperm.slane %v2985, 3
    %v2995 = vmul.f32 %v2983, %v2987
    %v2996 = vmul.f32 %v2982, %v2988
    %v2997 = vmul.f32 %v2981, %v2989
    %v2998 = vmul.f32 %v2980, %v2990
    %s2999 = scalar_lea.vmem %s3, 160
    %v3000 = vld [vmem:[%s2999] sm:$0xff]
    %v3002 = vsel %vm248, %v3000, 0
    %v3005 = vsel %vm252, %v2995, 0
    %v3008 = vsel %vm252, %v2996, 0
    %v3011 = vsel %vm252, %v2997, 0
    %v3014 = vsel %vm252, %v2998, 0
    %3016 = vmatpush.msra.mxu0 0.0
    %3017 = vmatpush.msra.mxu0 0.0
    %3018 = vmatpush.msra.mxu0 0.0
    %3019 = vmatpush.msra.mxu0 0.0
    %3020 = vmatpush.msra.mxu0 0.0
    %3021 = vmatpush.msra.mxu0 0.0
    %3022 = vmatpush.msra.mxu0 0.0
    %3023 = vmatpush.msra.mxu0 0.0
    %3024 = vmatpush.msra.mxu0 0.0
    %3025 = vmatpush.msra.mxu0 0.0
    %3026 = vmatpush.msra.mxu0 0.0
    %3027 = vmatpush.msra.mxu0 0.0
    %3028 = vmatpush.msra.mxu0 0.0
    %3029 = vmatpush.msra.mxu0 0.0
    %3030 = vmatpush.msra.mxu0 0.0
    %3031 = vmatpush.msra.mxu0 %v3005
    %3032 = vmatmul.f32.gmra.mxu0 %v3002
    %v3033 = vpop.f32.mrf.mxu0
    %v3034 = vadd.f32 0.0, %v3033
    %3035 = vdwg.mxu0
    %3036 = vmatpush.msra.mxu0 0.0
    %3037 = vmatpush.msra.mxu0 0.0
    %3038 = vmatpush.msra.mxu0 0.0
    %3039 = vmatpush.msra.mxu0 0.0
    %3040 = vmatpush.msra.mxu0 0.0
    %3041 = vmatpush.msra.mxu0 0.0
    %3042 = vmatpush.msra.mxu0 0.0
    %3043 = vmatpush.msra.mxu0 0.0
    %3044 = vmatpush.msra.mxu0 0.0
    %3045 = vmatpush.msra.mxu0 0.0
    %3046 = vmatpush.msra.mxu0 0.0
    %3047 = vmatpush.msra.mxu0 0.0
    %3048 = vmatpush.msra.mxu0 0.0
    %3049 = vmatpush.msra.mxu0 0.0
    %3050 = vmatpush.msra.mxu0 0.0
    %3051 = vmatpush.msra.mxu0 %v3008
    %3052 = vmatmul.f32.gmra.mxu0 %v3002
    %v3053 = vpop.f32.mrf.mxu0
    %v3054 = vadd.f32 0.0, %v3053
    %3055 = vdwg.mxu0
    %3056 = vmatpush.msra.mxu0 0.0
    %3057 = vmatpush.msra.mxu0 0.0
    %3058 = vmatpush.msra.mxu0 0.0
    %3059 = vmatpush.msra.mxu0 0.0
    %3060 = vmatpush.msra.mxu0 0.0
    %3061 = vmatpush.msra.mxu0 0.0
    %3062 = vmatpush.msra.mxu0 0.0
    %3063 = vmatpush.msra.mxu0 0.0
    %3064 = vmatpush.msra.mxu0 0.0
    %3065 = vmatpush.msra.mxu0 0.0
    %3066 = vmatpush.msra.mxu0 0.0
    %3067 = vmatpush.msra.mxu0 0.0
    %3068 = vmatpush.msra.mxu0 0.0
    %3069 = vmatpush.msra.mxu0 0.0
    %3070 = vmatpush.msra.mxu0 0.0
    %3071 = vmatpush.msra.mxu0 %v3011
    %3072 = vmatmul.f32.gmra.mxu0 %v3002
    %v3073 = vpop.f32.mrf.mxu0
    %v3074 = vadd.f32 0.0, %v3073
    %3075 = vdwg.mxu0
    %3076 = vmatpush.msra.mxu0 0.0
    %3077 = vmatpush.msra.mxu0 0.0
    %3078 = vmatpush.msra.mxu0 0.0
    %3079 = vmatpush.msra.mxu0 0.0
    %3080 = vmatpush.msra.mxu0 0.0
    %3081 = vmatpush.msra.mxu0 0.0
    %3082 = vmatpush.msra.mxu0 0.0
    %3083 = vmatpush.msra.mxu0 0.0
    %3084 = vmatpush.msra.mxu0 0.0
    %3085 = vmatpush.msra.mxu0 0.0
    %3086 = vmatpush.msra.mxu0 0.0
    %3087 = vmatpush.msra.mxu0 0.0
    %3088 = vmatpush.msra.mxu0 0.0
    %3089 = vmatpush.msra.mxu0 0.0
    %3090 = vmatpush.msra.mxu0 0.0
    %3091 = vmatpush.msra.mxu0 %v3014
    %3092 = vmatmul.f32.gmra.mxu0 %v3002
    %v3093 = vpop.f32.mrf.mxu0
    %v3094 = vadd.f32 0.0, %v3093
    %3095 = vdwg.mxu0
    %v3096 = vadd.f32 %v2956, %v3034
    %v3097 = vadd.f32 %v2957, %v3054
    %v3098 = vadd.f32 %v2958, %v3074
    %v3099 = vadd.f32 %v2959, %v3094
    %3100 = vst [vmem:[#allocation1] ss:$2 sm:$0xff] %v162
    %s3101 = scalar_lea.vmem [#allocation1], 16
    %3102 = vst [vmem:[%s3101] ss:$2 sm:$0xff] %v163
    %v3103 = vld.sshfl [vmem:[#allocation1] sm:$0xff pattern:$0x75316420]
    %v3104 = vld.sshfl [vmem:[#allocation1 + $0x8] sm:$0xff pattern:$0x75316420]
    %v3105 = vld.sshfl [vmem:[#allocation1 + $0x10] sm:$0xff pattern:$0x75316420]
    %v3106 = vld.sshfl [vmem:[#allocation1 + $0x18] sm:$0xff pattern:$0x75316420]
    %3111 = vrot.lane.b32.xlu0 %v3103, 3
    %v3112 = vpop.permute.xlu0 %3111
    %3113 = vrot.lane.b32.xlu0 %v3104, 3
    %v3114 = vpop.permute.xlu0 %3113
    %3115 = vrot.lane.b32.xlu0 %v3105, 3
    %v3116 = vpop.permute.xlu0 %3115
    %3117 = vrot.lane.b32.xlu0 %v3106, 3
    %v3118 = vpop.permute.xlu0 %3117
    %vm3119 = vcmp.lt.s32.totalorder %v186, 3
    %v3120 = vsel %vm3119, %v3116, %v3118
    %v3121 = vsel %vm3119, %v3114, %v3116
    %v3122 = vsel %vm3119, %v3112, %v3114
    %v3123 = vsel %vm3119, %v3118, %v3112
    %s3124 = scalar_lea.vmem %s7, 69
    %v3125 = vld [vmem:[%s3124] ss:$8 sm:$0xf]
    %v3127 = vperm.slane %v3125, 0
    %v3128 = vperm.slane %v3125, 1
    %v3129 = vperm.slane %v3125, 2
    %v3130 = vperm.slane %v3125, 3
    %v3135 = vmul.f32 %v3123, %v3127
    %v3136 = vmul.f32 %v3122, %v3128
    %v3137 = vmul.f32 %v3121, %v3129
    %v3138 = vmul.f32 %v3120, %v3130
    %s3139 = scalar_lea.vmem %s3, 168
    %v3140 = vld [vmem:[%s3139] sm:$0xff]
    %v3142 = vsel %vm248, %v3140, 0
    %v3145 = vsel %vm252, %v3135, 0
    %v3148 = vsel %vm252, %v3136, 0
    %v3151 = vsel %vm252, %v3137, 0
    %v3154 = vsel %vm252, %v3138, 0
    %3156 = vmatpush.msra.mxu0 0.0
    %3157 = vmatpush.msra.mxu0 0.0
    %3158 = vmatpush.msra.mxu0 0.0
    %3159 = vmatpush.msra.mxu0 0.0
    %3160 = vmatpush.msra.mxu0 0.0
    %3161 = vmatpush.msra.mxu0 0.0
    %3162 = vmatpush.msra.mxu0 0.0
    %3163 = vmatpush.msra.mxu0 0.0
    %3164 = vmatpush.msra.mxu0 0.0
    %3165 = vmatpush.msra.mxu0 0.0
    %3166 = vmatpush.msra.mxu0 0.0
    %3167 = vmatpush.msra.mxu0 0.0
    %3168 = vmatpush.msra.mxu0 0.0
    %3169 = vmatpush.msra.mxu0 0.0
    %3170 = vmatpush.msra.mxu0 0.0
    %3171 = vmatpush.msra.mxu0 %v3145
    %3172 = vmatmul.f32.gmra.mxu0 %v3142
    %v3173 = vpop.f32.mrf.mxu0
    %v3174 = vadd.f32 0.0, %v3173
    %3175 = vdwg.mxu0
    %3176 = vmatpush.msra.mxu0 0.0
    %3177 = vmatpush.msra.mxu0 0.0
    %3178 = vmatpush.msra.mxu0 0.0
    %3179 = vmatpush.msra.mxu0 0.0
    %3180 = vmatpush.msra.mxu0 0.0
    %3181 = vmatpush.msra.mxu0 0.0
    %3182 = vmatpush.msra.mxu0 0.0
    %3183 = vmatpush.msra.mxu0 0.0
    %3184 = vmatpush.msra.mxu0 0.0
    %3185 = vmatpush.msra.mxu0 0.0
    %3186 = vmatpush.msra.mxu0 0.0
    %3187 = vmatpush.msra.mxu0 0.0
    %3188 = vmatpush.msra.mxu0 0.0
    %3189 = vmatpush.msra.mxu0 0.0
    %3190 = vmatpush.msra.mxu0 0.0
    %3191 = vmatpush.msra.mxu0 %v3148
    %3192 = vmatmul.f32.gmra.mxu0 %v3142
    %v3193 = vpop.f32.mrf.mxu0
    %v3194 = vadd.f32 0.0, %v3193
    %3195 = vdwg.mxu0
    %3196 = vmatpush.msra.mxu0 0.0
    %3197 = vmatpush.msra.mxu0 0.0
    %3198 = vmatpush.msra.mxu0 0.0
    %3199 = vmatpush.msra.mxu0 0.0
    %3200 = vmatpush.msra.mxu0 0.0
    %3201 = vmatpush.msra.mxu0 0.0
    %3202 = vmatpush.msra.mxu0 0.0
    %3203 = vmatpush.msra.mxu0 0.0
    %3204 = vmatpush.msra.mxu0 0.0
    %3205 = vmatpush.msra.mxu0 0.0
    %3206 = vmatpush.msra.mxu0 0.0
    %3207 = vmatpush.msra.mxu0 0.0
    %3208 = vmatpush.msra.mxu0 0.0
    %3209 = vmatpush.msra.mxu0 0.0
    %3210 = vmatpush.msra.mxu0 0.0
    %3211 = vmatpush.msra.mxu0 %v3151
    %3212 = vmatmul.f32.gmra.mxu0 %v3142
    %v3213 = vpop.f32.mrf.mxu0
    %v3214 = vadd.f32 0.0, %v3213
    %3215 = vdwg.mxu0
    %3216 = vmatpush.msra.mxu0 0.0
    %3217 = vmatpush.msra.mxu0 0.0
    %3218 = vmatpush.msra.mxu0 0.0
    %3219 = vmatpush.msra.mxu0 0.0
    %3220 = vmatpush.msra.mxu0 0.0
    %3221 = vmatpush.msra.mxu0 0.0
    %3222 = vmatpush.msra.mxu0 0.0
    %3223 = vmatpush.msra.mxu0 0.0
    %3224 = vmatpush.msra.mxu0 0.0
    %3225 = vmatpush.msra.mxu0 0.0
    %3226 = vmatpush.msra.mxu0 0.0
    %3227 = vmatpush.msra.mxu0 0.0
    %3228 = vmatpush.msra.mxu0 0.0
    %3229 = vmatpush.msra.mxu0 0.0
    %3230 = vmatpush.msra.mxu0 0.0
    %3231 = vmatpush.msra.mxu0 %v3154
    %3232 = vmatmul.f32.gmra.mxu0 %v3142
    %v3233 = vpop.f32.mrf.mxu0
    %v3234 = vadd.f32 0.0, %v3233
    %3235 = vdwg.mxu0
    %v3236 = vadd.f32 %v3096, %v3174
    %v3237 = vadd.f32 %v3097, %v3194
    %v3238 = vadd.f32 %v3098, %v3214
    %v3239 = vadd.f32 %v3099, %v3234
    %3240 = vst [vmem:[#allocation1] ss:$2 sm:$0xff] %v162
    %s3241 = scalar_lea.vmem [#allocation1], 16
    %3242 = vst [vmem:[%s3241] ss:$2 sm:$0xff] %v163
    %v3243 = vld.sshfl [vmem:[#allocation1] sm:$0xff pattern:$0x75316420]
    %v3244 = vld.sshfl [vmem:[#allocation1 + $0x8] sm:$0xff pattern:$0x75316420]
    %v3245 = vld.sshfl [vmem:[#allocation1 + $0x10] sm:$0xff pattern:$0x75316420]
    %v3246 = vld.sshfl [vmem:[#allocation1 + $0x18] sm:$0xff pattern:$0x75316420]
    %3251 = vrot.lane.b32.xlu0 %v3243, 2
    %v3252 = vpop.permute.xlu0 %3251
    %3253 = vrot.lane.b32.xlu0 %v3244, 2
    %v3254 = vpop.permute.xlu0 %3253
    %3255 = vrot.lane.b32.xlu0 %v3245, 2
    %v3256 = vpop.permute.xlu0 %3255
    %3257 = vrot.lane.b32.xlu0 %v3246, 2
    %v3258 = vpop.permute.xlu0 %3257
    %vm3259 = vcmp.lt.s32.totalorder %v186, 2
    %v3260 = vsel %vm3259, %v3256, %v3258
    %v3261 = vsel %vm3259, %v3254, %v3256
    %v3262 = vsel %vm3259, %v3252, %v3254
    %v3263 = vsel %vm3259, %v3258, %v3252
    %s3264 = scalar_lea.vmem %s7, 70
    %v3265 = vld [vmem:[%s3264] ss:$8 sm:$0xf]
    %v3267 = vperm.slane %v3265, 0
    %v3268 = vperm.slane %v3265, 1
    %v3269 = vperm.slane %v3265, 2
    %v3270 = vperm.slane %v3265, 3
    %v3275 = vmul.f32 %v3263, %v3267
    %v3276 = vmul.f32 %v3262, %v3268
    %v3277 = vmul.f32 %v3261, %v3269
    %v3278 = vmul.f32 %v3260, %v3270
    %s3279 = scalar_lea.vmem %s3, 176
    %v3280 = vld [vmem:[%s3279] sm:$0xff]
    %v3282 = vsel %vm248, %v3280, 0
    %v3285 = vsel %vm252, %v3275, 0
    %v3288 = vsel %vm252, %v3276, 0
    %v3291 = vsel %vm252, %v3277, 0
    %v3294 = vsel %vm252, %v3278, 0
    %3296 = vmatpush.msra.mxu0 0.0
    %3297 = vmatpush.msra.mxu0 0.0
    %3298 = vmatpush.msra.mxu0 0.0
    %3299 = vmatpush.msra.mxu0 0.0
    %3300 = vmatpush.msra.mxu0 0.0
    %3301 = vmatpush.msra.mxu0 0.0
    %3302 = vmatpush.msra.mxu0 0.0
    %3303 = vmatpush.msra.mxu0 0.0
    %3304 = vmatpush.msra.mxu0 0.0
    %3305 = vmatpush.msra.mxu0 0.0
    %3306 = vmatpush.msra.mxu0 0.0
    %3307 = vmatpush.msra.mxu0 0.0
    %3308 = vmatpush.msra.mxu0 0.0
    %3309 = vmatpush.msra.mxu0 0.0
    %3310 = vmatpush.msra.mxu0 0.0
    %3311 = vmatpush.msra.mxu0 %v3285
    %3312 = vmatmul.f32.gmra.mxu0 %v3282
    %v3313 = vpop.f32.mrf.mxu0
    %v3314 = vadd.f32 0.0, %v3313
    %3315 = vdwg.mxu0
    %3316 = vmatpush.msra.mxu0 0.0
    %3317 = vmatpush.msra.mxu0 0.0
    %3318 = vmatpush.msra.mxu0 0.0
    %3319 = vmatpush.msra.mxu0 0.0
    %3320 = vmatpush.msra.mxu0 0.0
    %3321 = vmatpush.msra.mxu0 0.0
    %3322 = vmatpush.msra.mxu0 0.0
    %3323 = vmatpush.msra.mxu0 0.0
    %3324 = vmatpush.msra.mxu0 0.0
    %3325 = vmatpush.msra.mxu0 0.0
    %3326 = vmatpush.msra.mxu0 0.0
    %3327 = vmatpush.msra.mxu0 0.0
    %3328 = vmatpush.msra.mxu0 0.0
    %3329 = vmatpush.msra.mxu0 0.0
    %3330 = vmatpush.msra.mxu0 0.0
    %3331 = vmatpush.msra.mxu0 %v3288
    %3332 = vmatmul.f32.gmra.mxu0 %v3282
    %v3333 = vpop.f32.mrf.mxu0
    %v3334 = vadd.f32 0.0, %v3333
    %3335 = vdwg.mxu0
    %3336 = vmatpush.msra.mxu0 0.0
    %3337 = vmatpush.msra.mxu0 0.0
    %3338 = vmatpush.msra.mxu0 0.0
    %3339 = vmatpush.msra.mxu0 0.0
    %3340 = vmatpush.msra.mxu0 0.0
    %3341 = vmatpush.msra.mxu0 0.0
    %3342 = vmatpush.msra.mxu0 0.0
    %3343 = vmatpush.msra.mxu0 0.0
    %3344 = vmatpush.msra.mxu0 0.0
    %3345 = vmatpush.msra.mxu0 0.0
    %3346 = vmatpush.msra.mxu0 0.0
    %3347 = vmatpush.msra.mxu0 0.0
    %3348 = vmatpush.msra.mxu0 0.0
    %3349 = vmatpush.msra.mxu0 0.0
    %3350 = vmatpush.msra.mxu0 0.0
    %3351 = vmatpush.msra.mxu0 %v3291
    %3352 = vmatmul.f32.gmra.mxu0 %v3282
    %v3353 = vpop.f32.mrf.mxu0
    %v3354 = vadd.f32 0.0, %v3353
    %3355 = vdwg.mxu0
    %3356 = vmatpush.msra.mxu0 0.0
    %3357 = vmatpush.msra.mxu0 0.0
    %3358 = vmatpush.msra.mxu0 0.0
    %3359 = vmatpush.msra.mxu0 0.0
    %3360 = vmatpush.msra.mxu0 0.0
    %3361 = vmatpush.msra.mxu0 0.0
    %3362 = vmatpush.msra.mxu0 0.0
    %3363 = vmatpush.msra.mxu0 0.0
    %3364 = vmatpush.msra.mxu0 0.0
    %3365 = vmatpush.msra.mxu0 0.0
    %3366 = vmatpush.msra.mxu0 0.0
    %3367 = vmatpush.msra.mxu0 0.0
    %3368 = vmatpush.msra.mxu0 0.0
    %3369 = vmatpush.msra.mxu0 0.0
    %3370 = vmatpush.msra.mxu0 0.0
    %3371 = vmatpush.msra.mxu0 %v3294
    %3372 = vmatmul.f32.gmra.mxu0 %v3282
    %v3373 = vpop.f32.mrf.mxu0
    %v3374 = vadd.f32 0.0, %v3373
    %3375 = vdwg.mxu0
    %v3376 = vadd.f32 %v3236, %v3314
    %v3377 = vadd.f32 %v3237, %v3334
    %v3378 = vadd.f32 %v3238, %v3354
    %v3379 = vadd.f32 %v3239, %v3374
    %3380 = vst [vmem:[#allocation1] ss:$2 sm:$0xff] %v162
    %s3381 = scalar_lea.vmem [#allocation1], 16
    %3382 = vst [vmem:[%s3381] ss:$2 sm:$0xff] %v163
    %v3383 = vld.sshfl [vmem:[#allocation1] sm:$0xff pattern:$0x75316420]
    %v3384 = vld.sshfl [vmem:[#allocation1 + $0x8] sm:$0xff pattern:$0x75316420]
    %v3385 = vld.sshfl [vmem:[#allocation1 + $0x10] sm:$0xff pattern:$0x75316420]
    %v3386 = vld.sshfl [vmem:[#allocation1 + $0x18] sm:$0xff pattern:$0x75316420]
    %3391 = vrot.lane.b32.xlu0 %v3383, 1
    %v3392 = vpop.permute.xlu0 %3391
    %3393 = vrot.lane.b32.xlu0 %v3384, 1
    %v3394 = vpop.permute.xlu0 %3393
    %3395 = vrot.lane.b32.xlu0 %v3385, 1
    %v3396 = vpop.permute.xlu0 %3395
    %3397 = vrot.lane.b32.xlu0 %v3386, 1
    %v3398 = vpop.permute.xlu0 %3397
    %vm3399 = vcmp.lt.s32.totalorder %v186, 1
    %v3400 = vsel %vm3399, %v3396, %v3398
    %v3401 = vsel %vm3399, %v3394, %v3396
    %v3402 = vsel %vm3399, %v3392, %v3394
    %v3403 = vsel %vm3399, %v3398, %v3392
    %s3404 = scalar_lea.vmem %s7, 71
    %v3405 = vld [vmem:[%s3404] ss:$8 sm:$0xf]
    %v3407 = vperm.slane %v3405, 0
    %v3408 = vperm.slane %v3405, 1
    %v3409 = vperm.slane %v3405, 2
    %v3410 = vperm.slane %v3405, 3
    %v3415 = vmul.f32 %v3403, %v3407
    %v3416 = vmul.f32 %v3402, %v3408
    %v3417 = vmul.f32 %v3401, %v3409
    %v3418 = vmul.f32 %v3400, %v3410
    %s3419 = scalar_lea.vmem %s3, 184
    %v3420 = vld [vmem:[%s3419] sm:$0xff]
    %v3422 = vsel %vm248, %v3420, 0
    %v3425 = vsel %vm252, %v3415, 0
    %v3428 = vsel %vm252, %v3416, 0
    %v3431 = vsel %vm252, %v3417, 0
    %v3434 = vsel %vm252, %v3418, 0
    %3436 = vmatpush.msra.mxu0 0.0
    %3437 = vmatpush.msra.mxu0 0.0
    %3438 = vmatpush.msra.mxu0 0.0
    %3439 = vmatpush.msra.mxu0 0.0
    %3440 = vmatpush.msra.mxu0 0.0
    %3441 = vmatpush.msra.mxu0 0.0
    %3442 = vmatpush.msra.mxu0 0.0
    %3443 = vmatpush.msra.mxu0 0.0
    %3444 = vmatpush.msra.mxu0 0.0
    %3445 = vmatpush.msra.mxu0 0.0
    %3446 = vmatpush.msra.mxu0 0.0
    %3447 = vmatpush.msra.mxu0 0.0
    %3448 = vmatpush.msra.mxu0 0.0
    %3449 = vmatpush.msra.mxu0 0.0
    %3450 = vmatpush.msra.mxu0 0.0
    %3451 = vmatpush.msra.mxu0 %v3425
    %3452 = vmatmul.f32.gmra.mxu0 %v3422
    %v3453 = vpop.f32.mrf.mxu0
    %v3454 = vadd.f32 0.0, %v3453
    %3455 = vdwg.mxu0
    %3456 = vmatpush.msra.mxu0 0.0
    %3457 = vmatpush.msra.mxu0 0.0
    %3458 = vmatpush.msra.mxu0 0.0
    %3459 = vmatpush.msra.mxu0 0.0
    %3460 = vmatpush.msra.mxu0 0.0
    %3461 = vmatpush.msra.mxu0 0.0
    %3462 = vmatpush.msra.mxu0 0.0
    %3463 = vmatpush.msra.mxu0 0.0
    %3464 = vmatpush.msra.mxu0 0.0
    %3465 = vmatpush.msra.mxu0 0.0
    %3466 = vmatpush.msra.mxu0 0.0
    %3467 = vmatpush.msra.mxu0 0.0
    %3468 = vmatpush.msra.mxu0 0.0
    %3469 = vmatpush.msra.mxu0 0.0
    %3470 = vmatpush.msra.mxu0 0.0
    %3471 = vmatpush.msra.mxu0 %v3428
    %3472 = vmatmul.f32.gmra.mxu0 %v3422
    %v3473 = vpop.f32.mrf.mxu0
    %v3474 = vadd.f32 0.0, %v3473
    %3475 = vdwg.mxu0
    %3476 = vmatpush.msra.mxu0 0.0
    %3477 = vmatpush.msra.mxu0 0.0
    %3478 = vmatpush.msra.mxu0 0.0
    %3479 = vmatpush.msra.mxu0 0.0
    %3480 = vmatpush.msra.mxu0 0.0
    %3481 = vmatpush.msra.mxu0 0.0
    %3482 = vmatpush.msra.mxu0 0.0
    %3483 = vmatpush.msra.mxu0 0.0
    %3484 = vmatpush.msra.mxu0 0.0
    %3485 = vmatpush.msra.mxu0 0.0
    %3486 = vmatpush.msra.mxu0 0.0
    %3487 = vmatpush.msra.mxu0 0.0
    %3488 = vmatpush.msra.mxu0 0.0
    %3489 = vmatpush.msra.mxu0 0.0
    %3490 = vmatpush.msra.mxu0 0.0
    %3491 = vmatpush.msra.mxu0 %v3431
    %3492 = vmatmul.f32.gmra.mxu0 %v3422
    %v3493 = vpop.f32.mrf.mxu0
    %v3494 = vadd.f32 0.0, %v3493
    %3495 = vdwg.mxu0
    %3496 = vmatpush.msra.mxu0 0.0
    %3497 = vmatpush.msra.mxu0 0.0
    %3498 = vmatpush.msra.mxu0 0.0
    %3499 = vmatpush.msra.mxu0 0.0
    %3500 = vmatpush.msra.mxu0 0.0
    %3501 = vmatpush.msra.mxu0 0.0
    %3502 = vmatpush.msra.mxu0 0.0
    %3503 = vmatpush.msra.mxu0 0.0
    %3504 = vmatpush.msra.mxu0 0.0
    %3505 = vmatpush.msra.mxu0 0.0
    %3506 = vmatpush.msra.mxu0 0.0
    %3507 = vmatpush.msra.mxu0 0.0
    %3508 = vmatpush.msra.mxu0 0.0
    %3509 = vmatpush.msra.mxu0 0.0
    %3510 = vmatpush.msra.mxu0 0.0
    %3511 = vmatpush.msra.mxu0 %v3434
    %3512 = vmatmul.f32.gmra.mxu0 %v3422
    %v3513 = vpop.f32.mrf.mxu0
    %v3514 = vadd.f32 0.0, %v3513
    %3515 = vdwg.mxu0
    %v3516 = vadd.f32 %v3376, %v3454
    %v3517 = vadd.f32 %v3377, %v3474
    %v3518 = vadd.f32 %v3378, %v3494
    %v3519 = vadd.f32 %v3379, %v3514
    %s3520 = scalar_lea.vmem %s7, 96
    %v3521 = vld [vmem:[%s3520] ss:$8 sm:$0xf]
    %v3523 = vperm.slane %v3521, 0
    %v3524 = vperm.slane %v3521, 1
    %v3525 = vperm.slane %v3521, 2
    %v3526 = vperm.slane %v3521, 3
    %v3527 = vrot.slane %v3524, 4
    %v3528 = vrot.slane %v3526, 4
    %v3529 = vsel %vm252, %v3523, %v3527
    %v3530 = vsel %vm252, %v3525, %v3528
    %v3533 = vmul.f32 %v162, %v3529
    %v3534 = vmul.f32 %v163, %v3530
    %s3535 = scalar_lea.vmem %s3, 192
    %v3536 = vld [vmem:[%s3535] sm:$0xff]
    %3539 = vst [vmem:[#allocation1] ss:$2 sm:$0xff] %v3533
    %s3540 = scalar_lea.vmem [#allocation1], 16
    %3541 = vst [vmem:[%s3540] ss:$2 sm:$0xff] %v3534
    %v3542 = vld.sshfl [vmem:[#allocation1] sm:$0xff pattern:$0x75316420]
    %v3543 = vld.sshfl [vmem:[#allocation1 + $0x8] sm:$0xff pattern:$0x75316420]
    %v3544 = vld.sshfl [vmem:[#allocation1 + $0x10] sm:$0xff pattern:$0x75316420]
    %v3545 = vld.sshfl [vmem:[#allocation1 + $0x18] sm:$0xff pattern:$0x75316420]
    %v3547 = vsel %vm248, %v3536, 0
    %v3549 = vsel %vm252, %v3542, 0
    %v3551 = vsel %vm252, %v3543, 0
    %v3553 = vsel %vm252, %v3544, 0
    %v3555 = vsel %vm252, %v3545, 0
    %3557 = vmatpush.msra.mxu0 0.0
    %3558 = vmatpush.msra.mxu0 0.0
    %3559 = vmatpush.msra.mxu0 0.0
    %3560 = vmatpush.msra.mxu0 0.0
    %3561 = vmatpush.msra.mxu0 0.0
    %3562 = vmatpush.msra.mxu0 0.0
    %3563 = vmatpush.msra.mxu0 0.0
    %3564 = vmatpush.msra.mxu0 0.0
    %3565 = vmatpush.msra.mxu0 0.0
    %3566 = vmatpush.msra.mxu0 0.0
    %3567 = vmatpush.msra.mxu0 0.0
    %3568 = vmatpush.msra.mxu0 0.0
    %3569 = vmatpush.msra.mxu0 0.0
    %3570 = vmatpush.msra.mxu0 0.0
    %3571 = vmatpush.msra.mxu0 0.0
    %3572 = vmatpush.msra.mxu0 %v3549
    %3573 = vmatmul.f32.gmra.mxu0 %v3547
    %v3574 = vpop.f32.mrf.mxu0
    %v3575 = vadd.f32 0.0, %v3574
    %3576 = vdwg.mxu0
    %3577 = vmatpush.msra.mxu0 0.0
    %3578 = vmatpush.msra.mxu0 0.0
    %3579 = vmatpush.msra.mxu0 0.0
    %3580 = vmatpush.msra.mxu0 0.0
    %3581 = vmatpush.msra.mxu0 0.0
    %3582 = vmatpush.msra.mxu0 0.0
    %3583 = vmatpush.msra.mxu0 0.0
    %3584 = vmatpush.msra.mxu0 0.0
    %3585 = vmatpush.msra.mxu0 0.0
    %3586 = vmatpush.msra.mxu0 0.0
    %3587 = vmatpush.msra.mxu0 0.0
    %3588 = vmatpush.msra.mxu0 0.0
    %3589 = vmatpush.msra.mxu0 0.0
    %3590 = vmatpush.msra.mxu0 0.0
    %3591 = vmatpush.msra.mxu0 0.0
    %3592 = vmatpush.msra.mxu0 %v3551
    %3593 = vmatmul.f32.gmra.mxu0 %v3547
    %v3594 = vpop.f32.mrf.mxu0
    %v3595 = vadd.f32 0.0, %v3594
    %3596 = vdwg.mxu0
    %3597 = vmatpush.msra.mxu0 0.0
    %3598 = vmatpush.msra.mxu0 0.0
    %3599 = vmatpush.msra.mxu0 0.0
    %3600 = vmatpush.msra.mxu0 0.0
    %3601 = vmatpush.msra.mxu0 0.0
    %3602 = vmatpush.msra.mxu0 0.0
    %3603 = vmatpush.msra.mxu0 0.0
    %3604 = vmatpush.msra.mxu0 0.0
    %3605 = vmatpush.msra.mxu0 0.0
    %3606 = vmatpush.msra.mxu0 0.0
    %3607 = vmatpush.msra.mxu0 0.0
    %3608 = vmatpush.msra.mxu0 0.0
    %3609 = vmatpush.msra.mxu0 0.0
    %3610 = vmatpush.msra.mxu0 0.0
    %3611 = vmatpush.msra.mxu0 0.0
    %3612 = vmatpush.msra.mxu0 %v3553
    %3613 = vmatmul.f32.gmra.mxu0 %v3547
    %v3614 = vpop.f32.mrf.mxu0
    %v3615 = vadd.f32 0.0, %v3614
    %3616 = vdwg.mxu0
    %3617 = vmatpush.msra.mxu0 0.0
    %3618 = vmatpush.msra.mxu0 0.0
    %3619 = vmatpush.msra.mxu0 0.0
    %3620 = vmatpush.msra.mxu0 0.0
    %3621 = vmatpush.msra.mxu0 0.0
    %3622 = vmatpush.msra.mxu0 0.0
    %3623 = vmatpush.msra.mxu0 0.0
    %3624 = vmatpush.msra.mxu0 0.0
    %3625 = vmatpush.msra.mxu0 0.0
    %3626 = vmatpush.msra.mxu0 0.0
    %3627 = vmatpush.msra.mxu0 0.0
    %3628 = vmatpush.msra.mxu0 0.0
    %3629 = vmatpush.msra.mxu0 0.0
    %3630 = vmatpush.msra.mxu0 0.0
    %3631 = vmatpush.msra.mxu0 0.0
    %3632 = vmatpush.msra.mxu0 %v3555
    %3633 = vmatmul.f32.gmra.mxu0 %v3547
    %v3634 = vpop.f32.mrf.mxu0
    %v3635 = vadd.f32 0.0, %v3634
    %3636 = vdwg.mxu0
    %v3637 = vadd.f32 %v3516, %v3575
    %v3638 = vadd.f32 %v3517, %v3595
    %v3639 = vadd.f32 %v3518, %v3615
    %v3640 = vadd.f32 %v3519, %v3635
    %3641 = vst [vmem:[#allocation1] ss:$2 sm:$0xff] %v162
    %s3642 = scalar_lea.vmem [#allocation1], 16
    %3643 = vst [vmem:[%s3642] ss:$2 sm:$0xff] %v163
    %v3644 = vld.sshfl [vmem:[#allocation1] sm:$0xff pattern:$0x75316420]
    %v3645 = vld.sshfl [vmem:[#allocation1 + $0x8] sm:$0xff pattern:$0x75316420]
    %v3646 = vld.sshfl [vmem:[#allocation1 + $0x10] sm:$0xff pattern:$0x75316420]
    %v3647 = vld.sshfl [vmem:[#allocation1 + $0x18] sm:$0xff pattern:$0x75316420]
    %3652 = vrot.lane.b32.xlu0 %v3644, 127
    %v3653 = vpop.permute.xlu0 %3652
    %3654 = vrot.lane.b32.xlu0 %v3645, 127
    %v3655 = vpop.permute.xlu0 %3654
    %3656 = vrot.lane.b32.xlu0 %v3646, 127
    %v3657 = vpop.permute.xlu0 %3656
    %3658 = vrot.lane.b32.xlu0 %v3647, 127
    %v3659 = vpop.permute.xlu0 %3658
    %vm3660 = vcmp.lt.s32.totalorder %v186, 127
    %v3661 = vsel %vm3660, %v3657, %v3659
    %v3662 = vsel %vm3660, %v3655, %v3657
    %v3663 = vsel %vm3660, %v3653, %v3655
    %v3664 = vsel %vm3660, %v3659, %v3653
    %s3665 = scalar_lea.vmem %s7, 97
    %v3666 = vld [vmem:[%s3665] ss:$8 sm:$0xf]
    %v3668 = vperm.slane %v3666, 0
    %v3669 = vperm.slane %v3666, 1
    %v3670 = vperm.slane %v3666, 2
    %v3671 = vperm.slane %v3666, 3
    %v3676 = vmul.f32 %v3663, %v3668
    %v3677 = vmul.f32 %v3662, %v3669
    %v3678 = vmul.f32 %v3661, %v3670
    %v3679 = vmul.f32 %v3664, %v3671
    %s3680 = scalar_lea.vmem %s3, 200
    %v3681 = vld [vmem:[%s3680] sm:$0xff]
    %v3683 = vsel %vm248, %v3681, 0
    %v3686 = vsel %vm252, %v3676, 0
    %v3689 = vsel %vm252, %v3677, 0
    %v3692 = vsel %vm252, %v3678, 0
    %v3695 = vsel %vm252, %v3679, 0
    %3697 = vmatpush.msra.mxu0 0.0
    %3698 = vmatpush.msra.mxu0 0.0
    %3699 = vmatpush.msra.mxu0 0.0
    %3700 = vmatpush.msra.mxu0 0.0
    %3701 = vmatpush.msra.mxu0 0.0
    %3702 = vmatpush.msra.mxu0 0.0
    %3703 = vmatpush.msra.mxu0 0.0
    %3704 = vmatpush.msra.mxu0 0.0
    %3705 = vmatpush.msra.mxu0 0.0
    %3706 = vmatpush.msra.mxu0 0.0
    %3707 = vmatpush.msra.mxu0 0.0
    %3708 = vmatpush.msra.mxu0 0.0
    %3709 = vmatpush.msra.mxu0 0.0
    %3710 = vmatpush.msra.mxu0 0.0
    %3711 = vmatpush.msra.mxu0 0.0
    %3712 = vmatpush.msra.mxu0 %v3686
    %3713 = vmatmul.f32.gmra.mxu0 %v3683
    %v3714 = vpop.f32.mrf.mxu0
    %v3715 = vadd.f32 0.0, %v3714
    %3716 = vdwg.mxu0
    %3717 = vmatpush.msra.mxu0 0.0
    %3718 = vmatpush.msra.mxu0 0.0
    %3719 = vmatpush.msra.mxu0 0.0
    %3720 = vmatpush.msra.mxu0 0.0
    %3721 = vmatpush.msra.mxu0 0.0
    %3722 = vmatpush.msra.mxu0 0.0
    %3723 = vmatpush.msra.mxu0 0.0
    %3724 = vmatpush.msra.mxu0 0.0
    %3725 = vmatpush.msra.mxu0 0.0
    %3726 = vmatpush.msra.mxu0 0.0
    %3727 = vmatpush.msra.mxu0 0.0
    %3728 = vmatpush.msra.mxu0 0.0
    %3729 = vmatpush.msra.mxu0 0.0
    %3730 = vmatpush.msra.mxu0 0.0
    %3731 = vmatpush.msra.mxu0 0.0
    %3732 = vmatpush.msra.mxu0 %v3689
    %3733 = vmatmul.f32.gmra.mxu0 %v3683
    %v3734 = vpop.f32.mrf.mxu0
    %v3735 = vadd.f32 0.0, %v3734
    %3736 = vdwg.mxu0
    %3737 = vmatpush.msra.mxu0 0.0
    %3738 = vmatpush.msra.mxu0 0.0
    %3739 = vmatpush.msra.mxu0 0.0
    %3740 = vmatpush.msra.mxu0 0.0
    %3741 = vmatpush.msra.mxu0 0.0
    %3742 = vmatpush.msra.mxu0 0.0
    %3743 = vmatpush.msra.mxu0 0.0
    %3744 = vmatpush.msra.mxu0 0.0
    %3745 = vmatpush.msra.mxu0 0.0
    %3746 = vmatpush.msra.mxu0 0.0
    %3747 = vmatpush.msra.mxu0 0.0
    %3748 = vmatpush.msra.mxu0 0.0
    %3749 = vmatpush.msra.mxu0 0.0
    %3750 = vmatpush.msra.mxu0 0.0
    %3751 = vmatpush.msra.mxu0 0.0
    %3752 = vmatpush.msra.mxu0 %v3692
    %3753 = vmatmul.f32.gmra.mxu0 %v3683
    %v3754 = vpop.f32.mrf.mxu0
    %v3755 = vadd.f32 0.0, %v3754
    %3756 = vdwg.mxu0
    %3757 = vmatpush.msra.mxu0 0.0
    %3758 = vmatpush.msra.mxu0 0.0
    %3759 = vmatpush.msra.mxu0 0.0
    %3760 = vmatpush.msra.mxu0 0.0
    %3761 = vmatpush.msra.mxu0 0.0
    %3762 = vmatpush.msra.mxu0 0.0
    %3763 = vmatpush.msra.mxu0 0.0
    %3764 = vmatpush.msra.mxu0 0.0
    %3765 = vmatpush.msra.mxu0 0.0
    %3766 = vmatpush.msra.mxu0 0.0
    %3767 = vmatpush.msra.mxu0 0.0
    %3768 = vmatpush.msra.mxu0 0.0
    %3769 = vmatpush.msra.mxu0 0.0
    %3770 = vmatpush.msra.mxu0 0.0
    %3771 = vmatpush.msra.mxu0 0.0
    %3772 = vmatpush.msra.mxu0 %v3695
    %3773 = vmatmul.f32.gmra.mxu0 %v3683
    %v3774 = vpop.f32.mrf.mxu0
    %v3775 = vadd.f32 0.0, %v3774
    %3776 = vdwg.mxu0
    %v3777 = vadd.f32 %v3637, %v3715
    %v3778 = vadd.f32 %v3638, %v3735
    %v3779 = vadd.f32 %v3639, %v3755
    %v3780 = vadd.f32 %v3640, %v3775
    %3781 = vst [vmem:[#allocation1] ss:$2 sm:$0xff] %v162
    %s3782 = scalar_lea.vmem [#allocation1], 16
    %3783 = vst [vmem:[%s3782] ss:$2 sm:$0xff] %v163
    %v3784 = vld.sshfl [vmem:[#allocation1] sm:$0xff pattern:$0x75316420]
    %v3785 = vld.sshfl [vmem:[#allocation1 + $0x8] sm:$0xff pattern:$0x75316420]
    %v3786 = vld.sshfl [vmem:[#allocation1 + $0x10] sm:$0xff pattern:$0x75316420]
    %v3787 = vld.sshfl [vmem:[#allocation1 + $0x18] sm:$0xff pattern:$0x75316420]
    %3792 = vrot.lane.b32.xlu0 %v3784, 126
    %v3793 = vpop.permute.xlu0 %3792
    %3794 = vrot.lane.b32.xlu0 %v3785, 126
    %v3795 = vpop.permute.xlu0 %3794
    %3796 = vrot.lane.b32.xlu0 %v3786, 126
    %v3797 = vpop.permute.xlu0 %3796
    %3798 = vrot.lane.b32.xlu0 %v3787, 126
    %v3799 = vpop.permute.xlu0 %3798
    %vm3800 = vcmp.lt.s32.totalorder %v186, 126
    %v3801 = vsel %vm3800, %v3797, %v3799
    %v3802 = vsel %vm3800, %v3795, %v3797
    %v3803 = vsel %vm3800, %v3793, %v3795
    %v3804 = vsel %vm3800, %v3799, %v3793
    %s3805 = scalar_lea.vmem %s7, 98
    %v3806 = vld [vmem:[%s3805] ss:$8 sm:$0xf]
    %v3808 = vperm.slane %v3806, 0
    %v3809 = vperm.slane %v3806, 1
    %v3810 = vperm.slane %v3806, 2
    %v3811 = vperm.slane %v3806, 3
    %v3816 = vmul.f32 %v3803, %v3808
    %v3817 = vmul.f32 %v3802, %v3809
    %v3818 = vmul.f32 %v3801, %v3810
    %v3819 = vmul.f32 %v3804, %v3811
    %s3820 = scalar_lea.vmem %s3, 208
    %v3821 = vld [vmem:[%s3820] sm:$0xff]
    %v3823 = vsel %vm248, %v3821, 0
    %v3826 = vsel %vm252, %v3816, 0
    %v3829 = vsel %vm252, %v3817, 0
    %v3832 = vsel %vm252, %v3818, 0
    %v3835 = vsel %vm252, %v3819, 0
    %3837 = vmatpush.msra.mxu0 0.0
    %3838 = vmatpush.msra.mxu0 0.0
    %3839 = vmatpush.msra.mxu0 0.0
    %3840 = vmatpush.msra.mxu0 0.0
    %3841 = vmatpush.msra.mxu0 0.0
    %3842 = vmatpush.msra.mxu0 0.0
    %3843 = vmatpush.msra.mxu0 0.0
    %3844 = vmatpush.msra.mxu0 0.0
    %3845 = vmatpush.msra.mxu0 0.0
    %3846 = vmatpush.msra.mxu0 0.0
    %3847 = vmatpush.msra.mxu0 0.0
    %3848 = vmatpush.msra.mxu0 0.0
    %3849 = vmatpush.msra.mxu0 0.0
    %3850 = vmatpush.msra.mxu0 0.0
    %3851 = vmatpush.msra.mxu0 0.0
    %3852 = vmatpush.msra.mxu0 %v3826
    %3853 = vmatmul.f32.gmra.mxu0 %v3823
    %v3854 = vpop.f32.mrf.mxu0
    %v3855 = vadd.f32 0.0, %v3854
    %3856 = vdwg.mxu0
    %3857 = vmatpush.msra.mxu0 0.0
    %3858 = vmatpush.msra.mxu0 0.0
    %3859 = vmatpush.msra.mxu0 0.0
    %3860 = vmatpush.msra.mxu0 0.0
    %3861 = vmatpush.msra.mxu0 0.0
    %3862 = vmatpush.msra.mxu0 0.0
    %3863 = vmatpush.msra.mxu0 0.0
    %3864 = vmatpush.msra.mxu0 0.0
    %3865 = vmatpush.msra.mxu0 0.0
    %3866 = vmatpush.msra.mxu0 0.0
    %3867 = vmatpush.msra.mxu0 0.0
    %3868 = vmatpush.msra.mxu0 0.0
    %3869 = vmatpush.msra.mxu0 0.0
    %3870 = vmatpush.msra.mxu0 0.0
    %3871 = vmatpush.msra.mxu0 0.0
    %3872 = vmatpush.msra.mxu0 %v3829
    %3873 = vmatmul.f32.gmra.mxu0 %v3823
    %v3874 = vpop.f32.mrf.mxu0
    %v3875 = vadd.f32 0.0, %v3874
    %3876 = vdwg.mxu0
    %3877 = vmatpush.msra.mxu0 0.0
    %3878 = vmatpush.msra.mxu0 0.0
    %3879 = vmatpush.msra.mxu0 0.0
    %3880 = vmatpush.msra.mxu0 0.0
    %3881 = vmatpush.msra.mxu0 0.0
    %3882 = vmatpush.msra.mxu0 0.0
    %3883 = vmatpush.msra.mxu0 0.0
    %3884 = vmatpush.msra.mxu0 0.0
    %3885 = vmatpush.msra.mxu0 0.0
    %3886 = vmatpush.msra.mxu0 0.0
    %3887 = vmatpush.msra.mxu0 0.0
    %3888 = vmatpush.msra.mxu0 0.0
    %3889 = vmatpush.msra.mxu0 0.0
    %3890 = vmatpush.msra.mxu0 0.0
    %3891 = vmatpush.msra.mxu0 0.0
    %3892 = vmatpush.msra.mxu0 %v3832
    %3893 = vmatmul.f32.gmra.mxu0 %v3823
    %v3894 = vpop.f32.mrf.mxu0
    %v3895 = vadd.f32 0.0, %v3894
    %3896 = vdwg.mxu0
    %3897 = vmatpush.msra.mxu0 0.0
    %3898 = vmatpush.msra.mxu0 0.0
    %3899 = vmatpush.msra.mxu0 0.0
    %3900 = vmatpush.msra.mxu0 0.0
    %3901 = vmatpush.msra.mxu0 0.0
    %3902 = vmatpush.msra.mxu0 0.0
    %3903 = vmatpush.msra.mxu0 0.0
    %3904 = vmatpush.msra.mxu0 0.0
    %3905 = vmatpush.msra.mxu0 0.0
    %3906 = vmatpush.msra.mxu0 0.0
    %3907 = vmatpush.msra.mxu0 0.0
    %3908 = vmatpush.msra.mxu0 0.0
    %3909 = vmatpush.msra.mxu0 0.0
    %3910 = vmatpush.msra.mxu0 0.0
    %3911 = vmatpush.msra.mxu0 0.0
    %3912 = vmatpush.msra.mxu0 %v3835
    %3913 = vmatmul.f32.gmra.mxu0 %v3823
    %v3914 = vpop.f32.mrf.mxu0
    %v3915 = vadd.f32 0.0, %v3914
    %3916 = vdwg.mxu0
    %v3917 = vadd.f32 %v3777, %v3855
    %v3918 = vadd.f32 %v3778, %v3875
    %v3919 = vadd.f32 %v3779, %v3895
    %v3920 = vadd.f32 %v3780, %v3915
    %3921 = vst [vmem:[#allocation1] ss:$2 sm:$0xff] %v162
    %s3922 = scalar_lea.vmem [#allocation1], 16
    %3923 = vst [vmem:[%s3922] ss:$2 sm:$0xff] %v163
    %v3924 = vld.sshfl [vmem:[#allocation1] sm:$0xff pattern:$0x75316420]
    %v3925 = vld.sshfl [vmem:[#allocation1 + $0x8] sm:$0xff pattern:$0x75316420]
    %v3926 = vld.sshfl [vmem:[#allocation1 + $0x10] sm:$0xff pattern:$0x75316420]
    %v3927 = vld.sshfl [vmem:[#allocation1 + $0x18] sm:$0xff pattern:$0x75316420]
    %3932 = vrot.lane.b32.xlu0 %v3924, 125
    %v3933 = vpop.permute.xlu0 %3932
    %3934 = vrot.lane.b32.xlu0 %v3925, 125
    %v3935 = vpop.permute.xlu0 %3934
    %3936 = vrot.lane.b32.xlu0 %v3926, 125
    %v3937 = vpop.permute.xlu0 %3936
    %3938 = vrot.lane.b32.xlu0 %v3927, 125
    %v3939 = vpop.permute.xlu0 %3938
    %vm3940 = vcmp.lt.s32.totalorder %v186, 125
    %v3941 = vsel %vm3940, %v3937, %v3939
    %v3942 = vsel %vm3940, %v3935, %v3937
    %v3943 = vsel %vm3940, %v3933, %v3935
    %v3944 = vsel %vm3940, %v3939, %v3933
    %s3945 = scalar_lea.vmem %s7, 99
    %v3946 = vld [vmem:[%s3945] ss:$8 sm:$0xf]
    %v3948 = vperm.slane %v3946, 0
    %v3949 = vperm.slane %v3946, 1
    %v3950 = vperm.slane %v3946, 2
    %v3951 = vperm.slane %v3946, 3
    %v3956 = vmul.f32 %v3943, %v3948
    %v3957 = vmul.f32 %v3942, %v3949
    %v3958 = vmul.f32 %v3941, %v3950
    %v3959 = vmul.f32 %v3944, %v3951
    %s3960 = scalar_lea.vmem %s3, 216
    %v3961 = vld [vmem:[%s3960] sm:$0xff]
    %v3963 = vsel %vm248, %v3961, 0
    %v3966 = vsel %vm252, %v3956, 0
    %v3969 = vsel %vm252, %v3957, 0
    %v3972 = vsel %vm252, %v3958, 0
    %v3975 = vsel %vm252, %v3959, 0
    %3977 = vmatpush.msra.mxu0 0.0
    %3978 = vmatpush.msra.mxu0 0.0
    %3979 = vmatpush.msra.mxu0 0.0
    %3980 = vmatpush.msra.mxu0 0.0
    %3981 = vmatpush.msra.mxu0 0.0
    %3982 = vmatpush.msra.mxu0 0.0
    %3983 = vmatpush.msra.mxu0 0.0
    %3984 = vmatpush.msra.mxu0 0.0
    %3985 = vmatpush.msra.mxu0 0.0
    %3986 = vmatpush.msra.mxu0 0.0
    %3987 = vmatpush.msra.mxu0 0.0
    %3988 = vmatpush.msra.mxu0 0.0
    %3989 = vmatpush.msra.mxu0 0.0
    %3990 = vmatpush.msra.mxu0 0.0
    %3991 = vmatpush.msra.mxu0 0.0
    %3992 = vmatpush.msra.mxu0 %v3966
    %3993 = vmatmul.f32.gmra.mxu0 %v3963
    %v3994 = vpop.f32.mrf.mxu0
    %v3995 = vadd.f32 0.0, %v3994
    %3996 = vdwg.mxu0
    %3997 = vmatpush.msra.mxu0 0.0
    %3998 = vmatpush.msra.mxu0 0.0
    %3999 = vmatpush.msra.mxu0 0.0
    %4000 = vmatpush.msra.mxu0 0.0
    %4001 = vmatpush.msra.mxu0 0.0
    %4002 = vmatpush.msra.mxu0 0.0
    %4003 = vmatpush.msra.mxu0 0.0
    %4004 = vmatpush.msra.mxu0 0.0
    %4005 = vmatpush.msra.mxu0 0.0
    %4006 = vmatpush.msra.mxu0 0.0
    %4007 = vmatpush.msra.mxu0 0.0
    %4008 = vmatpush.msra.mxu0 0.0
    %4009 = vmatpush.msra.mxu0 0.0
    %4010 = vmatpush.msra.mxu0 0.0
    %4011 = vmatpush.msra.mxu0 0.0
    %4012 = vmatpush.msra.mxu0 %v3969
    %4013 = vmatmul.f32.gmra.mxu0 %v3963
    %v4014 = vpop.f32.mrf.mxu0
    %v4015 = vadd.f32 0.0, %v4014
    %4016 = vdwg.mxu0
    %4017 = vmatpush.msra.mxu0 0.0
    %4018 = vmatpush.msra.mxu0 0.0
    %4019 = vmatpush.msra.mxu0 0.0
    %4020 = vmatpush.msra.mxu0 0.0
    %4021 = vmatpush.msra.mxu0 0.0
    %4022 = vmatpush.msra.mxu0 0.0
    %4023 = vmatpush.msra.mxu0 0.0
    %4024 = vmatpush.msra.mxu0 0.0
    %4025 = vmatpush.msra.mxu0 0.0
    %4026 = vmatpush.msra.mxu0 0.0
    %4027 = vmatpush.msra.mxu0 0.0
    %4028 = vmatpush.msra.mxu0 0.0
    %4029 = vmatpush.msra.mxu0 0.0
    %4030 = vmatpush.msra.mxu0 0.0
    %4031 = vmatpush.msra.mxu0 0.0
    %4032 = vmatpush.msra.mxu0 %v3972
    %4033 = vmatmul.f32.gmra.mxu0 %v3963
    %v4034 = vpop.f32.mrf.mxu0
    %v4035 = vadd.f32 0.0, %v4034
    %4036 = vdwg.mxu0
    %4037 = vmatpush.msra.mxu0 0.0
    %4038 = vmatpush.msra.mxu0 0.0
    %4039 = vmatpush.msra.mxu0 0.0
    %4040 = vmatpush.msra.mxu0 0.0
    %4041 = vmatpush.msra.mxu0 0.0
    %4042 = vmatpush.msra.mxu0 0.0
    %4043 = vmatpush.msra.mxu0 0.0
    %4044 = vmatpush.msra.mxu0 0.0
    %4045 = vmatpush.msra.mxu0 0.0
    %4046 = vmatpush.msra.mxu0 0.0
    %4047 = vmatpush.msra.mxu0 0.0
    %4048 = vmatpush.msra.mxu0 0.0
    %4049 = vmatpush.msra.mxu0 0.0
    %4050 = vmatpush.msra.mxu0 0.0
    %4051 = vmatpush.msra.mxu0 0.0
    %4052 = vmatpush.msra.mxu0 %v3975
    %4053 = vmatmul.f32.gmra.mxu0 %v3963
    %v4054 = vpop.f32.mrf.mxu0
    %v4055 = vadd.f32 0.0, %v4054
    %4056 = vdwg.mxu0
    %v4057 = vadd.f32 %v3917, %v3995
    %v4058 = vadd.f32 %v3918, %v4015
    %v4059 = vadd.f32 %v3919, %v4035
    %v4060 = vadd.f32 %v3920, %v4055
    %4061 = vst [vmem:[#allocation1] ss:$2 sm:$0xff] %v162
    %s4062 = scalar_lea.vmem [#allocation1], 16
    %4063 = vst [vmem:[%s4062] ss:$2 sm:$0xff] %v163
    %v4064 = vld.sshfl [vmem:[#allocation1] sm:$0xff pattern:$0x75316420]
    %v4065 = vld.sshfl [vmem:[#allocation1 + $0x8] sm:$0xff pattern:$0x75316420]
    %v4066 = vld.sshfl [vmem:[#allocation1 + $0x10] sm:$0xff pattern:$0x75316420]
    %v4067 = vld.sshfl [vmem:[#allocation1 + $0x18] sm:$0xff pattern:$0x75316420]
    %4072 = vrot.lane.b32.xlu0 %v4064, 115
    %v4073 = vpop.permute.xlu0 %4072
    %4074 = vrot.lane.b32.xlu0 %v4065, 115
    %v4075 = vpop.permute.xlu0 %4074
    %4076 = vrot.lane.b32.xlu0 %v4066, 115
    %v4077 = vpop.permute.xlu0 %4076
    %4078 = vrot.lane.b32.xlu0 %v4067, 115
    %v4079 = vpop.permute.xlu0 %4078
    %vm4080 = vcmp.lt.s32.totalorder %v186, 115
    %v4081 = vsel %vm4080, %v4077, %v4079
    %v4082 = vsel %vm4080, %v4075, %v4077
    %v4083 = vsel %vm4080, %v4073, %v4075
    %v4084 = vsel %vm4080, %v4079, %v4073
    %s4085 = scalar_lea.vmem %s7, 100
    %v4086 = vld [vmem:[%s4085] ss:$8 sm:$0xf]
    %v4088 = vperm.slane %v4086, 0
    %v4089 = vperm.slane %v4086, 1
    %v4090 = vperm.slane %v4086, 2
    %v4091 = vperm.slane %v4086, 3
    %v4096 = vmul.f32 %v4083, %v4088
    %v4097 = vmul.f32 %v4082, %v4089
    %v4098 = vmul.f32 %v4081, %v4090
    %v4099 = vmul.f32 %v4084, %v4091
    %s4100 = scalar_lea.vmem %s3, 224
    %v4101 = vld [vmem:[%s4100] sm:$0xff]
    %v4103 = vsel %vm248, %v4101, 0
    %v4106 = vsel %vm252, %v4096, 0
    %v4109 = vsel %vm252, %v4097, 0
    %v4112 = vsel %vm252, %v4098, 0
    %v4115 = vsel %vm252, %v4099, 0
    %4117 = vmatpush.msra.mxu0 0.0
    %4118 = vmatpush.msra.mxu0 0.0
    %4119 = vmatpush.msra.mxu0 0.0
    %4120 = vmatpush.msra.mxu0 0.0
    %4121 = vmatpush.msra.mxu0 0.0
    %4122 = vmatpush.msra.mxu0 0.0
    %4123 = vmatpush.msra.mxu0 0.0
    %4124 = vmatpush.msra.mxu0 0.0
    %4125 = vmatpush.msra.mxu0 0.0
    %4126 = vmatpush.msra.mxu0 0.0
    %4127 = vmatpush.msra.mxu0 0.0
    %4128 = vmatpush.msra.mxu0 0.0
    %4129 = vmatpush.msra.mxu0 0.0
    %4130 = vmatpush.msra.mxu0 0.0
    %4131 = vmatpush.msra.mxu0 0.0
    %4132 = vmatpush.msra.mxu0 %v4106
    %4133 = vmatmul.f32.gmra.mxu0 %v4103
    %v4134 = vpop.f32.mrf.mxu0
    %v4135 = vadd.f32 0.0, %v4134
    %4136 = vdwg.mxu0
    %4137 = vmatpush.msra.mxu0 0.0
    %4138 = vmatpush.msra.mxu0 0.0
    %4139 = vmatpush.msra.mxu0 0.0
    %4140 = vmatpush.msra.mxu0 0.0
    %4141 = vmatpush.msra.mxu0 0.0
    %4142 = vmatpush.msra.mxu0 0.0
    %4143 = vmatpush.msra.mxu0 0.0
    %4144 = vmatpush.msra.mxu0 0.0
    %4145 = vmatpush.msra.mxu0 0.0
    %4146 = vmatpush.msra.mxu0 0.0
    %4147 = vmatpush.msra.mxu0 0.0
    %4148 = vmatpush.msra.mxu0 0.0
    %4149 = vmatpush.msra.mxu0 0.0
    %4150 = vmatpush.msra.mxu0 0.0
    %4151 = vmatpush.msra.mxu0 0.0
    %4152 = vmatpush.msra.mxu0 %v4109
    %4153 = vmatmul.f32.gmra.mxu0 %v4103
    %v4154 = vpop.f32.mrf.mxu0
    %v4155 = vadd.f32 0.0, %v4154
    %4156 = vdwg.mxu0
    %4157 = vmatpush.msra.mxu0 0.0
    %4158 = vmatpush.msra.mxu0 0.0
    %4159 = vmatpush.msra.mxu0 0.0
    %4160 = vmatpush.msra.mxu0 0.0
    %4161 = vmatpush.msra.mxu0 0.0
    %4162 = vmatpush.msra.mxu0 0.0
    %4163 = vmatpush.msra.mxu0 0.0
    %4164 = vmatpush.msra.mxu0 0.0
    %4165 = vmatpush.msra.mxu0 0.0
    %4166 = vmatpush.msra.mxu0 0.0
    %4167 = vmatpush.msra.mxu0 0.0
    %4168 = vmatpush.msra.mxu0 0.0
    %4169 = vmatpush.msra.mxu0 0.0
    %4170 = vmatpush.msra.mxu0 0.0
    %4171 = vmatpush.msra.mxu0 0.0
    %4172 = vmatpush.msra.mxu0 %v4112
    %4173 = vmatmul.f32.gmra.mxu0 %v4103
    %v4174 = vpop.f32.mrf.mxu0
    %v4175 = vadd.f32 0.0, %v4174
    %4176 = vdwg.mxu0
    %4177 = vmatpush.msra.mxu0 0.0
    %4178 = vmatpush.msra.mxu0 0.0
    %4179 = vmatpush.msra.mxu0 0.0
    %4180 = vmatpush.msra.mxu0 0.0
    %4181 = vmatpush.msra.mxu0 0.0
    %4182 = vmatpush.msra.mxu0 0.0
    %4183 = vmatpush.msra.mxu0 0.0
    %4184 = vmatpush.msra.mxu0 0.0
    %4185 = vmatpush.msra.mxu0 0.0
    %4186 = vmatpush.msra.mxu0 0.0
    %4187 = vmatpush.msra.mxu0 0.0
    %4188 = vmatpush.msra.mxu0 0.0
    %4189 = vmatpush.msra.mxu0 0.0
    %4190 = vmatpush.msra.mxu0 0.0
    %4191 = vmatpush.msra.mxu0 0.0
    %4192 = vmatpush.msra.mxu0 %v4115
    %4193 = vmatmul.f32.gmra.mxu0 %v4103
    %v4194 = vpop.f32.mrf.mxu0
    %v4195 = vadd.f32 0.0, %v4194
    %4196 = vdwg.mxu0
    %v4197 = vadd.f32 %v4057, %v4135
    %v4198 = vadd.f32 %v4058, %v4155
    %v4199 = vadd.f32 %v4059, %v4175
    %v4200 = vadd.f32 %v4060, %v4195
    %4201 = vst [vmem:[#allocation1] ss:$2 sm:$0xff] %v162
    %s4202 = scalar_lea.vmem [#allocation1], 16
    %4203 = vst [vmem:[%s4202] ss:$2 sm:$0xff] %v163
    %v4204 = vld.sshfl [vmem:[#allocation1] sm:$0xff pattern:$0x75316420]
    %v4205 = vld.sshfl [vmem:[#allocation1 + $0x8] sm:$0xff pattern:$0x75316420]
    %v4206 = vld.sshfl [vmem:[#allocation1 + $0x10] sm:$0xff pattern:$0x75316420]
    %v4207 = vld.sshfl [vmem:[#allocation1 + $0x18] sm:$0xff pattern:$0x75316420]
    %4212 = vrot.lane.b32.xlu0 %v4204, 114
    %v4213 = vpop.permute.xlu0 %4212
    %4214 = vrot.lane.b32.xlu0 %v4205, 114
    %v4215 = vpop.permute.xlu0 %4214
    %4216 = vrot.lane.b32.xlu0 %v4206, 114
    %v4217 = vpop.permute.xlu0 %4216
    %4218 = vrot.lane.b32.xlu0 %v4207, 114
    %v4219 = vpop.permute.xlu0 %4218
    %vm4220 = vcmp.lt.s32.totalorder %v186, 114
    %v4221 = vsel %vm4220, %v4217, %v4219
    %v4222 = vsel %vm4220, %v4215, %v4217
    %v4223 = vsel %vm4220, %v4213, %v4215
    %v4224 = vsel %vm4220, %v4219, %v4213
    %s4225 = scalar_lea.vmem %s7, 101
    %v4226 = vld [vmem:[%s4225] ss:$8 sm:$0xf]
    %v4228 = vperm.slane %v4226, 0
    %v4229 = vperm.slane %v4226, 1
    %v4230 = vperm.slane %v4226, 2
    %v4231 = vperm.slane %v4226, 3
    %v4236 = vmul.f32 %v4223, %v4228
    %v4237 = vmul.f32 %v4222, %v4229
    %v4238 = vmul.f32 %v4221, %v4230
    %v4239 = vmul.f32 %v4224, %v4231
    %s4240 = scalar_lea.vmem %s3, 232
    %v4241 = vld [vmem:[%s4240] sm:$0xff]
    %v4243 = vsel %vm248, %v4241, 0
    %v4246 = vsel %vm252, %v4236, 0
    %v4249 = vsel %vm252, %v4237, 0
    %v4252 = vsel %vm252, %v4238, 0
    %v4255 = vsel %vm252, %v4239, 0
    %4257 = vmatpush.msra.mxu0 0.0
    %4258 = vmatpush.msra.mxu0 0.0
    %4259 = vmatpush.msra.mxu0 0.0
    %4260 = vmatpush.msra.mxu0 0.0
    %4261 = vmatpush.msra.mxu0 0.0
    %4262 = vmatpush.msra.mxu0 0.0
    %4263 = vmatpush.msra.mxu0 0.0
    %4264 = vmatpush.msra.mxu0 0.0
    %4265 = vmatpush.msra.mxu0 0.0
    %4266 = vmatpush.msra.mxu0 0.0
    %4267 = vmatpush.msra.mxu0 0.0
    %4268 = vmatpush.msra.mxu0 0.0
    %4269 = vmatpush.msra.mxu0 0.0
    %4270 = vmatpush.msra.mxu0 0.0
    %4271 = vmatpush.msra.mxu0 0.0
    %4272 = vmatpush.msra.mxu0 %v4246
    %4273 = vmatmul.f32.gmra.mxu0 %v4243
    %v4274 = vpop.f32.mrf.mxu0
    %v4275 = vadd.f32 0.0, %v4274
    %4276 = vdwg.mxu0
    %4277 = vmatpush.msra.mxu0 0.0
    %4278 = vmatpush.msra.mxu0 0.0
    %4279 = vmatpush.msra.mxu0 0.0
    %4280 = vmatpush.msra.mxu0 0.0
    %4281 = vmatpush.msra.mxu0 0.0
    %4282 = vmatpush.msra.mxu0 0.0
    %4283 = vmatpush.msra.mxu0 0.0
    %4284 = vmatpush.msra.mxu0 0.0
    %4285 = vmatpush.msra.mxu0 0.0
    %4286 = vmatpush.msra.mxu0 0.0
    %4287 = vmatpush.msra.mxu0 0.0
    %4288 = vmatpush.msra.mxu0 0.0
    %4289 = vmatpush.msra.mxu0 0.0
    %4290 = vmatpush.msra.mxu0 0.0
    %4291 = vmatpush.msra.mxu0 0.0
    %4292 = vmatpush.msra.mxu0 %v4249
    %4293 = vmatmul.f32.gmra.mxu0 %v4243
    %v4294 = vpop.f32.mrf.mxu0
    %v4295 = vadd.f32 0.0, %v4294
    %4296 = vdwg.mxu0
    %4297 = vmatpush.msra.mxu0 0.0
    %4298 = vmatpush.msra.mxu0 0.0
    %4299 = vmatpush.msra.mxu0 0.0
    %4300 = vmatpush.msra.mxu0 0.0
    %4301 = vmatpush.msra.mxu0 0.0
    %4302 = vmatpush.msra.mxu0 0.0
    %4303 = vmatpush.msra.mxu0 0.0
    %4304 = vmatpush.msra.mxu0 0.0
    %4305 = vmatpush.msra.mxu0 0.0
    %4306 = vmatpush.msra.mxu0 0.0
    %4307 = vmatpush.msra.mxu0 0.0
    %4308 = vmatpush.msra.mxu0 0.0
    %4309 = vmatpush.msra.mxu0 0.0
    %4310 = vmatpush.msra.mxu0 0.0
    %4311 = vmatpush.msra.mxu0 0.0
    %4312 = vmatpush.msra.mxu0 %v4252
    %4313 = vmatmul.f32.gmra.mxu0 %v4243
    %v4314 = vpop.f32.mrf.mxu0
    %v4315 = vadd.f32 0.0, %v4314
    %4316 = vdwg.mxu0
    %4317 = vmatpush.msra.mxu0 0.0
    %4318 = vmatpush.msra.mxu0 0.0
    %4319 = vmatpush.msra.mxu0 0.0
    %4320 = vmatpush.msra.mxu0 0.0
    %4321 = vmatpush.msra.mxu0 0.0
    %4322 = vmatpush.msra.mxu0 0.0
    %4323 = vmatpush.msra.mxu0 0.0
    %4324 = vmatpush.msra.mxu0 0.0
    %4325 = vmatpush.msra.mxu0 0.0
    %4326 = vmatpush.msra.mxu0 0.0
    %4327 = vmatpush.msra.mxu0 0.0
    %4328 = vmatpush.msra.mxu0 0.0
    %4329 = vmatpush.msra.mxu0 0.0
    %4330 = vmatpush.msra.mxu0 0.0
    %4331 = vmatpush.msra.mxu0 0.0
    %4332 = vmatpush.msra.mxu0 %v4255
    %4333 = vmatmul.f32.gmra.mxu0 %v4243
    %v4334 = vpop.f32.mrf.mxu0
    %v4335 = vadd.f32 0.0, %v4334
    %4336 = vdwg.mxu0
    %v4337 = vadd.f32 %v4197, %v4275
    %v4338 = vadd.f32 %v4198, %v4295
    %v4339 = vadd.f32 %v4199, %v4315
    %v4340 = vadd.f32 %v4200, %v4335
    %4341 = vst [vmem:[#allocation1] ss:$2 sm:$0xff] %v162
    %s4342 = scalar_lea.vmem [#allocation1], 16
    %4343 = vst [vmem:[%s4342] ss:$2 sm:$0xff] %v163
    %v4344 = vld.sshfl [vmem:[#allocation1] sm:$0xff pattern:$0x75316420]
    %v4345 = vld.sshfl [vmem:[#allocation1 + $0x8] sm:$0xff pattern:$0x75316420]
    %v4346 = vld.sshfl [vmem:[#allocation1 + $0x10] sm:$0xff pattern:$0x75316420]
    %v4347 = vld.sshfl [vmem:[#allocation1 + $0x18] sm:$0xff pattern:$0x75316420]
    %4352 = vrot.lane.b32.xlu0 %v4344, 113
    %v4353 = vpop.permute.xlu0 %4352
    %4354 = vrot.lane.b32.xlu0 %v4345, 113
    %v4355 = vpop.permute.xlu0 %4354
    %4356 = vrot.lane.b32.xlu0 %v4346, 113
    %v4357 = vpop.permute.xlu0 %4356
    %4358 = vrot.lane.b32.xlu0 %v4347, 113
    %v4359 = vpop.permute.xlu0 %4358
    %vm4360 = vcmp.lt.s32.totalorder %v186, 113
    %v4361 = vsel %vm4360, %v4357, %v4359
    %v4362 = vsel %vm4360, %v4355, %v4357
    %v4363 = vsel %vm4360, %v4353, %v4355
    %v4364 = vsel %vm4360, %v4359, %v4353
    %s4365 = scalar_lea.vmem %s7, 102
    %v4366 = vld [vmem:[%s4365] ss:$8 sm:$0xf]
    %v4368 = vperm.slane %v4366, 0
    %v4369 = vperm.slane %v4366, 1
    %v4370 = vperm.slane %v4366, 2
    %v4371 = vperm.slane %v4366, 3
    %v4376 = vmul.f32 %v4363, %v4368
    %v4377 = vmul.f32 %v4362, %v4369
    %v4378 = vmul.f32 %v4361, %v4370
    %v4379 = vmul.f32 %v4364, %v4371
    %s4380 = scalar_lea.vmem %s3, 240
    %v4381 = vld [vmem:[%s4380] sm:$0xff]
    %v4383 = vsel %vm248, %v4381, 0
    %v4386 = vsel %vm252, %v4376, 0
    %v4389 = vsel %vm252, %v4377, 0
    %v4392 = vsel %vm252, %v4378, 0
    %v4395 = vsel %vm252, %v4379, 0
    %4397 = vmatpush.msra.mxu0 0.0
    %4398 = vmatpush.msra.mxu0 0.0
    %4399 = vmatpush.msra.mxu0 0.0
    %4400 = vmatpush.msra.mxu0 0.0
    %4401 = vmatpush.msra.mxu0 0.0
    %4402 = vmatpush.msra.mxu0 0.0
    %4403 = vmatpush.msra.mxu0 0.0
    %4404 = vmatpush.msra.mxu0 0.0
    %4405 = vmatpush.msra.mxu0 0.0
    %4406 = vmatpush.msra.mxu0 0.0
    %4407 = vmatpush.msra.mxu0 0.0
    %4408 = vmatpush.msra.mxu0 0.0
    %4409 = vmatpush.msra.mxu0 0.0
    %4410 = vmatpush.msra.mxu0 0.0
    %4411 = vmatpush.msra.mxu0 0.0
    %4412 = vmatpush.msra.mxu0 %v4386
    %4413 = vmatmul.f32.gmra.mxu0 %v4383
    %v4414 = vpop.f32.mrf.mxu0
    %v4415 = vadd.f32 0.0, %v4414
    %4416 = vdwg.mxu0
    %4417 = vmatpush.msra.mxu0 0.0
    %4418 = vmatpush.msra.mxu0 0.0
    %4419 = vmatpush.msra.mxu0 0.0
    %4420 = vmatpush.msra.mxu0 0.0
    %4421 = vmatpush.msra.mxu0 0.0
    %4422 = vmatpush.msra.mxu0 0.0
    %4423 = vmatpush.msra.mxu0 0.0
    %4424 = vmatpush.msra.mxu0 0.0
    %4425 = vmatpush.msra.mxu0 0.0
    %4426 = vmatpush.msra.mxu0 0.0
    %4427 = vmatpush.msra.mxu0 0.0
    %4428 = vmatpush.msra.mxu0 0.0
    %4429 = vmatpush.msra.mxu0 0.0
    %4430 = vmatpush.msra.mxu0 0.0
    %4431 = vmatpush.msra.mxu0 0.0
    %4432 = vmatpush.msra.mxu0 %v4389
    %4433 = vmatmul.f32.gmra.mxu0 %v4383
    %v4434 = vpop.f32.mrf.mxu0
    %v4435 = vadd.f32 0.0, %v4434
    %4436 = vdwg.mxu0
    %4437 = vmatpush.msra.mxu0 0.0
    %4438 = vmatpush.msra.mxu0 0.0
    %4439 = vmatpush.msra.mxu0 0.0
    %4440 = vmatpush.msra.mxu0 0.0
    %4441 = vmatpush.msra.mxu0 0.0
    %4442 = vmatpush.msra.mxu0 0.0
    %4443 = vmatpush.msra.mxu0 0.0
    %4444 = vmatpush.msra.mxu0 0.0
    %4445 = vmatpush.msra.mxu0 0.0
    %4446 = vmatpush.msra.mxu0 0.0
    %4447 = vmatpush.msra.mxu0 0.0
    %4448 = vmatpush.msra.mxu0 0.0
    %4449 = vmatpush.msra.mxu0 0.0
    %4450 = vmatpush.msra.mxu0 0.0
    %4451 = vmatpush.msra.mxu0 0.0
    %4452 = vmatpush.msra.mxu0 %v4392
    %4453 = vmatmul.f32.gmra.mxu0 %v4383
    %v4454 = vpop.f32.mrf.mxu0
    %v4455 = vadd.f32 0.0, %v4454
    %4456 = vdwg.mxu0
    %4457 = vmatpush.msra.mxu0 0.0
    %4458 = vmatpush.msra.mxu0 0.0
    %4459 = vmatpush.msra.mxu0 0.0
    %4460 = vmatpush.msra.mxu0 0.0
    %4461 = vmatpush.msra.mxu0 0.0
    %4462 = vmatpush.msra.mxu0 0.0
    %4463 = vmatpush.msra.mxu0 0.0
    %4464 = vmatpush.msra.mxu0 0.0
    %4465 = vmatpush.msra.mxu0 0.0
    %4466 = vmatpush.msra.mxu0 0.0
    %4467 = vmatpush.msra.mxu0 0.0
    %4468 = vmatpush.msra.mxu0 0.0
    %4469 = vmatpush.msra.mxu0 0.0
    %4470 = vmatpush.msra.mxu0 0.0
    %4471 = vmatpush.msra.mxu0 0.0
    %4472 = vmatpush.msra.mxu0 %v4395
    %4473 = vmatmul.f32.gmra.mxu0 %v4383
    %v4474 = vpop.f32.mrf.mxu0
    %v4475 = vadd.f32 0.0, %v4474
    %4476 = vdwg.mxu0
    %v4477 = vadd.f32 %v4337, %v4415
    %v4478 = vadd.f32 %v4338, %v4435
    %v4479 = vadd.f32 %v4339, %v4455
    %v4480 = vadd.f32 %v4340, %v4475
    %4481 = vst [vmem:[#allocation1] ss:$2 sm:$0xff] %v162
    %s4482 = scalar_lea.vmem [#allocation1], 16
    %4483 = vst [vmem:[%s4482] ss:$2 sm:$0xff] %v163
    %v4484 = vld.sshfl [vmem:[#allocation1] sm:$0xff pattern:$0x75316420]
    %v4485 = vld.sshfl [vmem:[#allocation1 + $0x8] sm:$0xff pattern:$0x75316420]
    %v4486 = vld.sshfl [vmem:[#allocation1 + $0x10] sm:$0xff pattern:$0x75316420]
    %v4487 = vld.sshfl [vmem:[#allocation1 + $0x18] sm:$0xff pattern:$0x75316420]
    %4492 = vrot.lane.b32.xlu0 %v4484, 112
    %v4493 = vpop.permute.xlu0 %4492
    %4494 = vrot.lane.b32.xlu0 %v4485, 112
    %v4495 = vpop.permute.xlu0 %4494
    %4496 = vrot.lane.b32.xlu0 %v4486, 112
    %v4497 = vpop.permute.xlu0 %4496
    %4498 = vrot.lane.b32.xlu0 %v4487, 112
    %v4499 = vpop.permute.xlu0 %4498
    %vm4500 = vcmp.lt.s32.totalorder %v186, 112
    %v4501 = vsel %vm4500, %v4497, %v4499
    %v4502 = vsel %vm4500, %v4495, %v4497
    %v4503 = vsel %vm4500, %v4493, %v4495
    %v4504 = vsel %vm4500, %v4499, %v4493
    %s4505 = scalar_lea.vmem %s7, 103
    %v4506 = vld [vmem:[%s4505] ss:$8 sm:$0xf]
    %v4508 = vperm.slane %v4506, 0
    %v4509 = vperm.slane %v4506, 1
    %v4510 = vperm.slane %v4506, 2
    %v4511 = vperm.slane %v4506, 3
    %v4516 = vmul.f32 %v4503, %v4508
    %v4517 = vmul.f32 %v4502, %v4509
    %v4518 = vmul.f32 %v4501, %v4510
    %v4519 = vmul.f32 %v4504, %v4511
    %s4520 = scalar_lea.vmem %s3, 248
    %v4521 = vld [vmem:[%s4520] sm:$0xff]
    %v4523 = vsel %vm248, %v4521, 0
    %v4526 = vsel %vm252, %v4516, 0
    %v4529 = vsel %vm252, %v4517, 0
    %v4532 = vsel %vm252, %v4518, 0
    %v4535 = vsel %vm252, %v4519, 0
    %4537 = vmatpush.msra.mxu0 0.0
    %4538 = vmatpush.msra.mxu0 0.0
    %4539 = vmatpush.msra.mxu0 0.0
    %4540 = vmatpush.msra.mxu0 0.0
    %4541 = vmatpush.msra.mxu0 0.0
    %4542 = vmatpush.msra.mxu0 0.0
    %4543 = vmatpush.msra.mxu0 0.0
    %4544 = vmatpush.msra.mxu0 0.0
    %4545 = vmatpush.msra.mxu0 0.0
    %4546 = vmatpush.msra.mxu0 0.0
    %4547 = vmatpush.msra.mxu0 0.0
    %4548 = vmatpush.msra.mxu0 0.0
    %4549 = vmatpush.msra.mxu0 0.0
    %4550 = vmatpush.msra.mxu0 0.0
    %4551 = vmatpush.msra.mxu0 0.0
    %4552 = vmatpush.msra.mxu0 %v4526
    %4553 = vmatmul.f32.gmra.mxu0 %v4523
    %v4554 = vpop.f32.mrf.mxu0
    %v4555 = vadd.f32 0.0, %v4554
    %4556 = vdwg.mxu0
    %4557 = vmatpush.msra.mxu0 0.0
    %4558 = vmatpush.msra.mxu0 0.0
    %4559 = vmatpush.msra.mxu0 0.0
    %4560 = vmatpush.msra.mxu0 0.0
    %4561 = vmatpush.msra.mxu0 0.0
    %4562 = vmatpush.msra.mxu0 0.0
    %4563 = vmatpush.msra.mxu0 0.0
    %4564 = vmatpush.msra.mxu0 0.0
    %4565 = vmatpush.msra.mxu0 0.0
    %4566 = vmatpush.msra.mxu0 0.0
    %4567 = vmatpush.msra.mxu0 0.0
    %4568 = vmatpush.msra.mxu0 0.0
    %4569 = vmatpush.msra.mxu0 0.0
    %4570 = vmatpush.msra.mxu0 0.0
    %4571 = vmatpush.msra.mxu0 0.0
    %4572 = vmatpush.msra.mxu0 %v4529
    %4573 = vmatmul.f32.gmra.mxu0 %v4523
    %v4574 = vpop.f32.mrf.mxu0
    %v4575 = vadd.f32 0.0, %v4574
    %4576 = vdwg.mxu0
    %4577 = vmatpush.msra.mxu0 0.0
    %4578 = vmatpush.msra.mxu0 0.0
    %4579 = vmatpush.msra.mxu0 0.0
    %4580 = vmatpush.msra.mxu0 0.0
    %4581 = vmatpush.msra.mxu0 0.0
    %4582 = vmatpush.msra.mxu0 0.0
    %4583 = vmatpush.msra.mxu0 0.0
    %4584 = vmatpush.msra.mxu0 0.0
    %4585 = vmatpush.msra.mxu0 0.0
    %4586 = vmatpush.msra.mxu0 0.0
    %4587 = vmatpush.msra.mxu0 0.0
    %4588 = vmatpush.msra.mxu0 0.0
    %4589 = vmatpush.msra.mxu0 0.0
    %4590 = vmatpush.msra.mxu0 0.0
    %4591 = vmatpush.msra.mxu0 0.0
    %4592 = vmatpush.msra.mxu0 %v4532
    %4593 = vmatmul.f32.gmra.mxu0 %v4523
    %v4594 = vpop.f32.mrf.mxu0
    %v4595 = vadd.f32 0.0, %v4594
    %4596 = vdwg.mxu0
    %4597 = vmatpush.msra.mxu0 0.0
    %4598 = vmatpush.msra.mxu0 0.0
    %4599 = vmatpush.msra.mxu0 0.0
    %4600 = vmatpush.msra.mxu0 0.0
    %4601 = vmatpush.msra.mxu0 0.0
    %4602 = vmatpush.msra.mxu0 0.0
    %4603 = vmatpush.msra.mxu0 0.0
    %4604 = vmatpush.msra.mxu0 0.0
    %4605 = vmatpush.msra.mxu0 0.0
    %4606 = vmatpush.msra.mxu0 0.0
    %4607 = vmatpush.msra.mxu0 0.0
    %4608 = vmatpush.msra.mxu0 0.0
    %4609 = vmatpush.msra.mxu0 0.0
    %4610 = vmatpush.msra.mxu0 0.0
    %4611 = vmatpush.msra.mxu0 0.0
    %4612 = vmatpush.msra.mxu0 %v4535
    %4613 = vmatmul.f32.gmra.mxu0 %v4523
    %v4614 = vpop.f32.mrf.mxu0
    %v4615 = vadd.f32 0.0, %v4614
    %4616 = vdwg.mxu0
    %v4617 = vadd.f32 %v4477, %v4555
    %v4618 = vadd.f32 %v4478, %v4575
    %v4619 = vadd.f32 %v4479, %v4595
    %v4620 = vadd.f32 %v4480, %v4615
    %4621 = vst [vmem:[#allocation1] ss:$2 sm:$0xff] %v162
    %s4622 = scalar_lea.vmem [#allocation1], 16
    %4623 = vst [vmem:[%s4622] ss:$2 sm:$0xff] %v163
    %v4624 = vld.sshfl [vmem:[#allocation1] sm:$0xff pattern:$0x75316420]
    %v4625 = vld.sshfl [vmem:[#allocation1 + $0x8] sm:$0xff pattern:$0x75316420]
    %v4626 = vld.sshfl [vmem:[#allocation1 + $0x10] sm:$0xff pattern:$0x75316420]
    %v4627 = vld.sshfl [vmem:[#allocation1 + $0x18] sm:$0xff pattern:$0x75316420]
    %4632 = vrot.lane.b32.xlu0 %v4624, 111
    %v4633 = vpop.permute.xlu0 %4632
    %4634 = vrot.lane.b32.xlu0 %v4625, 111
    %v4635 = vpop.permute.xlu0 %4634
    %4636 = vrot.lane.b32.xlu0 %v4626, 111
    %v4637 = vpop.permute.xlu0 %4636
    %4638 = vrot.lane.b32.xlu0 %v4627, 111
    %v4639 = vpop.permute.xlu0 %4638
    %vm4640 = vcmp.lt.s32.totalorder %v186, 111
    %v4641 = vsel %vm4640, %v4637, %v4639
    %v4642 = vsel %vm4640, %v4635, %v4637
    %v4643 = vsel %vm4640, %v4633, %v4635
    %v4644 = vsel %vm4640, %v4639, %v4633
    %s4645 = scalar_lea.vmem %s7, 128
    %v4646 = vld [vmem:[%s4645] ss:$8 sm:$0xf]
    %v4648 = vperm.slane %v4646, 0
    %v4649 = vperm.slane %v4646, 1
    %v4650 = vperm.slane %v4646, 2
    %v4651 = vperm.slane %v4646, 3
    %v4656 = vmul.f32 %v4643, %v4648
    %v4657 = vmul.f32 %v4642, %v4649
    %v4658 = vmul.f32 %v4641, %v4650
    %v4659 = vmul.f32 %v4644, %v4651
    %s4660 = scalar_lea.vmem %s3, 256
    %v4661 = vld [vmem:[%s4660] sm:$0xff]
    %v4663 = vsel %vm248, %v4661, 0
    %v4666 = vsel %vm252, %v4656, 0
    %v4669 = vsel %vm252, %v4657, 0
    %v4672 = vsel %vm252, %v4658, 0
    %v4675 = vsel %vm252, %v4659, 0
    %4677 = vmatpush.msra.mxu0 0.0
    %4678 = vmatpush.msra.mxu0 0.0
    %4679 = vmatpush.msra.mxu0 0.0
    %4680 = vmatpush.msra.mxu0 0.0
    %4681 = vmatpush.msra.mxu0 0.0
    %4682 = vmatpush.msra.mxu0 0.0
    %4683 = vmatpush.msra.mxu0 0.0
    %4684 = vmatpush.msra.mxu0 0.0
    %4685 = vmatpush.msra.mxu0 0.0
    %4686 = vmatpush.msra.mxu0 0.0
    %4687 = vmatpush.msra.mxu0 0.0
    %4688 = vmatpush.msra.mxu0 0.0
    %4689 = vmatpush.msra.mxu0 0.0
    %4690 = vmatpush.msra.mxu0 0.0
    %4691 = vmatpush.msra.mxu0 0.0
    %4692 = vmatpush.msra.mxu0 %v4666
    %4693 = vmatmul.f32.gmra.mxu0 %v4663
    %v4694 = vpop.f32.mrf.mxu0
    %v4695 = vadd.f32 0.0, %v4694
    %4696 = vdwg.mxu0
    %4697 = vmatpush.msra.mxu0 0.0
    %4698 = vmatpush.msra.mxu0 0.0
    %4699 = vmatpush.msra.mxu0 0.0
    %4700 = vmatpush.msra.mxu0 0.0
    %4701 = vmatpush.msra.mxu0 0.0
    %4702 = vmatpush.msra.mxu0 0.0
    %4703 = vmatpush.msra.mxu0 0.0
    %4704 = vmatpush.msra.mxu0 0.0
    %4705 = vmatpush.msra.mxu0 0.0
    %4706 = vmatpush.msra.mxu0 0.0
    %4707 = vmatpush.msra.mxu0 0.0
    %4708 = vmatpush.msra.mxu0 0.0
    %4709 = vmatpush.msra.mxu0 0.0
    %4710 = vmatpush.msra.mxu0 0.0
    %4711 = vmatpush.msra.mxu0 0.0
    %4712 = vmatpush.msra.mxu0 %v4669
    %4713 = vmatmul.f32.gmra.mxu0 %v4663
    %v4714 = vpop.f32.mrf.mxu0
    %v4715 = vadd.f32 0.0, %v4714
    %4716 = vdwg.mxu0
    %4717 = vmatpush.msra.mxu0 0.0
    %4718 = vmatpush.msra.mxu0 0.0
    %4719 = vmatpush.msra.mxu0 0.0
    %4720 = vmatpush.msra.mxu0 0.0
    %4721 = vmatpush.msra.mxu0 0.0
    %4722 = vmatpush.msra.mxu0 0.0
    %4723 = vmatpush.msra.mxu0 0.0
    %4724 = vmatpush.msra.mxu0 0.0
    %4725 = vmatpush.msra.mxu0 0.0
    %4726 = vmatpush.msra.mxu0 0.0
    %4727 = vmatpush.msra.mxu0 0.0
    %4728 = vmatpush.msra.mxu0 0.0
    %4729 = vmatpush.msra.mxu0 0.0
    %4730 = vmatpush.msra.mxu0 0.0
    %4731 = vmatpush.msra.mxu0 0.0
    %4732 = vmatpush.msra.mxu0 %v4672
    %4733 = vmatmul.f32.gmra.mxu0 %v4663
    %v4734 = vpop.f32.mrf.mxu0
    %v4735 = vadd.f32 0.0, %v4734
    %4736 = vdwg.mxu0
    %4737 = vmatpush.msra.mxu0 0.0
    %4738 = vmatpush.msra.mxu0 0.0
    %4739 = vmatpush.msra.mxu0 0.0
    %4740 = vmatpush.msra.mxu0 0.0
    %4741 = vmatpush.msra.mxu0 0.0
    %4742 = vmatpush.msra.mxu0 0.0
    %4743 = vmatpush.msra.mxu0 0.0
    %4744 = vmatpush.msra.mxu0 0.0
    %4745 = vmatpush.msra.mxu0 0.0
    %4746 = vmatpush.msra.mxu0 0.0
    %4747 = vmatpush.msra.mxu0 0.0
    %4748 = vmatpush.msra.mxu0 0.0
    %4749 = vmatpush.msra.mxu0 0.0
    %4750 = vmatpush.msra.mxu0 0.0
    %4751 = vmatpush.msra.mxu0 0.0
    %4752 = vmatpush.msra.mxu0 %v4675
    %4753 = vmatmul.f32.gmra.mxu0 %v4663
    %v4754 = vpop.f32.mrf.mxu0
    %v4755 = vadd.f32 0.0, %v4754
    %4756 = vdwg.mxu0
    %v4757 = vadd.f32 %v4617, %v4695
    %v4758 = vadd.f32 %v4618, %v4715
    %v4759 = vadd.f32 %v4619, %v4735
    %v4760 = vadd.f32 %v4620, %v4755
    %4761 = vst [vmem:[#allocation1] ss:$2 sm:$0xff] %v162
    %s4762 = scalar_lea.vmem [#allocation1], 16
    %4763 = vst [vmem:[%s4762] ss:$2 sm:$0xff] %v163
    %v4764 = vld.sshfl [vmem:[#allocation1] sm:$0xff pattern:$0x75316420]
    %v4765 = vld.sshfl [vmem:[#allocation1 + $0x8] sm:$0xff pattern:$0x75316420]
    %v4766 = vld.sshfl [vmem:[#allocation1 + $0x10] sm:$0xff pattern:$0x75316420]
    %v4767 = vld.sshfl [vmem:[#allocation1 + $0x18] sm:$0xff pattern:$0x75316420]
    %4772 = vrot.lane.b32.xlu0 %v4764, 110
    %v4773 = vpop.permute.xlu0 %4772
    %4774 = vrot.lane.b32.xlu0 %v4765, 110
    %v4775 = vpop.permute.xlu0 %4774
    %4776 = vrot.lane.b32.xlu0 %v4766, 110
    %v4777 = vpop.permute.xlu0 %4776
    %4778 = vrot.lane.b32.xlu0 %v4767, 110
    %v4779 = vpop.permute.xlu0 %4778
    %vm4780 = vcmp.lt.s32.totalorder %v186, 110
    %v4781 = vsel %vm4780, %v4777, %v4779
    %v4782 = vsel %vm4780, %v4775, %v4777
    %v4783 = vsel %vm4780, %v4773, %v4775
    %v4784 = vsel %vm4780, %v4779, %v4773
    %s4785 = scalar_lea.vmem %s7, 129
    %v4786 = vld [vmem:[%s4785] ss:$8 sm:$0xf]
    %v4788 = vperm.slane %v4786, 0
    %v4789 = vperm.slane %v4786, 1
    %v4790 = vperm.slane %v4786, 2
    %v4791 = vperm.slane %v4786, 3
    %v4796 = vmul.f32 %v4783, %v4788
    %v4797 = vmul.f32 %v4782, %v4789
    %v4798 = vmul.f32 %v4781, %v4790
    %v4799 = vmul.f32 %v4784, %v4791
    %s4800 = scalar_lea.vmem %s3, 264
    %v4801 = vld [vmem:[%s4800] sm:$0xff]
    %v4803 = vsel %vm248, %v4801, 0
    %v4806 = vsel %vm252, %v4796, 0
    %v4809 = vsel %vm252, %v4797, 0
    %v4812 = vsel %vm252, %v4798, 0
    %v4815 = vsel %vm252, %v4799, 0
    %4817 = vmatpush.msra.mxu0 0.0
    %4818 = vmatpush.msra.mxu0 0.0
    %4819 = vmatpush.msra.mxu0 0.0
    %4820 = vmatpush.msra.mxu0 0.0
    %4821 = vmatpush.msra.mxu0 0.0
    %4822 = vmatpush.msra.mxu0 0.0
    %4823 = vmatpush.msra.mxu0 0.0
    %4824 = vmatpush.msra.mxu0 0.0
    %4825 = vmatpush.msra.mxu0 0.0
    %4826 = vmatpush.msra.mxu0 0.0
    %4827 = vmatpush.msra.mxu0 0.0
    %4828 = vmatpush.msra.mxu0 0.0
    %4829 = vmatpush.msra.mxu0 0.0
    %4830 = vmatpush.msra.mxu0 0.0
    %4831 = vmatpush.msra.mxu0 0.0
    %4832 = vmatpush.msra.mxu0 %v4806
    %4833 = vmatmul.f32.gmra.mxu0 %v4803
    %v4834 = vpop.f32.mrf.mxu0
    %v4835 = vadd.f32 0.0, %v4834
    %4836 = vdwg.mxu0
    %4837 = vmatpush.msra.mxu0 0.0
    %4838 = vmatpush.msra.mxu0 0.0
    %4839 = vmatpush.msra.mxu0 0.0
    %4840 = vmatpush.msra.mxu0 0.0
    %4841 = vmatpush.msra.mxu0 0.0
    %4842 = vmatpush.msra.mxu0 0.0
    %4843 = vmatpush.msra.mxu0 0.0
    %4844 = vmatpush.msra.mxu0 0.0
    %4845 = vmatpush.msra.mxu0 0.0
    %4846 = vmatpush.msra.mxu0 0.0
    %4847 = vmatpush.msra.mxu0 0.0
    %4848 = vmatpush.msra.mxu0 0.0
    %4849 = vmatpush.msra.mxu0 0.0
    %4850 = vmatpush.msra.mxu0 0.0
    %4851 = vmatpush.msra.mxu0 0.0
    %4852 = vmatpush.msra.mxu0 %v4809
    %4853 = vmatmul.f32.gmra.mxu0 %v4803
    %v4854 = vpop.f32.mrf.mxu0
    %v4855 = vadd.f32 0.0, %v4854
    %4856 = vdwg.mxu0
    %4857 = vmatpush.msra.mxu0 0.0
    %4858 = vmatpush.msra.mxu0 0.0
    %4859 = vmatpush.msra.mxu0 0.0
    %4860 = vmatpush.msra.mxu0 0.0
    %4861 = vmatpush.msra.mxu0 0.0
    %4862 = vmatpush.msra.mxu0 0.0
    %4863 = vmatpush.msra.mxu0 0.0
    %4864 = vmatpush.msra.mxu0 0.0
    %4865 = vmatpush.msra.mxu0 0.0
    %4866 = vmatpush.msra.mxu0 0.0
    %4867 = vmatpush.msra.mxu0 0.0
    %4868 = vmatpush.msra.mxu0 0.0
    %4869 = vmatpush.msra.mxu0 0.0
    %4870 = vmatpush.msra.mxu0 0.0
    %4871 = vmatpush.msra.mxu0 0.0
    %4872 = vmatpush.msra.mxu0 %v4812
    %4873 = vmatmul.f32.gmra.mxu0 %v4803
    %v4874 = vpop.f32.mrf.mxu0
    %v4875 = vadd.f32 0.0, %v4874
    %4876 = vdwg.mxu0
    %4877 = vmatpush.msra.mxu0 0.0
    %4878 = vmatpush.msra.mxu0 0.0
    %4879 = vmatpush.msra.mxu0 0.0
    %4880 = vmatpush.msra.mxu0 0.0
    %4881 = vmatpush.msra.mxu0 0.0
    %4882 = vmatpush.msra.mxu0 0.0
    %4883 = vmatpush.msra.mxu0 0.0
    %4884 = vmatpush.msra.mxu0 0.0
    %4885 = vmatpush.msra.mxu0 0.0
    %4886 = vmatpush.msra.mxu0 0.0
    %4887 = vmatpush.msra.mxu0 0.0
    %4888 = vmatpush.msra.mxu0 0.0
    %4889 = vmatpush.msra.mxu0 0.0
    %4890 = vmatpush.msra.mxu0 0.0
    %4891 = vmatpush.msra.mxu0 0.0
    %4892 = vmatpush.msra.mxu0 %v4815
    %4893 = vmatmul.f32.gmra.mxu0 %v4803
    %v4894 = vpop.f32.mrf.mxu0
    %v4895 = vadd.f32 0.0, %v4894
    %4896 = vdwg.mxu0
    %v4897 = vadd.f32 %v4757, %v4835
    %v4898 = vadd.f32 %v4758, %v4855
    %v4899 = vadd.f32 %v4759, %v4875
    %v4900 = vadd.f32 %v4760, %v4895
    %4901 = vst [vmem:[#allocation1] ss:$2 sm:$0xff] %v162
    %s4902 = scalar_lea.vmem [#allocation1], 16
    %4903 = vst [vmem:[%s4902] ss:$2 sm:$0xff] %v163
    %v4904 = vld.sshfl [vmem:[#allocation1] sm:$0xff pattern:$0x75316420]
    %v4905 = vld.sshfl [vmem:[#allocation1 + $0x8] sm:$0xff pattern:$0x75316420]
    %v4906 = vld.sshfl [vmem:[#allocation1 + $0x10] sm:$0xff pattern:$0x75316420]
    %v4907 = vld.sshfl [vmem:[#allocation1 + $0x18] sm:$0xff pattern:$0x75316420]
    %4912 = vrot.lane.b32.xlu0 %v4904, 109
    %v4913 = vpop.permute.xlu0 %4912
    %4914 = vrot.lane.b32.xlu0 %v4905, 109
    %v4915 = vpop.permute.xlu0 %4914
    %4916 = vrot.lane.b32.xlu0 %v4906, 109
    %v4917 = vpop.permute.xlu0 %4916
    %4918 = vrot.lane.b32.xlu0 %v4907, 109
    %v4919 = vpop.permute.xlu0 %4918
    %vm4920 = vcmp.lt.s32.totalorder %v186, 109
    %v4921 = vsel %vm4920, %v4917, %v4919
    %v4922 = vsel %vm4920, %v4915, %v4917
    %v4923 = vsel %vm4920, %v4913, %v4915
    %v4924 = vsel %vm4920, %v4919, %v4913
    %s4925 = scalar_lea.vmem %s7, 130
    %v4926 = vld [vmem:[%s4925] ss:$8 sm:$0xf]
    %v4928 = vperm.slane %v4926, 0
    %v4929 = vperm.slane %v4926, 1
    %v4930 = vperm.slane %v4926, 2
    %v4931 = vperm.slane %v4926, 3
    %v4936 = vmul.f32 %v4923, %v4928
    %v4937 = vmul.f32 %v4922, %v4929
    %v4938 = vmul.f32 %v4921, %v4930
    %v4939 = vmul.f32 %v4924, %v4931
    %s4940 = scalar_lea.vmem %s3, 272
    %v4941 = vld [vmem:[%s4940] sm:$0xff]
    %v4943 = vsel %vm248, %v4941, 0
    %v4946 = vsel %vm252, %v4936, 0
    %v4949 = vsel %vm252, %v4937, 0
    %v4952 = vsel %vm252, %v4938, 0
    %v4955 = vsel %vm252, %v4939, 0
    %4957 = vmatpush.msra.mxu0 0.0
    %4958 = vmatpush.msra.mxu0 0.0
    %4959 = vmatpush.msra.mxu0 0.0
    %4960 = vmatpush.msra.mxu0 0.0
    %4961 = vmatpush.msra.mxu0 0.0
    %4962 = vmatpush.msra.mxu0 0.0
    %4963 = vmatpush.msra.mxu0 0.0
    %4964 = vmatpush.msra.mxu0 0.0
    %4965 = vmatpush.msra.mxu0 0.0
    %4966 = vmatpush.msra.mxu0 0.0
    %4967 = vmatpush.msra.mxu0 0.0
    %4968 = vmatpush.msra.mxu0 0.0
    %4969 = vmatpush.msra.mxu0 0.0
    %4970 = vmatpush.msra.mxu0 0.0
    %4971 = vmatpush.msra.mxu0 0.0
    %4972 = vmatpush.msra.mxu0 %v4946
    %4973 = vmatmul.f32.gmra.mxu0 %v4943
    %v4974 = vpop.f32.mrf.mxu0
    %v4975 = vadd.f32 0.0, %v4974
    %4976 = vdwg.mxu0
    %4977 = vmatpush.msra.mxu0 0.0
    %4978 = vmatpush.msra.mxu0 0.0
    %4979 = vmatpush.msra.mxu0 0.0
    %4980 = vmatpush.msra.mxu0 0.0
    %4981 = vmatpush.msra.mxu0 0.0
    %4982 = vmatpush.msra.mxu0 0.0
    %4983 = vmatpush.msra.mxu0 0.0
    %4984 = vmatpush.msra.mxu0 0.0
    %4985 = vmatpush.msra.mxu0 0.0
    %4986 = vmatpush.msra.mxu0 0.0
    %4987 = vmatpush.msra.mxu0 0.0
    %4988 = vmatpush.msra.mxu0 0.0
    %4989 = vmatpush.msra.mxu0 0.0
    %4990 = vmatpush.msra.mxu0 0.0
    %4991 = vmatpush.msra.mxu0 0.0
    %4992 = vmatpush.msra.mxu0 %v4949
    %4993 = vmatmul.f32.gmra.mxu0 %v4943
    %v4994 = vpop.f32.mrf.mxu0
    %v4995 = vadd.f32 0.0, %v4994
    %4996 = vdwg.mxu0
    %4997 = vmatpush.msra.mxu0 0.0
    %4998 = vmatpush.msra.mxu0 0.0
    %4999 = vmatpush.msra.mxu0 0.0
    %5000 = vmatpush.msra.mxu0 0.0
    %5001 = vmatpush.msra.mxu0 0.0
    %5002 = vmatpush.msra.mxu0 0.0
    %5003 = vmatpush.msra.mxu0 0.0
    %5004 = vmatpush.msra.mxu0 0.0
    %5005 = vmatpush.msra.mxu0 0.0
    %5006 = vmatpush.msra.mxu0 0.0
    %5007 = vmatpush.msra.mxu0 0.0
    %5008 = vmatpush.msra.mxu0 0.0
    %5009 = vmatpush.msra.mxu0 0.0
    %5010 = vmatpush.msra.mxu0 0.0
    %5011 = vmatpush.msra.mxu0 0.0
    %5012 = vmatpush.msra.mxu0 %v4952
    %5013 = vmatmul.f32.gmra.mxu0 %v4943
    %v5014 = vpop.f32.mrf.mxu0
    %v5015 = vadd.f32 0.0, %v5014
    %5016 = vdwg.mxu0
    %5017 = vmatpush.msra.mxu0 0.0
    %5018 = vmatpush.msra.mxu0 0.0
    %5019 = vmatpush.msra.mxu0 0.0
    %5020 = vmatpush.msra.mxu0 0.0
    %5021 = vmatpush.msra.mxu0 0.0
    %5022 = vmatpush.msra.mxu0 0.0
    %5023 = vmatpush.msra.mxu0 0.0
    %5024 = vmatpush.msra.mxu0 0.0
    %5025 = vmatpush.msra.mxu0 0.0
    %5026 = vmatpush.msra.mxu0 0.0
    %5027 = vmatpush.msra.mxu0 0.0
    %5028 = vmatpush.msra.mxu0 0.0
    %5029 = vmatpush.msra.mxu0 0.0
    %5030 = vmatpush.msra.mxu0 0.0
    %5031 = vmatpush.msra.mxu0 0.0
    %5032 = vmatpush.msra.mxu0 %v4955
    %5033 = vmatmul.f32.gmra.mxu0 %v4943
    %v5034 = vpop.f32.mrf.mxu0
    %v5035 = vadd.f32 0.0, %v5034
    %5036 = vdwg.mxu0
    %v5037 = vadd.f32 %v4897, %v4975
    %v5038 = vadd.f32 %v4898, %v4995
    %v5039 = vadd.f32 %v4899, %v5015
    %v5040 = vadd.f32 %v4900, %v5035
    %5041 = vst [vmem:[#allocation1] ss:$2 sm:$0xff] %v162
    %s5042 = scalar_lea.vmem [#allocation1], 16
    %5043 = vst [vmem:[%s5042] ss:$2 sm:$0xff] %v163
    %v5044 = vld.sshfl [vmem:[#allocation1] sm:$0xff pattern:$0x75316420]
    %v5045 = vld.sshfl [vmem:[#allocation1 + $0x8] sm:$0xff pattern:$0x75316420]
    %v5046 = vld.sshfl [vmem:[#allocation1 + $0x10] sm:$0xff pattern:$0x75316420]
    %v5047 = vld.sshfl [vmem:[#allocation1 + $0x18] sm:$0xff pattern:$0x75316420]
    %5052 = vrot.lane.b32.xlu0 %v5044, 99
    %v5053 = vpop.permute.xlu0 %5052
    %5054 = vrot.lane.b32.xlu0 %v5045, 99
    %v5055 = vpop.permute.xlu0 %5054
    %5056 = vrot.lane.b32.xlu0 %v5046, 99
    %v5057 = vpop.permute.xlu0 %5056
    %5058 = vrot.lane.b32.xlu0 %v5047, 99
    %v5059 = vpop.permute.xlu0 %5058
    %vm5060 = vcmp.lt.s32.totalorder %v186, 99
    %v5061 = vsel %vm5060, %v5057, %v5059
    %v5062 = vsel %vm5060, %v5055, %v5057
    %v5063 = vsel %vm5060, %v5053, %v5055
    %v5064 = vsel %vm5060, %v5059, %v5053
    %s5065 = scalar_lea.vmem %s7, 131
    %v5066 = vld [vmem:[%s5065] ss:$8 sm:$0xf]
    %v5068 = vperm.slane %v5066, 0
    %v5069 = vperm.slane %v5066, 1
    %v5070 = vperm.slane %v5066, 2
    %v5071 = vperm.slane %v5066, 3
    %v5076 = vmul.f32 %v5063, %v5068
    %v5077 = vmul.f32 %v5062, %v5069
    %v5078 = vmul.f32 %v5061, %v5070
    %v5079 = vmul.f32 %v5064, %v5071
    %s5080 = scalar_lea.vmem %s3, 280
    %v5081 = vld [vmem:[%s5080] sm:$0xff]
    %v5083 = vsel %vm248, %v5081, 0
    %v5086 = vsel %vm252, %v5076, 0
    %v5089 = vsel %vm252, %v5077, 0
    %v5092 = vsel %vm252, %v5078, 0
    %v5095 = vsel %vm252, %v5079, 0
    %5097 = vmatpush.msra.mxu0 0.0
    %5098 = vmatpush.msra.mxu0 0.0
    %5099 = vmatpush.msra.mxu0 0.0
    %5100 = vmatpush.msra.mxu0 0.0
    %5101 = vmatpush.msra.mxu0 0.0
    %5102 = vmatpush.msra.mxu0 0.0
    %5103 = vmatpush.msra.mxu0 0.0
    %5104 = vmatpush.msra.mxu0 0.0
    %5105 = vmatpush.msra.mxu0 0.0
    %5106 = vmatpush.msra.mxu0 0.0
    %5107 = vmatpush.msra.mxu0 0.0
    %5108 = vmatpush.msra.mxu0 0.0
    %5109 = vmatpush.msra.mxu0 0.0
    %5110 = vmatpush.msra.mxu0 0.0
    %5111 = vmatpush.msra.mxu0 0.0
    %5112 = vmatpush.msra.mxu0 %v5086
    %5113 = vmatmul.f32.gmra.mxu0 %v5083
    %v5114 = vpop.f32.mrf.mxu0
    %v5115 = vadd.f32 0.0, %v5114
    %5116 = vdwg.mxu0
    %5117 = vmatpush.msra.mxu0 0.0
    %5118 = vmatpush.msra.mxu0 0.0
    %5119 = vmatpush.msra.mxu0 0.0
    %5120 = vmatpush.msra.mxu0 0.0
    %5121 = vmatpush.msra.mxu0 0.0
    %5122 = vmatpush.msra.mxu0 0.0
    %5123 = vmatpush.msra.mxu0 0.0
    %5124 = vmatpush.msra.mxu0 0.0
    %5125 = vmatpush.msra.mxu0 0.0
    %5126 = vmatpush.msra.mxu0 0.0
    %5127 = vmatpush.msra.mxu0 0.0
    %5128 = vmatpush.msra.mxu0 0.0
    %5129 = vmatpush.msra.mxu0 0.0
    %5130 = vmatpush.msra.mxu0 0.0
    %5131 = vmatpush.msra.mxu0 0.0
    %5132 = vmatpush.msra.mxu0 %v5089
    %5133 = vmatmul.f32.gmra.mxu0 %v5083
    %v5134 = vpop.f32.mrf.mxu0
    %v5135 = vadd.f32 0.0, %v5134
    %5136 = vdwg.mxu0
    %5137 = vmatpush.msra.mxu0 0.0
    %5138 = vmatpush.msra.mxu0 0.0
    %5139 = vmatpush.msra.mxu0 0.0
    %5140 = vmatpush.msra.mxu0 0.0
    %5141 = vmatpush.msra.mxu0 0.0
    %5142 = vmatpush.msra.mxu0 0.0
    %5143 = vmatpush.msra.mxu0 0.0
    %5144 = vmatpush.msra.mxu0 0.0
    %5145 = vmatpush.msra.mxu0 0.0
    %5146 = vmatpush.msra.mxu0 0.0
    %5147 = vmatpush.msra.mxu0 0.0
    %5148 = vmatpush.msra.mxu0 0.0
    %5149 = vmatpush.msra.mxu0 0.0
    %5150 = vmatpush.msra.mxu0 0.0
    %5151 = vmatpush.msra.mxu0 0.0
    %5152 = vmatpush.msra.mxu0 %v5092
    %5153 = vmatmul.f32.gmra.mxu0 %v5083
    %v5154 = vpop.f32.mrf.mxu0
    %v5155 = vadd.f32 0.0, %v5154
    %5156 = vdwg.mxu0
    %5157 = vmatpush.msra.mxu0 0.0
    %5158 = vmatpush.msra.mxu0 0.0
    %5159 = vmatpush.msra.mxu0 0.0
    %5160 = vmatpush.msra.mxu0 0.0
    %5161 = vmatpush.msra.mxu0 0.0
    %5162 = vmatpush.msra.mxu0 0.0
    %5163 = vmatpush.msra.mxu0 0.0
    %5164 = vmatpush.msra.mxu0 0.0
    %5165 = vmatpush.msra.mxu0 0.0
    %5166 = vmatpush.msra.mxu0 0.0
    %5167 = vmatpush.msra.mxu0 0.0
    %5168 = vmatpush.msra.mxu0 0.0
    %5169 = vmatpush.msra.mxu0 0.0
    %5170 = vmatpush.msra.mxu0 0.0
    %5171 = vmatpush.msra.mxu0 0.0
    %5172 = vmatpush.msra.mxu0 %v5095
    %5173 = vmatmul.f32.gmra.mxu0 %v5083
    %v5174 = vpop.f32.mrf.mxu0
    %v5175 = vadd.f32 0.0, %v5174
    %5176 = vdwg.mxu0
    %v5177 = vadd.f32 %v5037, %v5115
    %v5178 = vadd.f32 %v5038, %v5135
    %v5179 = vadd.f32 %v5039, %v5155
    %v5180 = vadd.f32 %v5040, %v5175
    %5181 = vst [vmem:[#allocation1] ss:$2 sm:$0xff] %v162
    %s5182 = scalar_lea.vmem [#allocation1], 16
    %5183 = vst [vmem:[%s5182] ss:$2 sm:$0xff] %v163
    %v5184 = vld.sshfl [vmem:[#allocation1] sm:$0xff pattern:$0x75316420]
    %v5185 = vld.sshfl [vmem:[#allocation1 + $0x8] sm:$0xff pattern:$0x75316420]
    %v5186 = vld.sshfl [vmem:[#allocation1 + $0x10] sm:$0xff pattern:$0x75316420]
    %v5187 = vld.sshfl [vmem:[#allocation1 + $0x18] sm:$0xff pattern:$0x75316420]
    %5192 = vrot.lane.b32.xlu0 %v5184, 98
    %v5193 = vpop.permute.xlu0 %5192
    %5194 = vrot.lane.b32.xlu0 %v5185, 98
    %v5195 = vpop.permute.xlu0 %5194
    %5196 = vrot.lane.b32.xlu0 %v5186, 98
    %v5197 = vpop.permute.xlu0 %5196
    %5198 = vrot.lane.b32.xlu0 %v5187, 98
    %v5199 = vpop.permute.xlu0 %5198
    %vm5200 = vcmp.lt.s32.totalorder %v186, 98
    %v5201 = vsel %vm5200, %v5197, %v5199
    %v5202 = vsel %vm5200, %v5195, %v5197
    %v5203 = vsel %vm5200, %v5193, %v5195
    %v5204 = vsel %vm5200, %v5199, %v5193
    %s5205 = scalar_lea.vmem %s7, 132
    %v5206 = vld [vmem:[%s5205] ss:$8 sm:$0xf]
    %v5208 = vperm.slane %v5206, 0
    %v5209 = vperm.slane %v5206, 1
    %v5210 = vperm.slane %v5206, 2
    %v5211 = vperm.slane %v5206, 3
    %v5216 = vmul.f32 %v5203, %v5208
    %v5217 = vmul.f32 %v5202, %v5209
    %v5218 = vmul.f32 %v5201, %v5210
    %v5219 = vmul.f32 %v5204, %v5211
    %s5220 = scalar_lea.vmem %s3, 288
    %v5221 = vld [vmem:[%s5220] sm:$0xff]
    %v5223 = vsel %vm248, %v5221, 0
    %v5226 = vsel %vm252, %v5216, 0
    %v5229 = vsel %vm252, %v5217, 0
    %v5232 = vsel %vm252, %v5218, 0
    %v5235 = vsel %vm252, %v5219, 0
    %5237 = vmatpush.msra.mxu0 0.0
    %5238 = vmatpush.msra.mxu0 0.0
    %5239 = vmatpush.msra.mxu0 0.0
    %5240 = vmatpush.msra.mxu0 0.0
    %5241 = vmatpush.msra.mxu0 0.0
    %5242 = vmatpush.msra.mxu0 0.0
    %5243 = vmatpush.msra.mxu0 0.0
    %5244 = vmatpush.msra.mxu0 0.0
    %5245 = vmatpush.msra.mxu0 0.0
    %5246 = vmatpush.msra.mxu0 0.0
    %5247 = vmatpush.msra.mxu0 0.0
    %5248 = vmatpush.msra.mxu0 0.0
    %5249 = vmatpush.msra.mxu0 0.0
    %5250 = vmatpush.msra.mxu0 0.0
    %5251 = vmatpush.msra.mxu0 0.0
    %5252 = vmatpush.msra.mxu0 %v5226
    %5253 = vmatmul.f32.gmra.mxu0 %v5223
    %v5254 = vpop.f32.mrf.mxu0
    %v5255 = vadd.f32 0.0, %v5254
    %5256 = vdwg.mxu0
    %5257 = vmatpush.msra.mxu0 0.0
    %5258 = vmatpush.msra.mxu0 0.0
    %5259 = vmatpush.msra.mxu0 0.0
    %5260 = vmatpush.msra.mxu0 0.0
    %5261 = vmatpush.msra.mxu0 0.0
    %5262 = vmatpush.msra.mxu0 0.0
    %5263 = vmatpush.msra.mxu0 0.0
    %5264 = vmatpush.msra.mxu0 0.0
    %5265 = vmatpush.msra.mxu0 0.0
    %5266 = vmatpush.msra.mxu0 0.0
    %5267 = vmatpush.msra.mxu0 0.0
    %5268 = vmatpush.msra.mxu0 0.0
    %5269 = vmatpush.msra.mxu0 0.0
    %5270 = vmatpush.msra.mxu0 0.0
    %5271 = vmatpush.msra.mxu0 0.0
    %5272 = vmatpush.msra.mxu0 %v5229
    %5273 = vmatmul.f32.gmra.mxu0 %v5223
    %v5274 = vpop.f32.mrf.mxu0
    %v5275 = vadd.f32 0.0, %v5274
    %5276 = vdwg.mxu0
    %5277 = vmatpush.msra.mxu0 0.0
    %5278 = vmatpush.msra.mxu0 0.0
    %5279 = vmatpush.msra.mxu0 0.0
    %5280 = vmatpush.msra.mxu0 0.0
    %5281 = vmatpush.msra.mxu0 0.0
    %5282 = vmatpush.msra.mxu0 0.0
    %5283 = vmatpush.msra.mxu0 0.0
    %5284 = vmatpush.msra.mxu0 0.0
    %5285 = vmatpush.msra.mxu0 0.0
    %5286 = vmatpush.msra.mxu0 0.0
    %5287 = vmatpush.msra.mxu0 0.0
    %5288 = vmatpush.msra.mxu0 0.0
    %5289 = vmatpush.msra.mxu0 0.0
    %5290 = vmatpush.msra.mxu0 0.0
    %5291 = vmatpush.msra.mxu0 0.0
    %5292 = vmatpush.msra.mxu0 %v5232
    %5293 = vmatmul.f32.gmra.mxu0 %v5223
    %v5294 = vpop.f32.mrf.mxu0
    %v5295 = vadd.f32 0.0, %v5294
    %5296 = vdwg.mxu0
    %5297 = vmatpush.msra.mxu0 0.0
    %5298 = vmatpush.msra.mxu0 0.0
    %5299 = vmatpush.msra.mxu0 0.0
    %5300 = vmatpush.msra.mxu0 0.0
    %5301 = vmatpush.msra.mxu0 0.0
    %5302 = vmatpush.msra.mxu0 0.0
    %5303 = vmatpush.msra.mxu0 0.0
    %5304 = vmatpush.msra.mxu0 0.0
    %5305 = vmatpush.msra.mxu0 0.0
    %5306 = vmatpush.msra.mxu0 0.0
    %5307 = vmatpush.msra.mxu0 0.0
    %5308 = vmatpush.msra.mxu0 0.0
    %5309 = vmatpush.msra.mxu0 0.0
    %5310 = vmatpush.msra.mxu0 0.0
    %5311 = vmatpush.msra.mxu0 0.0
    %5312 = vmatpush.msra.mxu0 %v5235
    %5313 = vmatmul.f32.gmra.mxu0 %v5223
    %v5314 = vpop.f32.mrf.mxu0
    %v5315 = vadd.f32 0.0, %v5314
    %5316 = vdwg.mxu0
    %v5317 = vadd.f32 %v5177, %v5255
    %v5318 = vadd.f32 %v5178, %v5275
    %v5319 = vadd.f32 %v5179, %v5295
    %v5320 = vadd.f32 %v5180, %v5315
    %5321 = vst [vmem:[#allocation1] ss:$2 sm:$0xff] %v162
    %s5322 = scalar_lea.vmem [#allocation1], 16
    %5323 = vst [vmem:[%s5322] ss:$2 sm:$0xff] %v163
    %v5324 = vld.sshfl [vmem:[#allocation1] sm:$0xff pattern:$0x75316420]
    %v5325 = vld.sshfl [vmem:[#allocation1 + $0x8] sm:$0xff pattern:$0x75316420]
    %v5326 = vld.sshfl [vmem:[#allocation1 + $0x10] sm:$0xff pattern:$0x75316420]
    %v5327 = vld.sshfl [vmem:[#allocation1 + $0x18] sm:$0xff pattern:$0x75316420]
    %5332 = vrot.lane.b32.xlu0 %v5324, 97
    %v5333 = vpop.permute.xlu0 %5332
    %5334 = vrot.lane.b32.xlu0 %v5325, 97
    %v5335 = vpop.permute.xlu0 %5334
    %5336 = vrot.lane.b32.xlu0 %v5326, 97
    %v5337 = vpop.permute.xlu0 %5336
    %5338 = vrot.lane.b32.xlu0 %v5327, 97
    %v5339 = vpop.permute.xlu0 %5338
    %vm5340 = vcmp.lt.s32.totalorder %v186, 97
    %v5341 = vsel %vm5340, %v5337, %v5339
    %v5342 = vsel %vm5340, %v5335, %v5337
    %v5343 = vsel %vm5340, %v5333, %v5335
    %v5344 = vsel %vm5340, %v5339, %v5333
    %s5345 = scalar_lea.vmem %s7, 133
    %v5346 = vld [vmem:[%s5345] ss:$8 sm:$0xf]
    %v5348 = vperm.slane %v5346, 0
    %v5349 = vperm.slane %v5346, 1
    %v5350 = vperm.slane %v5346, 2
    %v5351 = vperm.slane %v5346, 3
    %v5356 = vmul.f32 %v5343, %v5348
    %v5357 = vmul.f32 %v5342, %v5349
    %v5358 = vmul.f32 %v5341, %v5350
    %v5359 = vmul.f32 %v5344, %v5351
    %s5360 = scalar_lea.vmem %s3, 296
    %v5361 = vld [vmem:[%s5360] sm:$0xff]
    %v5363 = vsel %vm248, %v5361, 0
    %v5366 = vsel %vm252, %v5356, 0
    %v5369 = vsel %vm252, %v5357, 0
    %v5372 = vsel %vm252, %v5358, 0
    %v5375 = vsel %vm252, %v5359, 0
    %5377 = vmatpush.msra.mxu0 0.0
    %5378 = vmatpush.msra.mxu0 0.0
    %5379 = vmatpush.msra.mxu0 0.0
    %5380 = vmatpush.msra.mxu0 0.0
    %5381 = vmatpush.msra.mxu0 0.0
    %5382 = vmatpush.msra.mxu0 0.0
    %5383 = vmatpush.msra.mxu0 0.0
    %5384 = vmatpush.msra.mxu0 0.0
    %5385 = vmatpush.msra.mxu0 0.0
    %5386 = vmatpush.msra.mxu0 0.0
    %5387 = vmatpush.msra.mxu0 0.0
    %5388 = vmatpush.msra.mxu0 0.0
    %5389 = vmatpush.msra.mxu0 0.0
    %5390 = vmatpush.msra.mxu0 0.0
    %5391 = vmatpush.msra.mxu0 0.0
    %5392 = vmatpush.msra.mxu0 %v5366
    %5393 = vmatmul.f32.gmra.mxu0 %v5363
    %v5394 = vpop.f32.mrf.mxu0
    %v5395 = vadd.f32 0.0, %v5394
    %5396 = vdwg.mxu0
    %5397 = vmatpush.msra.mxu0 0.0
    %5398 = vmatpush.msra.mxu0 0.0
    %5399 = vmatpush.msra.mxu0 0.0
    %5400 = vmatpush.msra.mxu0 0.0
    %5401 = vmatpush.msra.mxu0 0.0
    %5402 = vmatpush.msra.mxu0 0.0
    %5403 = vmatpush.msra.mxu0 0.0
    %5404 = vmatpush.msra.mxu0 0.0
    %5405 = vmatpush.msra.mxu0 0.0
    %5406 = vmatpush.msra.mxu0 0.0
    %5407 = vmatpush.msra.mxu0 0.0
    %5408 = vmatpush.msra.mxu0 0.0
    %5409 = vmatpush.msra.mxu0 0.0
    %5410 = vmatpush.msra.mxu0 0.0
    %5411 = vmatpush.msra.mxu0 0.0
    %5412 = vmatpush.msra.mxu0 %v5369
    %5413 = vmatmul.f32.gmra.mxu0 %v5363
    %v5414 = vpop.f32.mrf.mxu0
    %v5415 = vadd.f32 0.0, %v5414
    %5416 = vdwg.mxu0
    %5417 = vmatpush.msra.mxu0 0.0
    %5418 = vmatpush.msra.mxu0 0.0
    %5419 = vmatpush.msra.mxu0 0.0
    %5420 = vmatpush.msra.mxu0 0.0
    %5421 = vmatpush.msra.mxu0 0.0
    %5422 = vmatpush.msra.mxu0 0.0
    %5423 = vmatpush.msra.mxu0 0.0
    %5424 = vmatpush.msra.mxu0 0.0
    %5425 = vmatpush.msra.mxu0 0.0
    %5426 = vmatpush.msra.mxu0 0.0
    %5427 = vmatpush.msra.mxu0 0.0
    %5428 = vmatpush.msra.mxu0 0.0
    %5429 = vmatpush.msra.mxu0 0.0
    %5430 = vmatpush.msra.mxu0 0.0
    %5431 = vmatpush.msra.mxu0 0.0
    %5432 = vmatpush.msra.mxu0 %v5372
    %5433 = vmatmul.f32.gmra.mxu0 %v5363
    %v5434 = vpop.f32.mrf.mxu0
    %v5435 = vadd.f32 0.0, %v5434
    %5436 = vdwg.mxu0
    %5437 = vmatpush.msra.mxu0 0.0
    %5438 = vmatpush.msra.mxu0 0.0
    %5439 = vmatpush.msra.mxu0 0.0
    %5440 = vmatpush.msra.mxu0 0.0
    %5441 = vmatpush.msra.mxu0 0.0
    %5442 = vmatpush.msra.mxu0 0.0
    %5443 = vmatpush.msra.mxu0 0.0
    %5444 = vmatpush.msra.mxu0 0.0
    %5445 = vmatpush.msra.mxu0 0.0
    %5446 = vmatpush.msra.mxu0 0.0
    %5447 = vmatpush.msra.mxu0 0.0
    %5448 = vmatpush.msra.mxu0 0.0
    %5449 = vmatpush.msra.mxu0 0.0
    %5450 = vmatpush.msra.mxu0 0.0
    %5451 = vmatpush.msra.mxu0 0.0
    %5452 = vmatpush.msra.mxu0 %v5375
    %5453 = vmatmul.f32.gmra.mxu0 %v5363
    %v5454 = vpop.f32.mrf.mxu0
    %v5455 = vadd.f32 0.0, %v5454
    %5456 = vdwg.mxu0
    %v5457 = vadd.f32 %v5317, %v5395
    %v5458 = vadd.f32 %v5318, %v5415
    %v5459 = vadd.f32 %v5319, %v5435
    %v5460 = vadd.f32 %v5320, %v5455
    %5461 = vst [vmem:[#allocation1] ss:$2 sm:$0xff] %v162
    %s5462 = scalar_lea.vmem [#allocation1], 16
    %5463 = vst [vmem:[%s5462] ss:$2 sm:$0xff] %v163
    %v5464 = vld.sshfl [vmem:[#allocation1] sm:$0xff pattern:$0x75316420]
    %v5465 = vld.sshfl [vmem:[#allocation1 + $0x8] sm:$0xff pattern:$0x75316420]
    %v5466 = vld.sshfl [vmem:[#allocation1 + $0x10] sm:$0xff pattern:$0x75316420]
    %v5467 = vld.sshfl [vmem:[#allocation1 + $0x18] sm:$0xff pattern:$0x75316420]
    %5472 = vrot.lane.b32.xlu0 %v5464, 96
    %v5473 = vpop.permute.xlu0 %5472
    %5474 = vrot.lane.b32.xlu0 %v5465, 96
    %v5475 = vpop.permute.xlu0 %5474
    %5476 = vrot.lane.b32.xlu0 %v5466, 96
    %v5477 = vpop.permute.xlu0 %5476
    %5478 = vrot.lane.b32.xlu0 %v5467, 96
    %v5479 = vpop.permute.xlu0 %5478
    %vm5480 = vcmp.lt.s32.totalorder %v186, 96
    %v5481 = vsel %vm5480, %v5477, %v5479
    %v5482 = vsel %vm5480, %v5475, %v5477
    %v5483 = vsel %vm5480, %v5473, %v5475
    %v5484 = vsel %vm5480, %v5479, %v5473
    %s5485 = scalar_lea.vmem %s7, 134
    %v5486 = vld [vmem:[%s5485] ss:$8 sm:$0xf]
    %v5488 = vperm.slane %v5486, 0
    %v5489 = vperm.slane %v5486, 1
    %v5490 = vperm.slane %v5486, 2
    %v5491 = vperm.slane %v5486, 3
    %v5496 = vmul.f32 %v5483, %v5488
    %v5497 = vmul.f32 %v5482, %v5489
    %v5498 = vmul.f32 %v5481, %v5490
    %v5499 = vmul.f32 %v5484, %v5491
    %s5500 = scalar_lea.vmem %s3, 304
    %v5501 = vld [vmem:[%s5500] sm:$0xff]
    %v5503 = vsel %vm248, %v5501, 0
    %v5506 = vsel %vm252, %v5496, 0
    %v5509 = vsel %vm252, %v5497, 0
    %v5512 = vsel %vm252, %v5498, 0
    %v5515 = vsel %vm252, %v5499, 0
    %5517 = vmatpush.msra.mxu0 0.0
    %5518 = vmatpush.msra.mxu0 0.0
    %5519 = vmatpush.msra.mxu0 0.0
    %5520 = vmatpush.msra.mxu0 0.0
    %5521 = vmatpush.msra.mxu0 0.0
    %5522 = vmatpush.msra.mxu0 0.0
    %5523 = vmatpush.msra.mxu0 0.0
    %5524 = vmatpush.msra.mxu0 0.0
    %5525 = vmatpush.msra.mxu0 0.0
    %5526 = vmatpush.msra.mxu0 0.0
    %5527 = vmatpush.msra.mxu0 0.0
    %5528 = vmatpush.msra.mxu0 0.0
    %5529 = vmatpush.msra.mxu0 0.0
    %5530 = vmatpush.msra.mxu0 0.0
    %5531 = vmatpush.msra.mxu0 0.0
    %5532 = vmatpush.msra.mxu0 %v5506
    %5533 = vmatmul.f32.gmra.mxu0 %v5503
    %v5534 = vpop.f32.mrf.mxu0
    %v5535 = vadd.f32 0.0, %v5534
    %5536 = vdwg.mxu0
    %5537 = vmatpush.msra.mxu0 0.0
    %5538 = vmatpush.msra.mxu0 0.0
    %5539 = vmatpush.msra.mxu0 0.0
    %5540 = vmatpush.msra.mxu0 0.0
    %5541 = vmatpush.msra.mxu0 0.0
    %5542 = vmatpush.msra.mxu0 0.0
    %5543 = vmatpush.msra.mxu0 0.0
    %5544 = vmatpush.msra.mxu0 0.0
    %5545 = vmatpush.msra.mxu0 0.0
    %5546 = vmatpush.msra.mxu0 0.0
    %5547 = vmatpush.msra.mxu0 0.0
    %5548 = vmatpush.msra.mxu0 0.0
    %5549 = vmatpush.msra.mxu0 0.0
    %5550 = vmatpush.msra.mxu0 0.0
    %5551 = vmatpush.msra.mxu0 0.0
    %5552 = vmatpush.msra.mxu0 %v5509
    %5553 = vmatmul.f32.gmra.mxu0 %v5503
    %v5554 = vpop.f32.mrf.mxu0
    %v5555 = vadd.f32 0.0, %v5554
    %5556 = vdwg.mxu0
    %5557 = vmatpush.msra.mxu0 0.0
    %5558 = vmatpush.msra.mxu0 0.0
    %5559 = vmatpush.msra.mxu0 0.0
    %5560 = vmatpush.msra.mxu0 0.0
    %5561 = vmatpush.msra.mxu0 0.0
    %5562 = vmatpush.msra.mxu0 0.0
    %5563 = vmatpush.msra.mxu0 0.0
    %5564 = vmatpush.msra.mxu0 0.0
    %5565 = vmatpush.msra.mxu0 0.0
    %5566 = vmatpush.msra.mxu0 0.0
    %5567 = vmatpush.msra.mxu0 0.0
    %5568 = vmatpush.msra.mxu0 0.0
    %5569 = vmatpush.msra.mxu0 0.0
    %5570 = vmatpush.msra.mxu0 0.0
    %5571 = vmatpush.msra.mxu0 0.0
    %5572 = vmatpush.msra.mxu0 %v5512
    %5573 = vmatmul.f32.gmra.mxu0 %v5503
    %v5574 = vpop.f32.mrf.mxu0
    %v5575 = vadd.f32 0.0, %v5574
    %5576 = vdwg.mxu0
    %5577 = vmatpush.msra.mxu0 0.0
    %5578 = vmatpush.msra.mxu0 0.0
    %5579 = vmatpush.msra.mxu0 0.0
    %5580 = vmatpush.msra.mxu0 0.0
    %5581 = vmatpush.msra.mxu0 0.0
    %5582 = vmatpush.msra.mxu0 0.0
    %5583 = vmatpush.msra.mxu0 0.0
    %5584 = vmatpush.msra.mxu0 0.0
    %5585 = vmatpush.msra.mxu0 0.0
    %5586 = vmatpush.msra.mxu0 0.0
    %5587 = vmatpush.msra.mxu0 0.0
    %5588 = vmatpush.msra.mxu0 0.0
    %5589 = vmatpush.msra.mxu0 0.0
    %5590 = vmatpush.msra.mxu0 0.0
    %5591 = vmatpush.msra.mxu0 0.0
    %5592 = vmatpush.msra.mxu0 %v5515
    %5593 = vmatmul.f32.gmra.mxu0 %v5503
    %v5594 = vpop.f32.mrf.mxu0
    %v5595 = vadd.f32 0.0, %v5594
    %5596 = vdwg.mxu0
    %v5597 = vadd.f32 %v5457, %v5535
    %v5598 = vadd.f32 %v5458, %v5555
    %v5599 = vadd.f32 %v5459, %v5575
    %v5600 = vadd.f32 %v5460, %v5595
    %5601 = vst [vmem:[#allocation1] ss:$2 sm:$0xff] %v162
    %s5602 = scalar_lea.vmem [#allocation1], 16
    %5603 = vst [vmem:[%s5602] ss:$2 sm:$0xff] %v163
    %v5604 = vld.sshfl [vmem:[#allocation1] sm:$0xff pattern:$0x75316420]
    %v5605 = vld.sshfl [vmem:[#allocation1 + $0x8] sm:$0xff pattern:$0x75316420]
    %v5606 = vld.sshfl [vmem:[#allocation1 + $0x10] sm:$0xff pattern:$0x75316420]
    %v5607 = vld.sshfl [vmem:[#allocation1 + $0x18] sm:$0xff pattern:$0x75316420]
    %5612 = vrot.lane.b32.xlu0 %v5604, 95
    %v5613 = vpop.permute.xlu0 %5612
    %5614 = vrot.lane.b32.xlu0 %v5605, 95
    %v5615 = vpop.permute.xlu0 %5614
    %5616 = vrot.lane.b32.xlu0 %v5606, 95
    %v5617 = vpop.permute.xlu0 %5616
    %5618 = vrot.lane.b32.xlu0 %v5607, 95
    %v5619 = vpop.permute.xlu0 %5618
    %vm5620 = vcmp.lt.s32.totalorder %v186, 95
    %v5621 = vsel %vm5620, %v5617, %v5619
    %v5622 = vsel %vm5620, %v5615, %v5617
    %v5623 = vsel %vm5620, %v5613, %v5615
    %v5624 = vsel %vm5620, %v5619, %v5613
    %s5625 = scalar_lea.vmem %s7, 135
    %v5626 = vld [vmem:[%s5625] ss:$8 sm:$0xf]
    %v5628 = vperm.slane %v5626, 0
    %v5629 = vperm.slane %v5626, 1
    %v5630 = vperm.slane %v5626, 2
    %v5631 = vperm.slane %v5626, 3
    %v5636 = vmul.f32 %v5623, %v5628
    %v5637 = vmul.f32 %v5622, %v5629
    %v5638 = vmul.f32 %v5621, %v5630
    %v5639 = vmul.f32 %v5624, %v5631
    %s5640 = scalar_lea.vmem %s3, 312
    %v5641 = vld [vmem:[%s5640] sm:$0xff]
    %v5643 = vsel %vm248, %v5641, 0
    %v5646 = vsel %vm252, %v5636, 0
    %v5649 = vsel %vm252, %v5637, 0
    %v5652 = vsel %vm252, %v5638, 0
    %v5655 = vsel %vm252, %v5639, 0
    %5657 = vmatpush.msra.mxu0 0.0
    %5658 = vmatpush.msra.mxu0 0.0
    %5659 = vmatpush.msra.mxu0 0.0
    %5660 = vmatpush.msra.mxu0 0.0
    %5661 = vmatpush.msra.mxu0 0.0
    %5662 = vmatpush.msra.mxu0 0.0
    %5663 = vmatpush.msra.mxu0 0.0
    %5664 = vmatpush.msra.mxu0 0.0
    %5665 = vmatpush.msra.mxu0 0.0
    %5666 = vmatpush.msra.mxu0 0.0
    %5667 = vmatpush.msra.mxu0 0.0
    %5668 = vmatpush.msra.mxu0 0.0
    %5669 = vmatpush.msra.mxu0 0.0
    %5670 = vmatpush.msra.mxu0 0.0
    %5671 = vmatpush.msra.mxu0 0.0
    %5672 = vmatpush.msra.mxu0 %v5646
    %5673 = vmatmul.f32.gmra.mxu0 %v5643
    %v5674 = vpop.f32.mrf.mxu0
    %v5675 = vadd.f32 0.0, %v5674
    %5676 = vdwg.mxu0
    %5677 = vmatpush.msra.mxu0 0.0
    %5678 = vmatpush.msra.mxu0 0.0
    %5679 = vmatpush.msra.mxu0 0.0
    %5680 = vmatpush.msra.mxu0 0.0
    %5681 = vmatpush.msra.mxu0 0.0
    %5682 = vmatpush.msra.mxu0 0.0
    %5683 = vmatpush.msra.mxu0 0.0
    %5684 = vmatpush.msra.mxu0 0.0
    %5685 = vmatpush.msra.mxu0 0.0
    %5686 = vmatpush.msra.mxu0 0.0
    %5687 = vmatpush.msra.mxu0 0.0
    %5688 = vmatpush.msra.mxu0 0.0
    %5689 = vmatpush.msra.mxu0 0.0
    %5690 = vmatpush.msra.mxu0 0.0
    %5691 = vmatpush.msra.mxu0 0.0
    %5692 = vmatpush.msra.mxu0 %v5649
    %5693 = vmatmul.f32.gmra.mxu0 %v5643
    %v5694 = vpop.f32.mrf.mxu0
    %v5695 = vadd.f32 0.0, %v5694
    %5696 = vdwg.mxu0
    %5697 = vmatpush.msra.mxu0 0.0
    %5698 = vmatpush.msra.mxu0 0.0
    %5699 = vmatpush.msra.mxu0 0.0
    %5700 = vmatpush.msra.mxu0 0.0
    %5701 = vmatpush.msra.mxu0 0.0
    %5702 = vmatpush.msra.mxu0 0.0
    %5703 = vmatpush.msra.mxu0 0.0
    %5704 = vmatpush.msra.mxu0 0.0
    %5705 = vmatpush.msra.mxu0 0.0
    %5706 = vmatpush.msra.mxu0 0.0
    %5707 = vmatpush.msra.mxu0 0.0
    %5708 = vmatpush.msra.mxu0 0.0
    %5709 = vmatpush.msra.mxu0 0.0
    %5710 = vmatpush.msra.mxu0 0.0
    %5711 = vmatpush.msra.mxu0 0.0
    %5712 = vmatpush.msra.mxu0 %v5652
    %5713 = vmatmul.f32.gmra.mxu0 %v5643
    %v5714 = vpop.f32.mrf.mxu0
    %v5715 = vadd.f32 0.0, %v5714
    %5716 = vdwg.mxu0
    %5717 = vmatpush.msra.mxu0 0.0
    %5718 = vmatpush.msra.mxu0 0.0
    %5719 = vmatpush.msra.mxu0 0.0
    %5720 = vmatpush.msra.mxu0 0.0
    %5721 = vmatpush.msra.mxu0 0.0
    %5722 = vmatpush.msra.mxu0 0.0
    %5723 = vmatpush.msra.mxu0 0.0
    %5724 = vmatpush.msra.mxu0 0.0
    %5725 = vmatpush.msra.mxu0 0.0
    %5726 = vmatpush.msra.mxu0 0.0
    %5727 = vmatpush.msra.mxu0 0.0
    %5728 = vmatpush.msra.mxu0 0.0
    %5729 = vmatpush.msra.mxu0 0.0
    %5730 = vmatpush.msra.mxu0 0.0
    %5731 = vmatpush.msra.mxu0 0.0
    %5732 = vmatpush.msra.mxu0 %v5655
    %5733 = vmatmul.f32.gmra.mxu0 %v5643
    %v5734 = vpop.f32.mrf.mxu0
    %v5735 = vadd.f32 0.0, %v5734
    %5736 = vdwg.mxu0
    %v5737 = vadd.f32 %v5597, %v5675
    %v5738 = vadd.f32 %v5598, %v5695
    %v5739 = vadd.f32 %v5599, %v5715
    %v5740 = vadd.f32 %v5600, %v5735
    %5741 = vst [vmem:[#allocation1] ss:$2 sm:$0xff] %v162
    %s5742 = scalar_lea.vmem [#allocation1], 16
    %5743 = vst [vmem:[%s5742] ss:$2 sm:$0xff] %v163
    %v5744 = vld.sshfl [vmem:[#allocation1] sm:$0xff pattern:$0x75316420]
    %v5745 = vld.sshfl [vmem:[#allocation1 + $0x8] sm:$0xff pattern:$0x75316420]
    %v5746 = vld.sshfl [vmem:[#allocation1 + $0x10] sm:$0xff pattern:$0x75316420]
    %v5747 = vld.sshfl [vmem:[#allocation1 + $0x18] sm:$0xff pattern:$0x75316420]
    %5752 = vrot.lane.b32.xlu0 %v5744, 94
    %v5753 = vpop.permute.xlu0 %5752
    %5754 = vrot.lane.b32.xlu0 %v5745, 94
    %v5755 = vpop.permute.xlu0 %5754
    %5756 = vrot.lane.b32.xlu0 %v5746, 94
    %v5757 = vpop.permute.xlu0 %5756
    %5758 = vrot.lane.b32.xlu0 %v5747, 94
    %v5759 = vpop.permute.xlu0 %5758
    %vm5760 = vcmp.lt.s32.totalorder %v186, 94
    %v5761 = vsel %vm5760, %v5757, %v5759
    %v5762 = vsel %vm5760, %v5755, %v5757
    %v5763 = vsel %vm5760, %v5753, %v5755
    %v5764 = vsel %vm5760, %v5759, %v5753
    %s5765 = scalar_lea.vmem %s7, 160
    %v5766 = vld [vmem:[%s5765] ss:$8 sm:$0xf]
    %v5768 = vperm.slane %v5766, 0
    %v5769 = vperm.slane %v5766, 1
    %v5770 = vperm.slane %v5766, 2
    %v5771 = vperm.slane %v5766, 3
    %v5776 = vmul.f32 %v5763, %v5768
    %v5777 = vmul.f32 %v5762, %v5769
    %v5778 = vmul.f32 %v5761, %v5770
    %v5779 = vmul.f32 %v5764, %v5771
    %s5780 = scalar_lea.vmem %s3, 320
    %v5781 = vld [vmem:[%s5780] sm:$0xff]
    %v5783 = vsel %vm248, %v5781, 0
    %v5786 = vsel %vm252, %v5776, 0
    %v5789 = vsel %vm252, %v5777, 0
    %v5792 = vsel %vm252, %v5778, 0
    %v5795 = vsel %vm252, %v5779, 0
    %5797 = vmatpush.msra.mxu0 0.0
    %5798 = vmatpush.msra.mxu0 0.0
    %5799 = vmatpush.msra.mxu0 0.0
    %5800 = vmatpush.msra.mxu0 0.0
    %5801 = vmatpush.msra.mxu0 0.0
    %5802 = vmatpush.msra.mxu0 0.0
    %5803 = vmatpush.msra.mxu0 0.0
    %5804 = vmatpush.msra.mxu0 0.0
    %5805 = vmatpush.msra.mxu0 0.0
    %5806 = vmatpush.msra.mxu0 0.0
    %5807 = vmatpush.msra.mxu0 0.0
    %5808 = vmatpush.msra.mxu0 0.0
    %5809 = vmatpush.msra.mxu0 0.0
    %5810 = vmatpush.msra.mxu0 0.0
    %5811 = vmatpush.msra.mxu0 0.0
    %5812 = vmatpush.msra.mxu0 %v5786
    %5813 = vmatmul.f32.gmra.mxu0 %v5783
    %v5814 = vpop.f32.mrf.mxu0
    %v5815 = vadd.f32 0.0, %v5814
    %5816 = vdwg.mxu0
    %5817 = vmatpush.msra.mxu0 0.0
    %5818 = vmatpush.msra.mxu0 0.0
    %5819 = vmatpush.msra.mxu0 0.0
    %5820 = vmatpush.msra.mxu0 0.0
    %5821 = vmatpush.msra.mxu0 0.0
    %5822 = vmatpush.msra.mxu0 0.0
    %5823 = vmatpush.msra.mxu0 0.0
    %5824 = vmatpush.msra.mxu0 0.0
    %5825 = vmatpush.msra.mxu0 0.0
    %5826 = vmatpush.msra.mxu0 0.0
    %5827 = vmatpush.msra.mxu0 0.0
    %5828 = vmatpush.msra.mxu0 0.0
    %5829 = vmatpush.msra.mxu0 0.0
    %5830 = vmatpush.msra.mxu0 0.0
    %5831 = vmatpush.msra.mxu0 0.0
    %5832 = vmatpush.msra.mxu0 %v5789
    %5833 = vmatmul.f32.gmra.mxu0 %v5783
    %v5834 = vpop.f32.mrf.mxu0
    %v5835 = vadd.f32 0.0, %v5834
    %5836 = vdwg.mxu0
    %5837 = vmatpush.msra.mxu0 0.0
    %5838 = vmatpush.msra.mxu0 0.0
    %5839 = vmatpush.msra.mxu0 0.0
    %5840 = vmatpush.msra.mxu0 0.0
    %5841 = vmatpush.msra.mxu0 0.0
    %5842 = vmatpush.msra.mxu0 0.0
    %5843 = vmatpush.msra.mxu0 0.0
    %5844 = vmatpush.msra.mxu0 0.0
    %5845 = vmatpush.msra.mxu0 0.0
    %5846 = vmatpush.msra.mxu0 0.0
    %5847 = vmatpush.msra.mxu0 0.0
    %5848 = vmatpush.msra.mxu0 0.0
    %5849 = vmatpush.msra.mxu0 0.0
    %5850 = vmatpush.msra.mxu0 0.0
    %5851 = vmatpush.msra.mxu0 0.0
    %5852 = vmatpush.msra.mxu0 %v5792
    %5853 = vmatmul.f32.gmra.mxu0 %v5783
    %v5854 = vpop.f32.mrf.mxu0
    %v5855 = vadd.f32 0.0, %v5854
    %5856 = vdwg.mxu0
    %5857 = vmatpush.msra.mxu0 0.0
    %5858 = vmatpush.msra.mxu0 0.0
    %5859 = vmatpush.msra.mxu0 0.0
    %5860 = vmatpush.msra.mxu0 0.0
    %5861 = vmatpush.msra.mxu0 0.0
    %5862 = vmatpush.msra.mxu0 0.0
    %5863 = vmatpush.msra.mxu0 0.0
    %5864 = vmatpush.msra.mxu0 0.0
    %5865 = vmatpush.msra.mxu0 0.0
    %5866 = vmatpush.msra.mxu0 0.0
    %5867 = vmatpush.msra.mxu0 0.0
    %5868 = vmatpush.msra.mxu0 0.0
    %5869 = vmatpush.msra.mxu0 0.0
    %5870 = vmatpush.msra.mxu0 0.0
    %5871 = vmatpush.msra.mxu0 0.0
    %5872 = vmatpush.msra.mxu0 %v5795
    %5873 = vmatmul.f32.gmra.mxu0 %v5783
    %v5874 = vpop.f32.mrf.mxu0
    %v5875 = vadd.f32 0.0, %v5874
    %5876 = vdwg.mxu0
    %v5877 = vadd.f32 %v5737, %v5815
    %v5878 = vadd.f32 %v5738, %v5835
    %v5879 = vadd.f32 %v5739, %v5855
    %v5880 = vadd.f32 %v5740, %v5875
    %5881 = vst [vmem:[#allocation1] ss:$2 sm:$0xff] %v162
    %s5882 = scalar_lea.vmem [#allocation1], 16
    %5883 = vst [vmem:[%s5882] ss:$2 sm:$0xff] %v163
    %v5884 = vld.sshfl [vmem:[#allocation1] sm:$0xff pattern:$0x75316420]
    %v5885 = vld.sshfl [vmem:[#allocation1 + $0x8] sm:$0xff pattern:$0x75316420]
    %v5886 = vld.sshfl [vmem:[#allocation1 + $0x10] sm:$0xff pattern:$0x75316420]
    %v5887 = vld.sshfl [vmem:[#allocation1 + $0x18] sm:$0xff pattern:$0x75316420]
    %5892 = vrot.lane.b32.xlu0 %v5884, 93
    %v5893 = vpop.permute.xlu0 %5892
    %5894 = vrot.lane.b32.xlu0 %v5885, 93
    %v5895 = vpop.permute.xlu0 %5894
    %5896 = vrot.lane.b32.xlu0 %v5886, 93
    %v5897 = vpop.permute.xlu0 %5896
    %5898 = vrot.lane.b32.xlu0 %v5887, 93
    %v5899 = vpop.permute.xlu0 %5898
    %vm5900 = vcmp.lt.s32.totalorder %v186, 93
    %v5901 = vsel %vm5900, %v5897, %v5899
    %v5902 = vsel %vm5900, %v5895, %v5897
    %v5903 = vsel %vm5900, %v5893, %v5895
    %v5904 = vsel %vm5900, %v5899, %v5893
    %s5905 = scalar_lea.vmem %s7, 161
    %v5906 = vld [vmem:[%s5905] ss:$8 sm:$0xf]
    %v5908 = vperm.slane %v5906, 0
    %v5909 = vperm.slane %v5906, 1
    %v5910 = vperm.slane %v5906, 2
    %v5911 = vperm.slane %v5906, 3
    %v5916 = vmul.f32 %v5903, %v5908
    %v5917 = vmul.f32 %v5902, %v5909
    %v5918 = vmul.f32 %v5901, %v5910
    %v5919 = vmul.f32 %v5904, %v5911
    %s5920 = scalar_lea.vmem %s3, 328
    %v5921 = vld [vmem:[%s5920] sm:$0xff]
    %v5923 = vsel %vm248, %v5921, 0
    %v5926 = vsel %vm252, %v5916, 0
    %v5929 = vsel %vm252, %v5917, 0
    %v5932 = vsel %vm252, %v5918, 0
    %v5935 = vsel %vm252, %v5919, 0
    %5937 = vmatpush.msra.mxu0 0.0
    %5938 = vmatpush.msra.mxu0 0.0
    %5939 = vmatpush.msra.mxu0 0.0
    %5940 = vmatpush.msra.mxu0 0.0
    %5941 = vmatpush.msra.mxu0 0.0
    %5942 = vmatpush.msra.mxu0 0.0
    %5943 = vmatpush.msra.mxu0 0.0
    %5944 = vmatpush.msra.mxu0 0.0
    %5945 = vmatpush.msra.mxu0 0.0
    %5946 = vmatpush.msra.mxu0 0.0
    %5947 = vmatpush.msra.mxu0 0.0
    %5948 = vmatpush.msra.mxu0 0.0
    %5949 = vmatpush.msra.mxu0 0.0
    %5950 = vmatpush.msra.mxu0 0.0
    %5951 = vmatpush.msra.mxu0 0.0
    %5952 = vmatpush.msra.mxu0 %v5926
    %5953 = vmatmul.f32.gmra.mxu0 %v5923
    %v5954 = vpop.f32.mrf.mxu0
    %v5955 = vadd.f32 0.0, %v5954
    %5956 = vdwg.mxu0
    %5957 = vmatpush.msra.mxu0 0.0
    %5958 = vmatpush.msra.mxu0 0.0
    %5959 = vmatpush.msra.mxu0 0.0
    %5960 = vmatpush.msra.mxu0 0.0
    %5961 = vmatpush.msra.mxu0 0.0
    %5962 = vmatpush.msra.mxu0 0.0
    %5963 = vmatpush.msra.mxu0 0.0
    %5964 = vmatpush.msra.mxu0 0.0
    %5965 = vmatpush.msra.mxu0 0.0
    %5966 = vmatpush.msra.mxu0 0.0
    %5967 = vmatpush.msra.mxu0 0.0
    %5968 = vmatpush.msra.mxu0 0.0
    %5969 = vmatpush.msra.mxu0 0.0
    %5970 = vmatpush.msra.mxu0 0.0
    %5971 = vmatpush.msra.mxu0 0.0
    %5972 = vmatpush.msra.mxu0 %v5929
    %5973 = vmatmul.f32.gmra.mxu0 %v5923
    %v5974 = vpop.f32.mrf.mxu0
    %v5975 = vadd.f32 0.0, %v5974
    %5976 = vdwg.mxu0
    %5977 = vmatpush.msra.mxu0 0.0
    %5978 = vmatpush.msra.mxu0 0.0
    %5979 = vmatpush.msra.mxu0 0.0
    %5980 = vmatpush.msra.mxu0 0.0
    %5981 = vmatpush.msra.mxu0 0.0
    %5982 = vmatpush.msra.mxu0 0.0
    %5983 = vmatpush.msra.mxu0 0.0
    %5984 = vmatpush.msra.mxu0 0.0
    %5985 = vmatpush.msra.mxu0 0.0
    %5986 = vmatpush.msra.mxu0 0.0
    %5987 = vmatpush.msra.mxu0 0.0
    %5988 = vmatpush.msra.mxu0 0.0
    %5989 = vmatpush.msra.mxu0 0.0
    %5990 = vmatpush.msra.mxu0 0.0
    %5991 = vmatpush.msra.mxu0 0.0
    %5992 = vmatpush.msra.mxu0 %v5932
    %5993 = vmatmul.f32.gmra.mxu0 %v5923
    %v5994 = vpop.f32.mrf.mxu0
    %v5995 = vadd.f32 0.0, %v5994
    %5996 = vdwg.mxu0
    %5997 = vmatpush.msra.mxu0 0.0
    %5998 = vmatpush.msra.mxu0 0.0
    %5999 = vmatpush.msra.mxu0 0.0
    %6000 = vmatpush.msra.mxu0 0.0
    %6001 = vmatpush.msra.mxu0 0.0
    %6002 = vmatpush.msra.mxu0 0.0
    %6003 = vmatpush.msra.mxu0 0.0
    %6004 = vmatpush.msra.mxu0 0.0
    %6005 = vmatpush.msra.mxu0 0.0
    %6006 = vmatpush.msra.mxu0 0.0
    %6007 = vmatpush.msra.mxu0 0.0
    %6008 = vmatpush.msra.mxu0 0.0
    %6009 = vmatpush.msra.mxu0 0.0
    %6010 = vmatpush.msra.mxu0 0.0
    %6011 = vmatpush.msra.mxu0 0.0
    %6012 = vmatpush.msra.mxu0 %v5935
    %6013 = vmatmul.f32.gmra.mxu0 %v5923
    %v6014 = vpop.f32.mrf.mxu0
    %v6015 = vadd.f32 0.0, %v6014
    %6016 = vdwg.mxu0
    %v6017 = vadd.f32 %v5877, %v5955
    %v6018 = vadd.f32 %v5878, %v5975
    %v6019 = vadd.f32 %v5879, %v5995
    %v6020 = vadd.f32 %v5880, %v6015
    %6021 = vst [vmem:[#allocation1] ss:$2 sm:$0xff] %v162
    %s6022 = scalar_lea.vmem [#allocation1], 16
    %6023 = vst [vmem:[%s6022] ss:$2 sm:$0xff] %v163
    %v6024 = vld.sshfl [vmem:[#allocation1] sm:$0xff pattern:$0x75316420]
    %v6025 = vld.sshfl [vmem:[#allocation1 + $0x8] sm:$0xff pattern:$0x75316420]
    %v6026 = vld.sshfl [vmem:[#allocation1 + $0x10] sm:$0xff pattern:$0x75316420]
    %v6027 = vld.sshfl [vmem:[#allocation1 + $0x18] sm:$0xff pattern:$0x75316420]
    %6032 = vrot.lane.b32.xlu0 %v6024, 83
    %v6033 = vpop.permute.xlu0 %6032
    %6034 = vrot.lane.b32.xlu0 %v6025, 83
    %v6035 = vpop.permute.xlu0 %6034
    %6036 = vrot.lane.b32.xlu0 %v6026, 83
    %v6037 = vpop.permute.xlu0 %6036
    %6038 = vrot.lane.b32.xlu0 %v6027, 83
    %v6039 = vpop.permute.xlu0 %6038
    %vm6040 = vcmp.lt.s32.totalorder %v186, 83
    %v6041 = vsel %vm6040, %v6037, %v6039
    %v6042 = vsel %vm6040, %v6035, %v6037
    %v6043 = vsel %vm6040, %v6033, %v6035
    %v6044 = vsel %vm6040, %v6039, %v6033
    %s6045 = scalar_lea.vmem %s7, 162
    %v6046 = vld [vmem:[%s6045] ss:$8 sm:$0xf]
    %v6048 = vperm.slane %v6046, 0
    %v6049 = vperm.slane %v6046, 1
    %v6050 = vperm.slane %v6046, 2
    %v6051 = vperm.slane %v6046, 3
    %v6056 = vmul.f32 %v6043, %v6048
    %v6057 = vmul.f32 %v6042, %v6049
    %v6058 = vmul.f32 %v6041, %v6050
    %v6059 = vmul.f32 %v6044, %v6051
    %s6060 = scalar_lea.vmem %s3, 336
    %v6061 = vld [vmem:[%s6060] sm:$0xff]
    %v6063 = vsel %vm248, %v6061, 0
    %v6066 = vsel %vm252, %v6056, 0
    %v6069 = vsel %vm252, %v6057, 0
    %v6072 = vsel %vm252, %v6058, 0
    %v6075 = vsel %vm252, %v6059, 0
    %6077 = vmatpush.msra.mxu0 0.0
    %6078 = vmatpush.msra.mxu0 0.0
    %6079 = vmatpush.msra.mxu0 0.0
    %6080 = vmatpush.msra.mxu0 0.0
    %6081 = vmatpush.msra.mxu0 0.0
    %6082 = vmatpush.msra.mxu0 0.0
    %6083 = vmatpush.msra.mxu0 0.0
    %6084 = vmatpush.msra.mxu0 0.0
    %6085 = vmatpush.msra.mxu0 0.0
    %6086 = vmatpush.msra.mxu0 0.0
    %6087 = vmatpush.msra.mxu0 0.0
    %6088 = vmatpush.msra.mxu0 0.0
    %6089 = vmatpush.msra.mxu0 0.0
    %6090 = vmatpush.msra.mxu0 0.0
    %6091 = vmatpush.msra.mxu0 0.0
    %6092 = vmatpush.msra.mxu0 %v6066
    %6093 = vmatmul.f32.gmra.mxu0 %v6063
    %v6094 = vpop.f32.mrf.mxu0
    %v6095 = vadd.f32 0.0, %v6094
    %6096 = vdwg.mxu0
    %6097 = vmatpush.msra.mxu0 0.0
    %6098 = vmatpush.msra.mxu0 0.0
    %6099 = vmatpush.msra.mxu0 0.0
    %6100 = vmatpush.msra.mxu0 0.0
    %6101 = vmatpush.msra.mxu0 0.0
    %6102 = vmatpush.msra.mxu0 0.0
    %6103 = vmatpush.msra.mxu0 0.0
    %6104 = vmatpush.msra.mxu0 0.0
    %6105 = vmatpush.msra.mxu0 0.0
    %6106 = vmatpush.msra.mxu0 0.0
    %6107 = vmatpush.msra.mxu0 0.0
    %6108 = vmatpush.msra.mxu0 0.0
    %6109 = vmatpush.msra.mxu0 0.0
    %6110 = vmatpush.msra.mxu0 0.0
    %6111 = vmatpush.msra.mxu0 0.0
    %6112 = vmatpush.msra.mxu0 %v6069
    %6113 = vmatmul.f32.gmra.mxu0 %v6063
    %v6114 = vpop.f32.mrf.mxu0
    %v6115 = vadd.f32 0.0, %v6114
    %6116 = vdwg.mxu0
    %6117 = vmatpush.msra.mxu0 0.0
    %6118 = vmatpush.msra.mxu0 0.0
    %6119 = vmatpush.msra.mxu0 0.0
    %6120 = vmatpush.msra.mxu0 0.0
    %6121 = vmatpush.msra.mxu0 0.0
    %6122 = vmatpush.msra.mxu0 0.0
    %6123 = vmatpush.msra.mxu0 0.0
    %6124 = vmatpush.msra.mxu0 0.0
    %6125 = vmatpush.msra.mxu0 0.0
    %6126 = vmatpush.msra.mxu0 0.0
    %6127 = vmatpush.msra.mxu0 0.0
    %6128 = vmatpush.msra.mxu0 0.0
    %6129 = vmatpush.msra.mxu0 0.0
    %6130 = vmatpush.msra.mxu0 0.0
    %6131 = vmatpush.msra.mxu0 0.0
    %6132 = vmatpush.msra.mxu0 %v6072
    %6133 = vmatmul.f32.gmra.mxu0 %v6063
    %v6134 = vpop.f32.mrf.mxu0
    %v6135 = vadd.f32 0.0, %v6134
    %6136 = vdwg.mxu0
    %6137 = vmatpush.msra.mxu0 0.0
    %6138 = vmatpush.msra.mxu0 0.0
    %6139 = vmatpush.msra.mxu0 0.0
    %6140 = vmatpush.msra.mxu0 0.0
    %6141 = vmatpush.msra.mxu0 0.0
    %6142 = vmatpush.msra.mxu0 0.0
    %6143 = vmatpush.msra.mxu0 0.0
    %6144 = vmatpush.msra.mxu0 0.0
    %6145 = vmatpush.msra.mxu0 0.0
    %6146 = vmatpush.msra.mxu0 0.0
    %6147 = vmatpush.msra.mxu0 0.0
    %6148 = vmatpush.msra.mxu0 0.0
    %6149 = vmatpush.msra.mxu0 0.0
    %6150 = vmatpush.msra.mxu0 0.0
    %6151 = vmatpush.msra.mxu0 0.0
    %6152 = vmatpush.msra.mxu0 %v6075
    %6153 = vmatmul.f32.gmra.mxu0 %v6063
    %v6154 = vpop.f32.mrf.mxu0
    %v6155 = vadd.f32 0.0, %v6154
    %6156 = vdwg.mxu0
    %v6157 = vadd.f32 %v6017, %v6095
    %v6158 = vadd.f32 %v6018, %v6115
    %v6159 = vadd.f32 %v6019, %v6135
    %v6160 = vadd.f32 %v6020, %v6155
    %6161 = vst [vmem:[#allocation1] ss:$2 sm:$0xff] %v162
    %s6162 = scalar_lea.vmem [#allocation1], 16
    %6163 = vst [vmem:[%s6162] ss:$2 sm:$0xff] %v163
    %v6164 = vld.sshfl [vmem:[#allocation1] sm:$0xff pattern:$0x75316420]
    %v6165 = vld.sshfl [vmem:[#allocation1 + $0x8] sm:$0xff pattern:$0x75316420]
    %v6166 = vld.sshfl [vmem:[#allocation1 + $0x10] sm:$0xff pattern:$0x75316420]
    %v6167 = vld.sshfl [vmem:[#allocation1 + $0x18] sm:$0xff pattern:$0x75316420]
    %6172 = vrot.lane.b32.xlu0 %v6164, 82
    %v6173 = vpop.permute.xlu0 %6172
    %6174 = vrot.lane.b32.xlu0 %v6165, 82
    %v6175 = vpop.permute.xlu0 %6174
    %6176 = vrot.lane.b32.xlu0 %v6166, 82
    %v6177 = vpop.permute.xlu0 %6176
    %6178 = vrot.lane.b32.xlu0 %v6167, 82
    %v6179 = vpop.permute.xlu0 %6178
    %vm6180 = vcmp.lt.s32.totalorder %v186, 82
    %v6181 = vsel %vm6180, %v6177, %v6179
    %v6182 = vsel %vm6180, %v6175, %v6177
    %v6183 = vsel %vm6180, %v6173, %v6175
    %v6184 = vsel %vm6180, %v6179, %v6173
    %s6185 = scalar_lea.vmem %s7, 163
    %v6186 = vld [vmem:[%s6185] ss:$8 sm:$0xf]
    %v6188 = vperm.slane %v6186, 0
    %v6189 = vperm.slane %v6186, 1
    %v6190 = vperm.slane %v6186, 2
    %v6191 = vperm.slane %v6186, 3
    %v6196 = vmul.f32 %v6183, %v6188
    %v6197 = vmul.f32 %v6182, %v6189
    %v6198 = vmul.f32 %v6181, %v6190
    %v6199 = vmul.f32 %v6184, %v6191
    %s6200 = scalar_lea.vmem %s3, 344
    %v6201 = vld [vmem:[%s6200] sm:$0xff]
    %v6203 = vsel %vm248, %v6201, 0
    %v6206 = vsel %vm252, %v6196, 0
    %v6209 = vsel %vm252, %v6197, 0
    %v6212 = vsel %vm252, %v6198, 0
    %v6215 = vsel %vm252, %v6199, 0
    %6217 = vmatpush.msra.mxu0 0.0
    %6218 = vmatpush.msra.mxu0 0.0
    %6219 = vmatpush.msra.mxu0 0.0
    %6220 = vmatpush.msra.mxu0 0.0
    %6221 = vmatpush.msra.mxu0 0.0
    %6222 = vmatpush.msra.mxu0 0.0
    %6223 = vmatpush.msra.mxu0 0.0
    %6224 = vmatpush.msra.mxu0 0.0
    %6225 = vmatpush.msra.mxu0 0.0
    %6226 = vmatpush.msra.mxu0 0.0
    %6227 = vmatpush.msra.mxu0 0.0
    %6228 = vmatpush.msra.mxu0 0.0
    %6229 = vmatpush.msra.mxu0 0.0
    %6230 = vmatpush.msra.mxu0 0.0
    %6231 = vmatpush.msra.mxu0 0.0
    %6232 = vmatpush.msra.mxu0 %v6206
    %6233 = vmatmul.f32.gmra.mxu0 %v6203
    %v6234 = vpop.f32.mrf.mxu0
    %v6235 = vadd.f32 0.0, %v6234
    %6236 = vdwg.mxu0
    %6237 = vmatpush.msra.mxu0 0.0
    %6238 = vmatpush.msra.mxu0 0.0
    %6239 = vmatpush.msra.mxu0 0.0
    %6240 = vmatpush.msra.mxu0 0.0
    %6241 = vmatpush.msra.mxu0 0.0
    %6242 = vmatpush.msra.mxu0 0.0
    %6243 = vmatpush.msra.mxu0 0.0
    %6244 = vmatpush.msra.mxu0 0.0
    %6245 = vmatpush.msra.mxu0 0.0
    %6246 = vmatpush.msra.mxu0 0.0
    %6247 = vmatpush.msra.mxu0 0.0
    %6248 = vmatpush.msra.mxu0 0.0
    %6249 = vmatpush.msra.mxu0 0.0
    %6250 = vmatpush.msra.mxu0 0.0
    %6251 = vmatpush.msra.mxu0 0.0
    %6252 = vmatpush.msra.mxu0 %v6209
    %6253 = vmatmul.f32.gmra.mxu0 %v6203
    %v6254 = vpop.f32.mrf.mxu0
    %v6255 = vadd.f32 0.0, %v6254
    %6256 = vdwg.mxu0
    %6257 = vmatpush.msra.mxu0 0.0
    %6258 = vmatpush.msra.mxu0 0.0
    %6259 = vmatpush.msra.mxu0 0.0
    %6260 = vmatpush.msra.mxu0 0.0
    %6261 = vmatpush.msra.mxu0 0.0
    %6262 = vmatpush.msra.mxu0 0.0
    %6263 = vmatpush.msra.mxu0 0.0
    %6264 = vmatpush.msra.mxu0 0.0
    %6265 = vmatpush.msra.mxu0 0.0
    %6266 = vmatpush.msra.mxu0 0.0
    %6267 = vmatpush.msra.mxu0 0.0
    %6268 = vmatpush.msra.mxu0 0.0
    %6269 = vmatpush.msra.mxu0 0.0
    %6270 = vmatpush.msra.mxu0 0.0
    %6271 = vmatpush.msra.mxu0 0.0
    %6272 = vmatpush.msra.mxu0 %v6212
    %6273 = vmatmul.f32.gmra.mxu0 %v6203
    %v6274 = vpop.f32.mrf.mxu0
    %v6275 = vadd.f32 0.0, %v6274
    %6276 = vdwg.mxu0
    %6277 = vmatpush.msra.mxu0 0.0
    %6278 = vmatpush.msra.mxu0 0.0
    %6279 = vmatpush.msra.mxu0 0.0
    %6280 = vmatpush.msra.mxu0 0.0
    %6281 = vmatpush.msra.mxu0 0.0
    %6282 = vmatpush.msra.mxu0 0.0
    %6283 = vmatpush.msra.mxu0 0.0
    %6284 = vmatpush.msra.mxu0 0.0
    %6285 = vmatpush.msra.mxu0 0.0
    %6286 = vmatpush.msra.mxu0 0.0
    %6287 = vmatpush.msra.mxu0 0.0
    %6288 = vmatpush.msra.mxu0 0.0
    %6289 = vmatpush.msra.mxu0 0.0
    %6290 = vmatpush.msra.mxu0 0.0
    %6291 = vmatpush.msra.mxu0 0.0
    %6292 = vmatpush.msra.mxu0 %v6215
    %6293 = vmatmul.f32.gmra.mxu0 %v6203
    %v6294 = vpop.f32.mrf.mxu0
    %v6295 = vadd.f32 0.0, %v6294
    %6296 = vdwg.mxu0
    %v6297 = vadd.f32 %v6157, %v6235
    %v6298 = vadd.f32 %v6158, %v6255
    %v6299 = vadd.f32 %v6159, %v6275
    %v6300 = vadd.f32 %v6160, %v6295
    %6301 = vst [vmem:[#allocation1] ss:$2 sm:$0xff] %v162
    %s6302 = scalar_lea.vmem [#allocation1], 16
    %6303 = vst [vmem:[%s6302] ss:$2 sm:$0xff] %v163
    %v6304 = vld.sshfl [vmem:[#allocation1] sm:$0xff pattern:$0x75316420]
    %v6305 = vld.sshfl [vmem:[#allocation1 + $0x8] sm:$0xff pattern:$0x75316420]
    %v6306 = vld.sshfl [vmem:[#allocation1 + $0x10] sm:$0xff pattern:$0x75316420]
    %v6307 = vld.sshfl [vmem:[#allocation1 + $0x18] sm:$0xff pattern:$0x75316420]
    %6312 = vrot.lane.b32.xlu0 %v6304, 81
    %v6313 = vpop.permute.xlu0 %6312
    %6314 = vrot.lane.b32.xlu0 %v6305, 81
    %v6315 = vpop.permute.xlu0 %6314
    %6316 = vrot.lane.b32.xlu0 %v6306, 81
    %v6317 = vpop.permute.xlu0 %6316
    %6318 = vrot.lane.b32.xlu0 %v6307, 81
    %v6319 = vpop.permute.xlu0 %6318
    %vm6320 = vcmp.lt.s32.totalorder %v186, 81
    %v6321 = vsel %vm6320, %v6317, %v6319
    %v6322 = vsel %vm6320, %v6315, %v6317
    %v6323 = vsel %vm6320, %v6313, %v6315
    %v6324 = vsel %vm6320, %v6319, %v6313
    %s6325 = scalar_lea.vmem %s7, 164
    %v6326 = vld [vmem:[%s6325] ss:$8 sm:$0xf]
    %v6328 = vperm.slane %v6326, 0
    %v6329 = vperm.slane %v6326, 1
    %v6330 = vperm.slane %v6326, 2
    %v6331 = vperm.slane %v6326, 3
    %v6336 = vmul.f32 %v6323, %v6328
    %v6337 = vmul.f32 %v6322, %v6329
    %v6338 = vmul.f32 %v6321, %v6330
    %v6339 = vmul.f32 %v6324, %v6331
    %s6340 = scalar_lea.vmem %s3, 352
    %v6341 = vld [vmem:[%s6340] sm:$0xff]
    %v6343 = vsel %vm248, %v6341, 0
    %v6346 = vsel %vm252, %v6336, 0
    %v6349 = vsel %vm252, %v6337, 0
    %v6352 = vsel %vm252, %v6338, 0
    %v6355 = vsel %vm252, %v6339, 0
    %6357 = vmatpush.msra.mxu0 0.0
    %6358 = vmatpush.msra.mxu0 0.0
    %6359 = vmatpush.msra.mxu0 0.0
    %6360 = vmatpush.msra.mxu0 0.0
    %6361 = vmatpush.msra.mxu0 0.0
    %6362 = vmatpush.msra.mxu0 0.0
    %6363 = vmatpush.msra.mxu0 0.0
    %6364 = vmatpush.msra.mxu0 0.0
    %6365 = vmatpush.msra.mxu0 0.0
    %6366 = vmatpush.msra.mxu0 0.0
    %6367 = vmatpush.msra.mxu0 0.0
    %6368 = vmatpush.msra.mxu0 0.0
    %6369 = vmatpush.msra.mxu0 0.0
    %6370 = vmatpush.msra.mxu0 0.0
    %6371 = vmatpush.msra.mxu0 0.0
    %6372 = vmatpush.msra.mxu0 %v6346
    %6373 = vmatmul.f32.gmra.mxu0 %v6343
    %v6374 = vpop.f32.mrf.mxu0
    %v6375 = vadd.f32 0.0, %v6374
    %6376 = vdwg.mxu0
    %6377 = vmatpush.msra.mxu0 0.0
    %6378 = vmatpush.msra.mxu0 0.0
    %6379 = vmatpush.msra.mxu0 0.0
    %6380 = vmatpush.msra.mxu0 0.0
    %6381 = vmatpush.msra.mxu0 0.0
    %6382 = vmatpush.msra.mxu0 0.0
    %6383 = vmatpush.msra.mxu0 0.0
    %6384 = vmatpush.msra.mxu0 0.0
    %6385 = vmatpush.msra.mxu0 0.0
    %6386 = vmatpush.msra.mxu0 0.0
    %6387 = vmatpush.msra.mxu0 0.0
    %6388 = vmatpush.msra.mxu0 0.0
    %6389 = vmatpush.msra.mxu0 0.0
    %6390 = vmatpush.msra.mxu0 0.0
    %6391 = vmatpush.msra.mxu0 0.0
    %6392 = vmatpush.msra.mxu0 %v6349
    %6393 = vmatmul.f32.gmra.mxu0 %v6343
    %v6394 = vpop.f32.mrf.mxu0
    %v6395 = vadd.f32 0.0, %v6394
    %6396 = vdwg.mxu0
    %6397 = vmatpush.msra.mxu0 0.0
    %6398 = vmatpush.msra.mxu0 0.0
    %6399 = vmatpush.msra.mxu0 0.0
    %6400 = vmatpush.msra.mxu0 0.0
    %6401 = vmatpush.msra.mxu0 0.0
    %6402 = vmatpush.msra.mxu0 0.0
    %6403 = vmatpush.msra.mxu0 0.0
    %6404 = vmatpush.msra.mxu0 0.0
    %6405 = vmatpush.msra.mxu0 0.0
    %6406 = vmatpush.msra.mxu0 0.0
    %6407 = vmatpush.msra.mxu0 0.0
    %6408 = vmatpush.msra.mxu0 0.0
    %6409 = vmatpush.msra.mxu0 0.0
    %6410 = vmatpush.msra.mxu0 0.0
    %6411 = vmatpush.msra.mxu0 0.0
    %6412 = vmatpush.msra.mxu0 %v6352
    %6413 = vmatmul.f32.gmra.mxu0 %v6343
    %v6414 = vpop.f32.mrf.mxu0
    %v6415 = vadd.f32 0.0, %v6414
    %6416 = vdwg.mxu0
    %6417 = vmatpush.msra.mxu0 0.0
    %6418 = vmatpush.msra.mxu0 0.0
    %6419 = vmatpush.msra.mxu0 0.0
    %6420 = vmatpush.msra.mxu0 0.0
    %6421 = vmatpush.msra.mxu0 0.0
    %6422 = vmatpush.msra.mxu0 0.0
    %6423 = vmatpush.msra.mxu0 0.0
    %6424 = vmatpush.msra.mxu0 0.0
    %6425 = vmatpush.msra.mxu0 0.0
    %6426 = vmatpush.msra.mxu0 0.0
    %6427 = vmatpush.msra.mxu0 0.0
    %6428 = vmatpush.msra.mxu0 0.0
    %6429 = vmatpush.msra.mxu0 0.0
    %6430 = vmatpush.msra.mxu0 0.0
    %6431 = vmatpush.msra.mxu0 0.0
    %6432 = vmatpush.msra.mxu0 %v6355
    %6433 = vmatmul.f32.gmra.mxu0 %v6343
    %v6434 = vpop.f32.mrf.mxu0
    %v6435 = vadd.f32 0.0, %v6434
    %6436 = vdwg.mxu0
    %v6437 = vadd.f32 %v6297, %v6375
    %v6438 = vadd.f32 %v6298, %v6395
    %v6439 = vadd.f32 %v6299, %v6415
    %v6440 = vadd.f32 %v6300, %v6435
    %6441 = vst [vmem:[#allocation1] ss:$2 sm:$0xff] %v162
    %s6442 = scalar_lea.vmem [#allocation1], 16
    %6443 = vst [vmem:[%s6442] ss:$2 sm:$0xff] %v163
    %v6444 = vld.sshfl [vmem:[#allocation1] sm:$0xff pattern:$0x75316420]
    %v6445 = vld.sshfl [vmem:[#allocation1 + $0x8] sm:$0xff pattern:$0x75316420]
    %v6446 = vld.sshfl [vmem:[#allocation1 + $0x10] sm:$0xff pattern:$0x75316420]
    %v6447 = vld.sshfl [vmem:[#allocation1 + $0x18] sm:$0xff pattern:$0x75316420]
    %6452 = vrot.lane.b32.xlu0 %v6444, 80
    %v6453 = vpop.permute.xlu0 %6452
    %6454 = vrot.lane.b32.xlu0 %v6445, 80
    %v6455 = vpop.permute.xlu0 %6454
    %6456 = vrot.lane.b32.xlu0 %v6446, 80
    %v6457 = vpop.permute.xlu0 %6456
    %6458 = vrot.lane.b32.xlu0 %v6447, 80
    %v6459 = vpop.permute.xlu0 %6458
    %vm6460 = vcmp.lt.s32.totalorder %v186, 80
    %v6461 = vsel %vm6460, %v6457, %v6459
    %v6462 = vsel %vm6460, %v6455, %v6457
    %v6463 = vsel %vm6460, %v6453, %v6455
    %v6464 = vsel %vm6460, %v6459, %v6453
    %s6465 = scalar_lea.vmem %s7, 165
    %v6466 = vld [vmem:[%s6465] ss:$8 sm:$0xf]
    %v6468 = vperm.slane %v6466, 0
    %v6469 = vperm.slane %v6466, 1
    %v6470 = vperm.slane %v6466, 2
    %v6471 = vperm.slane %v6466, 3
    %v6476 = vmul.f32 %v6463, %v6468
    %v6477 = vmul.f32 %v6462, %v6469
    %v6478 = vmul.f32 %v6461, %v6470
    %v6479 = vmul.f32 %v6464, %v6471
    %s6480 = scalar_lea.vmem %s3, 360
    %v6481 = vld [vmem:[%s6480] sm:$0xff]
    %v6483 = vsel %vm248, %v6481, 0
    %v6486 = vsel %vm252, %v6476, 0
    %v6489 = vsel %vm252, %v6477, 0
    %v6492 = vsel %vm252, %v6478, 0
    %v6495 = vsel %vm252, %v6479, 0
    %6497 = vmatpush.msra.mxu0 0.0
    %6498 = vmatpush.msra.mxu0 0.0
    %6499 = vmatpush.msra.mxu0 0.0
    %6500 = vmatpush.msra.mxu0 0.0
    %6501 = vmatpush.msra.mxu0 0.0
    %6502 = vmatpush.msra.mxu0 0.0
    %6503 = vmatpush.msra.mxu0 0.0
    %6504 = vmatpush.msra.mxu0 0.0
    %6505 = vmatpush.msra.mxu0 0.0
    %6506 = vmatpush.msra.mxu0 0.0
    %6507 = vmatpush.msra.mxu0 0.0
    %6508 = vmatpush.msra.mxu0 0.0
    %6509 = vmatpush.msra.mxu0 0.0
    %6510 = vmatpush.msra.mxu0 0.0
    %6511 = vmatpush.msra.mxu0 0.0
    %6512 = vmatpush.msra.mxu0 %v6486
    %6513 = vmatmul.f32.gmra.mxu0 %v6483
    %v6514 = vpop.f32.mrf.mxu0
    %v6515 = vadd.f32 0.0, %v6514
    %6516 = vdwg.mxu0
    %6517 = vmatpush.msra.mxu0 0.0
    %6518 = vmatpush.msra.mxu0 0.0
    %6519 = vmatpush.msra.mxu0 0.0
    %6520 = vmatpush.msra.mxu0 0.0
    %6521 = vmatpush.msra.mxu0 0.0
    %6522 = vmatpush.msra.mxu0 0.0
    %6523 = vmatpush.msra.mxu0 0.0
    %6524 = vmatpush.msra.mxu0 0.0
    %6525 = vmatpush.msra.mxu0 0.0
    %6526 = vmatpush.msra.mxu0 0.0
    %6527 = vmatpush.msra.mxu0 0.0
    %6528 = vmatpush.msra.mxu0 0.0
    %6529 = vmatpush.msra.mxu0 0.0
    %6530 = vmatpush.msra.mxu0 0.0
    %6531 = vmatpush.msra.mxu0 0.0
    %6532 = vmatpush.msra.mxu0 %v6489
    %6533 = vmatmul.f32.gmra.mxu0 %v6483
    %v6534 = vpop.f32.mrf.mxu0
    %v6535 = vadd.f32 0.0, %v6534
    %6536 = vdwg.mxu0
    %6537 = vmatpush.msra.mxu0 0.0
    %6538 = vmatpush.msra.mxu0 0.0
    %6539 = vmatpush.msra.mxu0 0.0
    %6540 = vmatpush.msra.mxu0 0.0
    %6541 = vmatpush.msra.mxu0 0.0
    %6542 = vmatpush.msra.mxu0 0.0
    %6543 = vmatpush.msra.mxu0 0.0
    %6544 = vmatpush.msra.mxu0 0.0
    %6545 = vmatpush.msra.mxu0 0.0
    %6546 = vmatpush.msra.mxu0 0.0
    %6547 = vmatpush.msra.mxu0 0.0
    %6548 = vmatpush.msra.mxu0 0.0
    %6549 = vmatpush.msra.mxu0 0.0
    %6550 = vmatpush.msra.mxu0 0.0
    %6551 = vmatpush.msra.mxu0 0.0
    %6552 = vmatpush.msra.mxu0 %v6492
    %6553 = vmatmul.f32.gmra.mxu0 %v6483
    %v6554 = vpop.f32.mrf.mxu0
    %v6555 = vadd.f32 0.0, %v6554
    %6556 = vdwg.mxu0
    %6557 = vmatpush.msra.mxu0 0.0
    %6558 = vmatpush.msra.mxu0 0.0
    %6559 = vmatpush.msra.mxu0 0.0
    %6560 = vmatpush.msra.mxu0 0.0
    %6561 = vmatpush.msra.mxu0 0.0
    %6562 = vmatpush.msra.mxu0 0.0
    %6563 = vmatpush.msra.mxu0 0.0
    %6564 = vmatpush.msra.mxu0 0.0
    %6565 = vmatpush.msra.mxu0 0.0
    %6566 = vmatpush.msra.mxu0 0.0
    %6567 = vmatpush.msra.mxu0 0.0
    %6568 = vmatpush.msra.mxu0 0.0
    %6569 = vmatpush.msra.mxu0 0.0
    %6570 = vmatpush.msra.mxu0 0.0
    %6571 = vmatpush.msra.mxu0 0.0
    %6572 = vmatpush.msra.mxu0 %v6495
    %6573 = vmatmul.f32.gmra.mxu0 %v6483
    %v6574 = vpop.f32.mrf.mxu0
    %v6575 = vadd.f32 0.0, %v6574
    %6576 = vdwg.mxu0
    %v6577 = vadd.f32 %v6437, %v6515
    %v6578 = vadd.f32 %v6438, %v6535
    %v6579 = vadd.f32 %v6439, %v6555
    %v6580 = vadd.f32 %v6440, %v6575
    %6581 = vst [vmem:[#allocation1] ss:$2 sm:$0xff] %v162
    %s6582 = scalar_lea.vmem [#allocation1], 16
    %6583 = vst [vmem:[%s6582] ss:$2 sm:$0xff] %v163
    %v6584 = vld.sshfl [vmem:[#allocation1] sm:$0xff pattern:$0x75316420]
    %v6585 = vld.sshfl [vmem:[#allocation1 + $0x8] sm:$0xff pattern:$0x75316420]
    %v6586 = vld.sshfl [vmem:[#allocation1 + $0x10] sm:$0xff pattern:$0x75316420]
    %v6587 = vld.sshfl [vmem:[#allocation1 + $0x18] sm:$0xff pattern:$0x75316420]
    %6592 = vrot.lane.b32.xlu0 %v6584, 79
    %v6593 = vpop.permute.xlu0 %6592
    %6594 = vrot.lane.b32.xlu0 %v6585, 79
    %v6595 = vpop.permute.xlu0 %6594
    %6596 = vrot.lane.b32.xlu0 %v6586, 79
    %v6597 = vpop.permute.xlu0 %6596
    %6598 = vrot.lane.b32.xlu0 %v6587, 79
    %v6599 = vpop.permute.xlu0 %6598
    %vm6600 = vcmp.lt.s32.totalorder %v186, 79
    %v6601 = vsel %vm6600, %v6597, %v6599
    %v6602 = vsel %vm6600, %v6595, %v6597
    %v6603 = vsel %vm6600, %v6593, %v6595
    %v6604 = vsel %vm6600, %v6599, %v6593
    %s6605 = scalar_lea.vmem %s7, 166
    %v6606 = vld [vmem:[%s6605] ss:$8 sm:$0xf]
    %v6608 = vperm.slane %v6606, 0
    %v6609 = vperm.slane %v6606, 1
    %v6610 = vperm.slane %v6606, 2
    %v6611 = vperm.slane %v6606, 3
    %v6616 = vmul.f32 %v6603, %v6608
    %v6617 = vmul.f32 %v6602, %v6609
    %v6618 = vmul.f32 %v6601, %v6610
    %v6619 = vmul.f32 %v6604, %v6611
    %s6620 = scalar_lea.vmem %s3, 368
    %v6621 = vld [vmem:[%s6620] sm:$0xff]
    %v6623 = vsel %vm248, %v6621, 0
    %v6626 = vsel %vm252, %v6616, 0
    %v6629 = vsel %vm252, %v6617, 0
    %v6632 = vsel %vm252, %v6618, 0
    %v6635 = vsel %vm252, %v6619, 0
    %6637 = vmatpush.msra.mxu0 0.0
    %6638 = vmatpush.msra.mxu0 0.0
    %6639 = vmatpush.msra.mxu0 0.0
    %6640 = vmatpush.msra.mxu0 0.0
    %6641 = vmatpush.msra.mxu0 0.0
    %6642 = vmatpush.msra.mxu0 0.0
    %6643 = vmatpush.msra.mxu0 0.0
    %6644 = vmatpush.msra.mxu0 0.0
    %6645 = vmatpush.msra.mxu0 0.0
    %6646 = vmatpush.msra.mxu0 0.0
    %6647 = vmatpush.msra.mxu0 0.0
    %6648 = vmatpush.msra.mxu0 0.0
    %6649 = vmatpush.msra.mxu0 0.0
    %6650 = vmatpush.msra.mxu0 0.0
    %6651 = vmatpush.msra.mxu0 0.0
    %6652 = vmatpush.msra.mxu0 %v6626
    %6653 = vmatmul.f32.gmra.mxu0 %v6623
    %v6654 = vpop.f32.mrf.mxu0
    %v6655 = vadd.f32 0.0, %v6654
    %6656 = vdwg.mxu0
    %6657 = vmatpush.msra.mxu0 0.0
    %6658 = vmatpush.msra.mxu0 0.0
    %6659 = vmatpush.msra.mxu0 0.0
    %6660 = vmatpush.msra.mxu0 0.0
    %6661 = vmatpush.msra.mxu0 0.0
    %6662 = vmatpush.msra.mxu0 0.0
    %6663 = vmatpush.msra.mxu0 0.0
    %6664 = vmatpush.msra.mxu0 0.0
    %6665 = vmatpush.msra.mxu0 0.0
    %6666 = vmatpush.msra.mxu0 0.0
    %6667 = vmatpush.msra.mxu0 0.0
    %6668 = vmatpush.msra.mxu0 0.0
    %6669 = vmatpush.msra.mxu0 0.0
    %6670 = vmatpush.msra.mxu0 0.0
    %6671 = vmatpush.msra.mxu0 0.0
    %6672 = vmatpush.msra.mxu0 %v6629
    %6673 = vmatmul.f32.gmra.mxu0 %v6623
    %v6674 = vpop.f32.mrf.mxu0
    %v6675 = vadd.f32 0.0, %v6674
    %6676 = vdwg.mxu0
    %6677 = vmatpush.msra.mxu0 0.0
    %6678 = vmatpush.msra.mxu0 0.0
    %6679 = vmatpush.msra.mxu0 0.0
    %6680 = vmatpush.msra.mxu0 0.0
    %6681 = vmatpush.msra.mxu0 0.0
    %6682 = vmatpush.msra.mxu0 0.0
    %6683 = vmatpush.msra.mxu0 0.0
    %6684 = vmatpush.msra.mxu0 0.0
    %6685 = vmatpush.msra.mxu0 0.0
    %6686 = vmatpush.msra.mxu0 0.0
    %6687 = vmatpush.msra.mxu0 0.0
    %6688 = vmatpush.msra.mxu0 0.0
    %6689 = vmatpush.msra.mxu0 0.0
    %6690 = vmatpush.msra.mxu0 0.0
    %6691 = vmatpush.msra.mxu0 0.0
    %6692 = vmatpush.msra.mxu0 %v6632
    %6693 = vmatmul.f32.gmra.mxu0 %v6623
    %v6694 = vpop.f32.mrf.mxu0
    %v6695 = vadd.f32 0.0, %v6694
    %6696 = vdwg.mxu0
    %6697 = vmatpush.msra.mxu0 0.0
    %6698 = vmatpush.msra.mxu0 0.0
    %6699 = vmatpush.msra.mxu0 0.0
    %6700 = vmatpush.msra.mxu0 0.0
    %6701 = vmatpush.msra.mxu0 0.0
    %6702 = vmatpush.msra.mxu0 0.0
    %6703 = vmatpush.msra.mxu0 0.0
    %6704 = vmatpush.msra.mxu0 0.0
    %6705 = vmatpush.msra.mxu0 0.0
    %6706 = vmatpush.msra.mxu0 0.0
    %6707 = vmatpush.msra.mxu0 0.0
    %6708 = vmatpush.msra.mxu0 0.0
    %6709 = vmatpush.msra.mxu0 0.0
    %6710 = vmatpush.msra.mxu0 0.0
    %6711 = vmatpush.msra.mxu0 0.0
    %6712 = vmatpush.msra.mxu0 %v6635
    %6713 = vmatmul.f32.gmra.mxu0 %v6623
    %v6714 = vpop.f32.mrf.mxu0
    %v6715 = vadd.f32 0.0, %v6714
    %6716 = vdwg.mxu0
    %v6717 = vadd.f32 %v6577, %v6655
    %v6718 = vadd.f32 %v6578, %v6675
    %v6719 = vadd.f32 %v6579, %v6695
    %v6720 = vadd.f32 %v6580, %v6715
    %6721 = vst [vmem:[#allocation1] ss:$2 sm:$0xff] %v162
    %s6722 = scalar_lea.vmem [#allocation1], 16
    %6723 = vst [vmem:[%s6722] ss:$2 sm:$0xff] %v163
    %v6724 = vld.sshfl [vmem:[#allocation1] sm:$0xff pattern:$0x75316420]
    %v6725 = vld.sshfl [vmem:[#allocation1 + $0x8] sm:$0xff pattern:$0x75316420]
    %v6726 = vld.sshfl [vmem:[#allocation1 + $0x10] sm:$0xff pattern:$0x75316420]
    %v6727 = vld.sshfl [vmem:[#allocation1 + $0x18] sm:$0xff pattern:$0x75316420]
    %6732 = vrot.lane.b32.xlu0 %v6724, 78
    %v6733 = vpop.permute.xlu0 %6732
    %6734 = vrot.lane.b32.xlu0 %v6725, 78
    %v6735 = vpop.permute.xlu0 %6734
    %6736 = vrot.lane.b32.xlu0 %v6726, 78
    %v6737 = vpop.permute.xlu0 %6736
    %6738 = vrot.lane.b32.xlu0 %v6727, 78
    %v6739 = vpop.permute.xlu0 %6738
    %vm6740 = vcmp.lt.s32.totalorder %v186, 78
    %v6741 = vsel %vm6740, %v6737, %v6739
    %v6742 = vsel %vm6740, %v6735, %v6737
    %v6743 = vsel %vm6740, %v6733, %v6735
    %v6744 = vsel %vm6740, %v6739, %v6733
    %s6745 = scalar_lea.vmem %s7, 167
    %v6746 = vld [vmem:[%s6745] ss:$8 sm:$0xf]
    %v6748 = vperm.slane %v6746, 0
    %v6749 = vperm.slane %v6746, 1
    %v6750 = vperm.slane %v6746, 2
    %v6751 = vperm.slane %v6746, 3
    %v6756 = vmul.f32 %v6743, %v6748
    %v6757 = vmul.f32 %v6742, %v6749
    %v6758 = vmul.f32 %v6741, %v6750
    %v6759 = vmul.f32 %v6744, %v6751
    %s6760 = scalar_lea.vmem %s3, 376
    %v6761 = vld [vmem:[%s6760] sm:$0xff]
    %v6763 = vsel %vm248, %v6761, 0
    %v6766 = vsel %vm252, %v6756, 0
    %v6769 = vsel %vm252, %v6757, 0
    %v6772 = vsel %vm252, %v6758, 0
    %v6775 = vsel %vm252, %v6759, 0
    %6777 = vmatpush.msra.mxu0 0.0
    %6778 = vmatpush.msra.mxu0 0.0
    %6779 = vmatpush.msra.mxu0 0.0
    %6780 = vmatpush.msra.mxu0 0.0
    %6781 = vmatpush.msra.mxu0 0.0
    %6782 = vmatpush.msra.mxu0 0.0
    %6783 = vmatpush.msra.mxu0 0.0
    %6784 = vmatpush.msra.mxu0 0.0
    %6785 = vmatpush.msra.mxu0 0.0
    %6786 = vmatpush.msra.mxu0 0.0
    %6787 = vmatpush.msra.mxu0 0.0
    %6788 = vmatpush.msra.mxu0 0.0
    %6789 = vmatpush.msra.mxu0 0.0
    %6790 = vmatpush.msra.mxu0 0.0
    %6791 = vmatpush.msra.mxu0 0.0
    %6792 = vmatpush.msra.mxu0 %v6766
    %6793 = vmatmul.f32.gmra.mxu0 %v6763
    %v6794 = vpop.f32.mrf.mxu0
    %v6795 = vadd.f32 0.0, %v6794
    %6796 = vdwg.mxu0
    %6797 = vmatpush.msra.mxu0 0.0
    %6798 = vmatpush.msra.mxu0 0.0
    %6799 = vmatpush.msra.mxu0 0.0
    %6800 = vmatpush.msra.mxu0 0.0
    %6801 = vmatpush.msra.mxu0 0.0
    %6802 = vmatpush.msra.mxu0 0.0
    %6803 = vmatpush.msra.mxu0 0.0
    %6804 = vmatpush.msra.mxu0 0.0
    %6805 = vmatpush.msra.mxu0 0.0
    %6806 = vmatpush.msra.mxu0 0.0
    %6807 = vmatpush.msra.mxu0 0.0
    %6808 = vmatpush.msra.mxu0 0.0
    %6809 = vmatpush.msra.mxu0 0.0
    %6810 = vmatpush.msra.mxu0 0.0
    %6811 = vmatpush.msra.mxu0 0.0
    %6812 = vmatpush.msra.mxu0 %v6769
    %6813 = vmatmul.f32.gmra.mxu0 %v6763
    %v6814 = vpop.f32.mrf.mxu0
    %v6815 = vadd.f32 0.0, %v6814
    %6816 = vdwg.mxu0
    %6817 = vmatpush.msra.mxu0 0.0
    %6818 = vmatpush.msra.mxu0 0.0
    %6819 = vmatpush.msra.mxu0 0.0
    %6820 = vmatpush.msra.mxu0 0.0
    %6821 = vmatpush.msra.mxu0 0.0
    %6822 = vmatpush.msra.mxu0 0.0
    %6823 = vmatpush.msra.mxu0 0.0
    %6824 = vmatpush.msra.mxu0 0.0
    %6825 = vmatpush.msra.mxu0 0.0
    %6826 = vmatpush.msra.mxu0 0.0
    %6827 = vmatpush.msra.mxu0 0.0
    %6828 = vmatpush.msra.mxu0 0.0
    %6829 = vmatpush.msra.mxu0 0.0
    %6830 = vmatpush.msra.mxu0 0.0
    %6831 = vmatpush.msra.mxu0 0.0
    %6832 = vmatpush.msra.mxu0 %v6772
    %6833 = vmatmul.f32.gmra.mxu0 %v6763
    %v6834 = vpop.f32.mrf.mxu0
    %v6835 = vadd.f32 0.0, %v6834
    %6836 = vdwg.mxu0
    %6837 = vmatpush.msra.mxu0 0.0
    %6838 = vmatpush.msra.mxu0 0.0
    %6839 = vmatpush.msra.mxu0 0.0
    %6840 = vmatpush.msra.mxu0 0.0
    %6841 = vmatpush.msra.mxu0 0.0
    %6842 = vmatpush.msra.mxu0 0.0
    %6843 = vmatpush.msra.mxu0 0.0
    %6844 = vmatpush.msra.mxu0 0.0
    %6845 = vmatpush.msra.mxu0 0.0
    %6846 = vmatpush.msra.mxu0 0.0
    %6847 = vmatpush.msra.mxu0 0.0
    %6848 = vmatpush.msra.mxu0 0.0
    %6849 = vmatpush.msra.mxu0 0.0
    %6850 = vmatpush.msra.mxu0 0.0
    %6851 = vmatpush.msra.mxu0 0.0
    %6852 = vmatpush.msra.mxu0 %v6775
    %6853 = vmatmul.f32.gmra.mxu0 %v6763
    %v6854 = vpop.f32.mrf.mxu0
    %v6855 = vadd.f32 0.0, %v6854
    %6856 = vdwg.mxu0
    %v6857 = vadd.f32 %v6717, %v6795
    %v6858 = vadd.f32 %v6718, %v6815
    %v6859 = vadd.f32 %v6719, %v6835
    %v6860 = vadd.f32 %v6720, %v6855
    %6861 = vst [vmem:[#allocation1] ss:$2 sm:$0xff] %v162
    %s6862 = scalar_lea.vmem [#allocation1], 16
    %6863 = vst [vmem:[%s6862] ss:$2 sm:$0xff] %v163
    %v6864 = vld.sshfl [vmem:[#allocation1] sm:$0xff pattern:$0x75316420]
    %v6865 = vld.sshfl [vmem:[#allocation1 + $0x8] sm:$0xff pattern:$0x75316420]
    %v6866 = vld.sshfl [vmem:[#allocation1 + $0x10] sm:$0xff pattern:$0x75316420]
    %v6867 = vld.sshfl [vmem:[#allocation1 + $0x18] sm:$0xff pattern:$0x75316420]
    %6872 = vrot.lane.b32.xlu0 %v6864, 77
    %v6873 = vpop.permute.xlu0 %6872
    %6874 = vrot.lane.b32.xlu0 %v6865, 77
    %v6875 = vpop.permute.xlu0 %6874
    %6876 = vrot.lane.b32.xlu0 %v6866, 77
    %v6877 = vpop.permute.xlu0 %6876
    %6878 = vrot.lane.b32.xlu0 %v6867, 77
    %v6879 = vpop.permute.xlu0 %6878
    %vm6880 = vcmp.lt.s32.totalorder %v186, 77
    %v6881 = vsel %vm6880, %v6877, %v6879
    %v6882 = vsel %vm6880, %v6875, %v6877
    %v6883 = vsel %vm6880, %v6873, %v6875
    %v6884 = vsel %vm6880, %v6879, %v6873
    %s6885 = scalar_lea.vmem %s7, 192
    %v6886 = vld [vmem:[%s6885] ss:$8 sm:$0xf]
    %v6888 = vperm.slane %v6886, 0
    %v6889 = vperm.slane %v6886, 1
    %v6890 = vperm.slane %v6886, 2
    %v6891 = vperm.slane %v6886, 3
    %v6896 = vmul.f32 %v6883, %v6888
    %v6897 = vmul.f32 %v6882, %v6889
    %v6898 = vmul.f32 %v6881, %v6890
    %v6899 = vmul.f32 %v6884, %v6891
    %s6900 = scalar_lea.vmem %s3, 384
    %v6901 = vld [vmem:[%s6900] sm:$0xff]
    %v6903 = vsel %vm248, %v6901, 0
    %v6906 = vsel %vm252, %v6896, 0
    %v6909 = vsel %vm252, %v6897, 0
    %v6912 = vsel %vm252, %v6898, 0
    %v6915 = vsel %vm252, %v6899, 0
    %6917 = vmatpush.msra.mxu0 0.0
    %6918 = vmatpush.msra.mxu0 0.0
    %6919 = vmatpush.msra.mxu0 0.0
    %6920 = vmatpush.msra.mxu0 0.0
    %6921 = vmatpush.msra.mxu0 0.0
    %6922 = vmatpush.msra.mxu0 0.0
    %6923 = vmatpush.msra.mxu0 0.0
    %6924 = vmatpush.msra.mxu0 0.0
    %6925 = vmatpush.msra.mxu0 0.0
    %6926 = vmatpush.msra.mxu0 0.0
    %6927 = vmatpush.msra.mxu0 0.0
    %6928 = vmatpush.msra.mxu0 0.0
    %6929 = vmatpush.msra.mxu0 0.0
    %6930 = vmatpush.msra.mxu0 0.0
    %6931 = vmatpush.msra.mxu0 0.0
    %6932 = vmatpush.msra.mxu0 %v6906
    %6933 = vmatmul.f32.gmra.mxu0 %v6903
    %v6934 = vpop.f32.mrf.mxu0
    %v6935 = vadd.f32 0.0, %v6934
    %6936 = vdwg.mxu0
    %6937 = vmatpush.msra.mxu0 0.0
    %6938 = vmatpush.msra.mxu0 0.0
    %6939 = vmatpush.msra.mxu0 0.0
    %6940 = vmatpush.msra.mxu0 0.0
    %6941 = vmatpush.msra.mxu0 0.0
    %6942 = vmatpush.msra.mxu0 0.0
    %6943 = vmatpush.msra.mxu0 0.0
    %6944 = vmatpush.msra.mxu0 0.0
    %6945 = vmatpush.msra.mxu0 0.0
    %6946 = vmatpush.msra.mxu0 0.0
    %6947 = vmatpush.msra.mxu0 0.0
    %6948 = vmatpush.msra.mxu0 0.0
    %6949 = vmatpush.msra.mxu0 0.0
    %6950 = vmatpush.msra.mxu0 0.0
    %6951 = vmatpush.msra.mxu0 0.0
    %6952 = vmatpush.msra.mxu0 %v6909
    %6953 = vmatmul.f32.gmra.mxu0 %v6903
    %v6954 = vpop.f32.mrf.mxu0
    %v6955 = vadd.f32 0.0, %v6954
    %6956 = vdwg.mxu0
    %6957 = vmatpush.msra.mxu0 0.0
    %6958 = vmatpush.msra.mxu0 0.0
    %6959 = vmatpush.msra.mxu0 0.0
    %6960 = vmatpush.msra.mxu0 0.0
    %6961 = vmatpush.msra.mxu0 0.0
    %6962 = vmatpush.msra.mxu0 0.0
    %6963 = vmatpush.msra.mxu0 0.0
    %6964 = vmatpush.msra.mxu0 0.0
    %6965 = vmatpush.msra.mxu0 0.0
    %6966 = vmatpush.msra.mxu0 0.0
    %6967 = vmatpush.msra.mxu0 0.0
    %6968 = vmatpush.msra.mxu0 0.0
    %6969 = vmatpush.msra.mxu0 0.0
    %6970 = vmatpush.msra.mxu0 0.0
    %6971 = vmatpush.msra.mxu0 0.0
    %6972 = vmatpush.msra.mxu0 %v6912
    %6973 = vmatmul.f32.gmra.mxu0 %v6903
    %v6974 = vpop.f32.mrf.mxu0
    %v6975 = vadd.f32 0.0, %v6974
    %6976 = vdwg.mxu0
    %6977 = vmatpush.msra.mxu0 0.0
    %6978 = vmatpush.msra.mxu0 0.0
    %6979 = vmatpush.msra.mxu0 0.0
    %6980 = vmatpush.msra.mxu0 0.0
    %6981 = vmatpush.msra.mxu0 0.0
    %6982 = vmatpush.msra.mxu0 0.0
    %6983 = vmatpush.msra.mxu0 0.0
    %6984 = vmatpush.msra.mxu0 0.0
    %6985 = vmatpush.msra.mxu0 0.0
    %6986 = vmatpush.msra.mxu0 0.0
    %6987 = vmatpush.msra.mxu0 0.0
    %6988 = vmatpush.msra.mxu0 0.0
    %6989 = vmatpush.msra.mxu0 0.0
    %6990 = vmatpush.msra.mxu0 0.0
    %6991 = vmatpush.msra.mxu0 0.0
    %6992 = vmatpush.msra.mxu0 %v6915
    %6993 = vmatmul.f32.gmra.mxu0 %v6903
    %v6994 = vpop.f32.mrf.mxu0
    %v6995 = vadd.f32 0.0, %v6994
    %6996 = vdwg.mxu0
    %v6997 = vadd.f32 %v6857, %v6935
    %v6998 = vadd.f32 %v6858, %v6955
    %v6999 = vadd.f32 %v6859, %v6975
    %v7000 = vadd.f32 %v6860, %v6995
    %v7001 = vld [vmem:[%s5] sm:$0xff]
    %7003 = vset.pattern.permute.xlu0 0
    %7004 = vperm.xlu0 %7003, %v7001
    %v7005 = vpop.permute.xlu0 %7004
    %v7007 = vadd.f32 %v6997, %v7005
    %v7008 = vadd.f32 %v6998, %v7005
    %v7009 = vadd.f32 %v6999, %v7005
    %v7010 = vadd.f32 %v7000, %v7005
    %v7011 = vmax.f32 %v7007, 0.0
    %v7012 = vmax.f32 %v7008, 0.0
    %v7013 = vmax.f32 %v7009, 0.0
    %v7014 = vmax.f32 %v7010, 0.0
    %7015 = vrot.lane.b32.xlu0 %v7011, 17
    %v7016 = vpop.permute.xlu0 %7015
    %7017 = vrot.lane.b32.xlu0 %v7012, 17
    %v7018 = vpop.permute.xlu0 %7017
    %7019 = vrot.lane.b32.xlu0 %v7013, 17
    %v7020 = vpop.permute.xlu0 %7019
    %7021 = vrot.lane.b32.xlu0 %v7014, 17
    %v7022 = vpop.permute.xlu0 %7021
    %v7023 = vsel %vm2419, %v7020, %v7022
    %v7024 = vsel %vm2419, %v7018, %v7020
    %v7025 = vsel %vm2419, %v7016, %v7018
    %v7026 = vsel %vm2419, %v7022, %v7016
    %v7027 = vld [vmem:[%s13] ss:$8 sm:$0xf]
    %v7029 = vperm.slane %v7027, 0
    %v7030 = vperm.slane %v7027, 1
    %v7031 = vperm.slane %v7027, 2
    %v7032 = vperm.slane %v7027, 3
    %v7037 = vmul.f32 %v7026, %v7029
    %v7038 = vmul.f32 %v7025, %v7030
    %v7039 = vmul.f32 %v7024, %v7031
    %v7040 = vmul.f32 %v7023, %v7032
    %v7041 = vld [vmem:[%s9] sm:$0xff]
    %7042 = vrot.lane.b32.xlu0 %v7011, 16
    %v7043 = vpop.permute.xlu0 %7042
    %7044 = vrot.lane.b32.xlu0 %v7012, 16
    %v7045 = vpop.permute.xlu0 %7044
    %7046 = vrot.lane.b32.xlu0 %v7013, 16
    %v7047 = vpop.permute.xlu0 %7046
    %7048 = vrot.lane.b32.xlu0 %v7014, 16
    %v7049 = vpop.permute.xlu0 %7048
    %v7050 = vsel %vm2559, %v7047, %v7049
    %v7051 = vsel %vm2559, %v7045, %v7047
    %v7052 = vsel %vm2559, %v7043, %v7045
    %v7053 = vsel %vm2559, %v7049, %v7043
    %s7054 = scalar_lea.vmem %s13, 1
    %v7055 = vld [vmem:[%s7054] ss:$8 sm:$0xf]
    %v7057 = vperm.slane %v7055, 0
    %v7058 = vperm.slane %v7055, 1
    %v7059 = vperm.slane %v7055, 2
    %v7060 = vperm.slane %v7055, 3
    %v7065 = vmul.f32 %v7053, %v7057
    %v7066 = vmul.f32 %v7052, %v7058
    %v7067 = vmul.f32 %v7051, %v7059
    %v7068 = vmul.f32 %v7050, %v7060
    %s7069 = scalar_lea.vmem %s9, 8
    %v7070 = vld [vmem:[%s7069] sm:$0xff]
    %vm7071 = vcmask 64512
    %v7073 = vsel %vm7071, %v7070, 0
    %7075 = vmatpush.msra.mxu0 0.0
    %7076 = vmatpush.msra.mxu0 0.0
    %7077 = vmatpush.msra.mxu0 0.0
    %7078 = vmatpush.msra.mxu0 0.0
    %7079 = vmatpush.msra.mxu0 0.0
    %7080 = vmatpush.msra.mxu0 0.0
    %7081 = vmatpush.msra.mxu0 0.0
    %7082 = vmatpush.msra.mxu0 0.0
    %7083 = vmatpush.msra.mxu0 0.0
    %7084 = vmatpush.msra.mxu0 0.0
    %7085 = vmatpush.msra.mxu0 0.0
    %7086 = vmatpush.msra.mxu0 0.0
    %7087 = vmatpush.msra.mxu0 0.0
    %7088 = vmatpush.msra.mxu0 0.0
    %7089 = vmatpush.msra.mxu0 0.0
    %7090 = vmatpush.msra.mxu0 %v7065
    %7091 = vmatmul.f32.gmra.mxu0 %v7073
    %v7092 = vpop.f32.mrf.mxu0
    %v7093 = vadd.f32 0.0, %v7092
    %7094 = vdwg.mxu0
    %7095 = vmatpush.msra.mxu0 0.0
    %7096 = vmatpush.msra.mxu0 0.0
    %7097 = vmatpush.msra.mxu0 0.0
    %7098 = vmatpush.msra.mxu0 0.0
    %7099 = vmatpush.msra.mxu0 0.0
    %7100 = vmatpush.msra.mxu0 0.0
    %7101 = vmatpush.msra.mxu0 0.0
    %7102 = vmatpush.msra.mxu0 0.0
    %7103 = vmatpush.msra.mxu0 0.0
    %7104 = vmatpush.msra.mxu0 0.0
    %7105 = vmatpush.msra.mxu0 0.0
    %7106 = vmatpush.msra.mxu0 0.0
    %7107 = vmatpush.msra.mxu0 0.0
    %7108 = vmatpush.msra.mxu0 0.0
    %7109 = vmatpush.msra.mxu0 0.0
    %7110 = vmatpush.msra.mxu0 %v7066
    %7111 = vmatmul.f32.gmra.mxu0 %v7073
    %v7112 = vpop.f32.mrf.mxu0
    %v7113 = vadd.f32 0.0, %v7112
    %7114 = vdwg.mxu0
    %7115 = vmatpush.msra.mxu0 0.0
    %7116 = vmatpush.msra.mxu0 0.0
    %7117 = vmatpush.msra.mxu0 0.0
    %7118 = vmatpush.msra.mxu0 0.0
    %7119 = vmatpush.msra.mxu0 0.0
    %7120 = vmatpush.msra.mxu0 0.0
    %7121 = vmatpush.msra.mxu0 0.0
    %7122 = vmatpush.msra.mxu0 0.0
    %7123 = vmatpush.msra.mxu0 0.0
    %7124 = vmatpush.msra.mxu0 0.0
    %7125 = vmatpush.msra.mxu0 0.0
    %7126 = vmatpush.msra.mxu0 0.0
    %7127 = vmatpush.msra.mxu0 0.0
    %7128 = vmatpush.msra.mxu0 0.0
    %7129 = vmatpush.msra.mxu0 0.0
    %7130 = vmatpush.msra.mxu0 %v7067
    %7131 = vmatmul.f32.gmra.mxu0 %v7073
    %v7132 = vpop.f32.mrf.mxu0
    %v7133 = vadd.f32 0.0, %v7132
    %7134 = vdwg.mxu0
    %7135 = vmatpush.msra.mxu0 0.0
    %7136 = vmatpush.msra.mxu0 0.0
    %7137 = vmatpush.msra.mxu0 0.0
    %7138 = vmatpush.msra.mxu0 0.0
    %7139 = vmatpush.msra.mxu0 0.0
    %7140 = vmatpush.msra.mxu0 0.0
    %7141 = vmatpush.msra.mxu0 0.0
    %7142 = vmatpush.msra.mxu0 0.0
    %7143 = vmatpush.msra.mxu0 0.0
    %7144 = vmatpush.msra.mxu0 0.0
    %7145 = vmatpush.msra.mxu0 0.0
    %7146 = vmatpush.msra.mxu0 0.0
    %7147 = vmatpush.msra.mxu0 0.0
    %7148 = vmatpush.msra.mxu0 0.0
    %7149 = vmatpush.msra.mxu0 0.0
    %7150 = vmatpush.msra.mxu0 %v7068
    %7151 = vmatmul.f32.gmra.mxu0 %v7073
    %v7152 = vpop.f32.mrf.mxu0
    %v7153 = vadd.f32 0.0, %v7152
    %7154 = vdwg.mxu0
    %v7156 = vsel %vm7071, %v7041, 0
    %7158 = vmatpush.msra.mxu0 0.0
    %7159 = vmatpush.msra.mxu0 0.0
    %7160 = vmatpush.msra.mxu0 0.0
    %7161 = vmatpush.msra.mxu0 0.0
    %7162 = vmatpush.msra.mxu0 0.0
    %7163 = vmatpush.msra.mxu0 0.0
    %7164 = vmatpush.msra.mxu0 0.0
    %7165 = vmatpush.msra.mxu0 0.0
    %7166 = vmatpush.msra.mxu0 0.0
    %7167 = vmatpush.msra.mxu0 0.0
    %7168 = vmatpush.msra.mxu0 0.0
    %7169 = vmatpush.msra.mxu0 0.0
    %7170 = vmatpush.msra.mxu0 0.0
    %7171 = vmatpush.msra.mxu0 0.0
    %7172 = vmatpush.msra.mxu0 0.0
    %7173 = vmatpush.msra.mxu0 %v7037
    %7174 = vmatmul.f32.gmra.mxu0 %v7156
    %v7175 = vpop.f32.mrf.mxu0
    %v7176 = vadd.f32 %v7093, %v7175
    %7177 = vdwg.mxu0
    %7178 = vmatpush.msra.mxu0 0.0
    %7179 = vmatpush.msra.mxu0 0.0
    %7180 = vmatpush.msra.mxu0 0.0
    %7181 = vmatpush.msra.mxu0 0.0
    %7182 = vmatpush.msra.mxu0 0.0
    %7183 = vmatpush.msra.mxu0 0.0
    %7184 = vmatpush.msra.mxu0 0.0
    %7185 = vmatpush.msra.mxu0 0.0
    %7186 = vmatpush.msra.mxu0 0.0
    %7187 = vmatpush.msra.mxu0 0.0
    %7188 = vmatpush.msra.mxu0 0.0
    %7189 = vmatpush.msra.mxu0 0.0
    %7190 = vmatpush.msra.mxu0 0.0
    %7191 = vmatpush.msra.mxu0 0.0
    %7192 = vmatpush.msra.mxu0 0.0
    %7193 = vmatpush.msra.mxu0 %v7038
    %7194 = vmatmul.f32.gmra.mxu0 %v7156
    %v7195 = vpop.f32.mrf.mxu0
    %v7196 = vadd.f32 %v7113, %v7195
    %7197 = vdwg.mxu0
    %7198 = vmatpush.msra.mxu0 0.0
    %7199 = vmatpush.msra.mxu0 0.0
    %7200 = vmatpush.msra.mxu0 0.0
    %7201 = vmatpush.msra.mxu0 0.0
    %7202 = vmatpush.msra.mxu0 0.0
    %7203 = vmatpush.msra.mxu0 0.0
    %7204 = vmatpush.msra.mxu0 0.0
    %7205 = vmatpush.msra.mxu0 0.0
    %7206 = vmatpush.msra.mxu0 0.0
    %7207 = vmatpush.msra.mxu0 0.0
    %7208 = vmatpush.msra.mxu0 0.0
    %7209 = vmatpush.msra.mxu0 0.0
    %7210 = vmatpush.msra.mxu0 0.0
    %7211 = vmatpush.msra.mxu0 0.0
    %7212 = vmatpush.msra.mxu0 0.0
    %7213 = vmatpush.msra.mxu0 %v7039
    %7214 = vmatmul.f32.gmra.mxu0 %v7156
    %v7215 = vpop.f32.mrf.mxu0
    %v7216 = vadd.f32 %v7133, %v7215
    %7217 = vdwg.mxu0
    %7218 = vmatpush.msra.mxu0 0.0
    %7219 = vmatpush.msra.mxu0 0.0
    %7220 = vmatpush.msra.mxu0 0.0
    %7221 = vmatpush.msra.mxu0 0.0
    %7222 = vmatpush.msra.mxu0 0.0
    %7223 = vmatpush.msra.mxu0 0.0
    %7224 = vmatpush.msra.mxu0 0.0
    %7225 = vmatpush.msra.mxu0 0.0
    %7226 = vmatpush.msra.mxu0 0.0
    %7227 = vmatpush.msra.mxu0 0.0
    %7228 = vmatpush.msra.mxu0 0.0
    %7229 = vmatpush.msra.mxu0 0.0
    %7230 = vmatpush.msra.mxu0 0.0
    %7231 = vmatpush.msra.mxu0 0.0
    %7232 = vmatpush.msra.mxu0 0.0
    %7233 = vmatpush.msra.mxu0 %v7040
    %7234 = vmatmul.f32.gmra.mxu0 %v7156
    %v7235 = vpop.f32.mrf.mxu0
    %v7236 = vadd.f32 %v7153, %v7235
    %7237 = vdwg.mxu0
    %7238 = vrot.lane.b32.xlu0 %v7011, 15
    %v7239 = vpop.permute.xlu0 %7238
    %7240 = vrot.lane.b32.xlu0 %v7012, 15
    %v7241 = vpop.permute.xlu0 %7240
    %7242 = vrot.lane.b32.xlu0 %v7013, 15
    %v7243 = vpop.permute.xlu0 %7242
    %7244 = vrot.lane.b32.xlu0 %v7014, 15
    %v7245 = vpop.permute.xlu0 %7244
    %v7246 = vsel %vm2699, %v7243, %v7245
    %v7247 = vsel %vm2699, %v7241, %v7243
    %v7248 = vsel %vm2699, %v7239, %v7241
    %v7249 = vsel %vm2699, %v7245, %v7239
    %s7250 = scalar_lea.vmem %s13, 2
    %v7251 = vld [vmem:[%s7250] ss:$8 sm:$0xf]
    %v7253 = vperm.slane %v7251, 0
    %v7254 = vperm.slane %v7251, 1
    %v7255 = vperm.slane %v7251, 2
    %v7256 = vperm.slane %v7251, 3
    %v7261 = vmul.f32 %v7249, %v7253
    %v7262 = vmul.f32 %v7248, %v7254
    %v7263 = vmul.f32 %v7247, %v7255
    %v7264 = vmul.f32 %v7246, %v7256
    %s7265 = scalar_lea.vmem %s9, 16
    %v7266 = vld [vmem:[%s7265] sm:$0xff]
    %v7268 = vsel %vm7071, %v7266, 0
    %7270 = vmatpush.msra.mxu0 0.0
    %7271 = vmatpush.msra.mxu0 0.0
    %7272 = vmatpush.msra.mxu0 0.0
    %7273 = vmatpush.msra.mxu0 0.0
    %7274 = vmatpush.msra.mxu0 0.0
    %7275 = vmatpush.msra.mxu0 0.0
    %7276 = vmatpush.msra.mxu0 0.0
    %7277 = vmatpush.msra.mxu0 0.0
    %7278 = vmatpush.msra.mxu0 0.0
    %7279 = vmatpush.msra.mxu0 0.0
    %7280 = vmatpush.msra.mxu0 0.0
    %7281 = vmatpush.msra.mxu0 0.0
    %7282 = vmatpush.msra.mxu0 0.0
    %7283 = vmatpush.msra.mxu0 0.0
    %7284 = vmatpush.msra.mxu0 0.0
    %7285 = vmatpush.msra.mxu0 %v7261
    %7286 = vmatmul.f32.gmra.mxu0 %v7268
    %v7287 = vpop.f32.mrf.mxu0
    %v7288 = vadd.f32 0.0, %v7287
    %7289 = vdwg.mxu0
    %7290 = vmatpush.msra.mxu0 0.0
    %7291 = vmatpush.msra.mxu0 0.0
    %7292 = vmatpush.msra.mxu0 0.0
    %7293 = vmatpush.msra.mxu0 0.0
    %7294 = vmatpush.msra.mxu0 0.0
    %7295 = vmatpush.msra.mxu0 0.0
    %7296 = vmatpush.msra.mxu0 0.0
    %7297 = vmatpush.msra.mxu0 0.0
    %7298 = vmatpush.msra.mxu0 0.0
    %7299 = vmatpush.msra.mxu0 0.0
    %7300 = vmatpush.msra.mxu0 0.0
    %7301 = vmatpush.msra.mxu0 0.0
    %7302 = vmatpush.msra.mxu0 0.0
    %7303 = vmatpush.msra.mxu0 0.0
    %7304 = vmatpush.msra.mxu0 0.0
    %7305 = vmatpush.msra.mxu0 %v7262
    %7306 = vmatmul.f32.gmra.mxu0 %v7268
    %v7307 = vpop.f32.mrf.mxu0
    %v7308 = vadd.f32 0.0, %v7307
    %7309 = vdwg.mxu0
    %7310 = vmatpush.msra.mxu0 0.0
    %7311 = vmatpush.msra.mxu0 0.0
    %7312 = vmatpush.msra.mxu0 0.0
    %7313 = vmatpush.msra.mxu0 0.0
    %7314 = vmatpush.msra.mxu0 0.0
    %7315 = vmatpush.msra.mxu0 0.0
    %7316 = vmatpush.msra.mxu0 0.0
    %7317 = vmatpush.msra.mxu0 0.0
    %7318 = vmatpush.msra.mxu0 0.0
    %7319 = vmatpush.msra.mxu0 0.0
    %7320 = vmatpush.msra.mxu0 0.0
    %7321 = vmatpush.msra.mxu0 0.0
    %7322 = vmatpush.msra.mxu0 0.0
    %7323 = vmatpush.msra.mxu0 0.0
    %7324 = vmatpush.msra.mxu0 0.0
    %7325 = vmatpush.msra.mxu0 %v7263
    %7326 = vmatmul.f32.gmra.mxu0 %v7268
    %v7327 = vpop.f32.mrf.mxu0
    %v7328 = vadd.f32 0.0, %v7327
    %7329 = vdwg.mxu0
    %7330 = vmatpush.msra.mxu0 0.0
    %7331 = vmatpush.msra.mxu0 0.0
    %7332 = vmatpush.msra.mxu0 0.0
    %7333 = vmatpush.msra.mxu0 0.0
    %7334 = vmatpush.msra.mxu0 0.0
    %7335 = vmatpush.msra.mxu0 0.0
    %7336 = vmatpush.msra.mxu0 0.0
    %7337 = vmatpush.msra.mxu0 0.0
    %7338 = vmatpush.msra.mxu0 0.0
    %7339 = vmatpush.msra.mxu0 0.0
    %7340 = vmatpush.msra.mxu0 0.0
    %7341 = vmatpush.msra.mxu0 0.0
    %7342 = vmatpush.msra.mxu0 0.0
    %7343 = vmatpush.msra.mxu0 0.0
    %7344 = vmatpush.msra.mxu0 0.0
    %7345 = vmatpush.msra.mxu0 %v7264
    %7346 = vmatmul.f32.gmra.mxu0 %v7268
    %v7347 = vpop.f32.mrf.mxu0
    %v7348 = vadd.f32 0.0, %v7347
    %7349 = vdwg.mxu0
    %v7350 = vadd.f32 %v7176, %v7288
    %v7351 = vadd.f32 %v7196, %v7308
    %v7352 = vadd.f32 %v7216, %v7328
    %v7353 = vadd.f32 %v7236, %v7348
    %7354 = vrot.lane.b32.xlu0 %v7011, 1
    %v7355 = vpop.permute.xlu0 %7354
    %7356 = vrot.lane.b32.xlu0 %v7012, 1
    %v7357 = vpop.permute.xlu0 %7356
    %7358 = vrot.lane.b32.xlu0 %v7013, 1
    %v7359 = vpop.permute.xlu0 %7358
    %7360 = vrot.lane.b32.xlu0 %v7014, 1
    %v7361 = vpop.permute.xlu0 %7360
    %v7362 = vsel %vm3399, %v7359, %v7361
    %v7363 = vsel %vm3399, %v7357, %v7359
    %v7364 = vsel %vm3399, %v7355, %v7357
    %v7365 = vsel %vm3399, %v7361, %v7355
    %s7366 = scalar_lea.vmem %s13, 3
    %v7367 = vld [vmem:[%s7366] ss:$8 sm:$0xf]
    %v7369 = vperm.slane %v7367, 0
    %v7370 = vperm.slane %v7367, 1
    %v7371 = vperm.slane %v7367, 2
    %v7372 = vperm.slane %v7367, 3
    %v7377 = vmul.f32 %v7365, %v7369
    %v7378 = vmul.f32 %v7364, %v7370
    %v7379 = vmul.f32 %v7363, %v7371
    %v7380 = vmul.f32 %v7362, %v7372
    %s7381 = scalar_lea.vmem %s9, 24
    %v7382 = vld [vmem:[%s7381] sm:$0xff]
    %v7384 = vsel %vm7071, %v7382, 0
    %7386 = vmatpush.msra.mxu0 0.0
    %7387 = vmatpush.msra.mxu0 0.0
    %7388 = vmatpush.msra.mxu0 0.0
    %7389 = vmatpush.msra.mxu0 0.0
    %7390 = vmatpush.msra.mxu0 0.0
    %7391 = vmatpush.msra.mxu0 0.0
    %7392 = vmatpush.msra.mxu0 0.0
    %7393 = vmatpush.msra.mxu0 0.0
    %7394 = vmatpush.msra.mxu0 0.0
    %7395 = vmatpush.msra.mxu0 0.0
    %7396 = vmatpush.msra.mxu0 0.0
    %7397 = vmatpush.msra.mxu0 0.0
    %7398 = vmatpush.msra.mxu0 0.0
    %7399 = vmatpush.msra.mxu0 0.0
    %7400 = vmatpush.msra.mxu0 0.0
    %7401 = vmatpush.msra.mxu0 %v7377
    %7402 = vmatmul.f32.gmra.mxu0 %v7384
    %v7403 = vpop.f32.mrf.mxu0
    %v7404 = vadd.f32 0.0, %v7403
    %7405 = vdwg.mxu0
    %7406 = vmatpush.msra.mxu0 0.0
    %7407 = vmatpush.msra.mxu0 0.0
    %7408 = vmatpush.msra.mxu0 0.0
    %7409 = vmatpush.msra.mxu0 0.0
    %7410 = vmatpush.msra.mxu0 0.0
    %7411 = vmatpush.msra.mxu0 0.0
    %7412 = vmatpush.msra.mxu0 0.0
    %7413 = vmatpush.msra.mxu0 0.0
    %7414 = vmatpush.msra.mxu0 0.0
    %7415 = vmatpush.msra.mxu0 0.0
    %7416 = vmatpush.msra.mxu0 0.0
    %7417 = vmatpush.msra.mxu0 0.0
    %7418 = vmatpush.msra.mxu0 0.0
    %7419 = vmatpush.msra.mxu0 0.0
    %7420 = vmatpush.msra.mxu0 0.0
    %7421 = vmatpush.msra.mxu0 %v7378
    %7422 = vmatmul.f32.gmra.mxu0 %v7384
    %v7423 = vpop.f32.mrf.mxu0
    %v7424 = vadd.f32 0.0, %v7423
    %7425 = vdwg.mxu0
    %7426 = vmatpush.msra.mxu0 0.0
    %7427 = vmatpush.msra.mxu0 0.0
    %7428 = vmatpush.msra.mxu0 0.0
    %7429 = vmatpush.msra.mxu0 0.0
    %7430 = vmatpush.msra.mxu0 0.0
    %7431 = vmatpush.msra.mxu0 0.0
    %7432 = vmatpush.msra.mxu0 0.0
    %7433 = vmatpush.msra.mxu0 0.0
    %7434 = vmatpush.msra.mxu0 0.0
    %7435 = vmatpush.msra.mxu0 0.0
    %7436 = vmatpush.msra.mxu0 0.0
    %7437 = vmatpush.msra.mxu0 0.0
    %7438 = vmatpush.msra.mxu0 0.0
    %7439 = vmatpush.msra.mxu0 0.0
    %7440 = vmatpush.msra.mxu0 0.0
    %7441 = vmatpush.msra.mxu0 %v7379
    %7442 = vmatmul.f32.gmra.mxu0 %v7384
    %v7443 = vpop.f32.mrf.mxu0
    %v7444 = vadd.f32 0.0, %v7443
    %7445 = vdwg.mxu0
    %7446 = vmatpush.msra.mxu0 0.0
    %7447 = vmatpush.msra.mxu0 0.0
    %7448 = vmatpush.msra.mxu0 0.0
    %7449 = vmatpush.msra.mxu0 0.0
    %7450 = vmatpush.msra.mxu0 0.0
    %7451 = vmatpush.msra.mxu0 0.0
    %7452 = vmatpush.msra.mxu0 0.0
    %7453 = vmatpush.msra.mxu0 0.0
    %7454 = vmatpush.msra.mxu0 0.0
    %7455 = vmatpush.msra.mxu0 0.0
    %7456 = vmatpush.msra.mxu0 0.0
    %7457 = vmatpush.msra.mxu0 0.0
    %7458 = vmatpush.msra.mxu0 0.0
    %7459 = vmatpush.msra.mxu0 0.0
    %7460 = vmatpush.msra.mxu0 0.0
    %7461 = vmatpush.msra.mxu0 %v7380
    %7462 = vmatmul.f32.gmra.mxu0 %v7384
    %v7463 = vpop.f32.mrf.mxu0
    %v7464 = vadd.f32 0.0, %v7463
    %7465 = vdwg.mxu0
    %v7466 = vadd.f32 %v7350, %v7404
    %v7467 = vadd.f32 %v7351, %v7424
    %v7468 = vadd.f32 %v7352, %v7444
    %v7469 = vadd.f32 %v7353, %v7464
    %s7470 = scalar_lea.vmem %s13, 4
    %v7471 = vld [vmem:[%s7470] ss:$8 sm:$0xf]
    %v7473 = vperm.slane %v7471, 0
    %v7474 = vperm.slane %v7471, 1
    %v7475 = vperm.slane %v7471, 2
    %v7476 = vperm.slane %v7471, 3
    %v7481 = vmul.f32 %v7011, %v7473
    %v7482 = vmul.f32 %v7012, %v7474
    %v7483 = vmul.f32 %v7013, %v7475
    %v7484 = vmul.f32 %v7014, %v7476
    %s7485 = scalar_lea.vmem %s9, 32
    %v7486 = vld [vmem:[%s7485] sm:$0xff]
    %v7488 = vsel %vm7071, %v7486, 0
    %7490 = vmatpush.msra.mxu0 0.0
    %7491 = vmatpush.msra.mxu0 0.0
    %7492 = vmatpush.msra.mxu0 0.0
    %7493 = vmatpush.msra.mxu0 0.0
    %7494 = vmatpush.msra.mxu0 0.0
    %7495 = vmatpush.msra.mxu0 0.0
    %7496 = vmatpush.msra.mxu0 0.0
    %7497 = vmatpush.msra.mxu0 0.0
    %7498 = vmatpush.msra.mxu0 0.0
    %7499 = vmatpush.msra.mxu0 0.0
    %7500 = vmatpush.msra.mxu0 0.0
    %7501 = vmatpush.msra.mxu0 0.0
    %7502 = vmatpush.msra.mxu0 0.0
    %7503 = vmatpush.msra.mxu0 0.0
    %7504 = vmatpush.msra.mxu0 0.0
    %7505 = vmatpush.msra.mxu0 %v7481
    %7506 = vmatmul.f32.gmra.mxu0 %v7488
    %v7507 = vpop.f32.mrf.mxu0
    %v7508 = vadd.f32 0.0, %v7507
    %7509 = vdwg.mxu0
    %7510 = vmatpush.msra.mxu0 0.0
    %7511 = vmatpush.msra.mxu0 0.0
    %7512 = vmatpush.msra.mxu0 0.0
    %7513 = vmatpush.msra.mxu0 0.0
    %7514 = vmatpush.msra.mxu0 0.0
    %7515 = vmatpush.msra.mxu0 0.0
    %7516 = vmatpush.msra.mxu0 0.0
    %7517 = vmatpush.msra.mxu0 0.0
    %7518 = vmatpush.msra.mxu0 0.0
    %7519 = vmatpush.msra.mxu0 0.0
    %7520 = vmatpush.msra.mxu0 0.0
    %7521 = vmatpush.msra.mxu0 0.0
    %7522 = vmatpush.msra.mxu0 0.0
    %7523 = vmatpush.msra.mxu0 0.0
    %7524 = vmatpush.msra.mxu0 0.0
    %7525 = vmatpush.msra.mxu0 %v7482
    %7526 = vmatmul.f32.gmra.mxu0 %v7488
    %v7527 = vpop.f32.mrf.mxu0
    %v7528 = vadd.f32 0.0, %v7527
    %7529 = vdwg.mxu0
    %7530 = vmatpush.msra.mxu0 0.0
    %7531 = vmatpush.msra.mxu0 0.0
    %7532 = vmatpush.msra.mxu0 0.0
    %7533 = vmatpush.msra.mxu0 0.0
    %7534 = vmatpush.msra.mxu0 0.0
    %7535 = vmatpush.msra.mxu0 0.0
    %7536 = vmatpush.msra.mxu0 0.0
    %7537 = vmatpush.msra.mxu0 0.0
    %7538 = vmatpush.msra.mxu0 0.0
    %7539 = vmatpush.msra.mxu0 0.0
    %7540 = vmatpush.msra.mxu0 0.0
    %7541 = vmatpush.msra.mxu0 0.0
    %7542 = vmatpush.msra.mxu0 0.0
    %7543 = vmatpush.msra.mxu0 0.0
    %7544 = vmatpush.msra.mxu0 0.0
    %7545 = vmatpush.msra.mxu0 %v7483
    %7546 = vmatmul.f32.gmra.mxu0 %v7488
    %v7547 = vpop.f32.mrf.mxu0
    %v7548 = vadd.f32 0.0, %v7547
    %7549 = vdwg.mxu0
    %7550 = vmatpush.msra.mxu0 0.0
    %7551 = vmatpush.msra.mxu0 0.0
    %7552 = vmatpush.msra.mxu0 0.0
    %7553 = vmatpush.msra.mxu0 0.0
    %7554 = vmatpush.msra.mxu0 0.0
    %7555 = vmatpush.msra.mxu0 0.0
    %7556 = vmatpush.msra.mxu0 0.0
    %7557 = vmatpush.msra.mxu0 0.0
    %7558 = vmatpush.msra.mxu0 0.0
    %7559 = vmatpush.msra.mxu0 0.0
    %7560 = vmatpush.msra.mxu0 0.0
    %7561 = vmatpush.msra.mxu0 0.0
    %7562 = vmatpush.msra.mxu0 0.0
    %7563 = vmatpush.msra.mxu0 0.0
    %7564 = vmatpush.msra.mxu0 0.0
    %7565 = vmatpush.msra.mxu0 %v7484
    %7566 = vmatmul.f32.gmra.mxu0 %v7488
    %v7567 = vpop.f32.mrf.mxu0
    %v7568 = vadd.f32 0.0, %v7567
    %7569 = vdwg.mxu0
    %v7570 = vadd.f32 %v7466, %v7508
    %v7571 = vadd.f32 %v7467, %v7528
    %v7572 = vadd.f32 %v7468, %v7548
    %v7573 = vadd.f32 %v7469, %v7568
    %7574 = vrot.lane.b32.xlu0 %v7011, 127
    %v7575 = vpop.permute.xlu0 %7574
    %7576 = vrot.lane.b32.xlu0 %v7012, 127
    %v7577 = vpop.permute.xlu0 %7576
    %7578 = vrot.lane.b32.xlu0 %v7013, 127
    %v7579 = vpop.permute.xlu0 %7578
    %7580 = vrot.lane.b32.xlu0 %v7014, 127
    %v7581 = vpop.permute.xlu0 %7580
    %v7582 = vsel %vm3660, %v7579, %v7581
    %v7583 = vsel %vm3660, %v7577, %v7579
    %v7584 = vsel %vm3660, %v7575, %v7577
    %v7585 = vsel %vm3660, %v7581, %v7575
    %s7586 = scalar_lea.vmem %s13, 5
    %v7587 = vld [vmem:[%s7586] ss:$8 sm:$0xf]
    %v7589 = vperm.slane %v7587, 0
    %v7590 = vperm.slane %v7587, 1
    %v7591 = vperm.slane %v7587, 2
    %v7592 = vperm.slane %v7587, 3
    %v7597 = vmul.f32 %v7584, %v7589
    %v7598 = vmul.f32 %v7583, %v7590
    %v7599 = vmul.f32 %v7582, %v7591
    %v7600 = vmul.f32 %v7585, %v7592
    %s7601 = scalar_lea.vmem %s9, 40
    %v7602 = vld [vmem:[%s7601] sm:$0xff]
    %v7604 = vsel %vm7071, %v7602, 0
    %7606 = vmatpush.msra.mxu0 0.0
    %7607 = vmatpush.msra.mxu0 0.0
    %7608 = vmatpush.msra.mxu0 0.0
    %7609 = vmatpush.msra.mxu0 0.0
    %7610 = vmatpush.msra.mxu0 0.0
    %7611 = vmatpush.msra.mxu0 0.0
    %7612 = vmatpush.msra.mxu0 0.0
    %7613 = vmatpush.msra.mxu0 0.0
    %7614 = vmatpush.msra.mxu0 0.0
    %7615 = vmatpush.msra.mxu0 0.0
    %7616 = vmatpush.msra.mxu0 0.0
    %7617 = vmatpush.msra.mxu0 0.0
    %7618 = vmatpush.msra.mxu0 0.0
    %7619 = vmatpush.msra.mxu0 0.0
    %7620 = vmatpush.msra.mxu0 0.0
    %7621 = vmatpush.msra.mxu0 %v7597
    %7622 = vmatmul.f32.gmra.mxu0 %v7604
    %v7623 = vpop.f32.mrf.mxu0
    %v7624 = vadd.f32 0.0, %v7623
    %7625 = vdwg.mxu0
    %7626 = vmatpush.msra.mxu0 0.0
    %7627 = vmatpush.msra.mxu0 0.0
    %7628 = vmatpush.msra.mxu0 0.0
    %7629 = vmatpush.msra.mxu0 0.0
    %7630 = vmatpush.msra.mxu0 0.0
    %7631 = vmatpush.msra.mxu0 0.0
    %7632 = vmatpush.msra.mxu0 0.0
    %7633 = vmatpush.msra.mxu0 0.0
    %7634 = vmatpush.msra.mxu0 0.0
    %7635 = vmatpush.msra.mxu0 0.0
    %7636 = vmatpush.msra.mxu0 0.0
    %7637 = vmatpush.msra.mxu0 0.0
    %7638 = vmatpush.msra.mxu0 0.0
    %7639 = vmatpush.msra.mxu0 0.0
    %7640 = vmatpush.msra.mxu0 0.0
    %7641 = vmatpush.msra.mxu0 %v7598
    %7642 = vmatmul.f32.gmra.mxu0 %v7604
    %v7643 = vpop.f32.mrf.mxu0
    %v7644 = vadd.f32 0.0, %v7643
    %7645 = vdwg.mxu0
    %7646 = vmatpush.msra.mxu0 0.0
    %7647 = vmatpush.msra.mxu0 0.0
    %7648 = vmatpush.msra.mxu0 0.0
    %7649 = vmatpush.msra.mxu0 0.0
    %7650 = vmatpush.msra.mxu0 0.0
    %7651 = vmatpush.msra.mxu0 0.0
    %7652 = vmatpush.msra.mxu0 0.0
    %7653 = vmatpush.msra.mxu0 0.0
    %7654 = vmatpush.msra.mxu0 0.0
    %7655 = vmatpush.msra.mxu0 0.0
    %7656 = vmatpush.msra.mxu0 0.0
    %7657 = vmatpush.msra.mxu0 0.0
    %7658 = vmatpush.msra.mxu0 0.0
    %7659 = vmatpush.msra.mxu0 0.0
    %7660 = vmatpush.msra.mxu0 0.0
    %7661 = vmatpush.msra.mxu0 %v7599
    %7662 = vmatmul.f32.gmra.mxu0 %v7604
    %v7663 = vpop.f32.mrf.mxu0
    %v7664 = vadd.f32 0.0, %v7663
    %7665 = vdwg.mxu0
    %7666 = vmatpush.msra.mxu0 0.0
    %7667 = vmatpush.msra.mxu0 0.0
    %7668 = vmatpush.msra.mxu0 0.0
    %7669 = vmatpush.msra.mxu0 0.0
    %7670 = vmatpush.msra.mxu0 0.0
    %7671 = vmatpush.msra.mxu0 0.0
    %7672 = vmatpush.msra.mxu0 0.0
    %7673 = vmatpush.msra.mxu0 0.0
    %7674 = vmatpush.msra.mxu0 0.0
    %7675 = vmatpush.msra.mxu0 0.0
    %7676 = vmatpush.msra.mxu0 0.0
    %7677 = vmatpush.msra.mxu0 0.0
    %7678 = vmatpush.msra.mxu0 0.0
    %7679 = vmatpush.msra.mxu0 0.0
    %7680 = vmatpush.msra.mxu0 0.0
    %7681 = vmatpush.msra.mxu0 %v7600
    %7682 = vmatmul.f32.gmra.mxu0 %v7604
    %v7683 = vpop.f32.mrf.mxu0
    %v7684 = vadd.f32 0.0, %v7683
    %7685 = vdwg.mxu0
    %v7686 = vadd.f32 %v7570, %v7624
    %v7687 = vadd.f32 %v7571, %v7644
    %v7688 = vadd.f32 %v7572, %v7664
    %v7689 = vadd.f32 %v7573, %v7684
    %7690 = vrot.lane.b32.xlu0 %v7011, 113
    %v7691 = vpop.permute.xlu0 %7690
    %7692 = vrot.lane.b32.xlu0 %v7012, 113
    %v7693 = vpop.permute.xlu0 %7692
    %7694 = vrot.lane.b32.xlu0 %v7013, 113
    %v7695 = vpop.permute.xlu0 %7694
    %7696 = vrot.lane.b32.xlu0 %v7014, 113
    %v7697 = vpop.permute.xlu0 %7696
    %v7698 = vsel %vm4360, %v7695, %v7697
    %v7699 = vsel %vm4360, %v7693, %v7695
    %v7700 = vsel %vm4360, %v7691, %v7693
    %v7701 = vsel %vm4360, %v7697, %v7691
    %s7702 = scalar_lea.vmem %s13, 6
    %v7703 = vld [vmem:[%s7702] ss:$8 sm:$0xf]
    %v7705 = vperm.slane %v7703, 0
    %v7706 = vperm.slane %v7703, 1
    %v7707 = vperm.slane %v7703, 2
    %v7708 = vperm.slane %v7703, 3
    %v7713 = vmul.f32 %v7700, %v7705
    %v7714 = vmul.f32 %v7699, %v7706
    %v7715 = vmul.f32 %v7698, %v7707
    %v7716 = vmul.f32 %v7701, %v7708
    %s7717 = scalar_lea.vmem %s9, 48
    %v7718 = vld [vmem:[%s7717] sm:$0xff]
    %v7720 = vsel %vm7071, %v7718, 0
    %7722 = vmatpush.msra.mxu0 0.0
    %7723 = vmatpush.msra.mxu0 0.0
    %7724 = vmatpush.msra.mxu0 0.0
    %7725 = vmatpush.msra.mxu0 0.0
    %7726 = vmatpush.msra.mxu0 0.0
    %7727 = vmatpush.msra.mxu0 0.0
    %7728 = vmatpush.msra.mxu0 0.0
    %7729 = vmatpush.msra.mxu0 0.0
    %7730 = vmatpush.msra.mxu0 0.0
    %7731 = vmatpush.msra.mxu0 0.0
    %7732 = vmatpush.msra.mxu0 0.0
    %7733 = vmatpush.msra.mxu0 0.0
    %7734 = vmatpush.msra.mxu0 0.0
    %7735 = vmatpush.msra.mxu0 0.0
    %7736 = vmatpush.msra.mxu0 0.0
    %7737 = vmatpush.msra.mxu0 %v7713
    %7738 = vmatmul.f32.gmra.mxu0 %v7720
    %v7739 = vpop.f32.mrf.mxu0
    %v7740 = vadd.f32 0.0, %v7739
    %7741 = vdwg.mxu0
    %7742 = vmatpush.msra.mxu0 0.0
    %7743 = vmatpush.msra.mxu0 0.0
    %7744 = vmatpush.msra.mxu0 0.0
    %7745 = vmatpush.msra.mxu0 0.0
    %7746 = vmatpush.msra.mxu0 0.0
    %7747 = vmatpush.msra.mxu0 0.0
    %7748 = vmatpush.msra.mxu0 0.0
    %7749 = vmatpush.msra.mxu0 0.0
    %7750 = vmatpush.msra.mxu0 0.0
    %7751 = vmatpush.msra.mxu0 0.0
    %7752 = vmatpush.msra.mxu0 0.0
    %7753 = vmatpush.msra.mxu0 0.0
    %7754 = vmatpush.msra.mxu0 0.0
    %7755 = vmatpush.msra.mxu0 0.0
    %7756 = vmatpush.msra.mxu0 0.0
    %7757 = vmatpush.msra.mxu0 %v7714
    %7758 = vmatmul.f32.gmra.mxu0 %v7720
    %v7759 = vpop.f32.mrf.mxu0
    %v7760 = vadd.f32 0.0, %v7759
    %7761 = vdwg.mxu0
    %7762 = vmatpush.msra.mxu0 0.0
    %7763 = vmatpush.msra.mxu0 0.0
    %7764 = vmatpush.msra.mxu0 0.0
    %7765 = vmatpush.msra.mxu0 0.0
    %7766 = vmatpush.msra.mxu0 0.0
    %7767 = vmatpush.msra.mxu0 0.0
    %7768 = vmatpush.msra.mxu0 0.0
    %7769 = vmatpush.msra.mxu0 0.0
    %7770 = vmatpush.msra.mxu0 0.0
    %7771 = vmatpush.msra.mxu0 0.0
    %7772 = vmatpush.msra.mxu0 0.0
    %7773 = vmatpush.msra.mxu0 0.0
    %7774 = vmatpush.msra.mxu0 0.0
    %7775 = vmatpush.msra.mxu0 0.0
    %7776 = vmatpush.msra.mxu0 0.0
    %7777 = vmatpush.msra.mxu0 %v7715
    %7778 = vmatmul.f32.gmra.mxu0 %v7720
    %v7779 = vpop.f32.mrf.mxu0
    %v7780 = vadd.f32 0.0, %v7779
    %7781 = vdwg.mxu0
    %7782 = vmatpush.msra.mxu0 0.0
    %7783 = vmatpush.msra.mxu0 0.0
    %7784 = vmatpush.msra.mxu0 0.0
    %7785 = vmatpush.msra.mxu0 0.0
    %7786 = vmatpush.msra.mxu0 0.0
    %7787 = vmatpush.msra.mxu0 0.0
    %7788 = vmatpush.msra.mxu0 0.0
    %7789 = vmatpush.msra.mxu0 0.0
    %7790 = vmatpush.msra.mxu0 0.0
    %7791 = vmatpush.msra.mxu0 0.0
    %7792 = vmatpush.msra.mxu0 0.0
    %7793 = vmatpush.msra.mxu0 0.0
    %7794 = vmatpush.msra.mxu0 0.0
    %7795 = vmatpush.msra.mxu0 0.0
    %7796 = vmatpush.msra.mxu0 0.0
    %7797 = vmatpush.msra.mxu0 %v7716
    %7798 = vmatmul.f32.gmra.mxu0 %v7720
    %v7799 = vpop.f32.mrf.mxu0
    %v7800 = vadd.f32 0.0, %v7799
    %7801 = vdwg.mxu0
    %v7802 = vadd.f32 %v7686, %v7740
    %v7803 = vadd.f32 %v7687, %v7760
    %v7804 = vadd.f32 %v7688, %v7780
    %v7805 = vadd.f32 %v7689, %v7800
    %7806 = vrot.lane.b32.xlu0 %v7011, 112
    %v7807 = vpop.permute.xlu0 %7806
    %7808 = vrot.lane.b32.xlu0 %v7012, 112
    %v7809 = vpop.permute.xlu0 %7808
    %7810 = vrot.lane.b32.xlu0 %v7013, 112
    %v7811 = vpop.permute.xlu0 %7810
    %7812 = vrot.lane.b32.xlu0 %v7014, 112
    %v7813 = vpop.permute.xlu0 %7812
    %v7814 = vsel %vm4500, %v7811, %v7813
    %v7815 = vsel %vm4500, %v7809, %v7811
    %v7816 = vsel %vm4500, %v7807, %v7809
    %v7817 = vsel %vm4500, %v7813, %v7807
    %s7818 = scalar_lea.vmem %s13, 7
    %v7819 = vld [vmem:[%s7818] ss:$8 sm:$0xf]
    %v7821 = vperm.slane %v7819, 0
    %v7822 = vperm.slane %v7819, 1
    %v7823 = vperm.slane %v7819, 2
    %v7824 = vperm.slane %v7819, 3
    %v7829 = vmul.f32 %v7816, %v7821
    %v7830 = vmul.f32 %v7815, %v7822
    %v7831 = vmul.f32 %v7814, %v7823
    %v7832 = vmul.f32 %v7817, %v7824
    %s7833 = scalar_lea.vmem %s9, 56
    %v7834 = vld [vmem:[%s7833] sm:$0xff]
    %v7836 = vsel %vm7071, %v7834, 0
    %7838 = vmatpush.msra.mxu0 0.0
    %7839 = vmatpush.msra.mxu0 0.0
    %7840 = vmatpush.msra.mxu0 0.0
    %7841 = vmatpush.msra.mxu0 0.0
    %7842 = vmatpush.msra.mxu0 0.0
    %7843 = vmatpush.msra.mxu0 0.0
    %7844 = vmatpush.msra.mxu0 0.0
    %7845 = vmatpush.msra.mxu0 0.0
    %7846 = vmatpush.msra.mxu0 0.0
    %7847 = vmatpush.msra.mxu0 0.0
    %7848 = vmatpush.msra.mxu0 0.0
    %7849 = vmatpush.msra.mxu0 0.0
    %7850 = vmatpush.msra.mxu0 0.0
    %7851 = vmatpush.msra.mxu0 0.0
    %7852 = vmatpush.msra.mxu0 0.0
    %7853 = vmatpush.msra.mxu0 %v7829
    %7854 = vmatmul.f32.gmra.mxu0 %v7836
    %v7855 = vpop.f32.mrf.mxu0
    %v7856 = vadd.f32 0.0, %v7855
    %7857 = vdwg.mxu0
    %7858 = vmatpush.msra.mxu0 0.0
    %7859 = vmatpush.msra.mxu0 0.0
    %7860 = vmatpush.msra.mxu0 0.0
    %7861 = vmatpush.msra.mxu0 0.0
    %7862 = vmatpush.msra.mxu0 0.0
    %7863 = vmatpush.msra.mxu0 0.0
    %7864 = vmatpush.msra.mxu0 0.0
    %7865 = vmatpush.msra.mxu0 0.0
    %7866 = vmatpush.msra.mxu0 0.0
    %7867 = vmatpush.msra.mxu0 0.0
    %7868 = vmatpush.msra.mxu0 0.0
    %7869 = vmatpush.msra.mxu0 0.0
    %7870 = vmatpush.msra.mxu0 0.0
    %7871 = vmatpush.msra.mxu0 0.0
    %7872 = vmatpush.msra.mxu0 0.0
    %7873 = vmatpush.msra.mxu0 %v7830
    %7874 = vmatmul.f32.gmra.mxu0 %v7836
    %v7875 = vpop.f32.mrf.mxu0
    %v7876 = vadd.f32 0.0, %v7875
    %7877 = vdwg.mxu0
    %7878 = vmatpush.msra.mxu0 0.0
    %7879 = vmatpush.msra.mxu0 0.0
    %7880 = vmatpush.msra.mxu0 0.0
    %7881 = vmatpush.msra.mxu0 0.0
    %7882 = vmatpush.msra.mxu0 0.0
    %7883 = vmatpush.msra.mxu0 0.0
    %7884 = vmatpush.msra.mxu0 0.0
    %7885 = vmatpush.msra.mxu0 0.0
    %7886 = vmatpush.msra.mxu0 0.0
    %7887 = vmatpush.msra.mxu0 0.0
    %7888 = vmatpush.msra.mxu0 0.0
    %7889 = vmatpush.msra.mxu0 0.0
    %7890 = vmatpush.msra.mxu0 0.0
    %7891 = vmatpush.msra.mxu0 0.0
    %7892 = vmatpush.msra.mxu0 0.0
    %7893 = vmatpush.msra.mxu0 %v7831
    %7894 = vmatmul.f32.gmra.mxu0 %v7836
    %v7895 = vpop.f32.mrf.mxu0
    %v7896 = vadd.f32 0.0, %v7895
    %7897 = vdwg.mxu0
    %7898 = vmatpush.msra.mxu0 0.0
    %7899 = vmatpush.msra.mxu0 0.0
    %7900 = vmatpush.msra.mxu0 0.0
    %7901 = vmatpush.msra.mxu0 0.0
    %7902 = vmatpush.msra.mxu0 0.0
    %7903 = vmatpush.msra.mxu0 0.0
    %7904 = vmatpush.msra.mxu0 0.0
    %7905 = vmatpush.msra.mxu0 0.0
    %7906 = vmatpush.msra.mxu0 0.0
    %7907 = vmatpush.msra.mxu0 0.0
    %7908 = vmatpush.msra.mxu0 0.0
    %7909 = vmatpush.msra.mxu0 0.0
    %7910 = vmatpush.msra.mxu0 0.0
    %7911 = vmatpush.msra.mxu0 0.0
    %7912 = vmatpush.msra.mxu0 0.0
    %7913 = vmatpush.msra.mxu0 %v7832
    %7914 = vmatmul.f32.gmra.mxu0 %v7836
    %v7915 = vpop.f32.mrf.mxu0
    %v7916 = vadd.f32 0.0, %v7915
    %7917 = vdwg.mxu0
    %v7918 = vadd.f32 %v7802, %v7856
    %v7919 = vadd.f32 %v7803, %v7876
    %v7920 = vadd.f32 %v7804, %v7896
    %v7921 = vadd.f32 %v7805, %v7916
    %7922 = vrot.lane.b32.xlu0 %v7011, 111
    %v7923 = vpop.permute.xlu0 %7922
    %7924 = vrot.lane.b32.xlu0 %v7012, 111
    %v7925 = vpop.permute.xlu0 %7924
    %7926 = vrot.lane.b32.xlu0 %v7013, 111
    %v7927 = vpop.permute.xlu0 %7926
    %7928 = vrot.lane.b32.xlu0 %v7014, 111
    %v7929 = vpop.permute.xlu0 %7928
    %v7930 = vsel %vm4640, %v7927, %v7929
    %v7931 = vsel %vm4640, %v7925, %v7927
    %v7932 = vsel %vm4640, %v7923, %v7925
    %v7933 = vsel %vm4640, %v7929, %v7923
    %s7934 = scalar_lea.vmem %s13, 32
    %v7935 = vld [vmem:[%s7934] ss:$8 sm:$0xf]
    %v7937 = vperm.slane %v7935, 0
    %v7938 = vperm.slane %v7935, 1
    %v7939 = vperm.slane %v7935, 2
    %v7940 = vperm.slane %v7935, 3
    %v7945 = vmul.f32 %v7932, %v7937
    %v7946 = vmul.f32 %v7931, %v7938
    %v7947 = vmul.f32 %v7930, %v7939
    %v7948 = vmul.f32 %v7933, %v7940
    %s7949 = scalar_lea.vmem %s9, 64
    %v7950 = vld [vmem:[%s7949] sm:$0xff]
    %v7952 = vsel %vm7071, %v7950, 0
    %7954 = vmatpush.msra.mxu0 0.0
    %7955 = vmatpush.msra.mxu0 0.0
    %7956 = vmatpush.msra.mxu0 0.0
    %7957 = vmatpush.msra.mxu0 0.0
    %7958 = vmatpush.msra.mxu0 0.0
    %7959 = vmatpush.msra.mxu0 0.0
    %7960 = vmatpush.msra.mxu0 0.0
    %7961 = vmatpush.msra.mxu0 0.0
    %7962 = vmatpush.msra.mxu0 0.0
    %7963 = vmatpush.msra.mxu0 0.0
    %7964 = vmatpush.msra.mxu0 0.0
    %7965 = vmatpush.msra.mxu0 0.0
    %7966 = vmatpush.msra.mxu0 0.0
    %7967 = vmatpush.msra.mxu0 0.0
    %7968 = vmatpush.msra.mxu0 0.0
    %7969 = vmatpush.msra.mxu0 %v7945
    %7970 = vmatmul.f32.gmra.mxu0 %v7952
    %v7971 = vpop.f32.mrf.mxu0
    %v7972 = vadd.f32 0.0, %v7971
    %7973 = vdwg.mxu0
    %7974 = vmatpush.msra.mxu0 0.0
    %7975 = vmatpush.msra.mxu0 0.0
    %7976 = vmatpush.msra.mxu0 0.0
    %7977 = vmatpush.msra.mxu0 0.0
    %7978 = vmatpush.msra.mxu0 0.0
    %7979 = vmatpush.msra.mxu0 0.0
    %7980 = vmatpush.msra.mxu0 0.0
    %7981 = vmatpush.msra.mxu0 0.0
    %7982 = vmatpush.msra.mxu0 0.0
    %7983 = vmatpush.msra.mxu0 0.0
    %7984 = vmatpush.msra.mxu0 0.0
    %7985 = vmatpush.msra.mxu0 0.0
    %7986 = vmatpush.msra.mxu0 0.0
    %7987 = vmatpush.msra.mxu0 0.0
    %7988 = vmatpush.msra.mxu0 0.0
    %7989 = vmatpush.msra.mxu0 %v7946
    %7990 = vmatmul.f32.gmra.mxu0 %v7952
    %v7991 = vpop.f32.mrf.mxu0
    %v7992 = vadd.f32 0.0, %v7991
    %7993 = vdwg.mxu0
    %7994 = vmatpush.msra.mxu0 0.0
    %7995 = vmatpush.msra.mxu0 0.0
    %7996 = vmatpush.msra.mxu0 0.0
    %7997 = vmatpush.msra.mxu0 0.0
    %7998 = vmatpush.msra.mxu0 0.0
    %7999 = vmatpush.msra.mxu0 0.0
    %8000 = vmatpush.msra.mxu0 0.0
    %8001 = vmatpush.msra.mxu0 0.0
    %8002 = vmatpush.msra.mxu0 0.0
    %8003 = vmatpush.msra.mxu0 0.0
    %8004 = vmatpush.msra.mxu0 0.0
    %8005 = vmatpush.msra.mxu0 0.0
    %8006 = vmatpush.msra.mxu0 0.0
    %8007 = vmatpush.msra.mxu0 0.0
    %8008 = vmatpush.msra.mxu0 0.0
    %8009 = vmatpush.msra.mxu0 %v7947
    %8010 = vmatmul.f32.gmra.mxu0 %v7952
    %v8011 = vpop.f32.mrf.mxu0
    %v8012 = vadd.f32 0.0, %v8011
    %8013 = vdwg.mxu0
    %8014 = vmatpush.msra.mxu0 0.0
    %8015 = vmatpush.msra.mxu0 0.0
    %8016 = vmatpush.msra.mxu0 0.0
    %8017 = vmatpush.msra.mxu0 0.0
    %8018 = vmatpush.msra.mxu0 0.0
    %8019 = vmatpush.msra.mxu0 0.0
    %8020 = vmatpush.msra.mxu0 0.0
    %8021 = vmatpush.msra.mxu0 0.0
    %8022 = vmatpush.msra.mxu0 0.0
    %8023 = vmatpush.msra.mxu0 0.0
    %8024 = vmatpush.msra.mxu0 0.0
    %8025 = vmatpush.msra.mxu0 0.0
    %8026 = vmatpush.msra.mxu0 0.0
    %8027 = vmatpush.msra.mxu0 0.0
    %8028 = vmatpush.msra.mxu0 0.0
    %8029 = vmatpush.msra.mxu0 %v7948
    %8030 = vmatmul.f32.gmra.mxu0 %v7952
    %v8031 = vpop.f32.mrf.mxu0
    %v8032 = vadd.f32 0.0, %v8031
    %8033 = vdwg.mxu0
    %v8034 = vadd.f32 %v7918, %v7972
    %v8035 = vadd.f32 %v7919, %v7992
    %v8036 = vadd.f32 %v7920, %v8012
    %v8037 = vadd.f32 %v7921, %v8032
    %v8038 = vld [vmem:[%s11] sm:$0xff]
    %8040 = vset.pattern.permute.xlu0 0
    %8041 = vperm.xlu0 %8040, %v8038
    %v8042 = vpop.permute.xlu0 %8041
    %v8044 = vadd.f32 %v8034, %v8042
    %v8045 = vadd.f32 %v8035, %v8042
    %v8046 = vadd.f32 %v8036, %v8042
    %v8047 = vadd.f32 %v8037, %v8042
    %v8048 = vmax.f32 %v8044, 0.0
    %v8049 = vmax.f32 %v8045, 0.0
    %v8050 = vmax.f32 %v8046, 0.0
    %v8051 = vmax.f32 %v8047, 0.0
    %8052 = vrot.lane.b32.xlu0 %v8048, 127
    %v8053 = vpop.permute.xlu0 %8052
    %8054 = vrot.lane.b32.xlu0 %v8049, 127
    %v8055 = vpop.permute.xlu0 %8054
    %8056 = vrot.lane.b32.xlu0 %v8050, 127
    %v8057 = vpop.permute.xlu0 %8056
    %8058 = vrot.lane.b32.xlu0 %v8051, 127
    %v8059 = vpop.permute.xlu0 %8058
    %v8060 = vsel %vm3660, %v8057, %v8059
    %v8061 = vsel %vm3660, %v8055, %v8057
    %v8062 = vsel %vm3660, %v8053, %v8055
    %v8063 = vsel %vm3660, %v8059, %v8053
    %v8064 = vmax.f32 %v8048, %v8062
    %v8065 = vmax.f32 %v8049, %v8061
    %v8066 = vmax.f32 %v8050, %v8060
    %v8067 = vmax.f32 %v8051, %v8063
    %8068 = vrot.lane.b32.xlu0 %v8048, 112
    %v8069 = vpop.permute.xlu0 %8068
    %8070 = vrot.lane.b32.xlu0 %v8049, 112
    %v8071 = vpop.permute.xlu0 %8070
    %8072 = vrot.lane.b32.xlu0 %v8050, 112
    %v8073 = vpop.permute.xlu0 %8072
    %8074 = vrot.lane.b32.xlu0 %v8051, 112
    %v8075 = vpop.permute.xlu0 %8074
    %v8076 = vsel %vm4500, %v8073, %v8075
    %v8077 = vsel %vm4500, %v8071, %v8073
    %v8078 = vsel %vm4500, %v8069, %v8071
    %v8079 = vsel %vm4500, %v8075, %v8069
    %v8080 = vmax.f32 %v8064, %v8078
    %v8081 = vmax.f32 %v8065, %v8077
    %v8082 = vmax.f32 %v8066, %v8076
    %v8083 = vmax.f32 %v8067, %v8079
    %8084 = vrot.lane.b32.xlu0 %v8048, 111
    %v8085 = vpop.permute.xlu0 %8084
    %8086 = vrot.lane.b32.xlu0 %v8049, 111
    %v8087 = vpop.permute.xlu0 %8086
    %8088 = vrot.lane.b32.xlu0 %v8050, 111
    %v8089 = vpop.permute.xlu0 %8088
    %8090 = vrot.lane.b32.xlu0 %v8051, 111
    %v8091 = vpop.permute.xlu0 %8090
    %v8092 = vsel %vm4640, %v8089, %v8091
    %v8093 = vsel %vm4640, %v8087, %v8089
    %v8094 = vsel %vm4640, %v8085, %v8087
    %v8095 = vsel %vm4640, %v8091, %v8085
    %v8096 = vmax.f32 %v8080, %v8094
    %v8097 = vmax.f32 %v8081, %v8093
    %v8098 = vmax.f32 %v8082, %v8092
    %v8099 = vmax.f32 %v8083, %v8095
    %v8100 = vld [vmem:[#allocation2] sm:$0xff]
    %v8101 = vld [vmem:[#allocation2 + $0x8] sm:$0xff]
    %v8102 = vld [vmem:[#allocation2 + $0x10] sm:$0xff]
    %v8103 = vld [vmem:[#allocation2 + $0x18] sm:$0xff]
    %v8104 = vld [vmem:[#allocation2 + $0x20] sm:$0xff]
    %v8105 = vld [vmem:[#allocation2 + $0x28] sm:$0xff]
    %v8106 = vld [vmem:[#allocation2 + $0x30] sm:$0xff]
    %v8107 = vld [vmem:[#allocation2 + $0x38] sm:$0xff]
    %v8108 = vld [vmem:[#allocation2 + $0x40] sm:$0xff]
    %v8109 = vld [vmem:[#allocation2 + $0x48] sm:$0xff]
    %v8110 = vld [vmem:[#allocation2 + $0x50] sm:$0xff]
    %v8111 = vld [vmem:[#allocation2 + $0x58] sm:$0xff]
    %v8112 = vld [vmem:[#allocation2 + $0x60] sm:$0xff]
    %v8113 = vld [vmem:[#allocation2 + $0x68] sm:$0xff]
    %v8114 = vld [vmem:[#allocation2 + $0x70] sm:$0xff]
    %v8115 = vld [vmem:[#allocation2 + $0x78] sm:$0xff]
    %v8116 = vld [vmem:[#allocation2 + $0x80] sm:$0xff]
    %v8117 = vld [vmem:[#allocation2 + $0x88] sm:$0xff]
    %v8118 = vld [vmem:[#allocation2 + $0x90] sm:$0xff]
    %v8119 = vld [vmem:[#allocation2 + $0x98] sm:$0xff]
    %v8120 = vld [vmem:[#allocation2 + $0xa0] sm:$0xff]
    %v8121 = vld [vmem:[#allocation2 + $0xa8] sm:$0xff]
    %v8122 = vld [vmem:[#allocation2 + $0xb0] sm:$0xff]
    %v8123 = vld [vmem:[#allocation2 + $0xb8] sm:$0xff]
    %v8124 = vld [vmem:[#allocation2 + $0xc0] sm:$0xff]
    %v8125 = vld [vmem:[#allocation2 + $0xc8] sm:$0xff]
    %v8126 = vld [vmem:[#allocation2 + $0xd0] sm:$0xff]
    %v8127 = vld [vmem:[#allocation2 + $0xd8] sm:$0xff]
    %v8128 = vld [vmem:[#allocation2 + $0xe0] sm:$0xff]
    %v8129 = vld [vmem:[#allocation2 + $0xe8] sm:$0xff]
    %v8130 = vld [vmem:[#allocation2 + $0xf0] sm:$0xff]
    %v8131 = vld [vmem:[#allocation2 + $0xf8] sm:$0xff]
    %v8132 = vld [vmem:[#allocation2 + $0x100] sm:$0xff]
    %v8133 = vld [vmem:[#allocation2 + $0x108] sm:$0xff]
    %v8134 = vld [vmem:[#allocation2 + $0x110] sm:$0xff]
    %v8135 = vld [vmem:[#allocation2 + $0x118] sm:$0xff]
    %v8136 = vld [vmem:[#allocation2 + $0x120] sm:$0xff]
    %v8137 = vld [vmem:[#allocation2 + $0x128] sm:$0xff]
    %v8138 = vld [vmem:[#allocation2 + $0x130] sm:$0xff]
    %v8139 = vld [vmem:[#allocation2 + $0x138] sm:$0xff]
    %v8140 = vld [vmem:[#allocation2 + $0x140] sm:$0xff]
    %v8141 = vld [vmem:[#allocation2 + $0x148] sm:$0xff]
    %v8142 = vld [vmem:[#allocation2 + $0x150] sm:$0xff]
    %v8143 = vld [vmem:[#allocation2 + $0x158] sm:$0xff]
    %v8144 = vld [vmem:[#allocation2 + $0x160] sm:$0xff]
    %v8145 = vld [vmem:[#allocation2 + $0x168] sm:$0xff]
    %v8146 = vld [vmem:[#allocation2 + $0x170] sm:$0xff]
    %v8147 = vld [vmem:[#allocation2 + $0x178] sm:$0xff]
    %v8148 = vld [vmem:[#allocation2 + $0x180] sm:$0xff]
    %v8149 = vld [vmem:[#allocation2 + $0x188] sm:$0xff]
    %v8150 = vld [vmem:[#allocation2 + $0x190] sm:$0xff]
    %v8151 = vld [vmem:[#allocation2 + $0x198] sm:$0xff]
    %v8152 = vld [vmem:[#allocation2 + $0x1a0] sm:$0xff]
    %v8153 = vld [vmem:[#allocation2 + $0x1a8] sm:$0xff]
    %v8154 = vld [vmem:[#allocation2 + $0x1b0] sm:$0xff]
    %v8155 = vld [vmem:[#allocation2 + $0x1b8] sm:$0xff]
    %v8156 = vld [vmem:[#allocation2 + $0x1c0] sm:$0xff]
    %v8157 = vld [vmem:[#allocation2 + $0x1c8] sm:$0xff]
    %v8158 = vld [vmem:[#allocation2 + $0x1d0] sm:$0xff]
    %v8159 = vld [vmem:[#allocation2 + $0x1d8] sm:$0xff]
    %v8160 = vld [vmem:[#allocation2 + $0x1e0] sm:$0xff]
    %v8161 = vld [vmem:[#allocation2 + $0x1e8] sm:$0xff]
    %v8162 = vld [vmem:[#allocation2 + $0x1f0] sm:$0xff]
    %v8163 = vld [vmem:[#allocation2 + $0x1f8] sm:$0xff]
    %8164 = vmatpush.msra.mxu0 %v8115
    %8165 = vmatpush.msra.mxu0 %v8114
    %8166 = vmatpush.msra.mxu0 %v8113
    %8167 = vmatpush.msra.mxu0 %v8112
    %8168 = vmatpush.msra.mxu0 %v8111
    %8169 = vmatpush.msra.mxu0 %v8110
    %8170 = vmatpush.msra.mxu0 %v8109
    %8171 = vmatpush.msra.mxu0 %v8108
    %8172 = vmatpush.msra.mxu0 %v8107
    %8173 = vmatpush.msra.mxu0 %v8106
    %8174 = vmatpush.msra.mxu0 %v8105
    %8175 = vmatpush.msra.mxu0 %v8104
    %8176 = vmatpush.msra.mxu0 %v8103
    %8177 = vmatpush.msra.mxu0 %v8102
    %8178 = vmatpush.msra.mxu0 %v8101
    %8179 = vmatpush.msra.mxu0 %v8100
    %8180 = vmatmul.f32.gmra.mxu0 %v8096
    %v8181 = vpop.f32.mrf.mxu0
    %v8182 = vadd.f32 0.0, %v8181
    %8183 = vdwg.mxu0
    %8184 = vmatpush.msra.mxu0 %v8131
    %8185 = vmatpush.msra.mxu0 %v8130
    %8186 = vmatpush.msra.mxu0 %v8129
    %8187 = vmatpush.msra.mxu0 %v8128
    %8188 = vmatpush.msra.mxu0 %v8127
    %8189 = vmatpush.msra.mxu0 %v8126
    %8190 = vmatpush.msra.mxu0 %v8125
    %8191 = vmatpush.msra.mxu0 %v8124
    %8192 = vmatpush.msra.mxu0 %v8123
    %8193 = vmatpush.msra.mxu0 %v8122
    %8194 = vmatpush.msra.mxu0 %v8121
    %8195 = vmatpush.msra.mxu0 %v8120
    %8196 = vmatpush.msra.mxu0 %v8119
    %8197 = vmatpush.msra.mxu0 %v8118
    %8198 = vmatpush.msra.mxu0 %v8117
    %8199 = vmatpush.msra.mxu0 %v8116
    %8200 = vmatmul.f32.gmra.mxu0 %v8097
    %v8201 = vpop.f32.mrf.mxu0
    %v8202 = vadd.f32 %v8182, %v8201
    %8203 = vdwg.mxu0
    %8204 = vmatpush.msra.mxu0 %v8147
    %8205 = vmatpush.msra.mxu0 %v8146
    %8206 = vmatpush.msra.mxu0 %v8145
    %8207 = vmatpush.msra.mxu0 %v8144
    %8208 = vmatpush.msra.mxu0 %v8143
    %8209 = vmatpush.msra.mxu0 %v8142
    %8210 = vmatpush.msra.mxu0 %v8141
    %8211 = vmatpush.msra.mxu0 %v8140
    %8212 = vmatpush.msra.mxu0 %v8139
    %8213 = vmatpush.msra.mxu0 %v8138
    %8214 = vmatpush.msra.mxu0 %v8137
    %8215 = vmatpush.msra.mxu0 %v8136
    %8216 = vmatpush.msra.mxu0 %v8135
    %8217 = vmatpush.msra.mxu0 %v8134
    %8218 = vmatpush.msra.mxu0 %v8133
    %8219 = vmatpush.msra.mxu0 %v8132
    %8220 = vmatmul.f32.gmra.mxu0 %v8098
    %v8221 = vpop.f32.mrf.mxu0
    %v8222 = vadd.f32 %v8202, %v8221
    %8223 = vdwg.mxu0
    %8224 = vmatpush.msra.mxu0 %v8163
    %8225 = vmatpush.msra.mxu0 %v8162
    %8226 = vmatpush.msra.mxu0 %v8161
    %8227 = vmatpush.msra.mxu0 %v8160
    %8228 = vmatpush.msra.mxu0 %v8159
    %8229 = vmatpush.msra.mxu0 %v8158
    %8230 = vmatpush.msra.mxu0 %v8157
    %8231 = vmatpush.msra.mxu0 %v8156
    %8232 = vmatpush.msra.mxu0 %v8155
    %8233 = vmatpush.msra.mxu0 %v8154
    %8234 = vmatpush.msra.mxu0 %v8153
    %8235 = vmatpush.msra.mxu0 %v8152
    %8236 = vmatpush.msra.mxu0 %v8151
    %8237 = vmatpush.msra.mxu0 %v8150
    %8238 = vmatpush.msra.mxu0 %v8149
    %8239 = vmatpush.msra.mxu0 %v8148
    %8240 = vmatmul.f32.gmra.mxu0 %v8099
    %v8241 = vpop.f32.mrf.mxu0
    %v8242 = vadd.f32 %v8222, %v8241
    %8243 = vdwg.mxu0
    %v8244 = vld [vmem:[%s17] sm:$0xff]
    %v8245 = vld [vmem:[%s19] sm:$0xff]
    %8247 = vset.pattern.permute.xlu0 0
    %8248 = vperm.xlu0 %8247, %v8245
    %v8249 = vpop.permute.xlu0 %8248
    %v8252 = vsel %vm7071, %v8244, 0
    %8254 = vmatpush.msra.mxu0 0.0
    %8255 = vmatpush.msra.mxu0 0.0
    %8256 = vmatpush.msra.mxu0 0.0
    %8257 = vmatpush.msra.mxu0 0.0
    %8258 = vmatpush.msra.mxu0 0.0
    %8259 = vmatpush.msra.mxu0 0.0
    %8260 = vmatpush.msra.mxu0 0.0
    %8261 = vmatpush.msra.mxu0 0.0
    %8262 = vmatpush.msra.mxu0 0.0
    %8263 = vmatpush.msra.mxu0 0.0
    %8264 = vmatpush.msra.mxu0 0.0
    %8265 = vmatpush.msra.mxu0 0.0
    %8266 = vmatpush.msra.mxu0 0.0
    %8267 = vmatpush.msra.mxu0 0.0
    %8268 = vmatpush.msra.mxu0 0.0
    %8269 = vmatpush.msra.mxu0 %v8242
    %8270 = vmatmul.f32.gmra.mxu0 %v8252
    %v8271 = vpop.f32.mrf.mxu0
    %v8272 = vadd.f32 %v8249, %v8271
    %8273 = vdwg.mxu0
    %v8274 = vmax.f32 %v8272, 0.0
    %8275 = vrot.lane.b32.xlu0 %v8274, 9
    %v8276 = vpop.permute.xlu0 %8275
    %v8277 = vld [vmem:[%s25] sm:$0x1]
    %v8278 = vperm.slane %v8277, 0
    %v8279 = vmul.f32 %v8276, %v8278
    %v8280 = vld [vmem:[%s21] sm:$0xff]
    %8281 = vrot.lane.b32.xlu0 %v8274, 8
    %v8282 = vpop.permute.xlu0 %8281
    %v8283 = vld [vmem:[%s25 + $0x1] sm:$0x1]
    %v8284 = vperm.slane %v8283, 0
    %v8285 = vmul.f32 %v8282, %v8284
    %s8286 = scalar_lea.vmem %s21, 8
    %v8287 = vld [vmem:[%s8286] sm:$0xff]
    %v8289 = vsel %vm7071, %v8287, 0
    %8291 = vmatpush.msra.mxu0 0.0
    %8292 = vmatpush.msra.mxu0 0.0
    %8293 = vmatpush.msra.mxu0 0.0
    %8294 = vmatpush.msra.mxu0 0.0
    %8295 = vmatpush.msra.mxu0 0.0
    %8296 = vmatpush.msra.mxu0 0.0
    %8297 = vmatpush.msra.mxu0 0.0
    %8298 = vmatpush.msra.mxu0 0.0
    %8299 = vmatpush.msra.mxu0 0.0
    %8300 = vmatpush.msra.mxu0 0.0
    %8301 = vmatpush.msra.mxu0 0.0
    %8302 = vmatpush.msra.mxu0 0.0
    %8303 = vmatpush.msra.mxu0 0.0
    %8304 = vmatpush.msra.mxu0 0.0
    %8305 = vmatpush.msra.mxu0 0.0
    %8306 = vmatpush.msra.mxu0 %v8285
    %8307 = vmatmul.f32.gmra.mxu0 %v8289
    %v8308 = vpop.f32.mrf.mxu0
    %v8309 = vadd.f32 0.0, %v8308
    %8310 = vdwg.mxu0
    %v8312 = vsel %vm7071, %v8280, 0
    %8314 = vmatpush.msra.mxu0 0.0
    %8315 = vmatpush.msra.mxu0 0.0
    %8316 = vmatpush.msra.mxu0 0.0
    %8317 = vmatpush.msra.mxu0 0.0
    %8318 = vmatpush.msra.mxu0 0.0
    %8319 = vmatpush.msra.mxu0 0.0
    %8320 = vmatpush.msra.mxu0 0.0
    %8321 = vmatpush.msra.mxu0 0.0
    %8322 = vmatpush.msra.mxu0 0.0
    %8323 = vmatpush.msra.mxu0 0.0
    %8324 = vmatpush.msra.mxu0 0.0
    %8325 = vmatpush.msra.mxu0 0.0
    %8326 = vmatpush.msra.mxu0 0.0
    %8327 = vmatpush.msra.mxu0 0.0
    %8328 = vmatpush.msra.mxu0 0.0
    %8329 = vmatpush.msra.mxu0 %v8279
    %8330 = vmatmul.f32.gmra.mxu0 %v8312
    %v8331 = vpop.f32.mrf.mxu0
    %v8332 = vadd.f32 %v8309, %v8331
    %8333 = vdwg.mxu0
    %8334 = vrot.lane.b32.xlu0 %v8274, 7
    %v8335 = vpop.permute.xlu0 %8334
    %v8336 = vld [vmem:[%s25 + $0x2] sm:$0x1]
    %v8337 = vperm.slane %v8336, 0
    %v8338 = vmul.f32 %v8335, %v8337
    %s8339 = scalar_lea.vmem %s21, 16
    %v8340 = vld [vmem:[%s8339] sm:$0xff]
    %v8342 = vsel %vm7071, %v8340, 0
    %8344 = vmatpush.msra.mxu0 0.0
    %8345 = vmatpush.msra.mxu0 0.0
    %8346 = vmatpush.msra.mxu0 0.0
    %8347 = vmatpush.msra.mxu0 0.0
    %8348 = vmatpush.msra.mxu0 0.0
    %8349 = vmatpush.msra.mxu0 0.0
    %8350 = vmatpush.msra.mxu0 0.0
    %8351 = vmatpush.msra.mxu0 0.0
    %8352 = vmatpush.msra.mxu0 0.0
    %8353 = vmatpush.msra.mxu0 0.0
    %8354 = vmatpush.msra.mxu0 0.0
    %8355 = vmatpush.msra.mxu0 0.0
    %8356 = vmatpush.msra.mxu0 0.0
    %8357 = vmatpush.msra.mxu0 0.0
    %8358 = vmatpush.msra.mxu0 0.0
    %8359 = vmatpush.msra.mxu0 %v8338
    %8360 = vmatmul.f32.gmra.mxu0 %v8342
    %v8361 = vpop.f32.mrf.mxu0
    %v8362 = vadd.f32 0.0, %v8361
    %8363 = vdwg.mxu0
    %v8364 = vadd.f32 %v8332, %v8362
    %8365 = vrot.lane.b32.xlu0 %v8274, 1
    %v8366 = vpop.permute.xlu0 %8365
    %v8367 = vld [vmem:[%s25 + $0x3] sm:$0x1]
    %v8368 = vperm.slane %v8367, 0
    %v8369 = vmul.f32 %v8366, %v8368
    %s8370 = scalar_lea.vmem %s21, 24
    %v8371 = vld [vmem:[%s8370] sm:$0xff]
    %v8373 = vsel %vm7071, %v8371, 0
    %8375 = vmatpush.msra.mxu0 0.0
    %8376 = vmatpush.msra.mxu0 0.0
    %8377 = vmatpush.msra.mxu0 0.0
    %8378 = vmatpush.msra.mxu0 0.0
    %8379 = vmatpush.msra.mxu0 0.0
    %8380 = vmatpush.msra.mxu0 0.0
    %8381 = vmatpush.msra.mxu0 0.0
    %8382 = vmatpush.msra.mxu0 0.0
    %8383 = vmatpush.msra.mxu0 0.0
    %8384 = vmatpush.msra.mxu0 0.0
    %8385 = vmatpush.msra.mxu0 0.0
    %8386 = vmatpush.msra.mxu0 0.0
    %8387 = vmatpush.msra.mxu0 0.0
    %8388 = vmatpush.msra.mxu0 0.0
    %8389 = vmatpush.msra.mxu0 0.0
    %8390 = vmatpush.msra.mxu0 %v8369
    %8391 = vmatmul.f32.gmra.mxu0 %v8373
    %v8392 = vpop.f32.mrf.mxu0
    %v8393 = vadd.f32 0.0, %v8392
    %8394 = vdwg.mxu0
    %v8395 = vadd.f32 %v8364, %v8393
    %v8396 = vld [vmem:[%s25 + $0x4] sm:$0x1]
    %v8397 = vperm.slane %v8396, 0
    %v8398 = vmul.f32 %v8274, %v8397
    %s8399 = scalar_lea.vmem %s21, 32
    %v8400 = vld [vmem:[%s8399] sm:$0xff]
    %v8402 = vsel %vm7071, %v8400, 0
    %8404 = vmatpush.msra.mxu0 0.0
    %8405 = vmatpush.msra.mxu0 0.0
    %8406 = vmatpush.msra.mxu0 0.0
    %8407 = vmatpush.msra.mxu0 0.0
    %8408 = vmatpush.msra.mxu0 0.0
    %8409 = vmatpush.msra.mxu0 0.0
    %8410 = vmatpush.msra.mxu0 0.0
    %8411 = vmatpush.msra.mxu0 0.0
    %8412 = vmatpush.msra.mxu0 0.0
    %8413 = vmatpush.msra.mxu0 0.0
    %8414 = vmatpush.msra.mxu0 0.0
    %8415 = vmatpush.msra.mxu0 0.0
    %8416 = vmatpush.msra.mxu0 0.0
    %8417 = vmatpush.msra.mxu0 0.0
    %8418 = vmatpush.msra.mxu0 0.0
    %8419 = vmatpush.msra.mxu0 %v8398
    %8420 = vmatmul.f32.gmra.mxu0 %v8402
    %v8421 = vpop.f32.mrf.mxu0
    %v8422 = vadd.f32 0.0, %v8421
    %8423 = vdwg.mxu0
    %v8424 = vadd.f32 %v8395, %v8422
    %8425 = vrot.lane.b32.xlu0 %v8274, 127
    %v8426 = vpop.permute.xlu0 %8425
    %v8427 = vld [vmem:[%s25 + $0x5] sm:$0x1]
    %v8428 = vperm.slane %v8427, 0
    %v8429 = vmul.f32 %v8426, %v8428
    %s8430 = scalar_lea.vmem %s21, 40
    %v8431 = vld [vmem:[%s8430] sm:$0xff]
    %v8433 = vsel %vm7071, %v8431, 0
    %8435 = vmatpush.msra.mxu0 0.0
    %8436 = vmatpush.msra.mxu0 0.0
    %8437 = vmatpush.msra.mxu0 0.0
    %8438 = vmatpush.msra.mxu0 0.0
    %8439 = vmatpush.msra.mxu0 0.0
    %8440 = vmatpush.msra.mxu0 0.0
    %8441 = vmatpush.msra.mxu0 0.0
    %8442 = vmatpush.msra.mxu0 0.0
    %8443 = vmatpush.msra.mxu0 0.0
    %8444 = vmatpush.msra.mxu0 0.0
    %8445 = vmatpush.msra.mxu0 0.0
    %8446 = vmatpush.msra.mxu0 0.0
    %8447 = vmatpush.msra.mxu0 0.0
    %8448 = vmatpush.msra.mxu0 0.0
    %8449 = vmatpush.msra.mxu0 0.0
    %8450 = vmatpush.msra.mxu0 %v8429
    %8451 = vmatmul.f32.gmra.mxu0 %v8433
    %v8452 = vpop.f32.mrf.mxu0
    %v8453 = vadd.f32 0.0, %v8452
    %8454 = vdwg.mxu0
    %v8455 = vadd.f32 %v8424, %v8453
    %8456 = vrot.lane.b32.xlu0 %v8274, 121
    %v8457 = vpop.permute.xlu0 %8456
    %v8458 = vld [vmem:[%s25 + $0x6] sm:$0x1]
    %v8459 = vperm.slane %v8458, 0
    %v8460 = vmul.f32 %v8457, %v8459
    %s8461 = scalar_lea.vmem %s21, 48
    %v8462 = vld [vmem:[%s8461] sm:$0xff]
    %v8464 = vsel %vm7071, %v8462, 0
    %8466 = vmatpush.msra.mxu0 0.0
    %8467 = vmatpush.msra.mxu0 0.0
    %8468 = vmatpush.msra.mxu0 0.0
    %8469 = vmatpush.msra.mxu0 0.0
    %8470 = vmatpush.msra.mxu0 0.0
    %8471 = vmatpush.msra.mxu0 0.0
    %8472 = vmatpush.msra.mxu0 0.0
    %8473 = vmatpush.msra.mxu0 0.0
    %8474 = vmatpush.msra.mxu0 0.0
    %8475 = vmatpush.msra.mxu0 0.0
    %8476 = vmatpush.msra.mxu0 0.0
    %8477 = vmatpush.msra.mxu0 0.0
    %8478 = vmatpush.msra.mxu0 0.0
    %8479 = vmatpush.msra.mxu0 0.0
    %8480 = vmatpush.msra.mxu0 0.0
    %8481 = vmatpush.msra.mxu0 %v8460
    %8482 = vmatmul.f32.gmra.mxu0 %v8464
    %v8483 = vpop.f32.mrf.mxu0
    %v8484 = vadd.f32 0.0, %v8483
    %8485 = vdwg.mxu0
    %v8486 = vadd.f32 %v8455, %v8484
    %8487 = vrot.lane.b32.xlu0 %v8274, 120
    %v8488 = vpop.permute.xlu0 %8487
    %v8489 = vld [vmem:[%s25 + $0x7] sm:$0x1]
    %v8490 = vperm.slane %v8489, 0
    %v8491 = vmul.f32 %v8488, %v8490
    %s8492 = scalar_lea.vmem %s21, 56
    %v8493 = vld [vmem:[%s8492] sm:$0xff]
    %v8495 = vsel %vm7071, %v8493, 0
    %8497 = vmatpush.msra.mxu0 0.0
    %8498 = vmatpush.msra.mxu0 0.0
    %8499 = vmatpush.msra.mxu0 0.0
    %8500 = vmatpush.msra.mxu0 0.0
    %8501 = vmatpush.msra.mxu0 0.0
    %8502 = vmatpush.msra.mxu0 0.0
    %8503 = vmatpush.msra.mxu0 0.0
    %8504 = vmatpush.msra.mxu0 0.0
    %8505 = vmatpush.msra.mxu0 0.0
    %8506 = vmatpush.msra.mxu0 0.0
    %8507 = vmatpush.msra.mxu0 0.0
    %8508 = vmatpush.msra.mxu0 0.0
    %8509 = vmatpush.msra.mxu0 0.0
    %8510 = vmatpush.msra.mxu0 0.0
    %8511 = vmatpush.msra.mxu0 0.0
    %8512 = vmatpush.msra.mxu0 %v8491
    %8513 = vmatmul.f32.gmra.mxu0 %v8495
    %v8514 = vpop.f32.mrf.mxu0
    %v8515 = vadd.f32 0.0, %v8514
    %8516 = vdwg.mxu0
    %v8517 = vadd.f32 %v8486, %v8515
    %8518 = vrot.lane.b32.xlu0 %v8274, 119
    %v8519 = vpop.permute.xlu0 %8518
    %v8520 = vld [vmem:[%s25 + $0x8] sm:$0x1]
    %v8521 = vperm.slane %v8520, 0
    %v8522 = vmul.f32 %v8519, %v8521
    %s8523 = scalar_lea.vmem %s21, 64
    %v8524 = vld [vmem:[%s8523] sm:$0xff]
    %v8526 = vsel %vm7071, %v8524, 0
    %8528 = vmatpush.msra.mxu0 0.0
    %8529 = vmatpush.msra.mxu0 0.0
    %8530 = vmatpush.msra.mxu0 0.0
    %8531 = vmatpush.msra.mxu0 0.0
    %8532 = vmatpush.msra.mxu0 0.0
    %8533 = vmatpush.msra.mxu0 0.0
    %8534 = vmatpush.msra.mxu0 0.0
    %8535 = vmatpush.msra.mxu0 0.0
    %8536 = vmatpush.msra.mxu0 0.0
    %8537 = vmatpush.msra.mxu0 0.0
    %8538 = vmatpush.msra.mxu0 0.0
    %8539 = vmatpush.msra.mxu0 0.0
    %8540 = vmatpush.msra.mxu0 0.0
    %8541 = vmatpush.msra.mxu0 0.0
    %8542 = vmatpush.msra.mxu0 0.0
    %8543 = vmatpush.msra.mxu0 %v8522
    %8544 = vmatmul.f32.gmra.mxu0 %v8526
    %v8545 = vpop.f32.mrf.mxu0
    %v8546 = vadd.f32 0.0, %v8545
    %8547 = vdwg.mxu0
    %v8548 = vadd.f32 %v8517, %v8546
    %v8549 = vld [vmem:[%s23] sm:$0xff]
    %8551 = vset.pattern.permute.xlu0 0
    %8552 = vperm.xlu0 %8551, %v8549
    %v8553 = vpop.permute.xlu0 %8552
    %v8555 = vadd.f32 %v8548, %v8553
    %v8556 = vmax.f32 %v8555, 0.0
    %v8557 = vld [vmem:[%s27] sm:$0xff]
    %v8558 = vld [vmem:[%s29] sm:$0xff]
    %8560 = vset.pattern.permute.xlu0 0
    %8561 = vperm.xlu0 %8560, %v8558
    %v8562 = vpop.permute.xlu0 %8561
    %v8565 = vsel %vm7071, %v8557, 0
    %8567 = vmatpush.msra.mxu0 0.0
    %8568 = vmatpush.msra.mxu0 0.0
    %8569 = vmatpush.msra.mxu0 0.0
    %8570 = vmatpush.msra.mxu0 0.0
    %8571 = vmatpush.msra.mxu0 0.0
    %8572 = vmatpush.msra.mxu0 0.0
    %8573 = vmatpush.msra.mxu0 0.0
    %8574 = vmatpush.msra.mxu0 0.0
    %8575 = vmatpush.msra.mxu0 0.0
    %8576 = vmatpush.msra.mxu0 0.0
    %8577 = vmatpush.msra.mxu0 0.0
    %8578 = vmatpush.msra.mxu0 0.0
    %8579 = vmatpush.msra.mxu0 0.0
    %8580 = vmatpush.msra.mxu0 0.0
    %8581 = vmatpush.msra.mxu0 0.0
    %8582 = vmatpush.msra.mxu0 %v8556
    %8583 = vmatmul.f32.gmra.mxu0 %v8565
    %v8584 = vpop.f32.mrf.mxu0
    %v8585 = vadd.f32 %v8562, %v8584
    %8586 = vdwg.mxu0
    %v8587 = vadd.f32 %v8585, %v8242
    %v8588 = vmax.f32 %v8587, 0.0
    %8589 = vrot.lane.b32.xlu0 %v8588, 127
    %v8590 = vpop.permute.xlu0 %8589
    %v8591 = vmax.f32 %v8588, %v8590
    %8592 = vrot.lane.b32.xlu0 %v8588, 120
    %v8593 = vpop.permute.xlu0 %8592
    %v8594 = vmax.f32 %v8591, %v8593
    %8595 = vrot.lane.b32.xlu0 %v8588, 119
    %v8596 = vpop.permute.xlu0 %8595
    %v8597 = vmax.f32 %v8594, %v8596
    %v8598 = vld [vmem:[#allocation4] sm:$0xff]
    %v8599 = vld [vmem:[#allocation4 + $0x8] sm:$0xff]
    %v8600 = vld [vmem:[#allocation4 + $0x10] sm:$0xff]
    %v8601 = vld [vmem:[#allocation4 + $0x18] sm:$0xff]
    %v8602 = vld [vmem:[#allocation4 + $0x20] sm:$0xff]
    %v8603 = vld [vmem:[#allocation4 + $0x28] sm:$0xff]
    %v8604 = vld [vmem:[#allocation4 + $0x30] sm:$0xff]
    %v8605 = vld [vmem:[#allocation4 + $0x38] sm:$0xff]
    %v8606 = vld [vmem:[#allocation4 + $0x40] sm:$0xff]
    %v8607 = vld [vmem:[#allocation4 + $0x48] sm:$0xff]
    %v8608 = vld [vmem:[#allocation4 + $0x50] sm:$0xff]
    %v8609 = vld [vmem:[#allocation4 + $0x58] sm:$0xff]
    %v8610 = vld [vmem:[#allocation4 + $0x60] sm:$0xff]
    %v8611 = vld [vmem:[#allocation4 + $0x68] sm:$0xff]
    %v8612 = vld [vmem:[#allocation4 + $0x70] sm:$0xff]
    %v8613 = vld [vmem:[#allocation4 + $0x78] sm:$0xff]
    %8614 = vmatpush.msra.mxu0 %v8613
    %8615 = vmatpush.msra.mxu0 %v8612
    %8616 = vmatpush.msra.mxu0 %v8611
    %8617 = vmatpush.msra.mxu0 %v8610
    %8618 = vmatpush.msra.mxu0 %v8609
    %8619 = vmatpush.msra.mxu0 %v8608
    %8620 = vmatpush.msra.mxu0 %v8607
    %8621 = vmatpush.msra.mxu0 %v8606
    %8622 = vmatpush.msra.mxu0 %v8605
    %8623 = vmatpush.msra.mxu0 %v8604
    %8624 = vmatpush.msra.mxu0 %v8603
    %8625 = vmatpush.msra.mxu0 %v8602
    %8626 = vmatpush.msra.mxu0 %v8601
    %8627 = vmatpush.msra.mxu0 %v8600
    %8628 = vmatpush.msra.mxu0 %v8599
    %8629 = vmatpush.msra.mxu0 %v8598
    %8630 = vmatmul.f32.gmra.mxu0 %v8597
    %v8631 = vpop.f32.mrf.mxu0
    %v8632 = vadd.f32 0.0, %v8631
    %8633 = vdwg.mxu0
    %v8634 = vld [vmem:[%s33] sm:$0xff]
    %v8635 = vld [vmem:[%s35] sm:$0xff]
    %8637 = vset.pattern.permute.xlu0 0
    %8638 = vperm.xlu0 %8637, %v8635
    %v8639 = vpop.permute.xlu0 %8638
    %v8642 = vsel %vm7071, %v8634, 0
    %8644 = vmatpush.msra.mxu0 0.0
    %8645 = vmatpush.msra.mxu0 0.0
    %8646 = vmatpush.msra.mxu0 0.0
    %8647 = vmatpush.msra.mxu0 0.0
    %8648 = vmatpush.msra.mxu0 0.0
    %8649 = vmatpush.msra.mxu0 0.0
    %8650 = vmatpush.msra.mxu0 0.0
    %8651 = vmatpush.msra.mxu0 0.0
    %8652 = vmatpush.msra.mxu0 0.0
    %8653 = vmatpush.msra.mxu0 0.0
    %8654 = vmatpush.msra.mxu0 0.0
    %8655 = vmatpush.msra.mxu0 0.0
    %8656 = vmatpush.msra.mxu0 0.0
    %8657 = vmatpush.msra.mxu0 0.0
    %8658 = vmatpush.msra.mxu0 0.0
    %8659 = vmatpush.msra.mxu0 %v8632
    %8660 = vmatmul.f32.gmra.mxu0 %v8642
    %v8661 = vpop.f32.mrf.mxu0
    %v8662 = vadd.f32 %v8639, %v8661
    %8663 = vdwg.mxu0
    %v8664 = vmax.f32 %v8662, 0.0
    %8665 = vrot.lane.b32.xlu0 %v8664, 5
    %v8666 = vpop.permute.xlu0 %8665
    %v8667 = vld [vmem:[%s41] sm:$0x1]
    %v8668 = vperm.slane %v8667, 0
    %v8669 = vmul.f32 %v8666, %v8668
    %v8670 = vld [vmem:[%s37] sm:$0xff]
    %8671 = vrot.lane.b32.xlu0 %v8664, 4
    %v8672 = vpop.permute.xlu0 %8671
    %v8673 = vld [vmem:[%s41 + $0x1] sm:$0x1]
    %v8674 = vperm.slane %v8673, 0
    %v8675 = vmul.f32 %v8672, %v8674
    %s8676 = scalar_lea.vmem %s37, 8
    %v8677 = vld [vmem:[%s8676] sm:$0xff]
    %v8679 = vsel %vm7071, %v8677, 0
    %8681 = vmatpush.msra.mxu0 0.0
    %8682 = vmatpush.msra.mxu0 0.0
    %8683 = vmatpush.msra.mxu0 0.0
    %8684 = vmatpush.msra.mxu0 0.0
    %8685 = vmatpush.msra.mxu0 0.0
    %8686 = vmatpush.msra.mxu0 0.0
    %8687 = vmatpush.msra.mxu0 0.0
    %8688 = vmatpush.msra.mxu0 0.0
    %8689 = vmatpush.msra.mxu0 0.0
    %8690 = vmatpush.msra.mxu0 0.0
    %8691 = vmatpush.msra.mxu0 0.0
    %8692 = vmatpush.msra.mxu0 0.0
    %8693 = vmatpush.msra.mxu0 0.0
    %8694 = vmatpush.msra.mxu0 0.0
    %8695 = vmatpush.msra.mxu0 0.0
    %8696 = vmatpush.msra.mxu0 %v8675
    %8697 = vmatmul.f32.gmra.mxu0 %v8679
    %v8698 = vpop.f32.mrf.mxu0
    %v8699 = vadd.f32 0.0, %v8698
    %8700 = vdwg.mxu0
    %v8702 = vsel %vm7071, %v8670, 0
    %8704 = vmatpush.msra.mxu0 0.0
    %8705 = vmatpush.msra.mxu0 0.0
    %8706 = vmatpush.msra.mxu0 0.0
    %8707 = vmatpush.msra.mxu0 0.0
    %8708 = vmatpush.msra.mxu0 0.0
    %8709 = vmatpush.msra.mxu0 0.0
    %8710 = vmatpush.msra.mxu0 0.0
    %8711 = vmatpush.msra.mxu0 0.0
    %8712 = vmatpush.msra.mxu0 0.0
    %8713 = vmatpush.msra.mxu0 0.0
    %8714 = vmatpush.msra.mxu0 0.0
    %8715 = vmatpush.msra.mxu0 0.0
    %8716 = vmatpush.msra.mxu0 0.0
    %8717 = vmatpush.msra.mxu0 0.0
    %8718 = vmatpush.msra.mxu0 0.0
    %8719 = vmatpush.msra.mxu0 %v8669
    %8720 = vmatmul.f32.gmra.mxu0 %v8702
    %v8721 = vpop.f32.mrf.mxu0
    %v8722 = vadd.f32 %v8699, %v8721
    %8723 = vdwg.mxu0
    %8724 = vrot.lane.b32.xlu0 %v8664, 3
    %v8725 = vpop.permute.xlu0 %8724
    %v8726 = vld [vmem:[%s41 + $0x2] sm:$0x1]
    %v8727 = vperm.slane %v8726, 0
    %v8728 = vmul.f32 %v8725, %v8727
    %s8729 = scalar_lea.vmem %s37, 16
    %v8730 = vld [vmem:[%s8729] sm:$0xff]
    %v8732 = vsel %vm7071, %v8730, 0
    %8734 = vmatpush.msra.mxu0 0.0
    %8735 = vmatpush.msra.mxu0 0.0
    %8736 = vmatpush.msra.mxu0 0.0
    %8737 = vmatpush.msra.mxu0 0.0
    %8738 = vmatpush.msra.mxu0 0.0
    %8739 = vmatpush.msra.mxu0 0.0
    %8740 = vmatpush.msra.mxu0 0.0
    %8741 = vmatpush.msra.mxu0 0.0
    %8742 = vmatpush.msra.mxu0 0.0
    %8743 = vmatpush.msra.mxu0 0.0
    %8744 = vmatpush.msra.mxu0 0.0
    %8745 = vmatpush.msra.mxu0 0.0
    %8746 = vmatpush.msra.mxu0 0.0
    %8747 = vmatpush.msra.mxu0 0.0
    %8748 = vmatpush.msra.mxu0 0.0
    %8749 = vmatpush.msra.mxu0 %v8728
    %8750 = vmatmul.f32.gmra.mxu0 %v8732
    %v8751 = vpop.f32.mrf.mxu0
    %v8752 = vadd.f32 0.0, %v8751
    %8753 = vdwg.mxu0
    %v8754 = vadd.f32 %v8722, %v8752
    %8755 = vrot.lane.b32.xlu0 %v8664, 1
    %v8756 = vpop.permute.xlu0 %8755
    %v8757 = vld [vmem:[%s41 + $0x3] sm:$0x1]
    %v8758 = vperm.slane %v8757, 0
    %v8759 = vmul.f32 %v8756, %v8758
    %s8760 = scalar_lea.vmem %s37, 24
    %v8761 = vld [vmem:[%s8760] sm:$0xff]
    %v8763 = vsel %vm7071, %v8761, 0
    %8765 = vmatpush.msra.mxu0 0.0
    %8766 = vmatpush.msra.mxu0 0.0
    %8767 = vmatpush.msra.mxu0 0.0
    %8768 = vmatpush.msra.mxu0 0.0
    %8769 = vmatpush.msra.mxu0 0.0
    %8770 = vmatpush.msra.mxu0 0.0
    %8771 = vmatpush.msra.mxu0 0.0
    %8772 = vmatpush.msra.mxu0 0.0
    %8773 = vmatpush.msra.mxu0 0.0
    %8774 = vmatpush.msra.mxu0 0.0
    %8775 = vmatpush.msra.mxu0 0.0
    %8776 = vmatpush.msra.mxu0 0.0
    %8777 = vmatpush.msra.mxu0 0.0
    %8778 = vmatpush.msra.mxu0 0.0
    %8779 = vmatpush.msra.mxu0 0.0
    %8780 = vmatpush.msra.mxu0 %v8759
    %8781 = vmatmul.f32.gmra.mxu0 %v8763
    %v8782 = vpop.f32.mrf.mxu0
    %v8783 = vadd.f32 0.0, %v8782
    %8784 = vdwg.mxu0
    %v8785 = vadd.f32 %v8754, %v8783
    %v8786 = vld [vmem:[%s41 + $0x4] sm:$0x1]
    %v8787 = vperm.slane %v8786, 0
    %v8788 = vmul.f32 %v8664, %v8787
    %s8789 = scalar_lea.vmem %s37, 32
    %v8790 = vld [vmem:[%s8789] sm:$0xff]
    %v8792 = vsel %vm7071, %v8790, 0
    %8794 = vmatpush.msra.mxu0 0.0
    %8795 = vmatpush.msra.mxu0 0.0
    %8796 = vmatpush.msra.mxu0 0.0
    %8797 = vmatpush.msra.mxu0 0.0
    %8798 = vmatpush.msra.mxu0 0.0
    %8799 = vmatpush.msra.mxu0 0.0
    %8800 = vmatpush.msra.mxu0 0.0
    %8801 = vmatpush.msra.mxu0 0.0
    %8802 = vmatpush.msra.mxu0 0.0
    %8803 = vmatpush.msra.mxu0 0.0
    %8804 = vmatpush.msra.mxu0 0.0
    %8805 = vmatpush.msra.mxu0 0.0
    %8806 = vmatpush.msra.mxu0 0.0
    %8807 = vmatpush.msra.mxu0 0.0
    %8808 = vmatpush.msra.mxu0 0.0
    %8809 = vmatpush.msra.mxu0 %v8788
    %8810 = vmatmul.f32.gmra.mxu0 %v8792
    %v8811 = vpop.f32.mrf.mxu0
    %v8812 = vadd.f32 0.0, %v8811
    %8813 = vdwg.mxu0
    %v8814 = vadd.f32 %v8785, %v8812
    %8815 = vrot.lane.b32.xlu0 %v8664, 127
    %v8816 = vpop.permute.xlu0 %8815
    %v8817 = vld [vmem:[%s41 + $0x5] sm:$0x1]
    %v8818 = vperm.slane %v8817, 0
    %v8819 = vmul.f32 %v8816, %v8818
    %s8820 = scalar_lea.vmem %s37, 40
    %v8821 = vld [vmem:[%s8820] sm:$0xff]
    %v8823 = vsel %vm7071, %v8821, 0
    %8825 = vmatpush.msra.mxu0 0.0
    %8826 = vmatpush.msra.mxu0 0.0
    %8827 = vmatpush.msra.mxu0 0.0
    %8828 = vmatpush.msra.mxu0 0.0
    %8829 = vmatpush.msra.mxu0 0.0
    %8830 = vmatpush.msra.mxu0 0.0
    %8831 = vmatpush.msra.mxu0 0.0
    %8832 = vmatpush.msra.mxu0 0.0
    %8833 = vmatpush.msra.mxu0 0.0
    %8834 = vmatpush.msra.mxu0 0.0
    %8835 = vmatpush.msra.mxu0 0.0
    %8836 = vmatpush.msra.mxu0 0.0
    %8837 = vmatpush.msra.mxu0 0.0
    %8838 = vmatpush.msra.mxu0 0.0
    %8839 = vmatpush.msra.mxu0 0.0
    %8840 = vmatpush.msra.mxu0 %v8819
    %8841 = vmatmul.f32.gmra.mxu0 %v8823
    %v8842 = vpop.f32.mrf.mxu0
    %v8843 = vadd.f32 0.0, %v8842
    %8844 = vdwg.mxu0
    %v8845 = vadd.f32 %v8814, %v8843
    %8846 = vrot.lane.b32.xlu0 %v8664, 125
    %v8847 = vpop.permute.xlu0 %8846
    %v8848 = vld [vmem:[%s41 + $0x6] sm:$0x1]
    %v8849 = vperm.slane %v8848, 0
    %v8850 = vmul.f32 %v8847, %v8849
    %s8851 = scalar_lea.vmem %s37, 48
    %v8852 = vld [vmem:[%s8851] sm:$0xff]
    %v8854 = vsel %vm7071, %v8852, 0
    %8856 = vmatpush.msra.mxu0 0.0
    %8857 = vmatpush.msra.mxu0 0.0
    %8858 = vmatpush.msra.mxu0 0.0
    %8859 = vmatpush.msra.mxu0 0.0
    %8860 = vmatpush.msra.mxu0 0.0
    %8861 = vmatpush.msra.mxu0 0.0
    %8862 = vmatpush.msra.mxu0 0.0
    %8863 = vmatpush.msra.mxu0 0.0
    %8864 = vmatpush.msra.mxu0 0.0
    %8865 = vmatpush.msra.mxu0 0.0
    %8866 = vmatpush.msra.mxu0 0.0
    %8867 = vmatpush.msra.mxu0 0.0
    %8868 = vmatpush.msra.mxu0 0.0
    %8869 = vmatpush.msra.mxu0 0.0
    %8870 = vmatpush.msra.mxu0 0.0
    %8871 = vmatpush.msra.mxu0 %v8850
    %8872 = vmatmul.f32.gmra.mxu0 %v8854
    %v8873 = vpop.f32.mrf.mxu0
    %v8874 = vadd.f32 0.0, %v8873
    %8875 = vdwg.mxu0
    %v8876 = vadd.f32 %v8845, %v8874
    %8877 = vrot.lane.b32.xlu0 %v8664, 124
    %v8878 = vpop.permute.xlu0 %8877
    %v8879 = vld [vmem:[%s41 + $0x7] sm:$0x1]
    %v8880 = vperm.slane %v8879, 0
    %v8881 = vmul.f32 %v8878, %v8880
    %s8882 = scalar_lea.vmem %s37, 56
    %v8883 = vld [vmem:[%s8882] sm:$0xff]
    %v8885 = vsel %vm7071, %v8883, 0
    %8887 = vmatpush.msra.mxu0 0.0
    %8888 = vmatpush.msra.mxu0 0.0
    %8889 = vmatpush.msra.mxu0 0.0
    %8890 = vmatpush.msra.mxu0 0.0
    %8891 = vmatpush.msra.mxu0 0.0
    %8892 = vmatpush.msra.mxu0 0.0
    %8893 = vmatpush.msra.mxu0 0.0
    %8894 = vmatpush.msra.mxu0 0.0
    %8895 = vmatpush.msra.mxu0 0.0
    %8896 = vmatpush.msra.mxu0 0.0
    %8897 = vmatpush.msra.mxu0 0.0
    %8898 = vmatpush.msra.mxu0 0.0
    %8899 = vmatpush.msra.mxu0 0.0
    %8900 = vmatpush.msra.mxu0 0.0
    %8901 = vmatpush.msra.mxu0 0.0
    %8902 = vmatpush.msra.mxu0 %v8881
    %8903 = vmatmul.f32.gmra.mxu0 %v8885
    %v8904 = vpop.f32.mrf.mxu0
    %v8905 = vadd.f32 0.0, %v8904
    %8906 = vdwg.mxu0
    %v8907 = vadd.f32 %v8876, %v8905
    %8908 = vrot.lane.b32.xlu0 %v8664, 123
    %v8909 = vpop.permute.xlu0 %8908
    %v8910 = vld [vmem:[%s41 + $0x8] sm:$0x1]
    %v8911 = vperm.slane %v8910, 0
    %v8912 = vmul.f32 %v8909, %v8911
    %s8913 = scalar_lea.vmem %s37, 64
    %v8914 = vld [vmem:[%s8913] sm:$0xff]
    %v8916 = vsel %vm7071, %v8914, 0
    %8918 = vmatpush.msra.mxu0 0.0
    %8919 = vmatpush.msra.mxu0 0.0
    %8920 = vmatpush.msra.mxu0 0.0
    %8921 = vmatpush.msra.mxu0 0.0
    %8922 = vmatpush.msra.mxu0 0.0
    %8923 = vmatpush.msra.mxu0 0.0
    %8924 = vmatpush.msra.mxu0 0.0
    %8925 = vmatpush.msra.mxu0 0.0
    %8926 = vmatpush.msra.mxu0 0.0
    %8927 = vmatpush.msra.mxu0 0.0
    %8928 = vmatpush.msra.mxu0 0.0
    %8929 = vmatpush.msra.mxu0 0.0
    %8930 = vmatpush.msra.mxu0 0.0
    %8931 = vmatpush.msra.mxu0 0.0
    %8932 = vmatpush.msra.mxu0 0.0
    %8933 = vmatpush.msra.mxu0 %v8912
    %8934 = vmatmul.f32.gmra.mxu0 %v8916
    %v8935 = vpop.f32.mrf.mxu0
    %v8936 = vadd.f32 0.0, %v8935
    %8937 = vdwg.mxu0
    %v8938 = vadd.f32 %v8907, %v8936
    %v8939 = vld [vmem:[%s39] sm:$0xff]
    %8941 = vset.pattern.permute.xlu0 0
    %8942 = vperm.xlu0 %8941, %v8939
    %v8943 = vpop.permute.xlu0 %8942
    %v8945 = vadd.f32 %v8938, %v8943
    %v8946 = vmax.f32 %v8945, 0.0
    %v8947 = vld [vmem:[%s43] sm:$0xff]
    %v8948 = vld [vmem:[%s45] sm:$0xff]
    %8950 = vset.pattern.permute.xlu0 0
    %8951 = vperm.xlu0 %8950, %v8948
    %v8952 = vpop.permute.xlu0 %8951
    %v8955 = vsel %vm7071, %v8947, 0
    %8957 = vmatpush.msra.mxu0 0.0
    %8958 = vmatpush.msra.mxu0 0.0
    %8959 = vmatpush.msra.mxu0 0.0
    %8960 = vmatpush.msra.mxu0 0.0
    %8961 = vmatpush.msra.mxu0 0.0
    %8962 = vmatpush.msra.mxu0 0.0
    %8963 = vmatpush.msra.mxu0 0.0
    %8964 = vmatpush.msra.mxu0 0.0
    %8965 = vmatpush.msra.mxu0 0.0
    %8966 = vmatpush.msra.mxu0 0.0
    %8967 = vmatpush.msra.mxu0 0.0
    %8968 = vmatpush.msra.mxu0 0.0
    %8969 = vmatpush.msra.mxu0 0.0
    %8970 = vmatpush.msra.mxu0 0.0
    %8971 = vmatpush.msra.mxu0 0.0
    %8972 = vmatpush.msra.mxu0 %v8946
    %8973 = vmatmul.f32.gmra.mxu0 %v8955
    %v8974 = vpop.f32.mrf.mxu0
    %v8975 = vadd.f32 %v8952, %v8974
    %8976 = vdwg.mxu0
    %v8977 = vadd.f32 %v8975, %v8632
    %v8978 = vld [vmem:[%s47] sm:$0xff]
    %v8979 = vld [vmem:[%s47 + $0x8] sm:$0xff]
    %v8980 = vld [vmem:[%s49] sm:$0xff]
    %v8981 = vld [vmem:[%s49 + $0x8] sm:$0xff]
    %8983 = vset.pattern.permute.xlu0 0
    %8984 = vperm.xlu0 %8983, %v8980
    %v8985 = vpop.permute.xlu0 %8984
    %8988 = vset.pattern.permute.xlu0 0
    %8989 = vperm.xlu0 %8988, %v8981
    %v8990 = vpop.permute.xlu0 %8989
    %v8993 = vsel %vm7071, %v8978, 0
    %v8996 = vsel %vm7071, %v8979, 0
    %8998 = vmatpush.msra.mxu0 0.0
    %8999 = vmatpush.msra.mxu0 0.0
    %9000 = vmatpush.msra.mxu0 0.0
    %9001 = vmatpush.msra.mxu0 0.0
    %9002 = vmatpush.msra.mxu0 0.0
    %9003 = vmatpush.msra.mxu0 0.0
    %9004 = vmatpush.msra.mxu0 0.0
    %9005 = vmatpush.msra.mxu0 0.0
    %9006 = vmatpush.msra.mxu0 0.0
    %9007 = vmatpush.msra.mxu0 0.0
    %9008 = vmatpush.msra.mxu0 0.0
    %9009 = vmatpush.msra.mxu0 0.0
    %9010 = vmatpush.msra.mxu0 0.0
    %9011 = vmatpush.msra.mxu0 0.0
    %9012 = vmatpush.msra.mxu0 0.0
    %9013 = vmatpush.msra.mxu0 %v8977
    %9014 = vmatmul.f32.gmra.mxu0 %v8993
    %v9015 = vpop.f32.mrf.mxu0
    %v9016 = vadd.f32 %v8985, %v9015
    %9017 = vmatmul.f32.gmra.mxu0 %v8996
    %v9018 = vpop.f32.mrf.mxu0
    %v9019 = vadd.f32 %v8990, %v9018
    %9020 = vdwg.mxu0
    %v9021 = vmax.f32 %v9016, 0.0
    %v9022 = vmax.f32 %v9019, 0.0
    %9023 = vrot.lane.b32.xlu0 %v9021, 127
    %v9024 = vpop.permute.xlu0 %9023
    %9025 = vrot.lane.b32.xlu0 %v9022, 127
    %v9026 = vpop.permute.xlu0 %9025
    %v9027 = vmax.f32 %v9021, %v9024
    %v9028 = vmax.f32 %v9022, %v9026
    %9029 = vrot.lane.b32.xlu0 %v9021, 124
    %v9030 = vpop.permute.xlu0 %9029
    %9031 = vrot.lane.b32.xlu0 %v9022, 124
    %v9032 = vpop.permute.xlu0 %9031
    %v9033 = vmax.f32 %v9027, %v9030
    %v9034 = vmax.f32 %v9028, %v9032
    %9035 = vrot.lane.b32.xlu0 %v9021, 123
    %v9036 = vpop.permute.xlu0 %9035
    %9037 = vrot.lane.b32.xlu0 %v9022, 123
    %v9038 = vpop.permute.xlu0 %9037
    %v9039 = vmax.f32 %v9033, %v9036
    %v9040 = vmax.f32 %v9034, %v9038
    %v9041 = vld [vmem:[%s51] sm:$0xff]
    %v9042 = vld [vmem:[%s51 + $0x8] sm:$0xff]
    %v9043 = vld [vmem:[%s51 + $0x10] sm:$0xff]
    %v9044 = vld [vmem:[%s51 + $0x18] sm:$0xff]
    %v9045 = vld [vmem:[%s51 + $0x20] sm:$0xff]
    %v9046 = vld [vmem:[%s51 + $0x28] sm:$0xff]
    %v9047 = vld [vmem:[%s51 + $0x30] sm:$0xff]
    %v9048 = vld [vmem:[%s51 + $0x38] sm:$0xff]
    %v9049 = vld [vmem:[%s51 + $0x40] sm:$0xff]
    %v9050 = vld [vmem:[%s51 + $0x48] sm:$0xff]
    %v9051 = vld [vmem:[%s51 + $0x50] sm:$0xff]
    %v9052 = vld [vmem:[%s51 + $0x58] sm:$0xff]
    %v9053 = vld [vmem:[%s51 + $0x60] sm:$0xff]
    %v9054 = vld [vmem:[%s51 + $0x68] sm:$0xff]
    %v9055 = vld [vmem:[%s51 + $0x70] sm:$0xff]
    %v9056 = vld [vmem:[%s51 + $0x78] sm:$0xff]
    %9057 = vmatpush.msra.mxu0 %v9056
    %9058 = vmatpush.msra.mxu0 %v9055
    %9059 = vmatpush.msra.mxu0 %v9054
    %9060 = vmatpush.msra.mxu0 %v9053
    %9061 = vmatpush.msra.mxu0 %v9052
    %9062 = vmatpush.msra.mxu0 %v9051
    %9063 = vmatpush.msra.mxu0 %v9050
    %9064 = vmatpush.msra.mxu0 %v9049
    %9065 = vmatpush.msra.mxu0 %v9048
    %9066 = vmatpush.msra.mxu0 %v9047
    %9067 = vmatpush.msra.mxu0 %v9046
    %9068 = vmatpush.msra.mxu0 %v9045
    %9069 = vmatpush.msra.mxu0 %v9044
    %9070 = vmatpush.msra.mxu0 %v9043
    %9071 = vmatpush.msra.mxu0 %v9042
    %9072 = vmatpush.msra.mxu0 %v9041
    %9073 = vmatmul.f32.gmra.mxu0 %v9039
    %v9074 = vpop.f32.mrf.mxu0
    %v9075 = vadd.f32 0.0, %v9074
    %9076 = vmatmul.f32.gmra.mxu0 %v9040
    %v9077 = vpop.f32.mrf.mxu0
    %v9078 = vadd.f32 0.0, %v9077
    %9079 = vdwg.mxu0
    %v9080 = vld [vmem:[%s53] sm:$0xff]
    %v9081 = vld [vmem:[%s53 + $0x8] sm:$0xff]
    %v9082 = vld [vmem:[%s53 + $0x10] sm:$0xff]
    %v9083 = vld [vmem:[%s53 + $0x18] sm:$0xff]
    %v9084 = vld [vmem:[%s53 + $0x20] sm:$0xff]
    %v9085 = vld [vmem:[%s53 + $0x28] sm:$0xff]
    %v9086 = vld [vmem:[%s53 + $0x30] sm:$0xff]
    %v9087 = vld [vmem:[%s53 + $0x38] sm:$0xff]
    %v9088 = vld [vmem:[%s53 + $0x40] sm:$0xff]
    %v9089 = vld [vmem:[%s53 + $0x48] sm:$0xff]
    %v9090 = vld [vmem:[%s53 + $0x50] sm:$0xff]
    %v9091 = vld [vmem:[%s53 + $0x58] sm:$0xff]
    %v9092 = vld [vmem:[%s53 + $0x60] sm:$0xff]
    %v9093 = vld [vmem:[%s53 + $0x68] sm:$0xff]
    %v9094 = vld [vmem:[%s53 + $0x70] sm:$0xff]
    %v9095 = vld [vmem:[%s53 + $0x78] sm:$0xff]
    %9096 = vmatpush.msra.mxu0 %v9095
    %9097 = vmatpush.msra.mxu0 %v9094
    %9098 = vmatpush.msra.mxu0 %v9093
    %9099 = vmatpush.msra.mxu0 %v9092
    %9100 = vmatpush.msra.mxu0 %v9091
    %9101 = vmatpush.msra.mxu0 %v9090
    %9102 = vmatpush.msra.mxu0 %v9089
    %9103 = vmatpush.msra.mxu0 %v9088
    %9104 = vmatpush.msra.mxu0 %v9087
    %9105 = vmatpush.msra.mxu0 %v9086
    %9106 = vmatpush.msra.mxu0 %v9085
    %9107 = vmatpush.msra.mxu0 %v9084
    %9108 = vmatpush.msra.mxu0 %v9083
    %9109 = vmatpush.msra.mxu0 %v9082
    %9110 = vmatpush.msra.mxu0 %v9081
    %9111 = vmatpush.msra.mxu0 %v9080
    %9112 = vmatmul.f32.gmra.mxu0 %v9075
    %v9113 = vpop.f32.mrf.mxu0
    %v9114 = vadd.f32 0.0, %v9113
    %9115 = vmatmul.f32.gmra.mxu0 %v9078
    %v9116 = vpop.f32.mrf.mxu0
    %v9117 = vadd.f32 0.0, %v9116
    %9118 = vdwg.mxu0
    %s9119 = scalar_lea.vmem %s53, 128
    %v9120 = vld [vmem:[%s9119] sm:$0xff]
    %v9121 = vld [vmem:[%s9119 + $0x8] sm:$0xff]
    %v9122 = vld [vmem:[%s9119 + $0x10] sm:$0xff]
    %v9123 = vld [vmem:[%s9119 + $0x18] sm:$0xff]
    %v9124 = vld [vmem:[%s9119 + $0x20] sm:$0xff]
    %v9125 = vld [vmem:[%s9119 + $0x28] sm:$0xff]
    %v9126 = vld [vmem:[%s9119 + $0x30] sm:$0xff]
    %v9127 = vld [vmem:[%s9119 + $0x38] sm:$0xff]
    %v9128 = vld [vmem:[%s9119 + $0x40] sm:$0xff]
    %v9129 = vld [vmem:[%s9119 + $0x48] sm:$0xff]
    %v9130 = vld [vmem:[%s9119 + $0x50] sm:$0xff]
    %v9131 = vld [vmem:[%s9119 + $0x58] sm:$0xff]
    %v9132 = vld [vmem:[%s9119 + $0x60] sm:$0xff]
    %v9133 = vld [vmem:[%s9119 + $0x68] sm:$0xff]
    %v9134 = vld [vmem:[%s9119 + $0x70] sm:$0xff]
    %v9135 = vld [vmem:[%s9119 + $0x78] sm:$0xff]
    %9136 = vmatpush.msra.mxu0 %v9135
    %9137 = vmatpush.msra.mxu0 %v9134
    %9138 = vmatpush.msra.mxu0 %v9133
    %9139 = vmatpush.msra.mxu0 %v9132
    %9140 = vmatpush.msra.mxu0 %v9131
    %9141 = vmatpush.msra.mxu0 %v9130
    %9142 = vmatpush.msra.mxu0 %v9129
    %9143 = vmatpush.msra.mxu0 %v9128
    %9144 = vmatpush.msra.mxu0 %v9127
    %9145 = vmatpush.msra.mxu0 %v9126
    %9146 = vmatpush.msra.mxu0 %v9125
    %9147 = vmatpush.msra.mxu0 %v9124
    %9148 = vmatpush.msra.mxu0 %v9123
    %9149 = vmatpush.msra.mxu0 %v9122
    %9150 = vmatpush.msra.mxu0 %v9121
    %9151 = vmatpush.msra.mxu0 %v9120
    %9152 = vmatmul.f32.gmra.mxu0 %v9075
    %v9153 = vpop.f32.mrf.mxu0
    %v9154 = vadd.f32 0.0, %v9153
    %9155 = vmatmul.f32.gmra.mxu0 %v9078
    %v9156 = vpop.f32.mrf.mxu0
    %v9157 = vadd.f32 0.0, %v9156
    %9158 = vdwg.mxu0
    %v9159 = vmax.f32 %v9114, %v9154
    %v9160 = vmax.f32 %v9117, %v9157
    %s9161 = scalar_lea.vmem %s53, 256
    %v9162 = vld [vmem:[%s9161] sm:$0xff]
    %v9163 = vld [vmem:[%s9161 + $0x8] sm:$0xff]
    %v9164 = vld [vmem:[%s9161 + $0x10] sm:$0xff]
    %v9165 = vld [vmem:[%s9161 + $0x18] sm:$0xff]
    %v9166 = vld [vmem:[%s9161 + $0x20] sm:$0xff]
    %v9167 = vld [vmem:[%s9161 + $0x28] sm:$0xff]
    %v9168 = vld [vmem:[%s9161 + $0x30] sm:$0xff]
    %v9169 = vld [vmem:[%s9161 + $0x38] sm:$0xff]
    %v9170 = vld [vmem:[%s9161 + $0x40] sm:$0xff]
    %v9171 = vld [vmem:[%s9161 + $0x48] sm:$0xff]
    %v9172 = vld [vmem:[%s9161 + $0x50] sm:$0xff]
    %v9173 = vld [vmem:[%s9161 + $0x58] sm:$0xff]
    %v9174 = vld [vmem:[%s9161 + $0x60] sm:$0xff]
    %v9175 = vld [vmem:[%s9161 + $0x68] sm:$0xff]
    %v9176 = vld [vmem:[%s9161 + $0x70] sm:$0xff]
    %v9177 = vld [vmem:[%s9161 + $0x78] sm:$0xff]
    %9178 = vmatpush.msra.mxu0 %v9177
    %9179 = vmatpush.msra.mxu0 %v9176
    %9180 = vmatpush.msra.mxu0 %v9175
    %9181 = vmatpush.msra.mxu0 %v9174
    %9182 = vmatpush.msra.mxu0 %v9173
    %9183 = vmatpush.msra.mxu0 %v9172
    %9184 = vmatpush.msra.mxu0 %v9171
    %9185 = vmatpush.msra.mxu0 %v9170
    %9186 = vmatpush.msra.mxu0 %v9169
    %9187 = vmatpush.msra.mxu0 %v9168
    %9188 = vmatpush.msra.mxu0 %v9167
    %9189 = vmatpush.msra.mxu0 %v9166
    %9190 = vmatpush.msra.mxu0 %v9165
    %9191 = vmatpush.msra.mxu0 %v9164
    %9192 = vmatpush.msra.mxu0 %v9163
    %9193 = vmatpush.msra.mxu0 %v9162
    %9194 = vmatmul.f32.gmra.mxu0 %v9075
    %v9195 = vpop.f32.mrf.mxu0
    %v9196 = vadd.f32 0.0, %v9195
    %9197 = vmatmul.f32.gmra.mxu0 %v9078
    %v9198 = vpop.f32.mrf.mxu0
    %v9199 = vadd.f32 0.0, %v9198
    %9200 = vdwg.mxu0
    %v9201 = vmax.f32 %v9159, %v9196
    %v9202 = vmax.f32 %v9160, %v9199
    %s9203 = scalar_lea.vmem %s53, 384
    %v9204 = vld [vmem:[%s9203] sm:$0xff]
    %v9205 = vld [vmem:[%s9203 + $0x8] sm:$0xff]
    %v9206 = vld [vmem:[%s9203 + $0x10] sm:$0xff]
    %v9207 = vld [vmem:[%s9203 + $0x18] sm:$0xff]
    %v9208 = vld [vmem:[%s9203 + $0x20] sm:$0xff]
    %v9209 = vld [vmem:[%s9203 + $0x28] sm:$0xff]
    %v9210 = vld [vmem:[%s9203 + $0x30] sm:$0xff]
    %v9211 = vld [vmem:[%s9203 + $0x38] sm:$0xff]
    %v9212 = vld [vmem:[%s9203 + $0x40] sm:$0xff]
    %v9213 = vld [vmem:[%s9203 + $0x48] sm:$0xff]
    %v9214 = vld [vmem:[%s9203 + $0x50] sm:$0xff]
    %v9215 = vld [vmem:[%s9203 + $0x58] sm:$0xff]
    %v9216 = vld [vmem:[%s9203 + $0x60] sm:$0xff]
    %v9217 = vld [vmem:[%s9203 + $0x68] sm:$0xff]
    %v9218 = vld [vmem:[%s9203 + $0x70] sm:$0xff]
    %v9219 = vld [vmem:[%s9203 + $0x78] sm:$0xff]
    %9220 = vmatpush.msra.mxu0 %v9219
    %9221 = vmatpush.msra.mxu0 %v9218
    %9222 = vmatpush.msra.mxu0 %v9217
    %9223 = vmatpush.msra.mxu0 %v9216
    %9224 = vmatpush.msra.mxu0 %v9215
    %9225 = vmatpush.msra.mxu0 %v9214
    %9226 = vmatpush.msra.mxu0 %v9213
    %9227 = vmatpush.msra.mxu0 %v9212
    %9228 = vmatpush.msra.mxu0 %v9211
    %9229 = vmatpush.msra.mxu0 %v9210
    %9230 = vmatpush.msra.mxu0 %v9209
    %9231 = vmatpush.msra.mxu0 %v9208
    %9232 = vmatpush.msra.mxu0 %v9207
    %9233 = vmatpush.msra.mxu0 %v9206
    %9234 = vmatpush.msra.mxu0 %v9205
    %9235 = vmatpush.msra.mxu0 %v9204
    %9236 = vmatmul.f32.gmra.mxu0 %v9075
    %v9237 = vpop.f32.mrf.mxu0
    %v9238 = vadd.f32 0.0, %v9237
    %9239 = vmatmul.f32.gmra.mxu0 %v9078
    %v9240 = vpop.f32.mrf.mxu0
    %v9241 = vadd.f32 0.0, %v9240
    %9242 = vdwg.mxu0
    %v9243 = vmax.f32 %v9201, %v9238
    %v9244 = vmax.f32 %v9202, %v9241
    %v9245 = vld [vmem:[%s55] sm:$0xff]
    %v9246 = vld [vmem:[%s55 + $0x8] sm:$0xff]
    %v9247 = vld [vmem:[%s55 + $0x10] sm:$0xff]
    %v9248 = vld [vmem:[%s55 + $0x18] sm:$0xff]
    %v9249 = vld [vmem:[%s57] sm:$0xff]
    %v9250 = vld [vmem:[%s57 + $0x8] sm:$0xff]
    %v9251 = vld [vmem:[%s57 + $0x10] sm:$0xff]
    %v9252 = vld [vmem:[%s57 + $0x18] sm:$0xff]
    %9254 = vset.pattern.permute.xlu0 0
    %9255 = vperm.xlu0 %9254, %v9249
    %v9256 = vpop.permute.xlu0 %9255
    %9259 = vset.pattern.permute.xlu0 0
    %9260 = vperm.xlu0 %9259, %v9250
    %v9261 = vpop.permute.xlu0 %9260
    %9264 = vset.pattern.permute.xlu0 0
    %9265 = vperm.xlu0 %9264, %v9251
    %v9266 = vpop.permute.xlu0 %9265
    %9269 = vset.pattern.permute.xlu0 0
    %9270 = vperm.xlu0 %9269, %v9252
    %v9271 = vpop.permute.xlu0 %9270
    %vm9273 = vcmask 130048
    %v9275 = vsel %vm9273, %v9245, 0
    %v9278 = vsel %vm9273, %v9246, 0
    %v9281 = vsel %vm9273, %v9247, 0
    %v9284 = vsel %vm9273, %v9248, 0
    %9286 = vmatpush.msra.mxu0 0.0
    %9287 = vmatpush.msra.mxu0 0.0
    %9288 = vmatpush.msra.mxu0 0.0
    %9289 = vmatpush.msra.mxu0 0.0
    %9290 = vmatpush.msra.mxu0 0.0
    %9291 = vmatpush.msra.mxu0 0.0
    %9292 = vmatpush.msra.mxu0 0.0
    %9293 = vmatpush.msra.mxu0 0.0
    %9294 = vmatpush.msra.mxu0 0.0
    %9295 = vmatpush.msra.mxu0 0.0
    %9296 = vmatpush.msra.mxu0 0.0
    %9297 = vmatpush.msra.mxu0 0.0
    %9298 = vmatpush.msra.mxu0 0.0
    %9299 = vmatpush.msra.mxu0 0.0
    %9300 = vmatpush.msra.mxu0 %v9244
    %9301 = vmatpush.msra.mxu0 %v9243
    %9302 = vmatmul.f32.gmra.mxu0 %v9275
    %v9303 = vpop.f32.mrf.mxu0
    %v9304 = vadd.f32 %v9256, %v9303
    %9305 = vmatmul.f32.gmra.mxu0 %v9278
    %v9306 = vpop.f32.mrf.mxu0
    %v9307 = vadd.f32 %v9261, %v9306
    %9308 = vmatmul.f32.gmra.mxu0 %v9281
    %v9309 = vpop.f32.mrf.mxu0
    %v9310 = vadd.f32 %v9266, %v9309
    %9311 = vmatmul.f32.gmra.mxu0 %v9284
    %v9312 = vpop.f32.mrf.mxu0
    %v9313 = vadd.f32 %v9271, %v9312
    %9314 = vdwg.mxu0
    %v9315 = vmax.f32 %v9304, 0.0
    %v9316 = vmax.f32 %v9307, 0.0
    %v9317 = vmax.f32 %v9310, 0.0
    %v9318 = vmax.f32 %v9313, 0.0
    %v9319 = vld [vmem:[%s59] sm:$0xff]
    %v9320 = vld [vmem:[%s59 + $0x8] sm:$0xff]
    %v9321 = vld [vmem:[%s61] sm:$0xff]
    %v9322 = vld [vmem:[%s61 + $0x8] sm:$0xff]
    %9324 = vset.pattern.permute.xlu0 0
    %9325 = vperm.xlu0 %9324, %v9321
    %v9326 = vpop.permute.xlu0 %9325
    %9329 = vset.pattern.permute.xlu0 0
    %9330 = vperm.xlu0 %9329, %v9322
    %v9331 = vpop.permute.xlu0 %9330
    %vm9333 = vcmask 261120
    %v9335 = vsel %vm9333, %v9319, 0
    %v9338 = vsel %vm9333, %v9320, 0
    %9340 = vmatpush.msra.mxu0 0.0
    %9341 = vmatpush.msra.mxu0 0.0
    %9342 = vmatpush.msra.mxu0 0.0
    %9343 = vmatpush.msra.mxu0 0.0
    %9344 = vmatpush.msra.mxu0 0.0
    %9345 = vmatpush.msra.mxu0 0.0
    %9346 = vmatpush.msra.mxu0 0.0
    %9347 = vmatpush.msra.mxu0 0.0
    %9348 = vmatpush.msra.mxu0 0.0
    %9349 = vmatpush.msra.mxu0 0.0
    %9350 = vmatpush.msra.mxu0 0.0
    %9351 = vmatpush.msra.mxu0 0.0
    %9352 = vmatpush.msra.mxu0 %v9318
    %9353 = vmatpush.msra.mxu0 %v9317
    %9354 = vmatpush.msra.mxu0 %v9316
    %9355 = vmatpush.msra.mxu0 %v9315
    %9356 = vmatmul.f32.gmra.mxu0 %v9335
    %v9357 = vpop.f32.mrf.mxu0
    %v9358 = vadd.f32 %v9326, %v9357
    %9359 = vmatmul.f32.gmra.mxu0 %v9338
    %v9360 = vpop.f32.mrf.mxu0
    %v9361 = vadd.f32 %v9331, %v9360
    %9362 = vdwg.mxu0
    %vm9363 = vcmask 15360
    %9364 = vst.msk [vmem:[%s63] sm:$0xff] %vm9363, %v9358
    %9365 = vst.msk [vmem:[%s63 + $0x8] sm:$0xff] %vm9363, %v9361
    // Predicated region
    $region134: #{fused_resnet_forward.1} parent=1 // pred_check
      _
    $region135: #{fused_resnet_forward.1} parent=1 // pred_check_branch
      %9367 = sbr.rel (0) target = $region137
    $region136: #{fused_resnet_forward.1} parent=1 // pred_region
      _
    $region137: #{fused_resnet_forward.1} parent=1 // pred_fallthru
      _
    // Predicated region
    $region138: #{fused_resnet_forward.1} parent=1 // pred_check
      _
    $region139: #{fused_resnet_forward.1} parent=1 // pred_check_branch
      %9369 = sbr.rel (0) target = $region141
    $region140: #{fused_resnet_forward.1} parent=1 // pred_region
      _
    $region141: #{fused_resnet_forward.1} parent=1 // pred_fallthru
      _
    %9370 = vsyncpa [#allocation3], 1
    %9371 = vsyncpa [#allocation5], 1

</llo_original>
